<compile_context>
chip_gen: v6e
topology: v6e:2x2x1
jax: 0.10.0
libtpu: 0.0.40
codegen_flags: <defaults>
</compile_context>

<pallas_src>
import functools

import jax
import jax.numpy as jnp
from jax.experimental import pallas as pl
from jax.experimental.pallas import tpu as pltpu

# --- scaled-down "real" dimensions (analogues of the original MGN sizes) -------------
C1 = 16            # backbone stem channels
CB = 32            # backbone output channels   (analogue of 1024)
CF = 64            # branch output channels     (analogue of 2048)
FEATS = 32         # reduction feature size     (analogue of 256)
NUM_CLASSES = 751  # identical to the module

# --- lane-dense padded dimensions (zeros beyond the real extent) ----------------------
CPAD = 128         # every intermediate feature map carries 128 channels
FPAD = 128         # reduction features padded 32 -> 128
NC_PAD = 768       # classifier outputs padded 751 -> 768 (multiple of 128)
K_STEM_PAD = 128   # im2col K of the stem conv: 3*3*3 = 27 -> 128


# =====================================================================================
# Conv matmul kernel:  o = relu((x @ w) * scale + shift)   (BN folded into the affine)
# =====================================================================================
def _conv_matmul_kernel(x_ref, w_ref, s_ref, b_ref, o_ref):
    y = jnp.dot(x_ref[...], w_ref[...], preferred_element_type=jnp.float32)
    y = y * s_ref[...] + b_ref[...]
    o_ref[...] = jnp.maximum(y, 0.0).astype(o_ref.dtype)


def matmul_bn_relu(x, w, scale, shift):
    """x: [M, K] bf16, w: [K, N] bf16, scale/shift: [1, N] f32 -> [M, N] f32.

    Single grid step unless M is large enough to split into 2 parallel steps
    (keeps both v7x TensorCores busy on the biggest matmul; w/scale/shift block
    indices are constant so they are not re-DMA'd between steps)."""
    M, K = x.shape
    K2, N = w.shape
    assert K == K2
    if M >= 256 and (M // 2) % 16 == 0:
        tm = M // 2
    else:
        tm = M
    assert M % tm == 0
    grid = (M // tm,)
    return pl.pallas_call(
        _conv_matmul_kernel,
        out_shape=jax.ShapeDtypeStruct((M, N), jnp.float32),
        grid=grid,
        in_specs=[
            pl.BlockSpec((tm, K), lambda i: (i, 0)),
            pl.BlockSpec((K, N), lambda i: (0, 0)),
            pl.BlockSpec((1, N), lambda i: (0, 0)),
            pl.BlockSpec((1, N), lambda i: (0, 0)),
        ],
        out_specs=pl.BlockSpec((tm, N), lambda i: (i, 0)),
        compiler_params=pltpu.CompilerParams(dimension_semantics=("parallel",)),
    )(x, w, scale, shift)


def conv_bn_relu(x, w, scale, shift, ksize, stride, k_pad=None):
    """x: NHWC [B, H, W, Cin].  w: [K_pad, N_pad] bf16, rows ordered tap-major /
    channel-minor (matching the im2col layout below), zero rows/cols beyond the real
    extent.  Returns NHWC f32 [B, Ho, Wo, N_pad]."""
    B, H, W, C = x.shape
    pad = ksize // 2
    xp = jnp.pad(x, ((0, 0), (pad, pad), (pad, pad), (0, 0)))
    Ho = (H + 2 * pad - ksize) // stride + 1
    Wo = (W + 2 * pad - ksize) // stride + 1
    cols = []
    for di in range(ksize):
        for dj in range(ksize):
            cols.append(xp[:, di:di + (Ho - 1) * stride + 1:stride,
                              dj:dj + (Wo - 1) * stride + 1:stride, :])
    patches = jnp.concatenate(cols, axis=-1).reshape(B * Ho * Wo, ksize * ksize * C)
    if k_pad is not None and k_pad > patches.shape[1]:
        patches = jnp.pad(patches, ((0, 0), (0, k_pad - patches.shape[1])))
    # bf16 MXU inputs, f32 accumulate + f32 BN/ReLU epilogue (halves x/w DMA traffic).
    y = matmul_bn_relu(patches.astype(jnp.bfloat16), w.astype(jnp.bfloat16), scale, shift)
    return y.reshape(B, Ho, Wo, -1)


# =====================================================================================
# Fused MGN head: 5 maxpools + batched 8x reduction matmul + 8 FC heads in ONE kernel
# =====================================================================================
def _head_kernel(p1_ref, p2_ref, p3_ref, rw_ref, rs_ref, rb_ref, fw_ref, fb_ref,
                 feats_ref, logits_ref, *, batch):
    B = batch

    def gmax(v):  # [B, h, w, C] -> [B, C]   (MaxPool2d over the full h x w window)
        return jnp.max(jnp.max(v, axis=2), axis=1)

    p1 = p1_ref[...]            # [B, 12, 4, CPAD]
    p2 = p2_ref[...]            # [B, 24, 8, CPAD]
    p3 = p3_ref[...]            # [B, 24, 8, CPAD]

    pooled = [
        gmax(p1),               # zg_p1 : MaxPool2d((12, 4))
        gmax(p2),               # zg_p2 : MaxPool2d((24, 8))
        gmax(p3),               # zg_p3 : MaxPool2d((24, 8))
        gmax(p2[:, 0:12]),      # z0_p2 : MaxPool2d((12, 8)) stripe 0
        gmax(p2[:, 12:24]),     # z1_p2 : stripe 1
        gmax(p3[:, 0:8]),       # z0_p3 : MaxPool2d((8, 8)) stripe 0
        gmax(p3[:, 8:16]),      # z1_p3 : stripe 1
        gmax(p3[:, 16:24]),     # z2_p3 : stripe 2
    ]
    # Batch the 8 shared reductions into a single [8*B, CPAD] @ [CPAD, FPAD] matmul.
    z = jnp.concatenate(pooled, axis=0)                            # [8*B, CPAD]
    f = jnp.dot(z, rw_ref[...], preferred_element_type=jnp.float32)
    f = jnp.maximum(f * rs_ref[...] + rb_ref[...], 0.0)            # [8*B, FPAD]
    feats_ref[...] = f

    # 8 classifier heads, all VMEM-resident (unrolled; tiny lane-dense MXU pushes).
    for h in range(8):
        logits_ref[h] = (
            jnp.dot(f[h * B:(h + 1) * B, :], fw_ref[h],
                    preferred_element_type=jnp.float32) + fb_ref[h])


def mgn_head(p1, p2, p3, prm):
    B = p1.shape[0]
    return pl.pallas_call(
        functools.partial(_head_kernel, batch=B),
        out_shape=(jax.ShapeDtypeStruct((8 * B, FPAD), jnp.float32),
                   jax.ShapeDtypeStruct((8, B, NC_PAD), jnp.float32)),
    )(p1, p2, p3, prm["red_w"], prm["red_s"], prm["red_b"], prm["fc_w"], prm["fc_b"])


# =====================================================================================
# Parameters (deterministic, synthetic), padded to lane-dense shapes
# =====================================================================================
def init_params(key):
    keys = list(jax.random.split(key, 20))
    it = iter(keys)

    def nrm(shape, s=0.05):
        return jax.random.normal(next(it), shape, jnp.float32) * s

    def conv_w(cin_real, cout_real, ksize):
        """Real [k*k*cin_real, cout_real] weights embedded into a zero-padded
        [k*k*CPAD, CPAD] matrix with rows ordered (tap, channel) to match im2col."""
        w = nrm((ksize * ksize, cin_real, cout_real))
        wp = jnp.zeros((ksize * ksize, CPAD, CPAD), jnp.float32)
        wp = wp.at[:, :cin_real, :cout_real].set(w)
        return wp.reshape(ksize * ksize * CPAD, CPAD).astype(jnp.bfloat16)

    def bn(c_real, c_pad):
        # BN folded to eval-mode affine: scale ~ N(1, 0.02) on real channels, shift = 0.
        s = jnp.ones((1, c_pad), jnp.float32)
        s = s.at[:, :c_real].set(
            1.0 + 0.02 * jax.random.normal(next(it), (1, c_real), jnp.float32))
        return s, jnp.zeros((1, c_pad), jnp.float32)

    p = {}
    # backbone stem: K = 27 packed contiguously, zero-padded to 128
    w0 = nrm((3 * 3 * 3, C1))
    p["bb1_w"] = (jnp.zeros((K_STEM_PAD, CPAD), jnp.float32)
                  .at[:3 * 3 * 3, :C1].set(w0).astype(jnp.bfloat16))
    p["bb1_s"], p["bb1_b"] = bn(C1, CPAD)
    p["bb2_w"] = conv_w(C1, CB, 3); p["bb2_s"], p["bb2_b"] = bn(CB, CPAD)
    # shared branch weights (p1/p2/p3 are deepcopies of the same stack in the module)
    p["br1_w"] = conv_w(CB, CB, 3); p["br1_s"], p["br1_b"] = bn(CB, CPAD)
    p["br2_w"] = conv_w(CB, CF, 3); p["br2_s"], p["br2_b"] = bn(CF, CPAD)
    # reduction: 1x1 conv (CF -> FEATS) + BN + ReLU, shared by all 8 uses
    rw = nrm((CF, FEATS))
    p["red_w"] = jnp.zeros((CPAD, FPAD), jnp.float32).at[:CF, :FEATS].set(rw)
    p["red_s"], p["red_b"] = bn(FEATS, FPAD)
    # 8 FC classifiers, stacked: Linear(FEATS, NUM_CLASSES), bias init 0, padded to 768
    fws = []
    for _ in range(8):
        fw = nrm((FEATS, NUM_CLASSES))
        fws.append(jnp.zeros((FPAD, NC_PAD), jnp.float32)
                   .at[:FEATS, :NUM_CLASSES].set(fw))
    p["fc_w"] = jnp.stack(fws, axis=0)                 # [8, FPAD, NC_PAD]
    p["fc_b"] = jnp.zeros((8, 1, NC_PAD), jnp.float32)
    return p


# =====================================================================================
# Forward pass (mirrors MGN.forward)
# =====================================================================================
def mgn_forward(x_nchw, prm):
    x = jnp.transpose(x_nchw, (0, 2, 3, 1))  # NCHW -> NHWC
    B = x.shape[0]

    # backbone (stands in for resnet conv1..layer3[0]); total stride 4 here
    x = conv_bn_relu(x, prm["bb1_w"], prm["bb1_s"], prm["bb1_b"], 3, 2, k_pad=K_STEM_PAD)
    x = conv_bn_relu(x, prm["bb2_w"], prm["bb2_s"], prm["bb2_b"], 3, 2)  # [B,24,8,CPAD]

    # shared branch stack: br1 computed once; the stride-1 tail computed once for p2/p3
    # (they are weight-identical deepcopies in the reference module).
    # TODO(synk): if branch weights ever diverge (training), compute p2/p3 separately.
    h = conv_bn_relu(x, prm["br1_w"], prm["br1_s"], prm["br1_b"], 3, 1)
    p1 = conv_bn_relu(h, prm["br2_w"], prm["br2_s"], prm["br2_b"], 3, 2)   # [B,12,4,CPAD]
    p23 = conv_bn_relu(h, prm["br2_w"], prm["br2_s"], prm["br2_b"], 3, 1)  # [B,24,8,CPAD]

    # fused head: maxpools + batched reductions + 8 FC heads in one kernel
    feats, logits = mgn_head(p1, p23, p23, prm)

    f = feats[:, :FEATS].reshape(8, B, FEATS)          # unpad + split per head
    fg_p1, fg_p2, fg_p3, f0_p2, f1_p2, f0_p3, f1_p3, f2_p3 = [f[i] for i in range(8)]
    l = logits[:, :, :NUM_CLASSES]                     # [8, B, NUM_CLASSES]
    l_p1, l_p2, l_p3, l0_p2, l1_p2, l0_p3, l1_p3, l2_p3 = [l[i] for i in range(8)]

    predict = jnp.transpose(f, (1, 0, 2)).reshape(B, 8 * FEATS)

    return (predict, fg_p1, fg_p2, fg_p3, l_p1, l_p2, l_p3,
            l0_p2, l1_p2, l0_p3, l1_p3, l2_p3)


if __name__ == "__main__":
    key = jax.random.PRNGKey(0)
    k_params, k_x = jax.random.split(key)
    params = init_params(k_params)

    B = 2
    # stride-4 simplified backbone -> [B, 24, 8, C], matching the MGN pooling geometry
    x = jax.random.normal(k_x, (B, 3, 96, 32), jnp.float32)

    outs = jax.jit(mgn_forward)(x, params)
    outs = jax.block_until_ready(outs)

    predict = outs[0]
    assert predict.shape == (B, 8 * FEATS), predict.shape
    assert outs[1].shape == (B, FEATS)            # fg_p1
    assert outs[4].shape == (B, NUM_CLASSES)      # l_p1
    assert outs[11].shape == (B, NUM_CLASSES)     # l2_p3
    assert all(bool(jnp.isfinite(o).all()) for o in outs)

    print("KERNEL_OK")
</pallas_src>

<mosaic_0001>
module attributes {stable_mosaic.version = 11 : i64} {
  func.func @_conv_matmul_kernel(%arg0: i32, %arg1: memref<768x128xbf16, #tpu.memory_space<vmem>>, %arg2: memref<128x128xbf16, #tpu.memory_space<vmem>>, %arg3: memref<1x128xf32, #tpu.memory_space<vmem>>, %arg4: memref<1x128xf32, #tpu.memory_space<vmem>>, %arg5: memref<768x128xf32, #tpu.memory_space<vmem>>) attributes {dimension_semantics = [#tpu.dimension_semantics<parallel>], iteration_bounds = array<i64: 2>, scalar_prefetch = 0 : i64, scratch_operands = 0 : i64, tpu.core_type = #tpu.core_type<tc>, window_params = [{transform_indices = @transform_0, window_bounds = array<i64: 768, 128>}, {pipeline_mode = #tpu.pipeline_mode<synchronous>, transform_indices = @transform_1, window_bounds = array<i64: 128, 128>}, {pipeline_mode = #tpu.pipeline_mode<synchronous>, transform_indices = @transform_2, window_bounds = array<i64: 1, 128>}, {pipeline_mode = #tpu.pipeline_mode<synchronous>, transform_indices = @transform_3, window_bounds = array<i64: 1, 128>}, {transform_indices = @transform_4, window_bounds = array<i64: 768, 128>}]} {
    %c0 = arith.constant 0 : index
    %c0_0 = arith.constant 0 : index
    %0 = vector.load %arg1[%c0, %c0_0] : memref<768x128xbf16, #tpu.memory_space<vmem>>, vector<768x128xbf16>
    %c0_1 = arith.constant 0 : index
    %c0_2 = arith.constant 0 : index
    %1 = vector.load %arg2[%c0_1, %c0_2] : memref<128x128xbf16, #tpu.memory_space<vmem>>, vector<128x128xbf16>
    %cst = arith.constant dense<0.000000e+00> : vector<768x128xf32>
    %2 = tpu.matmul %0, %1, %cst {dimension_numbers = #tpu.dot_dimension_numbers<[1], [0], [0], [1], [0, 0, 1, 1], [], []>} : vector<768x128xbf16>, vector<128x128xbf16>, vector<768x128xf32> -> vector<768x128xf32>
    %c0_3 = arith.constant 0 : index
    %c0_4 = arith.constant 0 : index
    %3 = vector.load %arg3[%c0_3, %c0_4] : memref<1x128xf32, #tpu.memory_space<vmem>>, vector<1x128xf32>
    %4 = vector.broadcast %3 : vector<1x128xf32> to vector<768x128xf32>
    %5 = arith.mulf %2, %4 : vector<768x128xf32>
    %c0_5 = arith.constant 0 : index
    %c0_6 = arith.constant 0 : index
    %6 = vector.load %arg4[%c0_5, %c0_6] : memref<1x128xf32, #tpu.memory_space<vmem>>, vector<1x128xf32>
    %7 = vector.broadcast %6 : vector<1x128xf32> to vector<768x128xf32>
    %8 = arith.addf %5, %7 : vector<768x128xf32>
    %cst_7 = arith.constant 0.000000e+00 : f32
    %9 = vector.broadcast %cst_7 : f32 to vector<768x128xf32>
    %10 = arith.maximumf %8, %9 : vector<768x128xf32>
    %c0_8 = arith.constant 0 : index
    %c0_9 = arith.constant 0 : index
    %11 = vector.load %arg5[%c0_8, %c0_9] : memref<768x128xf32, #tpu.memory_space<vmem>>, vector<768x128xf32>
    tpu.vector_store %arg5[%c0_8, %c0_9], %10 {strides = array<i32>} : memref<768x128xf32, #tpu.memory_space<vmem>>, vector<768x128xf32>,
    return
  }
  func.func @transform_0(%arg0: i32) -> (i32, i32) {
    %c0_i32 = arith.constant 0 : i32
    %c0_i32_0 = arith.constant 0 : i32
    return %arg0, %c0_i32 : i32, i32
  }
  func.func @transform_1(%arg0: i32) -> (i32, i32) {
    %c0_i32 = arith.constant 0 : i32
    %c0_i32_0 = arith.constant 0 : i32
    %c0_i32_1 = arith.constant 0 : i32
    return %c0_i32, %c0_i32_0 : i32, i32
  }
  func.func @transform_2(%arg0: i32) -> (i32, i32) {
    %c0_i32 = arith.constant 0 : i32
    %c0_i32_0 = arith.constant 0 : i32
    %c0_i32_1 = arith.constant 0 : i32
    return %c0_i32, %c0_i32_0 : i32, i32
  }
  func.func @transform_3(%arg0: i32) -> (i32, i32) {
    %c0_i32 = arith.constant 0 : i32
    %c0_i32_0 = arith.constant 0 : i32
    %c0_i32_1 = arith.constant 0 : i32
    return %c0_i32, %c0_i32_0 : i32, i32
  }
  func.func @transform_4(%arg0: i32) -> (i32, i32) {
    %c0_i32 = arith.constant 0 : i32
    %c0_i32_0 = arith.constant 0 : i32
    return %arg0, %c0_i32 : i32, i32
  }
}

module attributes {stable_mosaic.version = 11 : i64} {
  func.func @_conv_matmul_kernel(%arg0: i32, %arg1: memref<192x1152xbf16, #tpu.memory_space<vmem>>, %arg2: memref<1152x128xbf16, #tpu.memory_space<vmem>>, %arg3: memref<1x128xf32, #tpu.memory_space<vmem>>, %arg4: memref<1x128xf32, #tpu.memory_space<vmem>>, %arg5: memref<192x128xf32, #tpu.memory_space<vmem>>) attributes {dimension_semantics = [#tpu.dimension_semantics<parallel>], iteration_bounds = array<i64: 2>, scalar_prefetch = 0 : i64, scratch_operands = 0 : i64, tpu.core_type = #tpu.core_type<tc>, window_params = [{transform_indices = @transform_0, window_bounds = array<i64: 192, 1152>}, {pipeline_mode = #tpu.pipeline_mode<synchronous>, transform_indices = @transform_1, window_bounds = array<i64: 1152, 128>}, {pipeline_mode = #tpu.pipeline_mode<synchronous>, transform_indices = @transform_2, window_bounds = array<i64: 1, 128>}, {pipeline_mode = #tpu.pipeline_mode<synchronous>, transform_indices = @transform_3, window_bounds = array<i64: 1, 128>}, {transform_indices = @transform_4, window_bounds = array<i64: 192, 128>}]} {
    %c0 = arith.constant 0 : index
    %c0_0 = arith.constant 0 : index
    %0 = vector.load %arg1[%c0, %c0_0] : memref<192x1152xbf16, #tpu.memory_space<vmem>>, vector<192x1152xbf16>
    %c0_1 = arith.constant 0 : index
    %c0_2 = arith.constant 0 : index
    %1 = vector.load %arg2[%c0_1, %c0_2] : memref<1152x128xbf16, #tpu.memory_space<vmem>>, vector<1152x128xbf16>
    %cst = arith.constant dense<0.000000e+00> : vector<192x128xf32>
    %2 = tpu.matmul %0, %1, %cst {dimension_numbers = #tpu.dot_dimension_numbers<[1], [0], [0], [1], [0, 0, 1, 1], [], []>} : vector<192x1152xbf16>, vector<1152x128xbf16>, vector<192x128xf32> -> vector<192x128xf32>
    %c0_3 = arith.constant 0 : index
    %c0_4 = arith.constant 0 : index
    %3 = vector.load %arg3[%c0_3, %c0_4] : memref<1x128xf32, #tpu.memory_space<vmem>>, vector<1x128xf32>
    %4 = vector.broadcast %3 : vector<1x128xf32> to vector<192x128xf32>
    %5 = arith.mulf %2, %4 : vector<192x128xf32>
    %c0_5 = arith.constant 0 : index
    %c0_6 = arith.constant 0 : index
    %6 = vector.load %arg4[%c0_5, %c0_6] : memref<1x128xf32, #tpu.memory_space<vmem>>, vector<1x128xf32>
    %7 = vector.broadcast %6 : vector<1x128xf32> to vector<192x128xf32>
    %8 = arith.addf %5, %7 : vector<192x128xf32>
    %cst_7 = arith.constant 0.000000e+00 : f32
    %9 = vector.broadcast %cst_7 : f32 to vector<192x128xf32>
    %10 = arith.maximumf %8, %9 : vector<192x128xf32>
    %c0_8 = arith.constant 0 : index
    %c0_9 = arith.constant 0 : index
    %11 = vector.load %arg5[%c0_8, %c0_9] : memref<192x128xf32, #tpu.memory_space<vmem>>, vector<192x128xf32>
    tpu.vector_store %arg5[%c0_8, %c0_9], %10 {strides = array<i32>} : memref<192x128xf32, #tpu.memory_space<vmem>>, vector<192x128xf32>,
    return
  }
  func.func @transform_0(%arg0: i32) -> (i32, i32) {
    %c0_i32 = arith.constant 0 : i32
    %c0_i32_0 = arith.constant 0 : i32
    return %arg0, %c0_i32 : i32, i32
  }
  func.func @transform_1(%arg0: i32) -> (i32, i32) {
    %c0_i32 = arith.constant 0 : i32
    %c0_i32_0 = arith.constant 0 : i32
    %c0_i32_1 = arith.constant 0 : i32
    return %c0_i32, %c0_i32_0 : i32, i32
  }
  func.func @transform_2(%arg0: i32) -> (i32, i32) {
    %c0_i32 = arith.constant 0 : i32
    %c0_i32_0 = arith.constant 0 : i32
    %c0_i32_1 = arith.constant 0 : i32
    return %c0_i32, %c0_i32_0 : i32, i32
  }
  func.func @transform_3(%arg0: i32) -> (i32, i32) {
    %c0_i32 = arith.constant 0 : i32
    %c0_i32_0 = arith.constant 0 : i32
    %c0_i32_1 = arith.constant 0 : i32
    return %c0_i32, %c0_i32_0 : i32, i32
  }
  func.func @transform_4(%arg0: i32) -> (i32, i32) {
    %c0_i32 = arith.constant 0 : i32
    %c0_i32_0 = arith.constant 0 : i32
    return %arg0, %c0_i32 : i32, i32
  }
}

module attributes {stable_mosaic.version = 11 : i64} {
  func.func @_conv_matmul_kernel(%arg0: i32, %arg1: memref<96x1152xbf16, #tpu.memory_space<vmem>>, %arg2: memref<1152x128xbf16, #tpu.memory_space<vmem>>, %arg3: memref<1x128xf32, #tpu.memory_space<vmem>>, %arg4: memref<1x128xf32, #tpu.memory_space<vmem>>, %arg5: memref<96x128xf32, #tpu.memory_space<vmem>>) attributes {dimension_semantics = [#tpu.dimension_semantics<parallel>], iteration_bounds = array<i64: 1>, scalar_prefetch = 0 : i64, scratch_operands = 0 : i64, tpu.core_type = #tpu.core_type<tc>, window_params = [{transform_indices = @transform_0, window_bounds = array<i64: 96, 1152>}, {pipeline_mode = #tpu.pipeline_mode<synchronous>, transform_indices = @transform_1, window_bounds = array<i64: 1152, 128>}, {pipeline_mode = #tpu.pipeline_mode<synchronous>, transform_indices = @transform_2, window_bounds = array<i64: 1, 128>}, {pipeline_mode = #tpu.pipeline_mode<synchronous>, transform_indices = @transform_3, window_bounds = array<i64: 1, 128>}, {transform_indices = @transform_4, window_bounds = array<i64: 96, 128>}]} {
    %c0 = arith.constant 0 : index
    %c0_0 = arith.constant 0 : index
    %0 = vector.load %arg1[%c0, %c0_0] : memref<96x1152xbf16, #tpu.memory_space<vmem>>, vector<96x1152xbf16>
    %c0_1 = arith.constant 0 : index
    %c0_2 = arith.constant 0 : index
    %1 = vector.load %arg2[%c0_1, %c0_2] : memref<1152x128xbf16, #tpu.memory_space<vmem>>, vector<1152x128xbf16>
    %cst = arith.constant dense<0.000000e+00> : vector<96x128xf32>
    %2 = tpu.matmul %0, %1, %cst {dimension_numbers = #tpu.dot_dimension_numbers<[1], [0], [0], [1], [0, 0, 1, 1], [], []>} : vector<96x1152xbf16>, vector<1152x128xbf16>, vector<96x128xf32> -> vector<96x128xf32>
    %c0_3 = arith.constant 0 : index
    %c0_4 = arith.constant 0 : index
    %3 = vector.load %arg3[%c0_3, %c0_4] : memref<1x128xf32, #tpu.memory_space<vmem>>, vector<1x128xf32>
    %4 = vector.broadcast %3 : vector<1x128xf32> to vector<96x128xf32>
    %5 = arith.mulf %2, %4 : vector<96x128xf32>
    %c0_5 = arith.constant 0 : index
    %c0_6 = arith.constant 0 : index
    %6 = vector.load %arg4[%c0_5, %c0_6] : memref<1x128xf32, #tpu.memory_space<vmem>>, vector<1x128xf32>
    %7 = vector.broadcast %6 : vector<1x128xf32> to vector<96x128xf32>
    %8 = arith.addf %5, %7 : vector<96x128xf32>
    %cst_7 = arith.constant 0.000000e+00 : f32
    %9 = vector.broadcast %cst_7 : f32 to vector<96x128xf32>
    %10 = arith.maximumf %8, %9 : vector<96x128xf32>
    %c0_8 = arith.constant 0 : index
    %c0_9 = arith.constant 0 : index
    %11 = vector.load %arg5[%c0_8, %c0_9] : memref<96x128xf32, #tpu.memory_space<vmem>>, vector<96x128xf32>
    tpu.vector_store %arg5[%c0_8, %c0_9], %10 {strides = array<i32>} : memref<96x128xf32, #tpu.memory_space<vmem>>, vector<96x128xf32>,
    return
  }
  func.func @transform_0(%arg0: i32) -> (i32, i32) {
    %c0_i32 = arith.constant 0 : i32
    %c0_i32_0 = arith.constant 0 : i32
    return %arg0, %c0_i32 : i32, i32
  }
  func.func @transform_1(%arg0: i32) -> (i32, i32) {
    %c0_i32 = arith.constant 0 : i32
    %c0_i32_0 = arith.constant 0 : i32
    %c0_i32_1 = arith.constant 0 : i32
    return %c0_i32, %c0_i32_0 : i32, i32
  }
  func.func @transform_2(%arg0: i32) -> (i32, i32) {
    %c0_i32 = arith.constant 0 : i32
    %c0_i32_0 = arith.constant 0 : i32
    %c0_i32_1 = arith.constant 0 : i32
    return %c0_i32, %c0_i32_0 : i32, i32
  }
  func.func @transform_3(%arg0: i32) -> (i32, i32) {
    %c0_i32 = arith.constant 0 : i32
    %c0_i32_0 = arith.constant 0 : i32
    %c0_i32_1 = arith.constant 0 : i32
    return %c0_i32, %c0_i32_0 : i32, i32
  }
  func.func @transform_4(%arg0: i32) -> (i32, i32) {
    %c0_i32 = arith.constant 0 : i32
    %c0_i32_0 = arith.constant 0 : i32
    return %arg0, %c0_i32 : i32, i32
  }
}

module attributes {stable_mosaic.version = 11 : i64} {
  func.func @_head_kernel(%arg0: memref<2x12x4x128xf32, #tpu.memory_space<vmem>>, %arg1: memref<2x24x8x128xf32, #tpu.memory_space<vmem>>, %arg2: memref<2x24x8x128xf32, #tpu.memory_space<vmem>>, %arg3: memref<128x128xf32, #tpu.memory_space<vmem>>, %arg4: memref<1x128xf32, #tpu.memory_space<vmem>>, %arg5: memref<1x128xf32, #tpu.memory_space<vmem>>, %arg6: memref<8x128x768xf32, #tpu.memory_space<vmem>>, %arg7: memref<8x1x768xf32, #tpu.memory_space<vmem>>, %arg8: memref<16x128xf32, #tpu.memory_space<vmem>>, %arg9: memref<8x2x768xf32, #tpu.memory_space<vmem>>) attributes {dimension_semantics = [], scalar_prefetch = 0 : i64, scratch_operands = 0 : i64, tpu.core_type = #tpu.core_type<tc>} {
    %c0 = arith.constant 0 : index
    %c0_0 = arith.constant 0 : index
    %c0_1 = arith.constant 0 : index
    %c0_2 = arith.constant 0 : index
    %0 = vector.load %arg0[%c0, %c0_0, %c0_1, %c0_2] : memref<2x12x4x128xf32, #tpu.memory_space<vmem>>, vector<2x12x4x128xf32>
    %c0_3 = arith.constant 0 : index
    %c0_4 = arith.constant 0 : index
    %c0_5 = arith.constant 0 : index
    %c0_6 = arith.constant 0 : index
    %1 = vector.load %arg1[%c0_3, %c0_4, %c0_5, %c0_6] : memref<2x24x8x128xf32, #tpu.memory_space<vmem>>, vector<2x24x8x128xf32>
    %c0_7 = arith.constant 0 : index
    %c0_8 = arith.constant 0 : index
    %c0_9 = arith.constant 0 : index
    %c0_10 = arith.constant 0 : index
    %2 = vector.load %arg2[%c0_7, %c0_8, %c0_9, %c0_10] : memref<2x24x8x128xf32, #tpu.memory_space<vmem>>, vector<2x24x8x128xf32>
    %cst = arith.constant dense<0xFF800000> : vector<2x12x128xf32>
    %3 = vector.multi_reduction <maximumf>, %0, %cst [2] : vector<2x12x4x128xf32> to vector<2x12x128xf32>
    %cst_11 = arith.constant dense<0xFF800000> : vector<2x128xf32>
    %4 = vector.multi_reduction <maximumf>, %3, %cst_11 [1] : vector<2x12x128xf32> to vector<2x128xf32>
    %cst_12 = arith.constant dense<0xFF800000> : vector<2x24x128xf32>
    %5 = vector.multi_reduction <maximumf>, %1, %cst_12 [2] : vector<2x24x8x128xf32> to vector<2x24x128xf32>
    %cst_13 = arith.constant dense<0xFF800000> : vector<2x128xf32>
    %6 = vector.multi_reduction <maximumf>, %5, %cst_13 [1] : vector<2x24x128xf32> to vector<2x128xf32>
    %cst_14 = arith.constant dense<0xFF800000> : vector<2x24x128xf32>
    %7 = vector.multi_reduction <maximumf>, %2, %cst_14 [2] : vector<2x24x8x128xf32> to vector<2x24x128xf32>
    %cst_15 = arith.constant dense<0xFF800000> : vector<2x128xf32>
    %8 = vector.multi_reduction <maximumf>, %7, %cst_15 [1] : vector<2x24x128xf32> to vector<2x128xf32>
    %9 = vector.extract_strided_slice %1 {offsets = [0, 0, 0, 0], sizes = [2, 12, 8, 128], strides = [1, 1, 1, 1]} : vector<2x24x8x128xf32> to vector<2x12x8x128xf32>
    %cst_16 = arith.constant dense<0xFF800000> : vector<2x12x128xf32>
    %10 = vector.multi_reduction <maximumf>, %9, %cst_16 [2] : vector<2x12x8x128xf32> to vector<2x12x128xf32>
    %cst_17 = arith.constant dense<0xFF800000> : vector<2x128xf32>
    %11 = vector.multi_reduction <maximumf>, %10, %cst_17 [1] : vector<2x12x128xf32> to vector<2x128xf32>
    %12 = vector.extract_strided_slice %1 {offsets = [0, 12, 0, 0], sizes = [2, 12, 8, 128], strides = [1, 1, 1, 1]} : vector<2x24x8x128xf32> to vector<2x12x8x128xf32>
    %cst_18 = arith.constant dense<0xFF800000> : vector<2x12x128xf32>
    %13 = vector.multi_reduction <maximumf>, %12, %cst_18 [2] : vector<2x12x8x128xf32> to vector<2x12x128xf32>
    %cst_19 = arith.constant dense<0xFF800000> : vector<2x128xf32>
    %14 = vector.multi_reduction <maximumf>, %13, %cst_19 [1] : vector<2x12x128xf32> to vector<2x128xf32>
    %15 = vector.extract_strided_slice %2 {offsets = [0, 0, 0, 0], sizes = [2, 8, 8, 128], strides = [1, 1, 1, 1]} : vector<2x24x8x128xf32> to vector<2x8x8x128xf32>
    %cst_20 = arith.constant dense<0xFF800000> : vector<2x8x128xf32>
    %16 = vector.multi_reduction <maximumf>, %15, %cst_20 [2] : vector<2x8x8x128xf32> to vector<2x8x128xf32>
    %cst_21 = arith.constant dense<0xFF800000> : vector<2x128xf32>
    %17 = vector.multi_reduction <maximumf>, %16, %cst_21 [1] : vector<2x8x128xf32> to vector<2x128xf32>
    %18 = vector.extract_strided_slice %2 {offsets = [0, 8, 0, 0], sizes = [2, 8, 8, 128], strides = [1, 1, 1, 1]} : vector<2x24x8x128xf32> to vector<2x8x8x128xf32>
    %cst_22 = arith.constant dense<0xFF800000> : vector<2x8x128xf32>
    %19 = vector.multi_reduction <maximumf>, %18, %cst_22 [2] : vector<2x8x8x128xf32> to vector<2x8x128xf32>
    %cst_23 = arith.constant dense<0xFF800000> : vector<2x128xf32>
    %20 = vector.multi_reduction <maximumf>, %19, %cst_23 [1] : vector<2x8x128xf32> to vector<2x128xf32>
    %21 = vector.extract_strided_slice %2 {offsets = [0, 16, 0, 0], sizes = [2, 8, 8, 128], strides = [1, 1, 1, 1]} : vector<2x24x8x128xf32> to vector<2x8x8x128xf32>
    %cst_24 = arith.constant dense<0xFF800000> : vector<2x8x128xf32>
    %22 = vector.multi_reduction <maximumf>, %21, %cst_24 [2] : vector<2x8x8x128xf32> to vector<2x8x128xf32>
    %cst_25 = arith.constant dense<0xFF800000> : vector<2x128xf32>
    %23 = vector.multi_reduction <maximumf>, %22, %cst_25 [1] : vector<2x8x128xf32> to vector<2x128xf32>
    %24 = tpu.concatenate %4, %6, %8, %11, %14, %17, %20, %23 in 0 : vector<2x128xf32>, vector<2x128xf32>, vector<2x128xf32>, vector<2x128xf32>, vector<2x128xf32>, vector<2x128xf32>, vector<2x128xf32>, vector<2x128xf32> -> vector<16x128xf32>
    %c0_26 = arith.constant 0 : index
    %c0_27 = arith.constant 0 : index
    %25 = vector.load %arg3[%c0_26, %c0_27] : memref<128x128xf32, #tpu.memory_space<vmem>>, vector<128x128xf32>
    %cst_28 = arith.constant dense<0.000000e+00> : vector<16x128xf32>
    %26 = tpu.matmul %24, %25, %cst_28 {dimension_numbers = #tpu.dot_dimension_numbers<[1], [0], [0], [1], [0, 0, 1, 1], [], []>} : vector<16x128xf32>, vector<128x128xf32>, vector<16x128xf32> -> vector<16x128xf32>
    %c0_29 = arith.constant 0 : index
    %c0_30 = arith.constant 0 : index
    %27 = vector.load %arg4[%c0_29, %c0_30] : memref<1x128xf32, #tpu.memory_space<vmem>>, vector<1x128xf32>
    %28 = vector.broadcast %27 : vector<1x128xf32> to vector<16x128xf32>
    %29 = arith.mulf %26, %28 : vector<16x128xf32>
    %c0_31 = arith.constant 0 : index
    %c0_32 = arith.constant 0 : index
    %30 = vector.load %arg5[%c0_31, %c0_32] : memref<1x128xf32, #tpu.memory_space<vmem>>, vector<1x128xf32>
    %31 = vector.broadcast %30 : vector<1x128xf32> to vector<16x128xf32>
    %32 = arith.addf %29, %31 : vector<16x128xf32>
    %cst_33 = arith.constant 0.000000e+00 : f32
    %33 = vector.broadcast %cst_33 : f32 to vector<16x128xf32>
    %34 = arith.maximumf %32, %33 : vector<16x128xf32>
    %c0_34 = arith.constant 0 : index
    %c0_35 = arith.constant 0 : index
    %35 = vector.load %arg8[%c0_34, %c0_35] : memref<16x128xf32, #tpu.memory_space<vmem>>, vector<16x128xf32>
    tpu.vector_store %arg8[%c0_34, %c0_35], %34 {strides = array<i32>} : memref<16x128xf32, #tpu.memory_space<vmem>>, vector<16x128xf32>,
    %36 = vector.extract_strided_slice %34 {offsets = [0, 0], sizes = [2, 128], strides = [1, 1]} : vector<16x128xf32> to vector<2x128xf32>
    %c0_36 = arith.constant 0 : index
    %c0_37 = arith.constant 0 : index
    %c0_38 = arith.constant 0 : index
    %37 = vector.load %arg6[%c0_36, %c0_37, %c0_38] : memref<8x128x768xf32, #tpu.memory_space<vmem>>, vector<1x128x768xf32>
    %38 = vector.shape_cast %37 : vector<1x128x768xf32> to vector<128x768xf32>
    %cst_39 = arith.constant dense<0.000000e+00> : vector<2x768xf32>
    %39 = tpu.matmul %36, %38, %cst_39 {dimension_numbers = #tpu.dot_dimension_numbers<[1], [0], [0], [1], [0, 0, 1, 1], [], []>} : vector<2x128xf32>, vector<128x768xf32>, vector<2x768xf32> -> vector<2x768xf32>
    %c0_40 = arith.constant 0 : index
    %c0_41 = arith.constant 0 : index
    %c0_42 = arith.constant 0 : index
    %40 = vector.load %arg7[%c0_40, %c0_41, %c0_42] : memref<8x1x768xf32, #tpu.memory_space<vmem>>, vector<1x1x768xf32>
    %41 = vector.shape_cast %40 : vector<1x1x768xf32> to vector<1x768xf32>
    %42 = vector.broadcast %41 : vector<1x768xf32> to vector<2x768xf32>
    %43 = arith.addf %39, %42 : vector<2x768xf32>
    %c0_43 = arith.constant 0 : index
    %c0_44 = arith.constant 0 : index
    %c0_45 = arith.constant 0 : index
    %44 = vector.load %arg9[%c0_43, %c0_44, %c0_45] : memref<8x2x768xf32, #tpu.memory_space<vmem>>, vector<1x2x768xf32>
    %45 = vector.shape_cast %44 : vector<1x2x768xf32> to vector<2x768xf32>
    %46 = vector.shape_cast %43 : vector<2x768xf32> to vector<1x2x768xf32>
    tpu.vector_store %arg9[%c0_43, %c0_44, %c0_45], %46 {strides = array<i32>} : memref<8x2x768xf32, #tpu.memory_space<vmem>>, vector<1x2x768xf32>,
    %47 = vector.extract_strided_slice %34 {offsets = [2, 0], sizes = [2, 128], strides = [1, 1]} : vector<16x128xf32> to vector<2x128xf32>
    %c1 = arith.constant 1 : index
    %c0_46 = arith.constant 0 : index
    %c0_47 = arith.constant 0 : index
    %48 = vector.load %arg6[%c1, %c0_46, %c0_47] : memref<8x128x768xf32, #tpu.memory_space<vmem>>, vector<1x128x768xf32>
    %49 = vector.shape_cast %48 : vector<1x128x768xf32> to vector<128x768xf32>
    %cst_48 = arith.constant dense<0.000000e+00> : vector<2x768xf32>
    %50 = tpu.matmul %47, %49, %cst_48 {dimension_numbers = #tpu.dot_dimension_numbers<[1], [0], [0], [1], [0, 0, 1, 1], [], []>} : vector<2x128xf32>, vector<128x768xf32>, vector<2x768xf32> -> vector<2x768xf32>
    %c1_49 = arith.constant 1 : index
    %c0_50 = arith.constant 0 : index
    %c0_51 = arith.constant 0 : index
    %51 = vector.load %arg7[%c1_49, %c0_50, %c0_51] : memref<8x1x768xf32, #tpu.memory_space<vmem>>, vector<1x1x768xf32>
    %52 = vector.shape_cast %51 : vector<1x1x768xf32> to vector<1x768xf32>
    %53 = vector.broadcast %52 : vector<1x768xf32> to vector<2x768xf32>
    %54 = arith.addf %50, %53 : vector<2x768xf32>
    %c1_52 = arith.constant 1 : index
    %c0_53 = arith.constant 0 : index
    %c0_54 = arith.constant 0 : index
    %55 = vector.load %arg9[%c1_52, %c0_53, %c0_54] : memref<8x2x768xf32, #tpu.memory_space<vmem>>, vector<1x2x768xf32>
    %56 = vector.shape_cast %55 : vector<1x2x768xf32> to vector<2x768xf32>
    %57 = vector.shape_cast %54 : vector<2x768xf32> to vector<1x2x768xf32>
    tpu.vector_store %arg9[%c1_52, %c0_53, %c0_54], %57 {strides = array<i32>} : memref<8x2x768xf32, #tpu.memory_space<vmem>>, vector<1x2x768xf32>,
    %58 = vector.extract_strided_slice %34 {offsets = [4, 0], sizes = [2, 128], strides = [1, 1]} : vector<16x128xf32> to vector<2x128xf32>
    %c2 = arith.constant 2 : index
    %c0_55 = arith.constant 0 : index
    %c0_56 = arith.constant 0 : index
    %59 = vector.load %arg6[%c2, %c0_55, %c0_56] : memref<8x128x768xf32, #tpu.memory_space<vmem>>, vector<1x128x768xf32>
    %60 = vector.shape_cast %59 : vector<1x128x768xf32> to vector<128x768xf32>
    %cst_57 = arith.constant dense<0.000000e+00> : vector<2x768xf32>
    %61 = tpu.matmul %58, %60, %cst_57 {dimension_numbers = #tpu.dot_dimension_numbers<[1], [0], [0], [1], [0, 0, 1, 1], [], []>} : vector<2x128xf32>, vector<128x768xf32>, vector<2x768xf32> -> vector<2x768xf32>
    %c2_58 = arith.constant 2 : index
    %c0_59 = arith.constant 0 : index
    %c0_60 = arith.constant 0 : index
    %62 = vector.load %arg7[%c2_58, %c0_59, %c0_60] : memref<8x1x768xf32, #tpu.memory_space<vmem>>, vector<1x1x768xf32>
    %63 = vector.shape_cast %62 : vector<1x1x768xf32> to vector<1x768xf32>
    %64 = vector.broadcast %63 : vector<1x768xf32> to vector<2x768xf32>
    %65 = arith.addf %61, %64 : vector<2x768xf32>
    %c2_61 = arith.constant 2 : index
    %c0_62 = arith.constant 0 : index
    %c0_63 = arith.constant 0 : index
    %66 = vector.load %arg9[%c2_61, %c0_62, %c0_63] : memref<8x2x768xf32, #tpu.memory_space<vmem>>, vector<1x2x768xf32>
    %67 = vector.shape_cast %66 : vector<1x2x768xf32> to vector<2x768xf32>
    %68 = vector.shape_cast %65 : vector<2x768xf32> to vector<1x2x768xf32>
    tpu.vector_store %arg9[%c2_61, %c0_62, %c0_63], %68 {strides = array<i32>} : memref<8x2x768xf32, #tpu.memory_space<vmem>>, vector<1x2x768xf32>,
    %69 = vector.extract_strided_slice %34 {offsets = [6, 0], sizes = [2, 128], strides = [1, 1]} : vector<16x128xf32> to vector<2x128xf32>
    %c3 = arith.constant 3 : index
    %c0_64 = arith.constant 0 : index
    %c0_65 = arith.constant 0 : index
    %70 = vector.load %arg6[%c3, %c0_64, %c0_65] : memref<8x128x768xf32, #tpu.memory_space<vmem>>, vector<1x128x768xf32>
    %71 = vector.shape_cast %70 : vector<1x128x768xf32> to vector<128x768xf32>
    %cst_66 = arith.constant dense<0.000000e+00> : vector<2x768xf32>
    %72 = tpu.matmul %69, %71, %cst_66 {dimension_numbers = #tpu.dot_dimension_numbers<[1], [0], [0], [1], [0, 0, 1, 1], [], []>} : vector<2x128xf32>, vector<128x768xf32>, vector<2x768xf32> -> vector<2x768xf32>
    %c3_67 = arith.constant 3 : index
    %c0_68 = arith.constant 0 : index
    %c0_69 = arith.constant 0 : index
    %73 = vector.load %arg7[%c3_67, %c0_68, %c0_69] : memref<8x1x768xf32, #tpu.memory_space<vmem>>, vector<1x1x768xf32>
    %74 = vector.shape_cast %73 : vector<1x1x768xf32> to vector<1x768xf32>
    %75 = vector.broadcast %74 : vector<1x768xf32> to vector<2x768xf32>
    %76 = arith.addf %72, %75 : vector<2x768xf32>
    %c3_70 = arith.constant 3 : index
    %c0_71 = arith.constant 0 : index
    %c0_72 = arith.constant 0 : index
    %77 = vector.load %arg9[%c3_70, %c0_71, %c0_72] : memref<8x2x768xf32, #tpu.memory_space<vmem>>, vector<1x2x768xf32>
    %78 = vector.shape_cast %77 : vector<1x2x768xf32> to vector<2x768xf32>
    %79 = vector.shape_cast %76 : vector<2x768xf32> to vector<1x2x768xf32>
    tpu.vector_store %arg9[%c3_70, %c0_71, %c0_72], %79 {strides = array<i32>} : memref<8x2x768xf32, #tpu.memory_space<vmem>>, vector<1x2x768xf32>,
    %80 = vector.extract_strided_slice %34 {offsets = [8, 0], sizes = [2, 128], strides = [1, 1]} : vector<16x128xf32> to vector<2x128xf32>
    %c4 = arith.constant 4 : index
    %c0_73 = arith.constant 0 : index
    %c0_74 = arith.constant 0 : index
    %81 = vector.load %arg6[%c4, %c0_73, %c0_74] : memref<8x128x768xf32, #tpu.memory_space<vmem>>, vector<1x128x768xf32>
    %82 = vector.shape_cast %81 : vector<1x128x768xf32> to vector<128x768xf32>
    %cst_75 = arith.constant dense<0.000000e+00> : vector<2x768xf32>
    %83 = tpu.matmul %80, %82, %cst_75 {dimension_numbers = #tpu.dot_dimension_numbers<[1], [0], [0], [1], [0, 0, 1, 1], [], []>} : vector<2x128xf32>, vector<128x768xf32>, vector<2x768xf32> -> vector<2x768xf32>
    %c4_76 = arith.constant 4 : index
    %c0_77 = arith.constant 0 : index
    %c0_78 = arith.constant 0 : index
    %84 = vector.load %arg7[%c4_76, %c0_77, %c0_78] : memref<8x1x768xf32, #tpu.memory_space<vmem>>, vector<1x1x768xf32>
    %85 = vector.shape_cast %84 : vector<1x1x768xf32> to vector<1x768xf32>
    %86 = vector.broadcast %85 : vector<1x768xf32> to vector<2x768xf32>
    %87 = arith.addf %83, %86 : vector<2x768xf32>
    %c4_79 = arith.constant 4 : index
    %c0_80 = arith.constant 0 : index
    %c0_81 = arith.constant 0 : index
    %88 = vector.load %arg9[%c4_79, %c0_80, %c0_81] : memref<8x2x768xf32, #tpu.memory_space<vmem>>, vector<1x2x768xf32>
    %89 = vector.shape_cast %88 : vector<1x2x768xf32> to vector<2x768xf32>
    %90 = vector.shape_cast %87 : vector<2x768xf32> to vector<1x2x768xf32>
    tpu.vector_store %arg9[%c4_79, %c0_80, %c0_81], %90 {strides = array<i32>} : memref<8x2x768xf32, #tpu.memory_space<vmem>>, vector<1x2x768xf32>,
    %91 = vector.extract_strided_slice %34 {offsets = [10, 0], sizes = [2, 128], strides = [1, 1]} : vector<16x128xf32> to vector<2x128xf32>
    %c5 = arith.constant 5 : index
    %c0_82 = arith.constant 0 : index
    %c0_83 = arith.constant 0 : index
    %92 = vector.load %arg6[%c5, %c0_82, %c0_83] : memref<8x128x768xf32, #tpu.memory_space<vmem>>, vector<1x128x768xf32>
    %93 = vector.shape_cast %92 : vector<1x128x768xf32> to vector<128x768xf32>
    %cst_84 = arith.constant dense<0.000000e+00> : vector<2x768xf32>
    %94 = tpu.matmul %91, %93, %cst_84 {dimension_numbers = #tpu.dot_dimension_numbers<[1], [0], [0], [1], [0, 0, 1, 1], [], []>} : vector<2x128xf32>, vector<128x768xf32>, vector<2x768xf32> -> vector<2x768xf32>
    %c5_85 = arith.constant 5 : index
    %c0_86 = arith.constant 0 : index
    %c0_87 = arith.constant 0 : index
    %95 = vector.load %arg7[%c5_85, %c0_86, %c0_87] : memref<8x1x768xf32, #tpu.memory_space<vmem>>, vector<1x1x768xf32>
    %96 = vector.shape_cast %95 : vector<1x1x768xf32> to vector<1x768xf32>
    %97 = vector.broadcast %96 : vector<1x768xf32> to vector<2x768xf32>
    %98 = arith.addf %94, %97 : vector<2x768xf32>
    %c5_88 = arith.constant 5 : index
    %c0_89 = arith.constant 0 : index
    %c0_90 = arith.constant 0 : index
    %99 = vector.load %arg9[%c5_88, %c0_89, %c0_90] : memref<8x2x768xf32, #tpu.memory_space<vmem>>, vector<1x2x768xf32>
    %100 = vector.shape_cast %99 : vector<1x2x768xf32> to vector<2x768xf32>
    %101 = vector.shape_cast %98 : vector<2x768xf32> to vector<1x2x768xf32>
    tpu.vector_store %arg9[%c5_88, %c0_89, %c0_90], %101 {strides = array<i32>} : memref<8x2x768xf32, #tpu.memory_space<vmem>>, vector<1x2x768xf32>,
    %102 = vector.extract_strided_slice %34 {offsets = [12, 0], sizes = [2, 128], strides = [1, 1]} : vector<16x128xf32> to vector<2x128xf32>
    %c6 = arith.constant 6 : index
    %c0_91 = arith.constant 0 : index
    %c0_92 = arith.constant 0 : index
    %103 = vector.load %arg6[%c6, %c0_91, %c0_92] : memref<8x128x768xf32, #tpu.memory_space<vmem>>, vector<1x128x768xf32>
    %104 = vector.shape_cast %103 : vector<1x128x768xf32> to vector<128x768xf32>
    %cst_93 = arith.constant dense<0.000000e+00> : vector<2x768xf32>
    %105 = tpu.matmul %102, %104, %cst_93 {dimension_numbers = #tpu.dot_dimension_numbers<[1], [0], [0], [1], [0, 0, 1, 1], [], []>} : vector<2x128xf32>, vector<128x768xf32>, vector<2x768xf32> -> vector<2x768xf32>
    %c6_94 = arith.constant 6 : index
    %c0_95 = arith.constant 0 : index
    %c0_96 = arith.constant 0 : index
    %106 = vector.load %arg7[%c6_94, %c0_95, %c0_96] : memref<8x1x768xf32, #tpu.memory_space<vmem>>, vector<1x1x768xf32>
    %107 = vector.shape_cast %106 : vector<1x1x768xf32> to vector<1x768xf32>
    %108 = vector.broadcast %107 : vector<1x768xf32> to vector<2x768xf32>
    %109 = arith.addf %105, %108 : vector<2x768xf32>
    %c6_97 = arith.constant 6 : index
    %c0_98 = arith.constant 0 : index
    %c0_99 = arith.constant 0 : index
    %110 = vector.load %arg9[%c6_97, %c0_98, %c0_99] : memref<8x2x768xf32, #tpu.memory_space<vmem>>, vector<1x2x768xf32>
    %111 = vector.shape_cast %110 : vector<1x2x768xf32> to vector<2x768xf32>
    %112 = vector.shape_cast %109 : vector<2x768xf32> to vector<1x2x768xf32>
    tpu.vector_store %arg9[%c6_97, %c0_98, %c0_99], %112 {strides = array<i32>} : memref<8x2x768xf32, #tpu.memory_space<vmem>>, vector<1x2x768xf32>,
    %113 = vector.extract_strided_slice %34 {offsets = [14, 0], sizes = [2, 128], strides = [1, 1]} : vector<16x128xf32> to vector<2x128xf32>
    %c7 = arith.constant 7 : index
    %c0_100 = arith.constant 0 : index
    %c0_101 = arith.constant 0 : index
    %114 = vector.load %arg6[%c7, %c0_100, %c0_101] : memref<8x128x768xf32, #tpu.memory_space<vmem>>, vector<1x128x768xf32>
    %115 = vector.shape_cast %114 : vector<1x128x768xf32> to vector<128x768xf32>
    %cst_102 = arith.constant dense<0.000000e+00> : vector<2x768xf32>
    %116 = tpu.matmul %113, %115, %cst_102 {dimension_numbers = #tpu.dot_dimension_numbers<[1], [0], [0], [1], [0, 0, 1, 1], [], []>} : vector<2x128xf32>, vector<128x768xf32>, vector<2x768xf32> -> vector<2x768xf32>
    %c7_103 = arith.constant 7 : index
    %c0_104 = arith.constant 0 : index
    %c0_105 = arith.constant 0 : index
    %117 = vector.load %arg7[%c7_103, %c0_104, %c0_105] : memref<8x1x768xf32, #tpu.memory_space<vmem>>, vector<1x1x768xf32>
    %118 = vector.shape_cast %117 : vector<1x1x768xf32> to vector<1x768xf32>
    %119 = vector.broadcast %118 : vector<1x768xf32> to vector<2x768xf32>
    %120 = arith.addf %116, %119 : vector<2x768xf32>
    %c7_106 = arith.constant 7 : index
    %c0_107 = arith.constant 0 : index
    %c0_108 = arith.constant 0 : index
    %121 = vector.load %arg9[%c7_106, %c0_107, %c0_108] : memref<8x2x768xf32, #tpu.memory_space<vmem>>, vector<1x2x768xf32>
    %122 = vector.shape_cast %121 : vector<1x2x768xf32> to vector<2x768xf32>
    %123 = vector.shape_cast %120 : vector<2x768xf32> to vector<1x2x768xf32>
    tpu.vector_store %arg9[%c7_106, %c0_107, %c0_108], %123 {strides = array<i32>} : memref<8x2x768xf32, #tpu.memory_space<vmem>>, vector<1x2x768xf32>,
    return
  }
}

</mosaic_0001>

<llo_original>
// kernel: mgn_forward.6
$region0: #{mgn_forward.6}
  #allocation0 [shape = 'u32[]', space=smem, size = 0x4, offset = 0x4, fixed_abs, tag = 'smem constant byte address 0x4 - core index']
  #allocation1 [shape = 'u32[144,128]{1,0:T(1,128)}', space=vmem, size = 0x12000, scoped, tag = 'internal scratch']
  %s0 = inlined_call_operand.vmem [shape: bf16[1536,128], index: 0, kind: input, shape index: {}]
  %s1 = inlined_call_operand.hbm [shape: bf16[128,128], index: 1, kind: input, shape index: {}]
  %s2 = inlined_call_operand.hbm [shape: f32[1,128], index: 2, kind: input, shape index: {}]
  %s3 = inlined_call_operand.hbm [shape: f32[1,128], index: 3, kind: input, shape index: {}]
  %s4 = inlined_call_operand.vmem [shape: f32[1536,128], index: 4, kind: output, shape index: {}]
  %s5 = sld [smem:[#allocation0]]
  $region61: #{mgn_forward.6} parent=0
    _
  %s7 = ssub.s32 1, %s5
  %s8 = scalar_select 0, %s7, %s5
  $region1: #{mgn_forward.6} parent=0
    #allocation2 [shape = 'u8[32768]{0}', space=vmem, size = 0x8000, scoped, tag = 'input window, operand 1, single buffered']
    #allocation3 [shape = 's32[2]{0}', space=sflag, size = 0x8, scoped, tag = 'scoped memory for mgn_forward.6']
    #allocation4 [shape = 'u8[512]{0}', space=vmem, size = 0x400, scoped, tag = 'input window, operand 2, single buffered']
    #allocation5 [shape = 's32[1]{0}', space=sflag, size = 0x4, scoped, tag = 'scoped memory for mgn_forward.6']
    #allocation6 [shape = 'u8[512]{0}', space=vmem, size = 0x400, scoped, tag = 'input window, operand 3, single buffered']
    %9 = vsyncpa [#allocation3], 0
    %10 = vsyncpa [#allocation5], 0
    loop: start=0, step=1, limit=4
    $region2: #{mgn_forward.6} parent=1 // loop_pre_header
      _
    $region3: #{mgn_forward.6} parent=1 // loop_header
      %s12 = sphi 0, %s16
      %p13 = scmp.ge.s32.totalorder %s12, 4
      %s22 = sphi 0, %s24
      %s25 = sphi 0, %s22
      %s26 = sphi 0, %s25
      %s42 = sphi 0, %s26
      %s46 = sphi 0, %s46
      %s48 = sphi 0, %s46
      %s49 = sphi 0, %s48
      %s63 = sphi 0, %s49
      %s67 = sphi 0, %s67
      %s69 = sphi 0, %s67
      %s70 = sphi 0, %s69
      %s84 = sphi 0, %s70
      %s88 = sphi 0, %s88
      %s90 = sphi 0, %s88
      %s91 = sphi 0, %s90
      %s105 = sphi 0, %s91
      %s111 = sphi 0, %s113
      %s114 = sphi 0, %s111
      %s115 = sphi 0, %s114
      %s131 = sphi 0, %s115
    $region4: #{mgn_forward.6} parent=1 // loop_header_branch
      %15 = sbr.rel (%p13) target = $region8
    $region5: #{mgn_forward.6} parent=1 // loop_body
      %s17 = ssub.s32 %s12, 1
      %s18 = ssub.s32 %s12, 2
      %s19 = sadd.s32 %s12, 1
      %s20 = ssub.s32 %s12, %s19
      %p21 = scmp.eq.s32.totalorder %s20, 0
      %s23 = sadd.s32 %s22, 1
      %s24 = scalar_select %p21, %s22, %s23
      %p27 = pneg %p21
      %p28 = scmp.eq.s32.totalorder %s12, 1
      %p29 = por %p27, %p28
      %p30 = scmp.ne.s32.totalorder %s22, %s25
      %p31 = scmp.eq.s32.totalorder %s12, 0
      %p32 = por %p30, %p31
      %p33 = scmp.ne.s32.totalorder %s22, %s25
      %p34 = scmp.eq.s32.totalorder %s17, 1
      %p35 = por %p33, %p34
      %p36 = scmp.ne.s32.totalorder %s25, %s26
      %p37 = scmp.eq.s32.totalorder %s17, 0
      %p38 = por %p36, %p37
      %p39 = scmp.ne.s32.totalorder %s25, %s26
      %p40 = scmp.eq.s32.totalorder %s18, 1
      %p41 = por %p39, %p40
      %p43 = scmp.ne.s32.totalorder %s26, %s42
      %p44 = scmp.eq.s32.totalorder %s18, 0
      %p45 = por %p43, %p44
      %s47 = sadd.s32 %s46, 1
      %p50 = scmp.eq.s32.totalorder %s12, 1
      %p51 = scmp.ne.s32.totalorder %s46, %s48
      %p52 = scmp.eq.s32.totalorder %s12, 0
      %p53 = por %p51, %p52
      %p54 = scmp.ne.s32.totalorder %s46, %s48
      %p55 = scmp.eq.s32.totalorder %s17, 1
      %p56 = por %p54, %p55
      %p57 = scmp.ne.s32.totalorder %s48, %s49
      %p58 = scmp.eq.s32.totalorder %s17, 0
      %p59 = por %p57, %p58
      %p60 = scmp.ne.s32.totalorder %s48, %s49
      %p61 = scmp.eq.s32.totalorder %s18, 1
      %p62 = por %p60, %p61
      %p64 = scmp.ne.s32.totalorder %s49, %s63
      %p65 = scmp.eq.s32.totalorder %s18, 0
      %p66 = por %p64, %p65
      %s68 = sadd.s32 %s67, 1
      %p71 = scmp.eq.s32.totalorder %s12, 1
      %p72 = scmp.ne.s32.totalorder %s67, %s69
      %p73 = scmp.eq.s32.totalorder %s12, 0
      %p74 = por %p72, %p73
      %p75 = scmp.ne.s32.totalorder %s67, %s69
      %p76 = scmp.eq.s32.totalorder %s17, 1
      %p77 = por %p75, %p76
      %p78 = scmp.ne.s32.totalorder %s69, %s70
      %p79 = scmp.eq.s32.totalorder %s17, 0
      %p80 = por %p78, %p79
      %p81 = scmp.ne.s32.totalorder %s69, %s70
      %p82 = scmp.eq.s32.totalorder %s18, 1
      %p83 = por %p81, %p82
      %p85 = scmp.ne.s32.totalorder %s70, %s84
      %p86 = scmp.eq.s32.totalorder %s18, 0
      %p87 = por %p85, %p86
      %s89 = sadd.s32 %s88, 1
      %p92 = scmp.eq.s32.totalorder %s12, 1
      %p93 = scmp.ne.s32.totalorder %s88, %s90
      %p94 = scmp.eq.s32.totalorder %s12, 0
      %p95 = por %p93, %p94
      %p96 = scmp.ne.s32.totalorder %s88, %s90
      %p97 = scmp.eq.s32.totalorder %s17, 1
      %p98 = por %p96, %p97
      %p99 = scmp.ne.s32.totalorder %s90, %s91
      %p100 = scmp.eq.s32.totalorder %s17, 0
      %p101 = por %p99, %p100
      %p102 = scmp.ne.s32.totalorder %s90, %s91
      %p103 = scmp.eq.s32.totalorder %s18, 1
      %p104 = por %p102, %p103
      %p106 = scmp.ne.s32.totalorder %s91, %s105
      %p107 = scmp.eq.s32.totalorder %s18, 0
      %p108 = por %p106, %p107
      %s109 = ssub.s32 %s12, %s19
      %p110 = scmp.eq.s32.totalorder %s109, 0
      %s112 = sadd.s32 %s111, 1
      %s113 = scalar_select %p110, %s111, %s112
      %p116 = pneg %p110
      %p117 = scmp.eq.s32.totalorder %s12, 1
      %p118 = por %p116, %p117
      %p119 = scmp.ne.s32.totalorder %s111, %s114
      %p120 = scmp.eq.s32.totalorder %s12, 0
      %p121 = por %p119, %p120
      %p122 = scmp.ne.s32.totalorder %s111, %s114
      %p123 = scmp.eq.s32.totalorder %s17, 1
      %p124 = por %p122, %p123
      %p125 = scmp.ne.s32.totalorder %s114, %s115
      %p126 = scmp.eq.s32.totalorder %s17, 0
      %p127 = por %p125, %p126
      %p128 = scmp.ne.s32.totalorder %s114, %s115
      %p129 = scmp.eq.s32.totalorder %s18, 1
      %p130 = por %p128, %p129
      %p132 = scmp.ne.s32.totalorder %s115, %s131
      %p133 = scmp.eq.s32.totalorder %s18, 0
      %p134 = por %p132, %p133
      %p135 = scmp.le.s32.totalorder 1, %s12
      %p136 = scmp.lt.s32.totalorder %s12, 3
      %p137 = pnand %p135, %p136
      %p138 = pneg %p137
      // Predicated region
      $region9: #{mgn_forward.6} parent=5 // pred_check
        _
      $region10: #{mgn_forward.6} parent=5 // pred_check_branch
        %140 = sbr.rel (%p137) target = $region12
      $region11: #{mgn_forward.6} parent=5 // pred_region
        %s141 = ssub.s32 %s12, 1
        // Predicated region
        $region13: #{mgn_forward.6} parent=11 // pred_check
          %p142 = pneg %p59
        $region14: #{mgn_forward.6} parent=11 // pred_check_branch
          %144 = sbr.rel (%p142) target = $region16
        $region15: #{mgn_forward.6} parent=11 // pred_region
          %s146 = ssub.s32 1024, 1024
          %147 = vsyncadd [#allocation3], %s146
          %s148 = sshll.u32 [#allocation2], 4
          %s149 = int_to_ptr.vmem [resolvable:$true] %s148
          %154 = dma.hbm_to_vmem [thread:$0]  %s1, 1024, %s149, [#allocation3], 64, 64, 4
        $region16: #{mgn_forward.6} parent=11 // pred_fallthru
          _
        // Predicated region
        $region17: #{mgn_forward.6} parent=11 // pred_check
          %p155 = pneg %p80
        $region18: #{mgn_forward.6} parent=11 // pred_check_branch
          %157 = sbr.rel (%p155) target = $region20
        $region19: #{mgn_forward.6} parent=11 // pred_region
          %s159 = ssub.s32 16, 16
          %160 = vsyncadd [#allocation5], %s159
          %s162 = sshll.u32 [#allocation4], 4
          %s163 = int_to_ptr.vmem [resolvable:$true] %s162
          %165 = dma.hbm_to_vmem [thread:$0]  %s2, 16, %s163, [#allocation5]
        $region20: #{mgn_forward.6} parent=11 // pred_fallthru
          _
        // Predicated region
        $region21: #{mgn_forward.6} parent=11 // pred_check
          %p166 = pneg %p101
        $region22: #{mgn_forward.6} parent=11 // pred_check_branch
          %168 = sbr.rel (%p166) target = $region24
        $region23: #{mgn_forward.6} parent=11 // pred_region
          %s170 = ssub.s32 16, 16
          %171 = vsyncadd [#allocation5], %s170
          %s173 = sshll.u32 [#allocation6], 4
          %s174 = int_to_ptr.vmem [resolvable:$true] %s173
          %176 = dma.hbm_to_vmem [thread:$0]  %s3, 16, %s174, [#allocation5]
        $region24: #{mgn_forward.6} parent=11 // pred_fallthru
          _
      $region12: #{mgn_forward.6} parent=5 // pred_fallthru
        _
      %p177 = scmp.lt.s32.totalorder %s12, 2
      // Predicated region
      $region25: #{mgn_forward.6} parent=5 // pred_check
        %p178 = pneg %p177
      $region26: #{mgn_forward.6} parent=5 // pred_check_branch
        %180 = sbr.rel (%p178) target = $region28
      $region27: #{mgn_forward.6} parent=5 // pred_region
        // Predicated region
        $region29: #{mgn_forward.6} parent=27 // pred_check
          %p181 = pneg %p32
        $region30: #{mgn_forward.6} parent=27 // pred_check_branch
          %183 = sbr.rel (%p181) target = $region32
        $region31: #{mgn_forward.6} parent=27 // pred_region
          %s184 = smul.u32 96, %s12
          %p185 = scmp.lt.s32.totalorder %s184, 191
          %s186 = scalar_select %p185, %s184, 191
          %s187 = smul.addr %s186, 4
          %s188 = scalar_lea.vmem %s0, %s187
          %s189 = smul.u32 96, %s12
        $region32: #{mgn_forward.6} parent=27 // pred_fallthru
          _
      $region28: #{mgn_forward.6} parent=5 // pred_fallthru
        _
      %p190 = scmp.le.s32.totalorder 1, %s12
      %p191 = scmp.lt.s32.totalorder %s12, 3
      %p192 = pnand %p190, %p191
      %p193 = pneg %p192
      // Predicated region
      $region33: #{mgn_forward.6} parent=5 // pred_check
        _
      $region34: #{mgn_forward.6} parent=5 // pred_check_branch
        %195 = sbr.rel (%p192) target = $region36
      $region35: #{mgn_forward.6} parent=5 // pred_region
        %s196 = ssub.s32 %s12, 1
        // Predicated region
        $region37: #{mgn_forward.6} parent=35 // pred_check
          %p197 = pneg %p59
        $region38: #{mgn_forward.6} parent=35 // pred_check_branch
          %199 = sbr.rel (%p197) target = $region40
        $region39: #{mgn_forward.6} parent=35 // pred_region
          %200 = dma.done [#allocation3], 1024
        $region40: #{mgn_forward.6} parent=35 // pred_fallthru
          _
        // Predicated region
        $region41: #{mgn_forward.6} parent=35 // pred_check
          %p201 = pneg %p80
        $region42: #{mgn_forward.6} parent=35 // pred_check_branch
          %203 = sbr.rel (%p201) target = $region44
        $region43: #{mgn_forward.6} parent=35 // pred_region
          %204 = dma.done [#allocation5], 16
        $region44: #{mgn_forward.6} parent=35 // pred_fallthru
          _
        // Predicated region
        $region45: #{mgn_forward.6} parent=35 // pred_check
          %p205 = pneg %p101
        $region46: #{mgn_forward.6} parent=35 // pred_check_branch
          %207 = sbr.rel (%p205) target = $region48
        $region47: #{mgn_forward.6} parent=35 // pred_region
          %208 = dma.done [#allocation5], 16
        $region48: #{mgn_forward.6} parent=35 // pred_fallthru
          _
        %s209 = smul.u32 96, %s17
        %p210 = scmp.lt.s32.totalorder %s209, 191
        %s211 = scalar_select %p210, %s209, 191
        %s212 = smul.addr %s211, 4
        %s213 = scalar_lea.vmem %s0, %s212
        %p214 = pneg %p38
        %p215 = pneg %p35
        %p216 = pneg %p59
        %p217 = pneg %p56
        %p218 = pneg %p80
        %p219 = pneg %p77
        %p220 = pneg %p101
        %p221 = pneg %p98
        %p222 = pneg %p127
        %p223 = pneg %p124
        %s224 = smul.u32 96, %s17
        %p225 = scmp.lt.s32.totalorder %s224, 191
        %s226 = scalar_select %p225, %s224, 191
        %s227 = smul.addr %s226, 8
        %s228 = scalar_lea.vmem %s4, %s227
        %s229 = smul.u32 96, %s17
        %p230 = scmp.lt.s32.totalorder %s229, 191
        %s231 = scalar_select %p230, %s229, 191
        %s232 = smul.addr %s231, 4
        %s233 = scalar_lea.vmem %s0, %s232
        %s234 = smul.u32 96, %s17
        %s235 = smul.u32 96, %s17
        %p236 = scmp.lt.s32.totalorder %s235, 191
        %s237 = scalar_select %p236, %s235, 191
        %s238 = smul.addr %s237, 8
        %s239 = scalar_lea.vmem %s4, %s238
        %s240 = smul.u32 96, %s17
        %v242 = vld [vmem:[%s233] sm:$0xf]
        %v243 = vld [vmem:[%s233 + $0x4] sm:$0xf]
        %v244 = vld [vmem:[%s233 + $0x8] sm:$0xf]
        %v245 = vld [vmem:[%s233 + $0xc] sm:$0xf]
        %v246 = vld [vmem:[%s233 + $0x10] sm:$0xf]
        %v247 = vld [vmem:[%s233 + $0x14] sm:$0xf]
        %v248 = vld [vmem:[%s233 + $0x18] sm:$0xf]
        %v249 = vld [vmem:[%s233 + $0x1c] sm:$0xf]
        %v250 = vld [vmem:[%s233 + $0x20] sm:$0xf]
        %v251 = vld [vmem:[%s233 + $0x24] sm:$0xf]
        %v252 = vld [vmem:[%s233 + $0x28] sm:$0xf]
        %v253 = vld [vmem:[%s233 + $0x2c] sm:$0xf]
        %v254 = vld [vmem:[%s233 + $0x30] sm:$0xf]
        %v255 = vld [vmem:[%s233 + $0x34] sm:$0xf]
        %v256 = vld [vmem:[%s233 + $0x38] sm:$0xf]
        %v257 = vld [vmem:[%s233 + $0x3c] sm:$0xf]
        %v258 = vld [vmem:[%s233 + $0x40] sm:$0xf]
        %v259 = vld [vmem:[%s233 + $0x44] sm:$0xf]
        %v260 = vld [vmem:[%s233 + $0x48] sm:$0xf]
        %v261 = vld [vmem:[%s233 + $0x4c] sm:$0xf]
        %v262 = vld [vmem:[%s233 + $0x50] sm:$0xf]
        %v263 = vld [vmem:[%s233 + $0x54] sm:$0xf]
        %v264 = vld [vmem:[%s233 + $0x58] sm:$0xf]
        %v265 = vld [vmem:[%s233 + $0x5c] sm:$0xf]
        %v266 = vld [vmem:[%s233 + $0x60] sm:$0xf]
        %v267 = vld [vmem:[%s233 + $0x64] sm:$0xf]
        %v268 = vld [vmem:[%s233 + $0x68] sm:$0xf]
        %v269 = vld [vmem:[%s233 + $0x6c] sm:$0xf]
        %v270 = vld [vmem:[%s233 + $0x70] sm:$0xf]
        %v271 = vld [vmem:[%s233 + $0x74] sm:$0xf]
        %v272 = vld [vmem:[%s233 + $0x78] sm:$0xf]
        %v273 = vld [vmem:[%s233 + $0x7c] sm:$0xf]
        %v274 = vld [vmem:[%s233 + $0x80] sm:$0xf]
        %v275 = vld [vmem:[%s233 + $0x84] sm:$0xf]
        %v276 = vld [vmem:[%s233 + $0x88] sm:$0xf]
        %v277 = vld [vmem:[%s233 + $0x8c] sm:$0xf]
        %v278 = vld [vmem:[%s233 + $0x90] sm:$0xf]
        %v279 = vld [vmem:[%s233 + $0x94] sm:$0xf]
        %v280 = vld [vmem:[%s233 + $0x98] sm:$0xf]
        %v281 = vld [vmem:[%s233 + $0x9c] sm:$0xf]
        %v282 = vld [vmem:[%s233 + $0xa0] sm:$0xf]
        %v283 = vld [vmem:[%s233 + $0xa4] sm:$0xf]
        %v284 = vld [vmem:[%s233 + $0xa8] sm:$0xf]
        %v285 = vld [vmem:[%s233 + $0xac] sm:$0xf]
        %v286 = vld [vmem:[%s233 + $0xb0] sm:$0xf]
        %v287 = vld [vmem:[%s233 + $0xb4] sm:$0xf]
        %v288 = vld [vmem:[%s233 + $0xb8] sm:$0xf]
        %v289 = vld [vmem:[%s233 + $0xbc] sm:$0xf]
        %v290 = vld [vmem:[%s233 + $0xc0] sm:$0xf]
        %v291 = vld [vmem:[%s233 + $0xc4] sm:$0xf]
        %v292 = vld [vmem:[%s233 + $0xc8] sm:$0xf]
        %v293 = vld [vmem:[%s233 + $0xcc] sm:$0xf]
        %v294 = vld [vmem:[%s233 + $0xd0] sm:$0xf]
        %v295 = vld [vmem:[%s233 + $0xd4] sm:$0xf]
        %v296 = vld [vmem:[%s233 + $0xd8] sm:$0xf]
        %v297 = vld [vmem:[%s233 + $0xdc] sm:$0xf]
        %v298 = vld [vmem:[%s233 + $0xe0] sm:$0xf]
        %v299 = vld [vmem:[%s233 + $0xe4] sm:$0xf]
        %v300 = vld [vmem:[%s233 + $0xe8] sm:$0xf]
        %v301 = vld [vmem:[%s233 + $0xec] sm:$0xf]
        %v302 = vld [vmem:[%s233 + $0xf0] sm:$0xf]
        %v303 = vld [vmem:[%s233 + $0xf4] sm:$0xf]
        %v304 = vld [vmem:[%s233 + $0xf8] sm:$0xf]
        %v305 = vld [vmem:[%s233 + $0xfc] sm:$0xf]
        %v306 = vld [vmem:[%s233 + $0x100] sm:$0xf]
        %v307 = vld [vmem:[%s233 + $0x104] sm:$0xf]
        %v308 = vld [vmem:[%s233 + $0x108] sm:$0xf]
        %v309 = vld [vmem:[%s233 + $0x10c] sm:$0xf]
        %v310 = vld [vmem:[%s233 + $0x110] sm:$0xf]
        %v311 = vld [vmem:[%s233 + $0x114] sm:$0xf]
        %v312 = vld [vmem:[%s233 + $0x118] sm:$0xf]
        %v313 = vld [vmem:[%s233 + $0x11c] sm:$0xf]
        %v314 = vld [vmem:[%s233 + $0x120] sm:$0xf]
        %v315 = vld [vmem:[%s233 + $0x124] sm:$0xf]
        %v316 = vld [vmem:[%s233 + $0x128] sm:$0xf]
        %v317 = vld [vmem:[%s233 + $0x12c] sm:$0xf]
        %v318 = vld [vmem:[%s233 + $0x130] sm:$0xf]
        %v319 = vld [vmem:[%s233 + $0x134] sm:$0xf]
        %v320 = vld [vmem:[%s233 + $0x138] sm:$0xf]
        %v321 = vld [vmem:[%s233 + $0x13c] sm:$0xf]
        %v322 = vld [vmem:[%s233 + $0x140] sm:$0xf]
        %v323 = vld [vmem:[%s233 + $0x144] sm:$0xf]
        %v324 = vld [vmem:[%s233 + $0x148] sm:$0xf]
        %v325 = vld [vmem:[%s233 + $0x14c] sm:$0xf]
        %v326 = vld [vmem:[%s233 + $0x150] sm:$0xf]
        %v327 = vld [vmem:[%s233 + $0x154] sm:$0xf]
        %v328 = vld [vmem:[%s233 + $0x158] sm:$0xf]
        %v329 = vld [vmem:[%s233 + $0x15c] sm:$0xf]
        %v330 = vld [vmem:[%s233 + $0x160] sm:$0xf]
        %v331 = vld [vmem:[%s233 + $0x164] sm:$0xf]
        %v332 = vld [vmem:[%s233 + $0x168] sm:$0xf]
        %v333 = vld [vmem:[%s233 + $0x16c] sm:$0xf]
        %v334 = vld [vmem:[%s233 + $0x170] sm:$0xf]
        %v335 = vld [vmem:[%s233 + $0x174] sm:$0xf]
        %v336 = vld [vmem:[%s233 + $0x178] sm:$0xf]
        %v337 = vld [vmem:[%s233 + $0x17c] sm:$0xf]
        %v338 = vld [vmem:[#allocation2] sm:$0xf]
        %v339 = vld [vmem:[#allocation2 + $0x4] sm:$0xf]
        %v340 = vld [vmem:[#allocation2 + $0x8] sm:$0xf]
        %v341 = vld [vmem:[#allocation2 + $0xc] sm:$0xf]
        %v342 = vld [vmem:[#allocation2 + $0x10] sm:$0xf]
        %v343 = vld [vmem:[#allocation2 + $0x14] sm:$0xf]
        %v344 = vld [vmem:[#allocation2 + $0x18] sm:$0xf]
        %v345 = vld [vmem:[#allocation2 + $0x1c] sm:$0xf]
        %v346 = vld [vmem:[#allocation2 + $0x20] sm:$0xf]
        %v347 = vld [vmem:[#allocation2 + $0x24] sm:$0xf]
        %v348 = vld [vmem:[#allocation2 + $0x28] sm:$0xf]
        %v349 = vld [vmem:[#allocation2 + $0x2c] sm:$0xf]
        %v350 = vld [vmem:[#allocation2 + $0x30] sm:$0xf]
        %v351 = vld [vmem:[#allocation2 + $0x34] sm:$0xf]
        %v352 = vld [vmem:[#allocation2 + $0x38] sm:$0xf]
        %v353 = vld [vmem:[#allocation2 + $0x3c] sm:$0xf]
        %v450 = vunpack.c.l.b16 %v242
        %v451 = vunpack.c.l.b16 %v243
        %v452 = vunpack.c.l.b16 %v244
        %v453 = vunpack.c.l.b16 %v245
        %v454 = vunpack.c.l.b16 %v246
        %v455 = vunpack.c.l.b16 %v247
        %v456 = vunpack.c.l.b16 %v248
        %v457 = vunpack.c.l.b16 %v249
        %v458 = vunpack.c.l.b16 %v250
        %v459 = vunpack.c.l.b16 %v251
        %v460 = vunpack.c.l.b16 %v252
        %v461 = vunpack.c.l.b16 %v253
        %v462 = vunpack.c.l.b16 %v254
        %v463 = vunpack.c.l.b16 %v255
        %v464 = vunpack.c.l.b16 %v256
        %v465 = vunpack.c.l.b16 %v257
        %v466 = vunpack.c.l.b16 %v258
        %v467 = vunpack.c.l.b16 %v259
        %v468 = vunpack.c.l.b16 %v260
        %v469 = vunpack.c.l.b16 %v261
        %v470 = vunpack.c.l.b16 %v262
        %v471 = vunpack.c.l.b16 %v263
        %v472 = vunpack.c.l.b16 %v264
        %v473 = vunpack.c.l.b16 %v265
        %v474 = vunpack.c.l.b16 %v266
        %v475 = vunpack.c.l.b16 %v267
        %v476 = vunpack.c.l.b16 %v268
        %v477 = vunpack.c.l.b16 %v269
        %v478 = vunpack.c.l.b16 %v270
        %v479 = vunpack.c.l.b16 %v271
        %v480 = vunpack.c.l.b16 %v272
        %v481 = vunpack.c.l.b16 %v273
        %v482 = vunpack.c.l.b16 %v274
        %v483 = vunpack.c.l.b16 %v275
        %v484 = vunpack.c.l.b16 %v276
        %v485 = vunpack.c.l.b16 %v277
        %v486 = vunpack.c.l.b16 %v278
        %v487 = vunpack.c.l.b16 %v279
        %v488 = vunpack.c.l.b16 %v280
        %v489 = vunpack.c.l.b16 %v281
        %v490 = vunpack.c.l.b16 %v282
        %v491 = vunpack.c.l.b16 %v283
        %v492 = vunpack.c.l.b16 %v284
        %v493 = vunpack.c.l.b16 %v285
        %v494 = vunpack.c.l.b16 %v286
        %v495 = vunpack.c.l.b16 %v287
        %v496 = vunpack.c.l.b16 %v288
        %v497 = vunpack.c.l.b16 %v289
        %v498 = vunpack.c.l.b16 %v290
        %v499 = vunpack.c.l.b16 %v291
        %v500 = vunpack.c.l.b16 %v292
        %v501 = vunpack.c.l.b16 %v293
        %v502 = vunpack.c.l.b16 %v294
        %v503 = vunpack.c.l.b16 %v295
        %v504 = vunpack.c.l.b16 %v296
        %v505 = vunpack.c.l.b16 %v297
        %v506 = vunpack.c.l.b16 %v298
        %v507 = vunpack.c.l.b16 %v299
        %v508 = vunpack.c.l.b16 %v300
        %v509 = vunpack.c.l.b16 %v301
        %v510 = vunpack.c.l.b16 %v302
        %v511 = vunpack.c.l.b16 %v303
        %v512 = vunpack.c.l.b16 %v304
        %v513 = vunpack.c.l.b16 %v305
        %v514 = vunpack.c.l.b16 %v306
        %v515 = vunpack.c.l.b16 %v307
        %v516 = vunpack.c.l.b16 %v308
        %v517 = vunpack.c.l.b16 %v309
        %v518 = vunpack.c.l.b16 %v310
        %v519 = vunpack.c.l.b16 %v311
        %v520 = vunpack.c.l.b16 %v312
        %v521 = vunpack.c.l.b16 %v313
        %v522 = vunpack.c.l.b16 %v314
        %v523 = vunpack.c.l.b16 %v315
        %v524 = vunpack.c.l.b16 %v316
        %v525 = vunpack.c.l.b16 %v317
        %v526 = vunpack.c.l.b16 %v318
        %v527 = vunpack.c.l.b16 %v319
        %v528 = vunpack.c.l.b16 %v320
        %v529 = vunpack.c.l.b16 %v321
        %v530 = vunpack.c.l.b16 %v322
        %v531 = vunpack.c.l.b16 %v323
        %v532 = vunpack.c.l.b16 %v324
        %v533 = vunpack.c.l.b16 %v325
        %v534 = vunpack.c.l.b16 %v326
        %v535 = vunpack.c.l.b16 %v327
        %v536 = vunpack.c.l.b16 %v328
        %v537 = vunpack.c.l.b16 %v329
        %v538 = vunpack.c.l.b16 %v330
        %v539 = vunpack.c.l.b16 %v331
        %v540 = vunpack.c.l.b16 %v332
        %v541 = vunpack.c.l.b16 %v333
        %v542 = vunpack.c.l.b16 %v334
        %v543 = vunpack.c.l.b16 %v335
        %v544 = vunpack.c.l.b16 %v336
        %v545 = vunpack.c.l.b16 %v337
        %v546 = vpack.c.b16 %v451, %v450
        %v547 = vpack.c.b16 %v453, %v452
        %v548 = vpack.c.b16 %v455, %v454
        %v549 = vpack.c.b16 %v457, %v456
        %v550 = vpack.c.b16 %v459, %v458
        %v551 = vpack.c.b16 %v461, %v460
        %v552 = vpack.c.b16 %v463, %v462
        %v553 = vpack.c.b16 %v465, %v464
        %v554 = vpack.c.b16 %v467, %v466
        %v555 = vpack.c.b16 %v469, %v468
        %v556 = vpack.c.b16 %v471, %v470
        %v557 = vpack.c.b16 %v473, %v472
        %v558 = vpack.c.b16 %v475, %v474
        %v559 = vpack.c.b16 %v477, %v476
        %v560 = vpack.c.b16 %v479, %v478
        %v561 = vpack.c.b16 %v481, %v480
        %v562 = vpack.c.b16 %v483, %v482
        %v563 = vpack.c.b16 %v485, %v484
        %v564 = vpack.c.b16 %v487, %v486
        %v565 = vpack.c.b16 %v489, %v488
        %v566 = vpack.c.b16 %v491, %v490
        %v567 = vpack.c.b16 %v493, %v492
        %v568 = vpack.c.b16 %v495, %v494
        %v569 = vpack.c.b16 %v497, %v496
        %v570 = vpack.c.b16 %v499, %v498
        %v571 = vpack.c.b16 %v501, %v500
        %v572 = vpack.c.b16 %v503, %v502
        %v573 = vpack.c.b16 %v505, %v504
        %v574 = vpack.c.b16 %v507, %v506
        %v575 = vpack.c.b16 %v509, %v508
        %v576 = vpack.c.b16 %v511, %v510
        %v577 = vpack.c.b16 %v513, %v512
        %v578 = vpack.c.b16 %v515, %v514
        %v579 = vpack.c.b16 %v517, %v516
        %v580 = vpack.c.b16 %v519, %v518
        %v581 = vpack.c.b16 %v521, %v520
        %v582 = vpack.c.b16 %v523, %v522
        %v583 = vpack.c.b16 %v525, %v524
        %v584 = vpack.c.b16 %v527, %v526
        %v585 = vpack.c.b16 %v529, %v528
        %v586 = vpack.c.b16 %v531, %v530
        %v587 = vpack.c.b16 %v533, %v532
        %v588 = vpack.c.b16 %v535, %v534
        %v589 = vpack.c.b16 %v537, %v536
        %v590 = vpack.c.b16 %v539, %v538
        %v591 = vpack.c.b16 %v541, %v540
        %v592 = vpack.c.b16 %v543, %v542
        %v593 = vpack.c.b16 %v545, %v544
        %v658 = vunpack.c.l.b16 %v338
        %v659 = vunpack.c.l.b16 %v339
        %v660 = vunpack.c.l.b16 %v340
        %v661 = vunpack.c.l.b16 %v341
        %v662 = vunpack.c.l.b16 %v342
        %v663 = vunpack.c.l.b16 %v343
        %v664 = vunpack.c.l.b16 %v344
        %v665 = vunpack.c.l.b16 %v345
        %v666 = vunpack.c.l.b16 %v346
        %v667 = vunpack.c.l.b16 %v347
        %v668 = vunpack.c.l.b16 %v348
        %v669 = vunpack.c.l.b16 %v349
        %v670 = vunpack.c.l.b16 %v350
        %v671 = vunpack.c.l.b16 %v351
        %v672 = vunpack.c.l.b16 %v352
        %v673 = vunpack.c.l.b16 %v353
        %v674 = vpack.c.b16 %v659, %v658
        %v675 = vpack.c.b16 %v661, %v660
        %v676 = vpack.c.b16 %v663, %v662
        %v677 = vpack.c.b16 %v665, %v664
        %v678 = vpack.c.b16 %v667, %v666
        %v679 = vpack.c.b16 %v669, %v668
        %v680 = vpack.c.b16 %v671, %v670
        %v681 = vpack.c.b16 %v673, %v672
        %690 = vmatprep.subr.bf16.mxu0 0
        %691 = vmatpush1.bf16.msra.mxu0 %v681
        %692 = vmatprep.subr.bf16.mxu0 0
        %693 = vmatpush1.bf16.msra.mxu0 %v680
        %694 = vmatprep.subr.bf16.mxu0 0
        %695 = vmatpush1.bf16.msra.mxu0 %v679
        %696 = vmatprep.subr.bf16.mxu0 0
        %697 = vmatpush1.bf16.msra.mxu0 %v678
        %698 = vmatprep.subr.bf16.mxu0 0
        %699 = vmatpush1.bf16.msra.mxu0 %v677
        %700 = vmatprep.subr.bf16.mxu0 0
        %701 = vmatpush1.bf16.msra.mxu0 %v676
        %702 = vmatprep.subr.bf16.mxu0 0
        %703 = vmatpush1.bf16.msra.mxu0 %v675
        %704 = vmatprep.subr.bf16.mxu0 0
        %705 = vmatpush1.bf16.msra.mxu0 %v674
        %706 = vmatprep.subr.bf16.mxu0 0
        %707 = vmatpush2.bf16.msra.mxu0 0
        %708 = vmatprep.subr.bf16.mxu0 0
        %709 = vmatpush2.bf16.msra.mxu0 0
        %710 = vmatprep.subr.bf16.mxu0 0
        %711 = vmatpush2.bf16.msra.mxu0 0
        %712 = vmatprep.subr.bf16.mxu0 0
        %713 = vmatpush2.bf16.msra.mxu0 0
        %714 = vmatprep.subr.bf16.mxu0 0
        %715 = vmatpush2.bf16.msra.mxu0 0
        %716 = vmatprep.subr.bf16.mxu0 0
        %717 = vmatpush2.bf16.msra.mxu0 0
        %718 = vmatprep.subr.bf16.mxu0 0
        %719 = vmatpush2.bf16.msra.mxu0 0
        %720 = vmatprep.subr.bf16.mxu0 0
        %721 = vmatpush2.bf16.msra.mxu0 0
        %722 = vmatprep.mubr.bf16.mxu0 0
        %723 = vmatmul.mubr.bf16.gmra.mxu0 %v546
        %v724 = vpop.f32.mrf.mxu0
        %v725 = vadd.f32 0.0, %v724
        %v726 = vpop.f32.mrf.mxu0
        %v727 = vpop.f32.mrf.mxu0
        %v728 = vadd.f32 0.0, %v727
        %v729 = vpop.f32.mrf.mxu0
        %730 = vmatprep.mubr.bf16.mxu0 0
        %731 = vmatmul.mubr.bf16.gmra.mxu0 %v547
        %v732 = vpop.f32.mrf.mxu0
        %v733 = vadd.f32 0.0, %v732
        %v734 = vpop.f32.mrf.mxu0
        %v735 = vpop.f32.mrf.mxu0
        %v736 = vadd.f32 0.0, %v735
        %v737 = vpop.f32.mrf.mxu0
        %738 = vmatprep.mubr.bf16.mxu0 0
        %739 = vmatmul.mubr.bf16.gmra.mxu0 %v548
        %v740 = vpop.f32.mrf.mxu0
        %v741 = vadd.f32 0.0, %v740
        %v742 = vpop.f32.mrf.mxu0
        %v743 = vpop.f32.mrf.mxu0
        %v744 = vadd.f32 0.0, %v743
        %v745 = vpop.f32.mrf.mxu0
        %746 = vmatprep.mubr.bf16.mxu0 0
        %747 = vmatmul.mubr.bf16.gmra.mxu0 %v549
        %v748 = vpop.f32.mrf.mxu0
        %v749 = vadd.f32 0.0, %v748
        %v750 = vpop.f32.mrf.mxu0
        %v751 = vpop.f32.mrf.mxu0
        %v752 = vadd.f32 0.0, %v751
        %v753 = vpop.f32.mrf.mxu0
        %754 = vmatprep.mubr.bf16.mxu0 0
        %755 = vmatmul.mubr.bf16.gmra.mxu0 %v550
        %v756 = vpop.f32.mrf.mxu0
        %v757 = vadd.f32 0.0, %v756
        %v758 = vpop.f32.mrf.mxu0
        %v759 = vpop.f32.mrf.mxu0
        %v760 = vadd.f32 0.0, %v759
        %v761 = vpop.f32.mrf.mxu0
        %762 = vmatprep.mubr.bf16.mxu0 0
        %763 = vmatmul.mubr.bf16.gmra.mxu0 %v551
        %v764 = vpop.f32.mrf.mxu0
        %v765 = vadd.f32 0.0, %v764
        %v766 = vpop.f32.mrf.mxu0
        %v767 = vpop.f32.mrf.mxu0
        %v768 = vadd.f32 0.0, %v767
        %v769 = vpop.f32.mrf.mxu0
        %770 = vmatprep.mubr.bf16.mxu0 0
        %771 = vmatmul.mubr.bf16.gmra.mxu0 %v552
        %v772 = vpop.f32.mrf.mxu0
        %v773 = vadd.f32 0.0, %v772
        %v774 = vpop.f32.mrf.mxu0
        %v775 = vpop.f32.mrf.mxu0
        %v776 = vadd.f32 0.0, %v775
        %v777 = vpop.f32.mrf.mxu0
        %778 = vmatprep.mubr.bf16.mxu0 0
        %779 = vmatmul.mubr.bf16.gmra.mxu0 %v553
        %v780 = vpop.f32.mrf.mxu0
        %v781 = vadd.f32 0.0, %v780
        %v782 = vpop.f32.mrf.mxu0
        %v783 = vpop.f32.mrf.mxu0
        %v784 = vadd.f32 0.0, %v783
        %v785 = vpop.f32.mrf.mxu0
        %786 = vmatprep.mubr.bf16.mxu0 0
        %787 = vmatmul.mubr.bf16.gmra.mxu0 %v554
        %v788 = vpop.f32.mrf.mxu0
        %v789 = vadd.f32 0.0, %v788
        %v790 = vpop.f32.mrf.mxu0
        %v791 = vpop.f32.mrf.mxu0
        %v792 = vadd.f32 0.0, %v791
        %v793 = vpop.f32.mrf.mxu0
        %794 = vmatprep.mubr.bf16.mxu0 0
        %795 = vmatmul.mubr.bf16.gmra.mxu0 %v555
        %v796 = vpop.f32.mrf.mxu0
        %v797 = vadd.f32 0.0, %v796
        %v798 = vpop.f32.mrf.mxu0
        %v799 = vpop.f32.mrf.mxu0
        %v800 = vadd.f32 0.0, %v799
        %v801 = vpop.f32.mrf.mxu0
        %802 = vmatprep.mubr.bf16.mxu0 0
        %803 = vmatmul.mubr.bf16.gmra.mxu0 %v556
        %v804 = vpop.f32.mrf.mxu0
        %v805 = vadd.f32 0.0, %v804
        %v806 = vpop.f32.mrf.mxu0
        %v807 = vpop.f32.mrf.mxu0
        %v808 = vadd.f32 0.0, %v807
        %v809 = vpop.f32.mrf.mxu0
        %810 = vmatprep.mubr.bf16.mxu0 0
        %811 = vmatmul.mubr.bf16.gmra.mxu0 %v557
        %v812 = vpop.f32.mrf.mxu0
        %v813 = vadd.f32 0.0, %v812
        %v814 = vpop.f32.mrf.mxu0
        %v815 = vpop.f32.mrf.mxu0
        %v816 = vadd.f32 0.0, %v815
        %v817 = vpop.f32.mrf.mxu0
        %818 = vmatprep.mubr.bf16.mxu0 0
        %819 = vmatmul.mubr.bf16.gmra.mxu0 %v558
        %v820 = vpop.f32.mrf.mxu0
        %v821 = vadd.f32 0.0, %v820
        %v822 = vpop.f32.mrf.mxu0
        %v823 = vpop.f32.mrf.mxu0
        %v824 = vadd.f32 0.0, %v823
        %v825 = vpop.f32.mrf.mxu0
        %826 = vmatprep.mubr.bf16.mxu0 0
        %827 = vmatmul.mubr.bf16.gmra.mxu0 %v559
        %v828 = vpop.f32.mrf.mxu0
        %v829 = vadd.f32 0.0, %v828
        %v830 = vpop.f32.mrf.mxu0
        %v831 = vpop.f32.mrf.mxu0
        %v832 = vadd.f32 0.0, %v831
        %v833 = vpop.f32.mrf.mxu0
        %834 = vmatprep.mubr.bf16.mxu0 0
        %835 = vmatmul.mubr.bf16.gmra.mxu0 %v560
        %v836 = vpop.f32.mrf.mxu0
        %v837 = vadd.f32 0.0, %v836
        %v838 = vpop.f32.mrf.mxu0
        %v839 = vpop.f32.mrf.mxu0
        %v840 = vadd.f32 0.0, %v839
        %v841 = vpop.f32.mrf.mxu0
        %842 = vmatprep.mubr.bf16.mxu0 0
        %843 = vmatmul.mubr.bf16.gmra.mxu0 %v561
        %v844 = vpop.f32.mrf.mxu0
        %v845 = vadd.f32 0.0, %v844
        %v846 = vpop.f32.mrf.mxu0
        %v847 = vpop.f32.mrf.mxu0
        %v848 = vadd.f32 0.0, %v847
        %v849 = vpop.f32.mrf.mxu0
        %850 = vmatprep.mubr.bf16.mxu0 0
        %851 = vmatmul.mubr.bf16.gmra.mxu0 %v562
        %v852 = vpop.f32.mrf.mxu0
        %v853 = vadd.f32 0.0, %v852
        %v854 = vpop.f32.mrf.mxu0
        %v855 = vpop.f32.mrf.mxu0
        %v856 = vadd.f32 0.0, %v855
        %v857 = vpop.f32.mrf.mxu0
        %858 = vmatprep.mubr.bf16.mxu0 0
        %859 = vmatmul.mubr.bf16.gmra.mxu0 %v563
        %v860 = vpop.f32.mrf.mxu0
        %v861 = vadd.f32 0.0, %v860
        %v862 = vpop.f32.mrf.mxu0
        %v863 = vpop.f32.mrf.mxu0
        %v864 = vadd.f32 0.0, %v863
        %v865 = vpop.f32.mrf.mxu0
        %866 = vmatprep.mubr.bf16.mxu0 0
        %867 = vmatmul.mubr.bf16.gmra.mxu0 %v564
        %v868 = vpop.f32.mrf.mxu0
        %v869 = vadd.f32 0.0, %v868
        %v870 = vpop.f32.mrf.mxu0
        %v871 = vpop.f32.mrf.mxu0
        %v872 = vadd.f32 0.0, %v871
        %v873 = vpop.f32.mrf.mxu0
        %874 = vmatprep.mubr.bf16.mxu0 0
        %875 = vmatmul.mubr.bf16.gmra.mxu0 %v565
        %v876 = vpop.f32.mrf.mxu0
        %v877 = vadd.f32 0.0, %v876
        %v878 = vpop.f32.mrf.mxu0
        %v879 = vpop.f32.mrf.mxu0
        %v880 = vadd.f32 0.0, %v879
        %v881 = vpop.f32.mrf.mxu0
        %882 = vmatprep.mubr.bf16.mxu0 0
        %883 = vmatmul.mubr.bf16.gmra.mxu0 %v566
        %v884 = vpop.f32.mrf.mxu0
        %v885 = vadd.f32 0.0, %v884
        %v886 = vpop.f32.mrf.mxu0
        %v887 = vpop.f32.mrf.mxu0
        %v888 = vadd.f32 0.0, %v887
        %v889 = vpop.f32.mrf.mxu0
        %890 = vmatprep.mubr.bf16.mxu0 0
        %891 = vmatmul.mubr.bf16.gmra.mxu0 %v567
        %v892 = vpop.f32.mrf.mxu0
        %v893 = vadd.f32 0.0, %v892
        %v894 = vpop.f32.mrf.mxu0
        %v895 = vpop.f32.mrf.mxu0
        %v896 = vadd.f32 0.0, %v895
        %v897 = vpop.f32.mrf.mxu0
        %898 = vmatprep.mubr.bf16.mxu0 0
        %899 = vmatmul.mubr.bf16.gmra.mxu0 %v568
        %v900 = vpop.f32.mrf.mxu0
        %v901 = vadd.f32 0.0, %v900
        %v902 = vpop.f32.mrf.mxu0
        %v903 = vpop.f32.mrf.mxu0
        %v904 = vadd.f32 0.0, %v903
        %v905 = vpop.f32.mrf.mxu0
        %906 = vmatprep.mubr.bf16.mxu0 0
        %907 = vmatmul.mubr.bf16.gmra.mxu0 %v569
        %v908 = vpop.f32.mrf.mxu0
        %v909 = vadd.f32 0.0, %v908
        %v910 = vpop.f32.mrf.mxu0
        %v911 = vpop.f32.mrf.mxu0
        %v912 = vadd.f32 0.0, %v911
        %v913 = vpop.f32.mrf.mxu0
        %914 = vmatprep.mubr.bf16.mxu0 0
        %915 = vmatmul.mubr.bf16.gmra.mxu0 %v570
        %v916 = vpop.f32.mrf.mxu0
        %v917 = vadd.f32 0.0, %v916
        %v918 = vpop.f32.mrf.mxu0
        %v919 = vpop.f32.mrf.mxu0
        %v920 = vadd.f32 0.0, %v919
        %v921 = vpop.f32.mrf.mxu0
        %922 = vmatprep.mubr.bf16.mxu0 0
        %923 = vmatmul.mubr.bf16.gmra.mxu0 %v571
        %v924 = vpop.f32.mrf.mxu0
        %v925 = vadd.f32 0.0, %v924
        %v926 = vpop.f32.mrf.mxu0
        %v927 = vpop.f32.mrf.mxu0
        %v928 = vadd.f32 0.0, %v927
        %v929 = vpop.f32.mrf.mxu0
        %930 = vmatprep.mubr.bf16.mxu0 0
        %931 = vmatmul.mubr.bf16.gmra.mxu0 %v572
        %v932 = vpop.f32.mrf.mxu0
        %v933 = vadd.f32 0.0, %v932
        %v934 = vpop.f32.mrf.mxu0
        %v935 = vpop.f32.mrf.mxu0
        %v936 = vadd.f32 0.0, %v935
        %v937 = vpop.f32.mrf.mxu0
        %938 = vmatprep.mubr.bf16.mxu0 0
        %939 = vmatmul.mubr.bf16.gmra.mxu0 %v573
        %v940 = vpop.f32.mrf.mxu0
        %v941 = vadd.f32 0.0, %v940
        %v942 = vpop.f32.mrf.mxu0
        %v943 = vpop.f32.mrf.mxu0
        %v944 = vadd.f32 0.0, %v943
        %v945 = vpop.f32.mrf.mxu0
        %946 = vmatprep.mubr.bf16.mxu0 0
        %947 = vmatmul.mubr.bf16.gmra.mxu0 %v574
        %v948 = vpop.f32.mrf.mxu0
        %v949 = vadd.f32 0.0, %v948
        %v950 = vpop.f32.mrf.mxu0
        %v951 = vpop.f32.mrf.mxu0
        %v952 = vadd.f32 0.0, %v951
        %v953 = vpop.f32.mrf.mxu0
        %954 = vmatprep.mubr.bf16.mxu0 0
        %955 = vmatmul.mubr.bf16.gmra.mxu0 %v575
        %v956 = vpop.f32.mrf.mxu0
        %v957 = vadd.f32 0.0, %v956
        %v958 = vpop.f32.mrf.mxu0
        %v959 = vpop.f32.mrf.mxu0
        %v960 = vadd.f32 0.0, %v959
        %v961 = vpop.f32.mrf.mxu0
        %962 = vmatprep.mubr.bf16.mxu0 0
        %963 = vmatmul.mubr.bf16.gmra.mxu0 %v576
        %v964 = vpop.f32.mrf.mxu0
        %v965 = vadd.f32 0.0, %v964
        %v966 = vpop.f32.mrf.mxu0
        %v967 = vpop.f32.mrf.mxu0
        %v968 = vadd.f32 0.0, %v967
        %v969 = vpop.f32.mrf.mxu0
        %970 = vmatprep.mubr.bf16.mxu0 0
        %971 = vmatmul.mubr.bf16.gmra.mxu0 %v577
        %v972 = vpop.f32.mrf.mxu0
        %v973 = vadd.f32 0.0, %v972
        %v974 = vpop.f32.mrf.mxu0
        %v975 = vpop.f32.mrf.mxu0
        %v976 = vadd.f32 0.0, %v975
        %v977 = vpop.f32.mrf.mxu0
        %978 = vmatprep.mubr.bf16.mxu0 0
        %979 = vmatmul.mubr.bf16.gmra.mxu0 %v578
        %v980 = vpop.f32.mrf.mxu0
        %v981 = vadd.f32 0.0, %v980
        %v982 = vpop.f32.mrf.mxu0
        %v983 = vpop.f32.mrf.mxu0
        %v984 = vadd.f32 0.0, %v983
        %v985 = vpop.f32.mrf.mxu0
        %986 = vmatprep.mubr.bf16.mxu0 0
        %987 = vmatmul.mubr.bf16.gmra.mxu0 %v579
        %v988 = vpop.f32.mrf.mxu0
        %v989 = vadd.f32 0.0, %v988
        %v990 = vpop.f32.mrf.mxu0
        %v991 = vpop.f32.mrf.mxu0
        %v992 = vadd.f32 0.0, %v991
        %v993 = vpop.f32.mrf.mxu0
        %994 = vmatprep.mubr.bf16.mxu0 0
        %995 = vmatmul.mubr.bf16.gmra.mxu0 %v580
        %v996 = vpop.f32.mrf.mxu0
        %v997 = vadd.f32 0.0, %v996
        %v998 = vpop.f32.mrf.mxu0
        %v999 = vpop.f32.mrf.mxu0
        %v1000 = vadd.f32 0.0, %v999
        %v1001 = vpop.f32.mrf.mxu0
        %1002 = vmatprep.mubr.bf16.mxu0 0
        %1003 = vmatmul.mubr.bf16.gmra.mxu0 %v581
        %v1004 = vpop.f32.mrf.mxu0
        %v1005 = vadd.f32 0.0, %v1004
        %v1006 = vpop.f32.mrf.mxu0
        %v1007 = vpop.f32.mrf.mxu0
        %v1008 = vadd.f32 0.0, %v1007
        %v1009 = vpop.f32.mrf.mxu0
        %1010 = vmatprep.mubr.bf16.mxu0 0
        %1011 = vmatmul.mubr.bf16.gmra.mxu0 %v582
        %v1012 = vpop.f32.mrf.mxu0
        %v1013 = vadd.f32 0.0, %v1012
        %v1014 = vpop.f32.mrf.mxu0
        %v1015 = vpop.f32.mrf.mxu0
        %v1016 = vadd.f32 0.0, %v1015
        %v1017 = vpop.f32.mrf.mxu0
        %1018 = vmatprep.mubr.bf16.mxu0 0
        %1019 = vmatmul.mubr.bf16.gmra.mxu0 %v583
        %v1020 = vpop.f32.mrf.mxu0
        %v1021 = vadd.f32 0.0, %v1020
        %v1022 = vpop.f32.mrf.mxu0
        %v1023 = vpop.f32.mrf.mxu0
        %v1024 = vadd.f32 0.0, %v1023
        %v1025 = vpop.f32.mrf.mxu0
        %1026 = vmatprep.mubr.bf16.mxu0 0
        %1027 = vmatmul.mubr.bf16.gmra.mxu0 %v584
        %v1028 = vpop.f32.mrf.mxu0
        %v1029 = vadd.f32 0.0, %v1028
        %v1030 = vpop.f32.mrf.mxu0
        %v1031 = vpop.f32.mrf.mxu0
        %v1032 = vadd.f32 0.0, %v1031
        %v1033 = vpop.f32.mrf.mxu0
        %1034 = vmatprep.mubr.bf16.mxu0 0
        %1035 = vmatmul.mubr.bf16.gmra.mxu0 %v585
        %v1036 = vpop.f32.mrf.mxu0
        %v1037 = vadd.f32 0.0, %v1036
        %v1038 = vpop.f32.mrf.mxu0
        %v1039 = vpop.f32.mrf.mxu0
        %v1040 = vadd.f32 0.0, %v1039
        %v1041 = vpop.f32.mrf.mxu0
        %1042 = vmatprep.mubr.bf16.mxu0 0
        %1043 = vmatmul.mubr.bf16.gmra.mxu0 %v586
        %v1044 = vpop.f32.mrf.mxu0
        %v1045 = vadd.f32 0.0, %v1044
        %v1046 = vpop.f32.mrf.mxu0
        %v1047 = vpop.f32.mrf.mxu0
        %v1048 = vadd.f32 0.0, %v1047
        %v1049 = vpop.f32.mrf.mxu0
        %1050 = vmatprep.mubr.bf16.mxu0 0
        %1051 = vmatmul.mubr.bf16.gmra.mxu0 %v587
        %v1052 = vpop.f32.mrf.mxu0
        %v1053 = vadd.f32 0.0, %v1052
        %v1054 = vpop.f32.mrf.mxu0
        %v1055 = vpop.f32.mrf.mxu0
        %v1056 = vadd.f32 0.0, %v1055
        %v1057 = vpop.f32.mrf.mxu0
        %1058 = vmatprep.mubr.bf16.mxu0 0
        %1059 = vmatmul.mubr.bf16.gmra.mxu0 %v588
        %v1060 = vpop.f32.mrf.mxu0
        %v1061 = vadd.f32 0.0, %v1060
        %v1062 = vpop.f32.mrf.mxu0
        %v1063 = vpop.f32.mrf.mxu0
        %v1064 = vadd.f32 0.0, %v1063
        %v1065 = vpop.f32.mrf.mxu0
        %1066 = vmatprep.mubr.bf16.mxu0 0
        %1067 = vmatmul.mubr.bf16.gmra.mxu0 %v589
        %v1068 = vpop.f32.mrf.mxu0
        %v1069 = vadd.f32 0.0, %v1068
        %v1070 = vpop.f32.mrf.mxu0
        %v1071 = vpop.f32.mrf.mxu0
        %v1072 = vadd.f32 0.0, %v1071
        %v1073 = vpop.f32.mrf.mxu0
        %1074 = vmatprep.mubr.bf16.mxu0 0
        %1075 = vmatmul.mubr.bf16.gmra.mxu0 %v590
        %v1076 = vpop.f32.mrf.mxu0
        %v1077 = vadd.f32 0.0, %v1076
        %v1078 = vpop.f32.mrf.mxu0
        %v1079 = vpop.f32.mrf.mxu0
        %v1080 = vadd.f32 0.0, %v1079
        %v1081 = vpop.f32.mrf.mxu0
        %1082 = vmatprep.mubr.bf16.mxu0 0
        %1083 = vmatmul.mubr.bf16.gmra.mxu0 %v591
        %v1084 = vpop.f32.mrf.mxu0
        %v1085 = vadd.f32 0.0, %v1084
        %v1086 = vpop.f32.mrf.mxu0
        %v1087 = vpop.f32.mrf.mxu0
        %v1088 = vadd.f32 0.0, %v1087
        %v1089 = vpop.f32.mrf.mxu0
        %1090 = vmatprep.mubr.bf16.mxu0 0
        %1091 = vmatmul.mubr.bf16.gmra.mxu0 %v592
        %v1092 = vpop.f32.mrf.mxu0
        %v1093 = vadd.f32 0.0, %v1092
        %v1094 = vpop.f32.mrf.mxu0
        %v1095 = vpop.f32.mrf.mxu0
        %v1096 = vadd.f32 0.0, %v1095
        %v1097 = vpop.f32.mrf.mxu0
        %1098 = vmatprep.mubr.bf16.mxu0 0
        %1099 = vmatmul.mubr.bf16.gmra.mxu0 %v593
        %v1100 = vpop.f32.mrf.mxu0
        %v1101 = vadd.f32 0.0, %v1100
        %v1102 = vpop.f32.mrf.mxu0
        %v1103 = vpop.f32.mrf.mxu0
        %v1104 = vadd.f32 0.0, %v1103
        %v1105 = vpop.f32.mrf.mxu0
        %1106 = vdwg.mxu0
        %v1107 = vld [vmem:[#allocation4] sm:$0x1]
        %v1109 = vlaneseq
        %v1110 = vshrl.u32 %v1109, 7
        %v1111 = vsub.s32 0, %v1110
        %v1112 = vrot.slane %v1107, %v1111
        %v1114 = vmul.f32 %v725, %v1112
        %v1115 = vmul.f32 %v728, %v1112
        %v1116 = vmul.f32 %v733, %v1112
        %v1117 = vmul.f32 %v736, %v1112
        %v1118 = vmul.f32 %v741, %v1112
        %v1119 = vmul.f32 %v744, %v1112
        %v1120 = vmul.f32 %v749, %v1112
        %v1121 = vmul.f32 %v752, %v1112
        %v1122 = vmul.f32 %v757, %v1112
        %v1123 = vmul.f32 %v760, %v1112
        %v1124 = vmul.f32 %v765, %v1112
        %v1125 = vmul.f32 %v768, %v1112
        %v1126 = vmul.f32 %v773, %v1112
        %v1127 = vmul.f32 %v776, %v1112
        %v1128 = vmul.f32 %v781, %v1112
        %v1129 = vmul.f32 %v784, %v1112
        %v1130 = vmul.f32 %v789, %v1112
        %v1131 = vmul.f32 %v792, %v1112
        %v1132 = vmul.f32 %v797, %v1112
        %v1133 = vmul.f32 %v800, %v1112
        %v1134 = vmul.f32 %v805, %v1112
        %v1135 = vmul.f32 %v808, %v1112
        %v1136 = vmul.f32 %v813, %v1112
        %v1137 = vmul.f32 %v816, %v1112
        %v1138 = vmul.f32 %v821, %v1112
        %v1139 = vmul.f32 %v824, %v1112
        %v1140 = vmul.f32 %v829, %v1112
        %v1141 = vmul.f32 %v832, %v1112
        %v1142 = vmul.f32 %v837, %v1112
        %v1143 = vmul.f32 %v840, %v1112
        %v1144 = vmul.f32 %v845, %v1112
        %v1145 = vmul.f32 %v848, %v1112
        %v1146 = vmul.f32 %v853, %v1112
        %v1147 = vmul.f32 %v856, %v1112
        %v1148 = vmul.f32 %v861, %v1112
        %v1149 = vmul.f32 %v864, %v1112
        %v1150 = vmul.f32 %v869, %v1112
        %v1151 = vmul.f32 %v872, %v1112
        %v1152 = vmul.f32 %v877, %v1112
        %v1153 = vmul.f32 %v880, %v1112
        %v1154 = vmul.f32 %v885, %v1112
        %v1155 = vmul.f32 %v888, %v1112
        %v1156 = vmul.f32 %v893, %v1112
        %v1157 = vmul.f32 %v896, %v1112
        %v1158 = vmul.f32 %v901, %v1112
        %v1159 = vmul.f32 %v904, %v1112
        %v1160 = vmul.f32 %v909, %v1112
        %v1161 = vmul.f32 %v912, %v1112
        %v1162 = vmul.f32 %v917, %v1112
        %v1163 = vmul.f32 %v920, %v1112
        %v1164 = vmul.f32 %v925, %v1112
        %v1165 = vmul.f32 %v928, %v1112
        %v1166 = vmul.f32 %v933, %v1112
        %v1167 = vmul.f32 %v936, %v1112
        %v1168 = vmul.f32 %v941, %v1112
        %v1169 = vmul.f32 %v944, %v1112
        %v1170 = vmul.f32 %v949, %v1112
        %v1171 = vmul.f32 %v952, %v1112
        %v1172 = vmul.f32 %v957, %v1112
        %v1173 = vmul.f32 %v960, %v1112
        %v1174 = vmul.f32 %v965, %v1112
        %v1175 = vmul.f32 %v968, %v1112
        %v1176 = vmul.f32 %v973, %v1112
        %v1177 = vmul.f32 %v976, %v1112
        %v1178 = vmul.f32 %v981, %v1112
        %v1179 = vmul.f32 %v984, %v1112
        %v1180 = vmul.f32 %v989, %v1112
        %v1181 = vmul.f32 %v992, %v1112
        %v1182 = vmul.f32 %v997, %v1112
        %v1183 = vmul.f32 %v1000, %v1112
        %v1184 = vmul.f32 %v1005, %v1112
        %v1185 = vmul.f32 %v1008, %v1112
        %v1186 = vmul.f32 %v1013, %v1112
        %v1187 = vmul.f32 %v1016, %v1112
        %v1188 = vmul.f32 %v1021, %v1112
        %v1189 = vmul.f32 %v1024, %v1112
        %v1190 = vmul.f32 %v1029, %v1112
        %v1191 = vmul.f32 %v1032, %v1112
        %v1192 = vmul.f32 %v1037, %v1112
        %v1193 = vmul.f32 %v1040, %v1112
        %v1194 = vmul.f32 %v1045, %v1112
        %v1195 = vmul.f32 %v1048, %v1112
        %v1196 = vmul.f32 %v1053, %v1112
        %v1197 = vmul.f32 %v1056, %v1112
        %v1198 = vmul.f32 %v1061, %v1112
        %v1199 = vmul.f32 %v1064, %v1112
        %v1200 = vmul.f32 %v1069, %v1112
        %v1201 = vmul.f32 %v1072, %v1112
        %v1202 = vmul.f32 %v1077, %v1112
        %v1203 = vmul.f32 %v1080, %v1112
        %v1204 = vmul.f32 %v1085, %v1112
        %v1205 = vmul.f32 %v1088, %v1112
        %v1206 = vmul.f32 %v1093, %v1112
        %v1207 = vmul.f32 %v1096, %v1112
        %v1208 = vmul.f32 %v1101, %v1112
        %v1209 = vmul.f32 %v1104, %v1112
        %v1210 = vld [vmem:[#allocation6] sm:$0x1]
        %v1212 = vlaneseq
        %v1213 = vshrl.u32 %v1212, 7
        %v1214 = vsub.s32 0, %v1213
        %v1215 = vrot.slane %v1210, %v1214
        %v1217 = vadd.f32 %v1114, %v1215
        %v1218 = vadd.f32 %v1115, %v1215
        %v1219 = vadd.f32 %v1116, %v1215
        %v1220 = vadd.f32 %v1117, %v1215
        %v1221 = vadd.f32 %v1118, %v1215
        %v1222 = vadd.f32 %v1119, %v1215
        %v1223 = vadd.f32 %v1120, %v1215
        %v1224 = vadd.f32 %v1121, %v1215
        %v1225 = vadd.f32 %v1122, %v1215
        %v1226 = vadd.f32 %v1123, %v1215
        %v1227 = vadd.f32 %v1124, %v1215
        %v1228 = vadd.f32 %v1125, %v1215
        %v1229 = vadd.f32 %v1126, %v1215
        %v1230 = vadd.f32 %v1127, %v1215
        %v1231 = vadd.f32 %v1128, %v1215
        %v1232 = vadd.f32 %v1129, %v1215
        %v1233 = vadd.f32 %v1130, %v1215
        %v1234 = vadd.f32 %v1131, %v1215
        %v1235 = vadd.f32 %v1132, %v1215
        %v1236 = vadd.f32 %v1133, %v1215
        %v1237 = vadd.f32 %v1134, %v1215
        %v1238 = vadd.f32 %v1135, %v1215
        %v1239 = vadd.f32 %v1136, %v1215
        %v1240 = vadd.f32 %v1137, %v1215
        %v1241 = vadd.f32 %v1138, %v1215
        %v1242 = vadd.f32 %v1139, %v1215
        %v1243 = vadd.f32 %v1140, %v1215
        %v1244 = vadd.f32 %v1141, %v1215
        %v1245 = vadd.f32 %v1142, %v1215
        %v1246 = vadd.f32 %v1143, %v1215
        %v1247 = vadd.f32 %v1144, %v1215
        %v1248 = vadd.f32 %v1145, %v1215
        %v1249 = vadd.f32 %v1146, %v1215
        %v1250 = vadd.f32 %v1147, %v1215
        %v1251 = vadd.f32 %v1148, %v1215
        %v1252 = vadd.f32 %v1149, %v1215
        %v1253 = vadd.f32 %v1150, %v1215
        %v1254 = vadd.f32 %v1151, %v1215
        %v1255 = vadd.f32 %v1152, %v1215
        %v1256 = vadd.f32 %v1153, %v1215
        %v1257 = vadd.f32 %v1154, %v1215
        %v1258 = vadd.f32 %v1155, %v1215
        %v1259 = vadd.f32 %v1156, %v1215
        %v1260 = vadd.f32 %v1157, %v1215
        %v1261 = vadd.f32 %v1158, %v1215
        %v1262 = vadd.f32 %v1159, %v1215
        %v1263 = vadd.f32 %v1160, %v1215
        %v1264 = vadd.f32 %v1161, %v1215
        %v1265 = vadd.f32 %v1162, %v1215
        %v1266 = vadd.f32 %v1163, %v1215
        %v1267 = vadd.f32 %v1164, %v1215
        %v1268 = vadd.f32 %v1165, %v1215
        %v1269 = vadd.f32 %v1166, %v1215
        %v1270 = vadd.f32 %v1167, %v1215
        %v1271 = vadd.f32 %v1168, %v1215
        %v1272 = vadd.f32 %v1169, %v1215
        %v1273 = vadd.f32 %v1170, %v1215
        %v1274 = vadd.f32 %v1171, %v1215
        %v1275 = vadd.f32 %v1172, %v1215
        %v1276 = vadd.f32 %v1173, %v1215
        %v1277 = vadd.f32 %v1174, %v1215
        %v1278 = vadd.f32 %v1175, %v1215
        %v1279 = vadd.f32 %v1176, %v1215
        %v1280 = vadd.f32 %v1177, %v1215
        %v1281 = vadd.f32 %v1178, %v1215
        %v1282 = vadd.f32 %v1179, %v1215
        %v1283 = vadd.f32 %v1180, %v1215
        %v1284 = vadd.f32 %v1181, %v1215
        %v1285 = vadd.f32 %v1182, %v1215
        %v1286 = vadd.f32 %v1183, %v1215
        %v1287 = vadd.f32 %v1184, %v1215
        %v1288 = vadd.f32 %v1185, %v1215
        %v1289 = vadd.f32 %v1186, %v1215
        %v1290 = vadd.f32 %v1187, %v1215
        %v1291 = vadd.f32 %v1188, %v1215
        %v1292 = vadd.f32 %v1189, %v1215
        %v1293 = vadd.f32 %v1190, %v1215
        %v1294 = vadd.f32 %v1191, %v1215
        %v1295 = vadd.f32 %v1192, %v1215
        %v1296 = vadd.f32 %v1193, %v1215
        %v1297 = vadd.f32 %v1194, %v1215
        %v1298 = vadd.f32 %v1195, %v1215
        %v1299 = vadd.f32 %v1196, %v1215
        %v1300 = vadd.f32 %v1197, %v1215
        %v1301 = vadd.f32 %v1198, %v1215
        %v1302 = vadd.f32 %v1199, %v1215
        %v1303 = vadd.f32 %v1200, %v1215
        %v1304 = vadd.f32 %v1201, %v1215
        %v1305 = vadd.f32 %v1202, %v1215
        %v1306 = vadd.f32 %v1203, %v1215
        %v1307 = vadd.f32 %v1204, %v1215
        %v1308 = vadd.f32 %v1205, %v1215
        %v1309 = vadd.f32 %v1206, %v1215
        %v1310 = vadd.f32 %v1207, %v1215
        %v1311 = vadd.f32 %v1208, %v1215
        %v1312 = vadd.f32 %v1209, %v1215
        %v1313 = vmax.f32 %v1217, 0.0
        %v1314 = vmax.f32 %v1218, 0.0
        %v1315 = vmax.f32 %v1219, 0.0
        %v1316 = vmax.f32 %v1220, 0.0
        %v1317 = vmax.f32 %v1221, 0.0
        %v1318 = vmax.f32 %v1222, 0.0
        %v1319 = vmax.f32 %v1223, 0.0
        %v1320 = vmax.f32 %v1224, 0.0
        %v1321 = vmax.f32 %v1225, 0.0
        %v1322 = vmax.f32 %v1226, 0.0
        %v1323 = vmax.f32 %v1227, 0.0
        %v1324 = vmax.f32 %v1228, 0.0
        %v1325 = vmax.f32 %v1229, 0.0
        %v1326 = vmax.f32 %v1230, 0.0
        %v1327 = vmax.f32 %v1231, 0.0
        %v1328 = vmax.f32 %v1232, 0.0
        %v1329 = vmax.f32 %v1233, 0.0
        %v1330 = vmax.f32 %v1234, 0.0
        %v1331 = vmax.f32 %v1235, 0.0
        %v1332 = vmax.f32 %v1236, 0.0
        %v1333 = vmax.f32 %v1237, 0.0
        %v1334 = vmax.f32 %v1238, 0.0
        %v1335 = vmax.f32 %v1239, 0.0
        %v1336 = vmax.f32 %v1240, 0.0
        %v1337 = vmax.f32 %v1241, 0.0
        %v1338 = vmax.f32 %v1242, 0.0
        %v1339 = vmax.f32 %v1243, 0.0
        %v1340 = vmax.f32 %v1244, 0.0
        %v1341 = vmax.f32 %v1245, 0.0
        %v1342 = vmax.f32 %v1246, 0.0
        %v1343 = vmax.f32 %v1247, 0.0
        %v1344 = vmax.f32 %v1248, 0.0
        %v1345 = vmax.f32 %v1249, 0.0
        %v1346 = vmax.f32 %v1250, 0.0
        %v1347 = vmax.f32 %v1251, 0.0
        %v1348 = vmax.f32 %v1252, 0.0
        %v1349 = vmax.f32 %v1253, 0.0
        %v1350 = vmax.f32 %v1254, 0.0
        %v1351 = vmax.f32 %v1255, 0.0
        %v1352 = vmax.f32 %v1256, 0.0
        %v1353 = vmax.f32 %v1257, 0.0
        %v1354 = vmax.f32 %v1258, 0.0
        %v1355 = vmax.f32 %v1259, 0.0
        %v1356 = vmax.f32 %v1260, 0.0
        %v1357 = vmax.f32 %v1261, 0.0
        %v1358 = vmax.f32 %v1262, 0.0
        %v1359 = vmax.f32 %v1263, 0.0
        %v1360 = vmax.f32 %v1264, 0.0
        %v1361 = vmax.f32 %v1265, 0.0
        %v1362 = vmax.f32 %v1266, 0.0
        %v1363 = vmax.f32 %v1267, 0.0
        %v1364 = vmax.f32 %v1268, 0.0
        %v1365 = vmax.f32 %v1269, 0.0
        %v1366 = vmax.f32 %v1270, 0.0
        %v1367 = vmax.f32 %v1271, 0.0
        %v1368 = vmax.f32 %v1272, 0.0
        %v1369 = vmax.f32 %v1273, 0.0
        %v1370 = vmax.f32 %v1274, 0.0
        %v1371 = vmax.f32 %v1275, 0.0
        %v1372 = vmax.f32 %v1276, 0.0
        %v1373 = vmax.f32 %v1277, 0.0
        %v1374 = vmax.f32 %v1278, 0.0
        %v1375 = vmax.f32 %v1279, 0.0
        %v1376 = vmax.f32 %v1280, 0.0
        %v1377 = vmax.f32 %v1281, 0.0
        %v1378 = vmax.f32 %v1282, 0.0
        %v1379 = vmax.f32 %v1283, 0.0
        %v1380 = vmax.f32 %v1284, 0.0
        %v1381 = vmax.f32 %v1285, 0.0
        %v1382 = vmax.f32 %v1286, 0.0
        %v1383 = vmax.f32 %v1287, 0.0
        %v1384 = vmax.f32 %v1288, 0.0
        %v1385 = vmax.f32 %v1289, 0.0
        %v1386 = vmax.f32 %v1290, 0.0
        %v1387 = vmax.f32 %v1291, 0.0
        %v1388 = vmax.f32 %v1292, 0.0
        %v1389 = vmax.f32 %v1293, 0.0
        %v1390 = vmax.f32 %v1294, 0.0
        %v1391 = vmax.f32 %v1295, 0.0
        %v1392 = vmax.f32 %v1296, 0.0
        %v1393 = vmax.f32 %v1297, 0.0
        %v1394 = vmax.f32 %v1298, 0.0
        %v1395 = vmax.f32 %v1299, 0.0
        %v1396 = vmax.f32 %v1300, 0.0
        %v1397 = vmax.f32 %v1301, 0.0
        %v1398 = vmax.f32 %v1302, 0.0
        %v1399 = vmax.f32 %v1303, 0.0
        %v1400 = vmax.f32 %v1304, 0.0
        %v1401 = vmax.f32 %v1305, 0.0
        %v1402 = vmax.f32 %v1306, 0.0
        %v1403 = vmax.f32 %v1307, 0.0
        %v1404 = vmax.f32 %v1308, 0.0
        %v1405 = vmax.f32 %v1309, 0.0
        %v1406 = vmax.f32 %v1310, 0.0
        %v1407 = vmax.f32 %v1311, 0.0
        %v1408 = vmax.f32 %v1312, 0.0
        %1409 = vst [vmem:[%s239] sm:$0xff] %v1313
        %1410 = vst [vmem:[%s239 + $0x8] sm:$0xff] %v1314
        %1411 = vst [vmem:[%s239 + $0x10] sm:$0xff] %v1315
        %1412 = vst [vmem:[%s239 + $0x18] sm:$0xff] %v1316
        %1413 = vst [vmem:[%s239 + $0x20] sm:$0xff] %v1317
        %1414 = vst [vmem:[%s239 + $0x28] sm:$0xff] %v1318
        %1415 = vst [vmem:[%s239 + $0x30] sm:$0xff] %v1319
        %1416 = vst [vmem:[%s239 + $0x38] sm:$0xff] %v1320
        %1417 = vst [vmem:[%s239 + $0x40] sm:$0xff] %v1321
        %1418 = vst [vmem:[%s239 + $0x48] sm:$0xff] %v1322
        %1419 = vst [vmem:[%s239 + $0x50] sm:$0xff] %v1323
        %1420 = vst [vmem:[%s239 + $0x58] sm:$0xff] %v1324
        %1421 = vst [vmem:[%s239 + $0x60] sm:$0xff] %v1325
        %1422 = vst [vmem:[%s239 + $0x68] sm:$0xff] %v1326
        %1423 = vst [vmem:[%s239 + $0x70] sm:$0xff] %v1327
        %1424 = vst [vmem:[%s239 + $0x78] sm:$0xff] %v1328
        %1425 = vst [vmem:[%s239 + $0x80] sm:$0xff] %v1329
        %1426 = vst [vmem:[%s239 + $0x88] sm:$0xff] %v1330
        %1427 = vst [vmem:[%s239 + $0x90] sm:$0xff] %v1331
        %1428 = vst [vmem:[%s239 + $0x98] sm:$0xff] %v1332
        %1429 = vst [vmem:[%s239 + $0xa0] sm:$0xff] %v1333
        %1430 = vst [vmem:[%s239 + $0xa8] sm:$0xff] %v1334
        %1431 = vst [vmem:[%s239 + $0xb0] sm:$0xff] %v1335
        %1432 = vst [vmem:[%s239 + $0xb8] sm:$0xff] %v1336
        %1433 = vst [vmem:[%s239 + $0xc0] sm:$0xff] %v1337
        %1434 = vst [vmem:[%s239 + $0xc8] sm:$0xff] %v1338
        %1435 = vst [vmem:[%s239 + $0xd0] sm:$0xff] %v1339
        %1436 = vst [vmem:[%s239 + $0xd8] sm:$0xff] %v1340
        %1437 = vst [vmem:[%s239 + $0xe0] sm:$0xff] %v1341
        %1438 = vst [vmem:[%s239 + $0xe8] sm:$0xff] %v1342
        %1439 = vst [vmem:[%s239 + $0xf0] sm:$0xff] %v1343
        %1440 = vst [vmem:[%s239 + $0xf8] sm:$0xff] %v1344
        %1441 = vst [vmem:[%s239 + $0x100] sm:$0xff] %v1345
        %1442 = vst [vmem:[%s239 + $0x108] sm:$0xff] %v1346
        %1443 = vst [vmem:[%s239 + $0x110] sm:$0xff] %v1347
        %1444 = vst [vmem:[%s239 + $0x118] sm:$0xff] %v1348
        %1445 = vst [vmem:[%s239 + $0x120] sm:$0xff] %v1349
        %1446 = vst [vmem:[%s239 + $0x128] sm:$0xff] %v1350
        %1447 = vst [vmem:[%s239 + $0x130] sm:$0xff] %v1351
        %1448 = vst [vmem:[%s239 + $0x138] sm:$0xff] %v1352
        %1449 = vst [vmem:[%s239 + $0x140] sm:$0xff] %v1353
        %1450 = vst [vmem:[%s239 + $0x148] sm:$0xff] %v1354
        %1451 = vst [vmem:[%s239 + $0x150] sm:$0xff] %v1355
        %1452 = vst [vmem:[%s239 + $0x158] sm:$0xff] %v1356
        %1453 = vst [vmem:[%s239 + $0x160] sm:$0xff] %v1357
        %1454 = vst [vmem:[%s239 + $0x168] sm:$0xff] %v1358
        %1455 = vst [vmem:[%s239 + $0x170] sm:$0xff] %v1359
        %1456 = vst [vmem:[%s239 + $0x178] sm:$0xff] %v1360
        %1457 = vst [vmem:[%s239 + $0x180] sm:$0xff] %v1361
        %1458 = vst [vmem:[%s239 + $0x188] sm:$0xff] %v1362
        %1459 = vst [vmem:[%s239 + $0x190] sm:$0xff] %v1363
        %1460 = vst [vmem:[%s239 + $0x198] sm:$0xff] %v1364
        %1461 = vst [vmem:[%s239 + $0x1a0] sm:$0xff] %v1365
        %1462 = vst [vmem:[%s239 + $0x1a8] sm:$0xff] %v1366
        %1463 = vst [vmem:[%s239 + $0x1b0] sm:$0xff] %v1367
        %1464 = vst [vmem:[%s239 + $0x1b8] sm:$0xff] %v1368
        %1465 = vst [vmem:[%s239 + $0x1c0] sm:$0xff] %v1369
        %1466 = vst [vmem:[%s239 + $0x1c8] sm:$0xff] %v1370
        %1467 = vst [vmem:[%s239 + $0x1d0] sm:$0xff] %v1371
        %1468 = vst [vmem:[%s239 + $0x1d8] sm:$0xff] %v1372
        %1469 = vst [vmem:[%s239 + $0x1e0] sm:$0xff] %v1373
        %1470 = vst [vmem:[%s239 + $0x1e8] sm:$0xff] %v1374
        %1471 = vst [vmem:[%s239 + $0x1f0] sm:$0xff] %v1375
        %1472 = vst [vmem:[%s239 + $0x1f8] sm:$0xff] %v1376
        %1473 = vst [vmem:[%s239 + $0x200] sm:$0xff] %v1377
        %1474 = vst [vmem:[%s239 + $0x208] sm:$0xff] %v1378
        %1475 = vst [vmem:[%s239 + $0x210] sm:$0xff] %v1379
        %1476 = vst [vmem:[%s239 + $0x218] sm:$0xff] %v1380
        %1477 = vst [vmem:[%s239 + $0x220] sm:$0xff] %v1381
        %1478 = vst [vmem:[%s239 + $0x228] sm:$0xff] %v1382
        %1479 = vst [vmem:[%s239 + $0x230] sm:$0xff] %v1383
        %1480 = vst [vmem:[%s239 + $0x238] sm:$0xff] %v1384
        %1481 = vst [vmem:[%s239 + $0x240] sm:$0xff] %v1385
        %1482 = vst [vmem:[%s239 + $0x248] sm:$0xff] %v1386
        %1483 = vst [vmem:[%s239 + $0x250] sm:$0xff] %v1387
        %1484 = vst [vmem:[%s239 + $0x258] sm:$0xff] %v1388
        %1485 = vst [vmem:[%s239 + $0x260] sm:$0xff] %v1389
        %1486 = vst [vmem:[%s239 + $0x268] sm:$0xff] %v1390
        %1487 = vst [vmem:[%s239 + $0x270] sm:$0xff] %v1391
        %1488 = vst [vmem:[%s239 + $0x278] sm:$0xff] %v1392
        %1489 = vst [vmem:[%s239 + $0x280] sm:$0xff] %v1393
        %1490 = vst [vmem:[%s239 + $0x288] sm:$0xff] %v1394
        %1491 = vst [vmem:[%s239 + $0x290] sm:$0xff] %v1395
        %1492 = vst [vmem:[%s239 + $0x298] sm:$0xff] %v1396
        %1493 = vst [vmem:[%s239 + $0x2a0] sm:$0xff] %v1397
        %1494 = vst [vmem:[%s239 + $0x2a8] sm:$0xff] %v1398
        %1495 = vst [vmem:[%s239 + $0x2b0] sm:$0xff] %v1399
        %1496 = vst [vmem:[%s239 + $0x2b8] sm:$0xff] %v1400
        %1497 = vst [vmem:[%s239 + $0x2c0] sm:$0xff] %v1401
        %1498 = vst [vmem:[%s239 + $0x2c8] sm:$0xff] %v1402
        %1499 = vst [vmem:[%s239 + $0x2d0] sm:$0xff] %v1403
        %1500 = vst [vmem:[%s239 + $0x2d8] sm:$0xff] %v1404
        %1501 = vst [vmem:[%s239 + $0x2e0] sm:$0xff] %v1405
        %1502 = vst [vmem:[%s239 + $0x2e8] sm:$0xff] %v1406
        %1503 = vst [vmem:[%s239 + $0x2f0] sm:$0xff] %v1407
        %1504 = vst [vmem:[%s239 + $0x2f8] sm:$0xff] %v1408
        %s1505 = smul.u32 96, %s17
        %p1506 = scmp.lt.s32.totalorder %s1505, 191
        %s1507 = scalar_select %p1506, %s1505, 191
        %s1508 = smul.addr %s1507, 8
        %s1509 = scalar_lea.vmem %s4, %s1508
        // Predicated region
        $region49: #{mgn_forward.6} parent=35 // pred_check
          %p1510 = pneg %p124
        $region50: #{mgn_forward.6} parent=35 // pred_check_branch
          %1512 = sbr.rel (%p1510) target = $region52
        $region51: #{mgn_forward.6} parent=35 // pred_region
          %s1513 = smul.u32 96, %s17
        $region52: #{mgn_forward.6} parent=35 // pred_fallthru
          _
      $region36: #{mgn_forward.6} parent=5 // pred_fallthru
        _
      %p1514 = scmp.le.s32.totalorder 2, %s12
      // Predicated region
      $region53: #{mgn_forward.6} parent=5 // pred_check
        %p1515 = pneg %p1514
      $region54: #{mgn_forward.6} parent=5 // pred_check_branch
        %1517 = sbr.rel (%p1515) target = $region56
      $region55: #{mgn_forward.6} parent=5 // pred_region
        %s1518 = ssub.s32 %s12, 2
        // Predicated region
        $region57: #{mgn_forward.6} parent=55 // pred_check
          %p1519 = pneg %p130
        $region58: #{mgn_forward.6} parent=55 // pred_check_branch
          %1521 = sbr.rel (%p1519) target = $region60
        $region59: #{mgn_forward.6} parent=55 // pred_region
          %s1522 = smul.u32 96, %s18
          %p1523 = scmp.lt.s32.totalorder %s1522, 191
          %s1524 = scalar_select %p1523, %s1522, 191
          %s1525 = smul.addr %s1524, 8
          %s1526 = scalar_lea.vmem %s4, %s1525
        $region60: #{mgn_forward.6} parent=55 // pred_fallthru
          _
      $region56: #{mgn_forward.6} parent=5 // pred_fallthru
        _
    $region6: #{mgn_forward.6} parent=1 // loop_footer
      %s16 = sadd.s32 1, %s12
    $region7: #{mgn_forward.6} parent=1 // loop_footer_branch
      %11 = sbr.rel target = $region3
    $region8: #{mgn_forward.6} parent=1 // loop_exit
      _
    %1527 = vsyncpa [#allocation3], 1
    %s1528 = scalar_lea.sflag [#allocation3], 1
    %1529 = vsyncpa %s1528, 1
    %1530 = vsyncpa [#allocation5], 1

// kernel: mgn_forward.7
$region0: #{mgn_forward.7}
  #allocation0 [shape = 'u32[]', space=smem, size = 0x4, offset = 0x4, fixed_abs, tag = 'smem constant byte address 0x4 - core index']
  #allocation1 [shape = 'u32[144,128]{1,0:T(1,128)}', space=vmem, size = 0x12000, scoped, tag = 'internal scratch']
  %s0 = inlined_call_operand.vmem [shape: bf16[384,1152], index: 0, kind: input, shape index: {}]
  %s1 = inlined_call_operand.vmem [shape: bf16[1152,128], index: 1, kind: input, shape index: {}]
  %s2 = inlined_call_operand.vmem [shape: f32[1,128], index: 2, kind: input, shape index: {}]
  %s3 = inlined_call_operand.vmem [shape: f32[1,128], index: 3, kind: input, shape index: {}]
  %s4 = inlined_call_operand.vmem [shape: f32[384,128], index: 4, kind: output, shape index: {}]
  %s5 = sld [smem:[#allocation0]]
  $region49: #{mgn_forward.7} parent=0
    _
  %s7 = ssub.s32 1, %s5
  %s8 = scalar_select 0, %s7, %s5
  loop: start=0, step=1, limit=4
  $region2: #{mgn_forward.7} parent=0 // loop_pre_header
    _
  $region3: #{mgn_forward.7} parent=0 // loop_header
    %s10 = sphi 0, %s14
    %p11 = scmp.ge.s32.totalorder %s10, 4
    %s20 = sphi 0, %s22
    %s23 = sphi 0, %s20
    %s24 = sphi 0, %s23
    %s40 = sphi 0, %s24
    %s44 = sphi 0, %s44
    %s46 = sphi 0, %s44
    %s47 = sphi 0, %s46
    %s61 = sphi 0, %s47
    %s65 = sphi 0, %s65
    %s67 = sphi 0, %s65
    %s68 = sphi 0, %s67
    %s82 = sphi 0, %s68
    %s86 = sphi 0, %s86
    %s88 = sphi 0, %s86
    %s89 = sphi 0, %s88
    %s103 = sphi 0, %s89
    %s109 = sphi 0, %s111
    %s112 = sphi 0, %s109
    %s113 = sphi 0, %s112
    %s129 = sphi 0, %s113
  $region4: #{mgn_forward.7} parent=0 // loop_header_branch
    %13 = sbr.rel (%p11) target = $region8
  $region5: #{mgn_forward.7} parent=0 // loop_body
    %s15 = ssub.s32 %s10, 1
    %s16 = ssub.s32 %s10, 2
    %s17 = sadd.s32 %s10, 1
    %s18 = ssub.s32 %s10, %s17
    %p19 = scmp.eq.s32.totalorder %s18, 0
    %s21 = sadd.s32 %s20, 1
    %s22 = scalar_select %p19, %s20, %s21
    %p25 = pneg %p19
    %p26 = scmp.eq.s32.totalorder %s10, 1
    %p27 = por %p25, %p26
    %p28 = scmp.ne.s32.totalorder %s20, %s23
    %p29 = scmp.eq.s32.totalorder %s10, 0
    %p30 = por %p28, %p29
    %p31 = scmp.ne.s32.totalorder %s20, %s23
    %p32 = scmp.eq.s32.totalorder %s15, 1
    %p33 = por %p31, %p32
    %p34 = scmp.ne.s32.totalorder %s23, %s24
    %p35 = scmp.eq.s32.totalorder %s15, 0
    %p36 = por %p34, %p35
    %p37 = scmp.ne.s32.totalorder %s23, %s24
    %p38 = scmp.eq.s32.totalorder %s16, 1
    %p39 = por %p37, %p38
    %p41 = scmp.ne.s32.totalorder %s24, %s40
    %p42 = scmp.eq.s32.totalorder %s16, 0
    %p43 = por %p41, %p42
    %s45 = sadd.s32 %s44, 1
    %p48 = scmp.eq.s32.totalorder %s10, 1
    %p49 = scmp.ne.s32.totalorder %s44, %s46
    %p50 = scmp.eq.s32.totalorder %s10, 0
    %p51 = por %p49, %p50
    %p52 = scmp.ne.s32.totalorder %s44, %s46
    %p53 = scmp.eq.s32.totalorder %s15, 1
    %p54 = por %p52, %p53
    %p55 = scmp.ne.s32.totalorder %s46, %s47
    %p56 = scmp.eq.s32.totalorder %s15, 0
    %p57 = por %p55, %p56
    %p58 = scmp.ne.s32.totalorder %s46, %s47
    %p59 = scmp.eq.s32.totalorder %s16, 1
    %p60 = por %p58, %p59
    %p62 = scmp.ne.s32.totalorder %s47, %s61
    %p63 = scmp.eq.s32.totalorder %s16, 0
    %p64 = por %p62, %p63
    %s66 = sadd.s32 %s65, 1
    %p69 = scmp.eq.s32.totalorder %s10, 1
    %p70 = scmp.ne.s32.totalorder %s65, %s67
    %p71 = scmp.eq.s32.totalorder %s10, 0
    %p72 = por %p70, %p71
    %p73 = scmp.ne.s32.totalorder %s65, %s67
    %p74 = scmp.eq.s32.totalorder %s15, 1
    %p75 = por %p73, %p74
    %p76 = scmp.ne.s32.totalorder %s67, %s68
    %p77 = scmp.eq.s32.totalorder %s15, 0
    %p78 = por %p76, %p77
    %p79 = scmp.ne.s32.totalorder %s67, %s68
    %p80 = scmp.eq.s32.totalorder %s16, 1
    %p81 = por %p79, %p80
    %p83 = scmp.ne.s32.totalorder %s68, %s82
    %p84 = scmp.eq.s32.totalorder %s16, 0
    %p85 = por %p83, %p84
    %s87 = sadd.s32 %s86, 1
    %p90 = scmp.eq.s32.totalorder %s10, 1
    %p91 = scmp.ne.s32.totalorder %s86, %s88
    %p92 = scmp.eq.s32.totalorder %s10, 0
    %p93 = por %p91, %p92
    %p94 = scmp.ne.s32.totalorder %s86, %s88
    %p95 = scmp.eq.s32.totalorder %s15, 1
    %p96 = por %p94, %p95
    %p97 = scmp.ne.s32.totalorder %s88, %s89
    %p98 = scmp.eq.s32.totalorder %s15, 0
    %p99 = por %p97, %p98
    %p100 = scmp.ne.s32.totalorder %s88, %s89
    %p101 = scmp.eq.s32.totalorder %s16, 1
    %p102 = por %p100, %p101
    %p104 = scmp.ne.s32.totalorder %s89, %s103
    %p105 = scmp.eq.s32.totalorder %s16, 0
    %p106 = por %p104, %p105
    %s107 = ssub.s32 %s10, %s17
    %p108 = scmp.eq.s32.totalorder %s107, 0
    %s110 = sadd.s32 %s109, 1
    %s111 = scalar_select %p108, %s109, %s110
    %p114 = pneg %p108
    %p115 = scmp.eq.s32.totalorder %s10, 1
    %p116 = por %p114, %p115
    %p117 = scmp.ne.s32.totalorder %s109, %s112
    %p118 = scmp.eq.s32.totalorder %s10, 0
    %p119 = por %p117, %p118
    %p120 = scmp.ne.s32.totalorder %s109, %s112
    %p121 = scmp.eq.s32.totalorder %s15, 1
    %p122 = por %p120, %p121
    %p123 = scmp.ne.s32.totalorder %s112, %s113
    %p124 = scmp.eq.s32.totalorder %s15, 0
    %p125 = por %p123, %p124
    %p126 = scmp.ne.s32.totalorder %s112, %s113
    %p127 = scmp.eq.s32.totalorder %s16, 1
    %p128 = por %p126, %p127
    %p130 = scmp.ne.s32.totalorder %s113, %s129
    %p131 = scmp.eq.s32.totalorder %s16, 0
    %p132 = por %p130, %p131
    %p133 = scmp.le.s32.totalorder 1, %s10
    %p134 = scmp.lt.s32.totalorder %s10, 3
    %p135 = pnand %p133, %p134
    %p136 = pneg %p135
    // Predicated region
    $region9: #{mgn_forward.7} parent=5 // pred_check
      _
    $region10: #{mgn_forward.7} parent=5 // pred_check_branch
      %138 = sbr.rel (%p135) target = $region12
    $region11: #{mgn_forward.7} parent=5 // pred_region
      %s139 = ssub.s32 %s10, 1
      // Predicated region
      $region13: #{mgn_forward.7} parent=11 // pred_check
        %p140 = pneg %p57
      $region14: #{mgn_forward.7} parent=11 // pred_check_branch
        %142 = sbr.rel (%p140) target = $region16
      $region15: #{mgn_forward.7} parent=11 // pred_region
        _
      $region16: #{mgn_forward.7} parent=11 // pred_fallthru
        _
      // Predicated region
      $region17: #{mgn_forward.7} parent=11 // pred_check
        %p143 = pneg %p78
      $region18: #{mgn_forward.7} parent=11 // pred_check_branch
        %145 = sbr.rel (%p143) target = $region20
      $region19: #{mgn_forward.7} parent=11 // pred_region
        _
      $region20: #{mgn_forward.7} parent=11 // pred_fallthru
        _
      // Predicated region
      $region21: #{mgn_forward.7} parent=11 // pred_check
        %p146 = pneg %p99
      $region22: #{mgn_forward.7} parent=11 // pred_check_branch
        %148 = sbr.rel (%p146) target = $region24
      $region23: #{mgn_forward.7} parent=11 // pred_region
        _
      $region24: #{mgn_forward.7} parent=11 // pred_fallthru
        _
    $region12: #{mgn_forward.7} parent=5 // pred_fallthru
      _
    %p149 = scmp.lt.s32.totalorder %s10, 2
    // Predicated region
    $region25: #{mgn_forward.7} parent=5 // pred_check
      %p150 = pneg %p149
    $region26: #{mgn_forward.7} parent=5 // pred_check_branch
      %152 = sbr.rel (%p150) target = $region28
    $region27: #{mgn_forward.7} parent=5 // pred_region
      // Predicated region
      $region29: #{mgn_forward.7} parent=27 // pred_check
        %p153 = pneg %p30
      $region30: #{mgn_forward.7} parent=27 // pred_check_branch
        %155 = sbr.rel (%p153) target = $region32
      $region31: #{mgn_forward.7} parent=27 // pred_region
        %s156 = smul.u32 24, %s10
        %p157 = scmp.lt.s32.totalorder %s156, 47
        %s158 = scalar_select %p157, %s156, 47
        %s159 = smul.addr %s158, 9
        %s160 = smul.addr %s159, 4
        %s161 = scalar_lea.vmem %s0, %s160
        %s162 = smul.u32 24, %s10
      $region32: #{mgn_forward.7} parent=27 // pred_fallthru
        _
    $region28: #{mgn_forward.7} parent=5 // pred_fallthru
      _
    %p163 = scmp.le.s32.totalorder 1, %s10
    %p164 = scmp.lt.s32.totalorder %s10, 3
    %p165 = pnand %p163, %p164
    %p166 = pneg %p165
    // Predicated region
    $region33: #{mgn_forward.7} parent=5 // pred_check
      _
    $region34: #{mgn_forward.7} parent=5 // pred_check_branch
      %168 = sbr.rel (%p165) target = $region36
    $region35: #{mgn_forward.7} parent=5 // pred_region
      %s169 = ssub.s32 %s10, 1
      %s170 = smul.u32 24, %s15
      %p171 = scmp.lt.s32.totalorder %s170, 47
      %s172 = scalar_select %p171, %s170, 47
      %s173 = smul.addr %s172, 9
      %s174 = smul.addr %s173, 4
      %s175 = scalar_lea.vmem %s0, %s174
      %p176 = pneg %p36
      %p177 = pneg %p33
      %p178 = pneg %p57
      %p179 = pneg %p54
      %p180 = pneg %p78
      %p181 = pneg %p75
      %p182 = pneg %p99
      %p183 = pneg %p96
      %p184 = pneg %p125
      %p185 = pneg %p122
      %s186 = smul.u32 24, %s15
      %p187 = scmp.lt.s32.totalorder %s186, 47
      %s188 = scalar_select %p187, %s186, 47
      %s189 = smul.addr %s188, 8
      %s190 = scalar_lea.vmem %s4, %s189
      %s191 = smul.u32 24, %s15
      %p192 = scmp.lt.s32.totalorder %s191, 47
      %s193 = scalar_select %p192, %s191, 47
      %s194 = smul.addr %s193, 9
      %s195 = smul.addr %s194, 4
      %s196 = scalar_lea.vmem %s0, %s195
      %s197 = smul.u32 24, %s15
      %s198 = smul.u32 24, %s15
      %p199 = scmp.lt.s32.totalorder %s198, 47
      %s200 = scalar_select %p199, %s198, 47
      %s201 = smul.addr %s200, 8
      %s202 = scalar_lea.vmem %s4, %s201
      %s203 = smul.u32 24, %s15
      %v205 = vld [vmem:[%s196] sm:$0xff]
      %v206 = vld [vmem:[%s196 + $0x8] sm:$0xff]
      %v207 = vld [vmem:[%s196 + $0x10] sm:$0xff]
      %v208 = vld [vmem:[%s196 + $0x18] sm:$0xff]
      %v209 = vld [vmem:[%s196 + $0x20] sm:$0xf]
      %v210 = vld [vmem:[%s196 + $0x24] sm:$0xff]
      %v211 = vld [vmem:[%s196 + $0x2c] sm:$0xff]
      %v212 = vld [vmem:[%s196 + $0x34] sm:$0xff]
      %v213 = vld [vmem:[%s196 + $0x3c] sm:$0xff]
      %v214 = vld [vmem:[%s196 + $0x44] sm:$0xf]
      %v215 = vld [vmem:[%s196 + $0x48] sm:$0xff]
      %v216 = vld [vmem:[%s196 + $0x50] sm:$0xff]
      %v217 = vld [vmem:[%s196 + $0x58] sm:$0xff]
      %v218 = vld [vmem:[%s196 + $0x60] sm:$0xff]
      %v219 = vld [vmem:[%s196 + $0x68] sm:$0xf]
      %v220 = vld [vmem:[%s196 + $0x6c] sm:$0xff]
      %v221 = vld [vmem:[%s196 + $0x74] sm:$0xff]
      %v222 = vld [vmem:[%s196 + $0x7c] sm:$0xff]
      %v223 = vld [vmem:[%s196 + $0x84] sm:$0xff]
      %v224 = vld [vmem:[%s196 + $0x8c] sm:$0xf]
      %v225 = vld [vmem:[%s196 + $0x90] sm:$0xff]
      %v226 = vld [vmem:[%s196 + $0x98] sm:$0xff]
      %v227 = vld [vmem:[%s196 + $0xa0] sm:$0xff]
      %v228 = vld [vmem:[%s196 + $0xa8] sm:$0xff]
      %v229 = vld [vmem:[%s196 + $0xb0] sm:$0xf]
      %v230 = vld [vmem:[%s196 + $0xb4] sm:$0xff]
      %v231 = vld [vmem:[%s196 + $0xbc] sm:$0xff]
      %v232 = vld [vmem:[%s196 + $0xc4] sm:$0xff]
      %v233 = vld [vmem:[%s196 + $0xcc] sm:$0xff]
      %v234 = vld [vmem:[%s196 + $0xd4] sm:$0xf]
      %v235 = vld [vmem:[%s196 + $0xd8] sm:$0xff]
      %v236 = vld [vmem:[%s196 + $0xe0] sm:$0xff]
      %v237 = vld [vmem:[%s196 + $0xe8] sm:$0xff]
      %v238 = vld [vmem:[%s196 + $0xf0] sm:$0xff]
      %v239 = vld [vmem:[%s196 + $0xf8] sm:$0xf]
      %v240 = vld [vmem:[%s196 + $0xfc] sm:$0xff]
      %v241 = vld [vmem:[%s196 + $0x104] sm:$0xff]
      %v242 = vld [vmem:[%s196 + $0x10c] sm:$0xff]
      %v243 = vld [vmem:[%s196 + $0x114] sm:$0xff]
      %v244 = vld [vmem:[%s196 + $0x11c] sm:$0xf]
      %v245 = vld [vmem:[%s196 + $0x120] sm:$0xff]
      %v246 = vld [vmem:[%s196 + $0x128] sm:$0xff]
      %v247 = vld [vmem:[%s196 + $0x130] sm:$0xff]
      %v248 = vld [vmem:[%s196 + $0x138] sm:$0xff]
      %v249 = vld [vmem:[%s196 + $0x140] sm:$0xf]
      %v250 = vld [vmem:[%s196 + $0x144] sm:$0xff]
      %v251 = vld [vmem:[%s196 + $0x14c] sm:$0xff]
      %v252 = vld [vmem:[%s196 + $0x154] sm:$0xff]
      %v253 = vld [vmem:[%s196 + $0x15c] sm:$0xff]
      %v254 = vld [vmem:[%s196 + $0x164] sm:$0xf]
      %v255 = vld [vmem:[%s196 + $0x168] sm:$0xff]
      %v256 = vld [vmem:[%s196 + $0x170] sm:$0xff]
      %v257 = vld [vmem:[%s196 + $0x178] sm:$0xff]
      %v258 = vld [vmem:[%s196 + $0x180] sm:$0xff]
      %v259 = vld [vmem:[%s196 + $0x188] sm:$0xf]
      %v260 = vld [vmem:[%s196 + $0x18c] sm:$0xff]
      %v261 = vld [vmem:[%s196 + $0x194] sm:$0xff]
      %v262 = vld [vmem:[%s196 + $0x19c] sm:$0xff]
      %v263 = vld [vmem:[%s196 + $0x1a4] sm:$0xff]
      %v264 = vld [vmem:[%s196 + $0x1ac] sm:$0xf]
      %v265 = vld [vmem:[%s196 + $0x1b0] sm:$0xff]
      %v266 = vld [vmem:[%s196 + $0x1b8] sm:$0xff]
      %v267 = vld [vmem:[%s196 + $0x1c0] sm:$0xff]
      %v268 = vld [vmem:[%s196 + $0x1c8] sm:$0xff]
      %v269 = vld [vmem:[%s196 + $0x1d0] sm:$0xf]
      %v270 = vld [vmem:[%s196 + $0x1d4] sm:$0xff]
      %v271 = vld [vmem:[%s196 + $0x1dc] sm:$0xff]
      %v272 = vld [vmem:[%s196 + $0x1e4] sm:$0xff]
      %v273 = vld [vmem:[%s196 + $0x1ec] sm:$0xff]
      %v274 = vld [vmem:[%s196 + $0x1f4] sm:$0xf]
      %v275 = vld [vmem:[%s196 + $0x1f8] sm:$0xff]
      %v276 = vld [vmem:[%s196 + $0x200] sm:$0xff]
      %v277 = vld [vmem:[%s196 + $0x208] sm:$0xff]
      %v278 = vld [vmem:[%s196 + $0x210] sm:$0xff]
      %v279 = vld [vmem:[%s196 + $0x218] sm:$0xf]
      %v280 = vld [vmem:[%s196 + $0x21c] sm:$0xff]
      %v281 = vld [vmem:[%s196 + $0x224] sm:$0xff]
      %v282 = vld [vmem:[%s196 + $0x22c] sm:$0xff]
      %v283 = vld [vmem:[%s196 + $0x234] sm:$0xff]
      %v284 = vld [vmem:[%s196 + $0x23c] sm:$0xf]
      %v285 = vld [vmem:[%s196 + $0x240] sm:$0xff]
      %v286 = vld [vmem:[%s196 + $0x248] sm:$0xff]
      %v287 = vld [vmem:[%s196 + $0x250] sm:$0xff]
      %v288 = vld [vmem:[%s196 + $0x258] sm:$0xff]
      %v289 = vld [vmem:[%s196 + $0x260] sm:$0xf]
      %v290 = vld [vmem:[%s196 + $0x264] sm:$0xff]
      %v291 = vld [vmem:[%s196 + $0x26c] sm:$0xff]
      %v292 = vld [vmem:[%s196 + $0x274] sm:$0xff]
      %v293 = vld [vmem:[%s196 + $0x27c] sm:$0xff]
      %v294 = vld [vmem:[%s196 + $0x284] sm:$0xf]
      %v295 = vld [vmem:[%s196 + $0x288] sm:$0xff]
      %v296 = vld [vmem:[%s196 + $0x290] sm:$0xff]
      %v297 = vld [vmem:[%s196 + $0x298] sm:$0xff]
      %v298 = vld [vmem:[%s196 + $0x2a0] sm:$0xff]
      %v299 = vld [vmem:[%s196 + $0x2a8] sm:$0xf]
      %v300 = vld [vmem:[%s196 + $0x2ac] sm:$0xff]
      %v301 = vld [vmem:[%s196 + $0x2b4] sm:$0xff]
      %v302 = vld [vmem:[%s196 + $0x2bc] sm:$0xff]
      %v303 = vld [vmem:[%s196 + $0x2c4] sm:$0xff]
      %v304 = vld [vmem:[%s196 + $0x2cc] sm:$0xf]
      %v305 = vld [vmem:[%s196 + $0x2d0] sm:$0xff]
      %v306 = vld [vmem:[%s196 + $0x2d8] sm:$0xff]
      %v307 = vld [vmem:[%s196 + $0x2e0] sm:$0xff]
      %v308 = vld [vmem:[%s196 + $0x2e8] sm:$0xff]
      %v309 = vld [vmem:[%s196 + $0x2f0] sm:$0xf]
      %v310 = vld [vmem:[%s196 + $0x2f4] sm:$0xff]
      %v311 = vld [vmem:[%s196 + $0x2fc] sm:$0xff]
      %v312 = vld [vmem:[%s196 + $0x304] sm:$0xff]
      %v313 = vld [vmem:[%s196 + $0x30c] sm:$0xff]
      %v314 = vld [vmem:[%s196 + $0x314] sm:$0xf]
      %v315 = vld [vmem:[%s196 + $0x318] sm:$0xff]
      %v316 = vld [vmem:[%s196 + $0x320] sm:$0xff]
      %v317 = vld [vmem:[%s196 + $0x328] sm:$0xff]
      %v318 = vld [vmem:[%s196 + $0x330] sm:$0xff]
      %v319 = vld [vmem:[%s196 + $0x338] sm:$0xf]
      %v320 = vld [vmem:[%s196 + $0x33c] sm:$0xff]
      %v321 = vld [vmem:[%s196 + $0x344] sm:$0xff]
      %v322 = vld [vmem:[%s196 + $0x34c] sm:$0xff]
      %v323 = vld [vmem:[%s196 + $0x354] sm:$0xff]
      %v324 = vld [vmem:[%s196 + $0x35c] sm:$0xf]
      %v325 = vld [vmem:[%s1] sm:$0xf]
      %v326 = vld [vmem:[%s1 + $0x4] sm:$0xf]
      %v327 = vld [vmem:[%s1 + $0x8] sm:$0xf]
      %v328 = vld [vmem:[%s1 + $0xc] sm:$0xf]
      %v329 = vld [vmem:[%s1 + $0x10] sm:$0xf]
      %v330 = vld [vmem:[%s1 + $0x14] sm:$0xf]
      %v331 = vld [vmem:[%s1 + $0x18] sm:$0xf]
      %v332 = vld [vmem:[%s1 + $0x1c] sm:$0xf]
      %v333 = vld [vmem:[%s1 + $0x20] sm:$0xf]
      %v334 = vld [vmem:[%s1 + $0x24] sm:$0xf]
      %v335 = vld [vmem:[%s1 + $0x28] sm:$0xf]
      %v336 = vld [vmem:[%s1 + $0x2c] sm:$0xf]
      %v337 = vld [vmem:[%s1 + $0x30] sm:$0xf]
      %v338 = vld [vmem:[%s1 + $0x34] sm:$0xf]
      %v339 = vld [vmem:[%s1 + $0x38] sm:$0xf]
      %v340 = vld [vmem:[%s1 + $0x3c] sm:$0xf]
      %v341 = vld [vmem:[%s1 + $0x40] sm:$0xf]
      %v342 = vld [vmem:[%s1 + $0x44] sm:$0xf]
      %v343 = vld [vmem:[%s1 + $0x48] sm:$0xf]
      %v344 = vld [vmem:[%s1 + $0x4c] sm:$0xf]
      %v345 = vld [vmem:[%s1 + $0x50] sm:$0xf]
      %v346 = vld [vmem:[%s1 + $0x54] sm:$0xf]
      %v347 = vld [vmem:[%s1 + $0x58] sm:$0xf]
      %v348 = vld [vmem:[%s1 + $0x5c] sm:$0xf]
      %v349 = vld [vmem:[%s1 + $0x60] sm:$0xf]
      %v350 = vld [vmem:[%s1 + $0x64] sm:$0xf]
      %v351 = vld [vmem:[%s1 + $0x68] sm:$0xf]
      %v352 = vld [vmem:[%s1 + $0x6c] sm:$0xf]
      %v353 = vld [vmem:[%s1 + $0x70] sm:$0xf]
      %v354 = vld [vmem:[%s1 + $0x74] sm:$0xf]
      %v355 = vld [vmem:[%s1 + $0x78] sm:$0xf]
      %v356 = vld [vmem:[%s1 + $0x7c] sm:$0xf]
      %v357 = vld [vmem:[%s1 + $0x80] sm:$0xf]
      %v358 = vld [vmem:[%s1 + $0x84] sm:$0xf]
      %v359 = vld [vmem:[%s1 + $0x88] sm:$0xf]
      %v360 = vld [vmem:[%s1 + $0x8c] sm:$0xf]
      %v361 = vld [vmem:[%s1 + $0x90] sm:$0xf]
      %v362 = vld [vmem:[%s1 + $0x94] sm:$0xf]
      %v363 = vld [vmem:[%s1 + $0x98] sm:$0xf]
      %v364 = vld [vmem:[%s1 + $0x9c] sm:$0xf]
      %v365 = vld [vmem:[%s1 + $0xa0] sm:$0xf]
      %v366 = vld [vmem:[%s1 + $0xa4] sm:$0xf]
      %v367 = vld [vmem:[%s1 + $0xa8] sm:$0xf]
      %v368 = vld [vmem:[%s1 + $0xac] sm:$0xf]
      %v369 = vld [vmem:[%s1 + $0xb0] sm:$0xf]
      %v370 = vld [vmem:[%s1 + $0xb4] sm:$0xf]
      %v371 = vld [vmem:[%s1 + $0xb8] sm:$0xf]
      %v372 = vld [vmem:[%s1 + $0xbc] sm:$0xf]
      %v373 = vld [vmem:[%s1 + $0xc0] sm:$0xf]
      %v374 = vld [vmem:[%s1 + $0xc4] sm:$0xf]
      %v375 = vld [vmem:[%s1 + $0xc8] sm:$0xf]
      %v376 = vld [vmem:[%s1 + $0xcc] sm:$0xf]
      %v377 = vld [vmem:[%s1 + $0xd0] sm:$0xf]
      %v378 = vld [vmem:[%s1 + $0xd4] sm:$0xf]
      %v379 = vld [vmem:[%s1 + $0xd8] sm:$0xf]
      %v380 = vld [vmem:[%s1 + $0xdc] sm:$0xf]
      %v381 = vld [vmem:[%s1 + $0xe0] sm:$0xf]
      %v382 = vld [vmem:[%s1 + $0xe4] sm:$0xf]
      %v383 = vld [vmem:[%s1 + $0xe8] sm:$0xf]
      %v384 = vld [vmem:[%s1 + $0xec] sm:$0xf]
      %v385 = vld [vmem:[%s1 + $0xf0] sm:$0xf]
      %v386 = vld [vmem:[%s1 + $0xf4] sm:$0xf]
      %v387 = vld [vmem:[%s1 + $0xf8] sm:$0xf]
      %v388 = vld [vmem:[%s1 + $0xfc] sm:$0xf]
      %v389 = vld [vmem:[%s1 + $0x100] sm:$0xf]
      %v390 = vld [vmem:[%s1 + $0x104] sm:$0xf]
      %v391 = vld [vmem:[%s1 + $0x108] sm:$0xf]
      %v392 = vld [vmem:[%s1 + $0x10c] sm:$0xf]
      %v393 = vld [vmem:[%s1 + $0x110] sm:$0xf]
      %v394 = vld [vmem:[%s1 + $0x114] sm:$0xf]
      %v395 = vld [vmem:[%s1 + $0x118] sm:$0xf]
      %v396 = vld [vmem:[%s1 + $0x11c] sm:$0xf]
      %v397 = vld [vmem:[%s1 + $0x120] sm:$0xf]
      %v398 = vld [vmem:[%s1 + $0x124] sm:$0xf]
      %v399 = vld [vmem:[%s1 + $0x128] sm:$0xf]
      %v400 = vld [vmem:[%s1 + $0x12c] sm:$0xf]
      %v401 = vld [vmem:[%s1 + $0x130] sm:$0xf]
      %v402 = vld [vmem:[%s1 + $0x134] sm:$0xf]
      %v403 = vld [vmem:[%s1 + $0x138] sm:$0xf]
      %v404 = vld [vmem:[%s1 + $0x13c] sm:$0xf]
      %v405 = vld [vmem:[%s1 + $0x140] sm:$0xf]
      %v406 = vld [vmem:[%s1 + $0x144] sm:$0xf]
      %v407 = vld [vmem:[%s1 + $0x148] sm:$0xf]
      %v408 = vld [vmem:[%s1 + $0x14c] sm:$0xf]
      %v409 = vld [vmem:[%s1 + $0x150] sm:$0xf]
      %v410 = vld [vmem:[%s1 + $0x154] sm:$0xf]
      %v411 = vld [vmem:[%s1 + $0x158] sm:$0xf]
      %v412 = vld [vmem:[%s1 + $0x15c] sm:$0xf]
      %v413 = vld [vmem:[%s1 + $0x160] sm:$0xf]
      %v414 = vld [vmem:[%s1 + $0x164] sm:$0xf]
      %v415 = vld [vmem:[%s1 + $0x168] sm:$0xf]
      %v416 = vld [vmem:[%s1 + $0x16c] sm:$0xf]
      %v417 = vld [vmem:[%s1 + $0x170] sm:$0xf]
      %v418 = vld [vmem:[%s1 + $0x174] sm:$0xf]
      %v419 = vld [vmem:[%s1 + $0x178] sm:$0xf]
      %v420 = vld [vmem:[%s1 + $0x17c] sm:$0xf]
      %v421 = vld [vmem:[%s1 + $0x180] sm:$0xf]
      %v422 = vld [vmem:[%s1 + $0x184] sm:$0xf]
      %v423 = vld [vmem:[%s1 + $0x188] sm:$0xf]
      %v424 = vld [vmem:[%s1 + $0x18c] sm:$0xf]
      %v425 = vld [vmem:[%s1 + $0x190] sm:$0xf]
      %v426 = vld [vmem:[%s1 + $0x194] sm:$0xf]
      %v427 = vld [vmem:[%s1 + $0x198] sm:$0xf]
      %v428 = vld [vmem:[%s1 + $0x19c] sm:$0xf]
      %v429 = vld [vmem:[%s1 + $0x1a0] sm:$0xf]
      %v430 = vld [vmem:[%s1 + $0x1a4] sm:$0xf]
      %v431 = vld [vmem:[%s1 + $0x1a8] sm:$0xf]
      %v432 = vld [vmem:[%s1 + $0x1ac] sm:$0xf]
      %v433 = vld [vmem:[%s1 + $0x1b0] sm:$0xf]
      %v434 = vld [vmem:[%s1 + $0x1b4] sm:$0xf]
      %v435 = vld [vmem:[%s1 + $0x1b8] sm:$0xf]
      %v436 = vld [vmem:[%s1 + $0x1bc] sm:$0xf]
      %v437 = vld [vmem:[%s1 + $0x1c0] sm:$0xf]
      %v438 = vld [vmem:[%s1 + $0x1c4] sm:$0xf]
      %v439 = vld [vmem:[%s1 + $0x1c8] sm:$0xf]
      %v440 = vld [vmem:[%s1 + $0x1cc] sm:$0xf]
      %v441 = vld [vmem:[%s1 + $0x1d0] sm:$0xf]
      %v442 = vld [vmem:[%s1 + $0x1d4] sm:$0xf]
      %v443 = vld [vmem:[%s1 + $0x1d8] sm:$0xf]
      %v444 = vld [vmem:[%s1 + $0x1dc] sm:$0xf]
      %v445 = vld [vmem:[%s1 + $0x1e0] sm:$0xf]
      %v446 = vld [vmem:[%s1 + $0x1e4] sm:$0xf]
      %v447 = vld [vmem:[%s1 + $0x1e8] sm:$0xf]
      %v448 = vld [vmem:[%s1 + $0x1ec] sm:$0xf]
      %v449 = vld [vmem:[%s1 + $0x1f0] sm:$0xf]
      %v450 = vld [vmem:[%s1 + $0x1f4] sm:$0xf]
      %v451 = vld [vmem:[%s1 + $0x1f8] sm:$0xf]
      %v452 = vld [vmem:[%s1 + $0x1fc] sm:$0xf]
      %v453 = vld [vmem:[%s1 + $0x200] sm:$0xf]
      %v454 = vld [vmem:[%s1 + $0x204] sm:$0xf]
      %v455 = vld [vmem:[%s1 + $0x208] sm:$0xf]
      %v456 = vld [vmem:[%s1 + $0x20c] sm:$0xf]
      %v457 = vld [vmem:[%s1 + $0x210] sm:$0xf]
      %v458 = vld [vmem:[%s1 + $0x214] sm:$0xf]
      %v459 = vld [vmem:[%s1 + $0x218] sm:$0xf]
      %v460 = vld [vmem:[%s1 + $0x21c] sm:$0xf]
      %v461 = vld [vmem:[%s1 + $0x220] sm:$0xf]
      %v462 = vld [vmem:[%s1 + $0x224] sm:$0xf]
      %v463 = vld [vmem:[%s1 + $0x228] sm:$0xf]
      %v464 = vld [vmem:[%s1 + $0x22c] sm:$0xf]
      %v465 = vld [vmem:[%s1 + $0x230] sm:$0xf]
      %v466 = vld [vmem:[%s1 + $0x234] sm:$0xf]
      %v467 = vld [vmem:[%s1 + $0x238] sm:$0xf]
      %v468 = vld [vmem:[%s1 + $0x23c] sm:$0xf]
      %v589 = vunpack.c.l.b16 %v205
      %v590 = vunpack.c.h.b16 %v205
      %v591 = vunpack.c.l.b16 %v206
      %v592 = vunpack.c.h.b16 %v206
      %v593 = vunpack.c.l.b16 %v207
      %v594 = vunpack.c.h.b16 %v207
      %v595 = vunpack.c.l.b16 %v208
      %v596 = vunpack.c.h.b16 %v208
      %v597 = vunpack.c.l.b16 %v209
      %v598 = vunpack.c.l.b16 %v210
      %v599 = vunpack.c.h.b16 %v210
      %v600 = vunpack.c.l.b16 %v211
      %v601 = vunpack.c.h.b16 %v211
      %v602 = vunpack.c.l.b16 %v212
      %v603 = vunpack.c.h.b16 %v212
      %v604 = vunpack.c.l.b16 %v213
      %v605 = vunpack.c.h.b16 %v213
      %v606 = vunpack.c.l.b16 %v214
      %v607 = vunpack.c.l.b16 %v215
      %v608 = vunpack.c.h.b16 %v215
      %v609 = vunpack.c.l.b16 %v216
      %v610 = vunpack.c.h.b16 %v216
      %v611 = vunpack.c.l.b16 %v217
      %v612 = vunpack.c.h.b16 %v217
      %v613 = vunpack.c.l.b16 %v218
      %v614 = vunpack.c.h.b16 %v218
      %v615 = vunpack.c.l.b16 %v219
      %v616 = vunpack.c.l.b16 %v220
      %v617 = vunpack.c.h.b16 %v220
      %v618 = vunpack.c.l.b16 %v221
      %v619 = vunpack.c.h.b16 %v221
      %v620 = vunpack.c.l.b16 %v222
      %v621 = vunpack.c.h.b16 %v222
      %v622 = vunpack.c.l.b16 %v223
      %v623 = vunpack.c.h.b16 %v223
      %v624 = vunpack.c.l.b16 %v224
      %v625 = vunpack.c.l.b16 %v225
      %v626 = vunpack.c.h.b16 %v225
      %v627 = vunpack.c.l.b16 %v226
      %v628 = vunpack.c.h.b16 %v226
      %v629 = vunpack.c.l.b16 %v227
      %v630 = vunpack.c.h.b16 %v227
      %v631 = vunpack.c.l.b16 %v228
      %v632 = vunpack.c.h.b16 %v228
      %v633 = vunpack.c.l.b16 %v229
      %v634 = vunpack.c.l.b16 %v230
      %v635 = vunpack.c.h.b16 %v230
      %v636 = vunpack.c.l.b16 %v231
      %v637 = vunpack.c.h.b16 %v231
      %v638 = vunpack.c.l.b16 %v232
      %v639 = vunpack.c.h.b16 %v232
      %v640 = vunpack.c.l.b16 %v233
      %v641 = vunpack.c.h.b16 %v233
      %v642 = vunpack.c.l.b16 %v234
      %v643 = vunpack.c.l.b16 %v235
      %v644 = vunpack.c.h.b16 %v235
      %v645 = vunpack.c.l.b16 %v236
      %v646 = vunpack.c.h.b16 %v236
      %v647 = vunpack.c.l.b16 %v237
      %v648 = vunpack.c.h.b16 %v237
      %v649 = vunpack.c.l.b16 %v238
      %v650 = vunpack.c.h.b16 %v238
      %v651 = vunpack.c.l.b16 %v239
      %v652 = vunpack.c.l.b16 %v240
      %v653 = vunpack.c.h.b16 %v240
      %v654 = vunpack.c.l.b16 %v241
      %v655 = vunpack.c.h.b16 %v241
      %v656 = vunpack.c.l.b16 %v242
      %v657 = vunpack.c.h.b16 %v242
      %v658 = vunpack.c.l.b16 %v243
      %v659 = vunpack.c.h.b16 %v243
      %v660 = vunpack.c.l.b16 %v244
      %v661 = vunpack.c.l.b16 %v245
      %v662 = vunpack.c.h.b16 %v245
      %v663 = vunpack.c.l.b16 %v246
      %v664 = vunpack.c.h.b16 %v246
      %v665 = vunpack.c.l.b16 %v247
      %v666 = vunpack.c.h.b16 %v247
      %v667 = vunpack.c.l.b16 %v248
      %v668 = vunpack.c.h.b16 %v248
      %v669 = vunpack.c.l.b16 %v249
      %v670 = vunpack.c.l.b16 %v250
      %v671 = vunpack.c.h.b16 %v250
      %v672 = vunpack.c.l.b16 %v251
      %v673 = vunpack.c.h.b16 %v251
      %v674 = vunpack.c.l.b16 %v252
      %v675 = vunpack.c.h.b16 %v252
      %v676 = vunpack.c.l.b16 %v253
      %v677 = vunpack.c.h.b16 %v253
      %v678 = vunpack.c.l.b16 %v254
      %v679 = vunpack.c.l.b16 %v255
      %v680 = vunpack.c.h.b16 %v255
      %v681 = vunpack.c.l.b16 %v256
      %v682 = vunpack.c.h.b16 %v256
      %v683 = vunpack.c.l.b16 %v257
      %v684 = vunpack.c.h.b16 %v257
      %v685 = vunpack.c.l.b16 %v258
      %v686 = vunpack.c.h.b16 %v258
      %v687 = vunpack.c.l.b16 %v259
      %v688 = vunpack.c.l.b16 %v260
      %v689 = vunpack.c.h.b16 %v260
      %v690 = vunpack.c.l.b16 %v261
      %v691 = vunpack.c.h.b16 %v261
      %v692 = vunpack.c.l.b16 %v262
      %v693 = vunpack.c.h.b16 %v262
      %v694 = vunpack.c.l.b16 %v263
      %v695 = vunpack.c.h.b16 %v263
      %v696 = vunpack.c.l.b16 %v264
      %v697 = vunpack.c.l.b16 %v265
      %v698 = vunpack.c.h.b16 %v265
      %v699 = vunpack.c.l.b16 %v266
      %v700 = vunpack.c.h.b16 %v266
      %v701 = vunpack.c.l.b16 %v267
      %v702 = vunpack.c.h.b16 %v267
      %v703 = vunpack.c.l.b16 %v268
      %v704 = vunpack.c.h.b16 %v268
      %v705 = vunpack.c.l.b16 %v269
      %v706 = vunpack.c.l.b16 %v270
      %v707 = vunpack.c.h.b16 %v270
      %v708 = vunpack.c.l.b16 %v271
      %v709 = vunpack.c.h.b16 %v271
      %v710 = vunpack.c.l.b16 %v272
      %v711 = vunpack.c.h.b16 %v272
      %v712 = vunpack.c.l.b16 %v273
      %v713 = vunpack.c.h.b16 %v273
      %v714 = vunpack.c.l.b16 %v274
      %v715 = vunpack.c.l.b16 %v275
      %v716 = vunpack.c.h.b16 %v275
      %v717 = vunpack.c.l.b16 %v276
      %v718 = vunpack.c.h.b16 %v276
      %v719 = vunpack.c.l.b16 %v277
      %v720 = vunpack.c.h.b16 %v277
      %v721 = vunpack.c.l.b16 %v278
      %v722 = vunpack.c.h.b16 %v278
      %v723 = vunpack.c.l.b16 %v279
      %v724 = vunpack.c.l.b16 %v280
      %v725 = vunpack.c.h.b16 %v280
      %v726 = vunpack.c.l.b16 %v281
      %v727 = vunpack.c.h.b16 %v281
      %v728 = vunpack.c.l.b16 %v282
      %v729 = vunpack.c.h.b16 %v282
      %v730 = vunpack.c.l.b16 %v283
      %v731 = vunpack.c.h.b16 %v283
      %v732 = vunpack.c.l.b16 %v284
      %v733 = vunpack.c.l.b16 %v285
      %v734 = vunpack.c.h.b16 %v285
      %v735 = vunpack.c.l.b16 %v286
      %v736 = vunpack.c.h.b16 %v286
      %v737 = vunpack.c.l.b16 %v287
      %v738 = vunpack.c.h.b16 %v287
      %v739 = vunpack.c.l.b16 %v288
      %v740 = vunpack.c.h.b16 %v288
      %v741 = vunpack.c.l.b16 %v289
      %v742 = vunpack.c.l.b16 %v290
      %v743 = vunpack.c.h.b16 %v290
      %v744 = vunpack.c.l.b16 %v291
      %v745 = vunpack.c.h.b16 %v291
      %v746 = vunpack.c.l.b16 %v292
      %v747 = vunpack.c.h.b16 %v292
      %v748 = vunpack.c.l.b16 %v293
      %v749 = vunpack.c.h.b16 %v293
      %v750 = vunpack.c.l.b16 %v294
      %v751 = vunpack.c.l.b16 %v295
      %v752 = vunpack.c.h.b16 %v295
      %v753 = vunpack.c.l.b16 %v296
      %v754 = vunpack.c.h.b16 %v296
      %v755 = vunpack.c.l.b16 %v297
      %v756 = vunpack.c.h.b16 %v297
      %v757 = vunpack.c.l.b16 %v298
      %v758 = vunpack.c.h.b16 %v298
      %v759 = vunpack.c.l.b16 %v299
      %v760 = vunpack.c.l.b16 %v300
      %v761 = vunpack.c.h.b16 %v300
      %v762 = vunpack.c.l.b16 %v301
      %v763 = vunpack.c.h.b16 %v301
      %v764 = vunpack.c.l.b16 %v302
      %v765 = vunpack.c.h.b16 %v302
      %v766 = vunpack.c.l.b16 %v303
      %v767 = vunpack.c.h.b16 %v303
      %v768 = vunpack.c.l.b16 %v304
      %v769 = vunpack.c.l.b16 %v305
      %v770 = vunpack.c.h.b16 %v305
      %v771 = vunpack.c.l.b16 %v306
      %v772 = vunpack.c.h.b16 %v306
      %v773 = vunpack.c.l.b16 %v307
      %v774 = vunpack.c.h.b16 %v307
      %v775 = vunpack.c.l.b16 %v308
      %v776 = vunpack.c.h.b16 %v308
      %v777 = vunpack.c.l.b16 %v309
      %v778 = vunpack.c.l.b16 %v310
      %v779 = vunpack.c.h.b16 %v310
      %v780 = vunpack.c.l.b16 %v311
      %v781 = vunpack.c.h.b16 %v311
      %v782 = vunpack.c.l.b16 %v312
      %v783 = vunpack.c.h.b16 %v312
      %v784 = vunpack.c.l.b16 %v313
      %v785 = vunpack.c.h.b16 %v313
      %v786 = vunpack.c.l.b16 %v314
      %v787 = vunpack.c.l.b16 %v315
      %v788 = vunpack.c.h.b16 %v315
      %v789 = vunpack.c.l.b16 %v316
      %v790 = vunpack.c.h.b16 %v316
      %v791 = vunpack.c.l.b16 %v317
      %v792 = vunpack.c.h.b16 %v317
      %v793 = vunpack.c.l.b16 %v318
      %v794 = vunpack.c.h.b16 %v318
      %v795 = vunpack.c.l.b16 %v319
      %v796 = vunpack.c.l.b16 %v320
      %v797 = vunpack.c.h.b16 %v320
      %v798 = vunpack.c.l.b16 %v321
      %v799 = vunpack.c.h.b16 %v321
      %v800 = vunpack.c.l.b16 %v322
      %v801 = vunpack.c.h.b16 %v322
      %v802 = vunpack.c.l.b16 %v323
      %v803 = vunpack.c.h.b16 %v323
      %v804 = vunpack.c.l.b16 %v324
      %v805 = vpack.c.b16 %v598, %v589
      %v806 = vpack.c.b16 %v599, %v590
      %v807 = vpack.c.b16 %v600, %v591
      %v808 = vpack.c.b16 %v601, %v592
      %v809 = vpack.c.b16 %v602, %v593
      %v810 = vpack.c.b16 %v603, %v594
      %v811 = vpack.c.b16 %v604, %v595
      %v812 = vpack.c.b16 %v605, %v596
      %v813 = vpack.c.b16 %v606, %v597
      %v814 = vpack.c.b16 %v616, %v607
      %v815 = vpack.c.b16 %v617, %v608
      %v816 = vpack.c.b16 %v618, %v609
      %v817 = vpack.c.b16 %v619, %v610
      %v818 = vpack.c.b16 %v620, %v611
      %v819 = vpack.c.b16 %v621, %v612
      %v820 = vpack.c.b16 %v622, %v613
      %v821 = vpack.c.b16 %v623, %v614
      %v822 = vpack.c.b16 %v624, %v615
      %v823 = vpack.c.b16 %v634, %v625
      %v824 = vpack.c.b16 %v635, %v626
      %v825 = vpack.c.b16 %v636, %v627
      %v826 = vpack.c.b16 %v637, %v628
      %v827 = vpack.c.b16 %v638, %v629
      %v828 = vpack.c.b16 %v639, %v630
      %v829 = vpack.c.b16 %v640, %v631
      %v830 = vpack.c.b16 %v641, %v632
      %v831 = vpack.c.b16 %v642, %v633
      %v832 = vpack.c.b16 %v652, %v643
      %v833 = vpack.c.b16 %v653, %v644
      %v834 = vpack.c.b16 %v654, %v645
      %v835 = vpack.c.b16 %v655, %v646
      %v836 = vpack.c.b16 %v656, %v647
      %v837 = vpack.c.b16 %v657, %v648
      %v838 = vpack.c.b16 %v658, %v649
      %v839 = vpack.c.b16 %v659, %v650
      %v840 = vpack.c.b16 %v660, %v651
      %v841 = vpack.c.b16 %v670, %v661
      %v842 = vpack.c.b16 %v671, %v662
      %v843 = vpack.c.b16 %v672, %v663
      %v844 = vpack.c.b16 %v673, %v664
      %v845 = vpack.c.b16 %v674, %v665
      %v846 = vpack.c.b16 %v675, %v666
      %v847 = vpack.c.b16 %v676, %v667
      %v848 = vpack.c.b16 %v677, %v668
      %v849 = vpack.c.b16 %v678, %v669
      %v850 = vpack.c.b16 %v688, %v679
      %v851 = vpack.c.b16 %v689, %v680
      %v852 = vpack.c.b16 %v690, %v681
      %v853 = vpack.c.b16 %v691, %v682
      %v854 = vpack.c.b16 %v692, %v683
      %v855 = vpack.c.b16 %v693, %v684
      %v856 = vpack.c.b16 %v694, %v685
      %v857 = vpack.c.b16 %v695, %v686
      %v858 = vpack.c.b16 %v696, %v687
      %v859 = vpack.c.b16 %v706, %v697
      %v860 = vpack.c.b16 %v707, %v698
      %v861 = vpack.c.b16 %v708, %v699
      %v862 = vpack.c.b16 %v709, %v700
      %v863 = vpack.c.b16 %v710, %v701
      %v864 = vpack.c.b16 %v711, %v702
      %v865 = vpack.c.b16 %v712, %v703
      %v866 = vpack.c.b16 %v713, %v704
      %v867 = vpack.c.b16 %v714, %v705
      %v868 = vpack.c.b16 %v724, %v715
      %v869 = vpack.c.b16 %v725, %v716
      %v870 = vpack.c.b16 %v726, %v717
      %v871 = vpack.c.b16 %v727, %v718
      %v872 = vpack.c.b16 %v728, %v719
      %v873 = vpack.c.b16 %v729, %v720
      %v874 = vpack.c.b16 %v730, %v721
      %v875 = vpack.c.b16 %v731, %v722
      %v876 = vpack.c.b16 %v732, %v723
      %v877 = vpack.c.b16 %v742, %v733
      %v878 = vpack.c.b16 %v743, %v734
      %v879 = vpack.c.b16 %v744, %v735
      %v880 = vpack.c.b16 %v745, %v736
      %v881 = vpack.c.b16 %v746, %v737
      %v882 = vpack.c.b16 %v747, %v738
      %v883 = vpack.c.b16 %v748, %v739
      %v884 = vpack.c.b16 %v749, %v740
      %v885 = vpack.c.b16 %v750, %v741
      %v886 = vpack.c.b16 %v760, %v751
      %v887 = vpack.c.b16 %v761, %v752
      %v888 = vpack.c.b16 %v762, %v753
      %v889 = vpack.c.b16 %v763, %v754
      %v890 = vpack.c.b16 %v764, %v755
      %v891 = vpack.c.b16 %v765, %v756
      %v892 = vpack.c.b16 %v766, %v757
      %v893 = vpack.c.b16 %v767, %v758
      %v894 = vpack.c.b16 %v768, %v759
      %v895 = vpack.c.b16 %v778, %v769
      %v896 = vpack.c.b16 %v779, %v770
      %v897 = vpack.c.b16 %v780, %v771
      %v898 = vpack.c.b16 %v781, %v772
      %v899 = vpack.c.b16 %v782, %v773
      %v900 = vpack.c.b16 %v783, %v774
      %v901 = vpack.c.b16 %v784, %v775
      %v902 = vpack.c.b16 %v785, %v776
      %v903 = vpack.c.b16 %v786, %v777
      %v904 = vpack.c.b16 %v796, %v787
      %v905 = vpack.c.b16 %v797, %v788
      %v906 = vpack.c.b16 %v798, %v789
      %v907 = vpack.c.b16 %v799, %v790
      %v908 = vpack.c.b16 %v800, %v791
      %v909 = vpack.c.b16 %v801, %v792
      %v910 = vpack.c.b16 %v802, %v793
      %v911 = vpack.c.b16 %v803, %v794
      %v912 = vpack.c.b16 %v804, %v795
      %v1165 = vunpack.c.l.b16 %v325
      %v1166 = vunpack.c.l.b16 %v326
      %v1167 = vunpack.c.l.b16 %v327
      %v1168 = vunpack.c.l.b16 %v328
      %v1169 = vunpack.c.l.b16 %v329
      %v1170 = vunpack.c.l.b16 %v330
      %v1171 = vunpack.c.l.b16 %v331
      %v1172 = vunpack.c.l.b16 %v332
      %v1173 = vunpack.c.l.b16 %v333
      %v1174 = vunpack.c.l.b16 %v334
      %v1175 = vunpack.c.l.b16 %v335
      %v1176 = vunpack.c.l.b16 %v336
      %v1177 = vunpack.c.l.b16 %v337
      %v1178 = vunpack.c.l.b16 %v338
      %v1179 = vunpack.c.l.b16 %v339
      %v1180 = vunpack.c.l.b16 %v340
      %v1181 = vunpack.c.l.b16 %v341
      %v1182 = vunpack.c.l.b16 %v342
      %v1183 = vunpack.c.l.b16 %v343
      %v1184 = vunpack.c.l.b16 %v344
      %v1185 = vunpack.c.l.b16 %v345
      %v1186 = vunpack.c.l.b16 %v346
      %v1187 = vunpack.c.l.b16 %v347
      %v1188 = vunpack.c.l.b16 %v348
      %v1189 = vunpack.c.l.b16 %v349
      %v1190 = vunpack.c.l.b16 %v350
      %v1191 = vunpack.c.l.b16 %v351
      %v1192 = vunpack.c.l.b16 %v352
      %v1193 = vunpack.c.l.b16 %v353
      %v1194 = vunpack.c.l.b16 %v354
      %v1195 = vunpack.c.l.b16 %v355
      %v1196 = vunpack.c.l.b16 %v356
      %v1197 = vunpack.c.l.b16 %v357
      %v1198 = vunpack.c.l.b16 %v358
      %v1199 = vunpack.c.l.b16 %v359
      %v1200 = vunpack.c.l.b16 %v360
      %v1201 = vunpack.c.l.b16 %v361
      %v1202 = vunpack.c.l.b16 %v362
      %v1203 = vunpack.c.l.b16 %v363
      %v1204 = vunpack.c.l.b16 %v364
      %v1205 = vunpack.c.l.b16 %v365
      %v1206 = vunpack.c.l.b16 %v366
      %v1207 = vunpack.c.l.b16 %v367
      %v1208 = vunpack.c.l.b16 %v368
      %v1209 = vunpack.c.l.b16 %v369
      %v1210 = vunpack.c.l.b16 %v370
      %v1211 = vunpack.c.l.b16 %v371
      %v1212 = vunpack.c.l.b16 %v372
      %v1213 = vunpack.c.l.b16 %v373
      %v1214 = vunpack.c.l.b16 %v374
      %v1215 = vunpack.c.l.b16 %v375
      %v1216 = vunpack.c.l.b16 %v376
      %v1217 = vunpack.c.l.b16 %v377
      %v1218 = vunpack.c.l.b16 %v378
      %v1219 = vunpack.c.l.b16 %v379
      %v1220 = vunpack.c.l.b16 %v380
      %v1221 = vunpack.c.l.b16 %v381
      %v1222 = vunpack.c.l.b16 %v382
      %v1223 = vunpack.c.l.b16 %v383
      %v1224 = vunpack.c.l.b16 %v384
      %v1225 = vunpack.c.l.b16 %v385
      %v1226 = vunpack.c.l.b16 %v386
      %v1227 = vunpack.c.l.b16 %v387
      %v1228 = vunpack.c.l.b16 %v388
      %v1229 = vunpack.c.l.b16 %v389
      %v1230 = vunpack.c.l.b16 %v390
      %v1231 = vunpack.c.l.b16 %v391
      %v1232 = vunpack.c.l.b16 %v392
      %v1233 = vunpack.c.l.b16 %v393
      %v1234 = vunpack.c.l.b16 %v394
      %v1235 = vunpack.c.l.b16 %v395
      %v1236 = vunpack.c.l.b16 %v396
      %v1237 = vunpack.c.l.b16 %v397
      %v1238 = vunpack.c.l.b16 %v398
      %v1239 = vunpack.c.l.b16 %v399
      %v1240 = vunpack.c.l.b16 %v400
      %v1241 = vunpack.c.l.b16 %v401
      %v1242 = vunpack.c.l.b16 %v402
      %v1243 = vunpack.c.l.b16 %v403
      %v1244 = vunpack.c.l.b16 %v404
      %v1245 = vunpack.c.l.b16 %v405
      %v1246 = vunpack.c.l.b16 %v406
      %v1247 = vunpack.c.l.b16 %v407
      %v1248 = vunpack.c.l.b16 %v408
      %v1249 = vunpack.c.l.b16 %v409
      %v1250 = vunpack.c.l.b16 %v410
      %v1251 = vunpack.c.l.b16 %v411
      %v1252 = vunpack.c.l.b16 %v412
      %v1253 = vunpack.c.l.b16 %v413
      %v1254 = vunpack.c.l.b16 %v414
      %v1255 = vunpack.c.l.b16 %v415
      %v1256 = vunpack.c.l.b16 %v416
      %v1257 = vunpack.c.l.b16 %v417
      %v1258 = vunpack.c.l.b16 %v418
      %v1259 = vunpack.c.l.b16 %v419
      %v1260 = vunpack.c.l.b16 %v420
      %v1261 = vunpack.c.l.b16 %v421
      %v1262 = vunpack.c.l.b16 %v422
      %v1263 = vunpack.c.l.b16 %v423
      %v1264 = vunpack.c.l.b16 %v424
      %v1265 = vunpack.c.l.b16 %v425
      %v1266 = vunpack.c.l.b16 %v426
      %v1267 = vunpack.c.l.b16 %v427
      %v1268 = vunpack.c.l.b16 %v428
      %v1269 = vunpack.c.l.b16 %v429
      %v1270 = vunpack.c.l.b16 %v430
      %v1271 = vunpack.c.l.b16 %v431
      %v1272 = vunpack.c.l.b16 %v432
      %v1273 = vunpack.c.l.b16 %v433
      %v1274 = vunpack.c.l.b16 %v434
      %v1275 = vunpack.c.l.b16 %v435
      %v1276 = vunpack.c.l.b16 %v436
      %v1277 = vunpack.c.l.b16 %v437
      %v1278 = vunpack.c.l.b16 %v438
      %v1279 = vunpack.c.l.b16 %v439
      %v1280 = vunpack.c.l.b16 %v440
      %v1281 = vunpack.c.l.b16 %v441
      %v1282 = vunpack.c.l.b16 %v442
      %v1283 = vunpack.c.l.b16 %v443
      %v1284 = vunpack.c.l.b16 %v444
      %v1285 = vunpack.c.l.b16 %v445
      %v1286 = vunpack.c.l.b16 %v446
      %v1287 = vunpack.c.l.b16 %v447
      %v1288 = vunpack.c.l.b16 %v448
      %v1289 = vunpack.c.l.b16 %v449
      %v1290 = vunpack.c.l.b16 %v450
      %v1291 = vunpack.c.l.b16 %v451
      %v1292 = vunpack.c.l.b16 %v452
      %v1293 = vunpack.c.l.b16 %v453
      %v1294 = vunpack.c.l.b16 %v454
      %v1295 = vunpack.c.l.b16 %v455
      %v1296 = vunpack.c.l.b16 %v456
      %v1297 = vunpack.c.l.b16 %v457
      %v1298 = vunpack.c.l.b16 %v458
      %v1299 = vunpack.c.l.b16 %v459
      %v1300 = vunpack.c.l.b16 %v460
      %v1301 = vunpack.c.l.b16 %v461
      %v1302 = vunpack.c.l.b16 %v462
      %v1303 = vunpack.c.l.b16 %v463
      %v1304 = vunpack.c.l.b16 %v464
      %v1305 = vunpack.c.l.b16 %v465
      %v1306 = vunpack.c.l.b16 %v466
      %v1307 = vunpack.c.l.b16 %v467
      %v1308 = vunpack.c.l.b16 %v468
      %v1309 = vpack.c.b16 %v1166, %v1165
      %v1310 = vpack.c.b16 %v1168, %v1167
      %v1311 = vpack.c.b16 %v1170, %v1169
      %v1312 = vpack.c.b16 %v1172, %v1171
      %v1313 = vpack.c.b16 %v1174, %v1173
      %v1314 = vpack.c.b16 %v1176, %v1175
      %v1315 = vpack.c.b16 %v1178, %v1177
      %v1316 = vpack.c.b16 %v1180, %v1179
      %v1317 = vpack.c.b16 %v1182, %v1181
      %v1318 = vpack.c.b16 %v1184, %v1183
      %v1319 = vpack.c.b16 %v1186, %v1185
      %v1320 = vpack.c.b16 %v1188, %v1187
      %v1321 = vpack.c.b16 %v1190, %v1189
      %v1322 = vpack.c.b16 %v1192, %v1191
      %v1323 = vpack.c.b16 %v1194, %v1193
      %v1324 = vpack.c.b16 %v1196, %v1195
      %v1325 = vpack.c.b16 %v1198, %v1197
      %v1326 = vpack.c.b16 %v1200, %v1199
      %v1327 = vpack.c.b16 %v1202, %v1201
      %v1328 = vpack.c.b16 %v1204, %v1203
      %v1329 = vpack.c.b16 %v1206, %v1205
      %v1330 = vpack.c.b16 %v1208, %v1207
      %v1331 = vpack.c.b16 %v1210, %v1209
      %v1332 = vpack.c.b16 %v1212, %v1211
      %v1333 = vpack.c.b16 %v1214, %v1213
      %v1334 = vpack.c.b16 %v1216, %v1215
      %v1335 = vpack.c.b16 %v1218, %v1217
      %v1336 = vpack.c.b16 %v1220, %v1219
      %v1337 = vpack.c.b16 %v1222, %v1221
      %v1338 = vpack.c.b16 %v1224, %v1223
      %v1339 = vpack.c.b16 %v1226, %v1225
      %v1340 = vpack.c.b16 %v1228, %v1227
      %v1341 = vpack.c.b16 %v1230, %v1229
      %v1342 = vpack.c.b16 %v1232, %v1231
      %v1343 = vpack.c.b16 %v1234, %v1233
      %v1344 = vpack.c.b16 %v1236, %v1235
      %v1345 = vpack.c.b16 %v1238, %v1237
      %v1346 = vpack.c.b16 %v1240, %v1239
      %v1347 = vpack.c.b16 %v1242, %v1241
      %v1348 = vpack.c.b16 %v1244, %v1243
      %v1349 = vpack.c.b16 %v1246, %v1245
      %v1350 = vpack.c.b16 %v1248, %v1247
      %v1351 = vpack.c.b16 %v1250, %v1249
      %v1352 = vpack.c.b16 %v1252, %v1251
      %v1353 = vpack.c.b16 %v1254, %v1253
      %v1354 = vpack.c.b16 %v1256, %v1255
      %v1355 = vpack.c.b16 %v1258, %v1257
      %v1356 = vpack.c.b16 %v1260, %v1259
      %v1357 = vpack.c.b16 %v1262, %v1261
      %v1358 = vpack.c.b16 %v1264, %v1263
      %v1359 = vpack.c.b16 %v1266, %v1265
      %v1360 = vpack.c.b16 %v1268, %v1267
      %v1361 = vpack.c.b16 %v1270, %v1269
      %v1362 = vpack.c.b16 %v1272, %v1271
      %v1363 = vpack.c.b16 %v1274, %v1273
      %v1364 = vpack.c.b16 %v1276, %v1275
      %v1365 = vpack.c.b16 %v1278, %v1277
      %v1366 = vpack.c.b16 %v1280, %v1279
      %v1367 = vpack.c.b16 %v1282, %v1281
      %v1368 = vpack.c.b16 %v1284, %v1283
      %v1369 = vpack.c.b16 %v1286, %v1285
      %v1370 = vpack.c.b16 %v1288, %v1287
      %v1371 = vpack.c.b16 %v1290, %v1289
      %v1372 = vpack.c.b16 %v1292, %v1291
      %v1373 = vpack.c.b16 %v1294, %v1293
      %v1374 = vpack.c.b16 %v1296, %v1295
      %v1375 = vpack.c.b16 %v1298, %v1297
      %v1376 = vpack.c.b16 %v1300, %v1299
      %v1377 = vpack.c.b16 %v1302, %v1301
      %v1378 = vpack.c.b16 %v1304, %v1303
      %v1379 = vpack.c.b16 %v1306, %v1305
      %v1380 = vpack.c.b16 %v1308, %v1307
      %1453 = vmatprep.subr.bf16.mxu0 0
      %1454 = vmatpush1.bf16.msra.mxu0 %v1316
      %1455 = vmatprep.subr.bf16.mxu0 0
      %1456 = vmatpush1.bf16.msra.mxu0 %v1315
      %1457 = vmatprep.subr.bf16.mxu0 0
      %1458 = vmatpush1.bf16.msra.mxu0 %v1314
      %1459 = vmatprep.subr.bf16.mxu0 0
      %1460 = vmatpush1.bf16.msra.mxu0 %v1313
      %1461 = vmatprep.subr.bf16.mxu0 0
      %1462 = vmatpush1.bf16.msra.mxu0 %v1312
      %1463 = vmatprep.subr.bf16.mxu0 0
      %1464 = vmatpush1.bf16.msra.mxu0 %v1311
      %1465 = vmatprep.subr.bf16.mxu0 0
      %1466 = vmatpush1.bf16.msra.mxu0 %v1310
      %1467 = vmatprep.subr.bf16.mxu0 0
      %1468 = vmatpush1.bf16.msra.mxu0 %v1309
      %1469 = vmatprep.subr.bf16.mxu0 0
      %1470 = vmatpush2.bf16.msra.mxu0 %v1324
      %1471 = vmatprep.subr.bf16.mxu0 0
      %1472 = vmatpush2.bf16.msra.mxu0 %v1323
      %1473 = vmatprep.subr.bf16.mxu0 0
      %1474 = vmatpush2.bf16.msra.mxu0 %v1322
      %1475 = vmatprep.subr.bf16.mxu0 0
      %1476 = vmatpush2.bf16.msra.mxu0 %v1321
      %1477 = vmatprep.subr.bf16.mxu0 0
      %1478 = vmatpush2.bf16.msra.mxu0 %v1320
      %1479 = vmatprep.subr.bf16.mxu0 0
      %1480 = vmatpush2.bf16.msra.mxu0 %v1319
      %1481 = vmatprep.subr.bf16.mxu0 0
      %1482 = vmatpush2.bf16.msra.mxu0 %v1318
      %1483 = vmatprep.subr.bf16.mxu0 0
      %1484 = vmatpush2.bf16.msra.mxu0 %v1317
      %1485 = vmatprep.mubr.bf16.mxu0 %v806
      %1486 = vmatmul.mubr.bf16.gmra.mxu0 %v805
      %v1487 = vpop.f32.mrf.mxu0
      %v1488 = vadd.f32 0.0, %v1487
      %v1489 = vpop.f32.mrf.mxu0
      %v1490 = vpop.f32.mrf.mxu0
      %v1491 = vadd.f32 0.0, %v1490
      %v1492 = vpop.f32.mrf.mxu0
      %1493 = vmatprep.mubr.bf16.mxu0 %v815
      %1494 = vmatmul.mubr.bf16.gmra.mxu0 %v814
      %v1495 = vpop.f32.mrf.mxu0
      %v1496 = vadd.f32 0.0, %v1495
      %v1497 = vpop.f32.mrf.mxu0
      %v1498 = vpop.f32.mrf.mxu0
      %v1499 = vadd.f32 0.0, %v1498
      %v1500 = vpop.f32.mrf.mxu0
      %1501 = vmatprep.mubr.bf16.mxu0 %v824
      %1502 = vmatmul.mubr.bf16.gmra.mxu0 %v823
      %v1503 = vpop.f32.mrf.mxu0
      %v1504 = vadd.f32 0.0, %v1503
      %v1505 = vpop.f32.mrf.mxu0
      %v1506 = vpop.f32.mrf.mxu0
      %v1507 = vadd.f32 0.0, %v1506
      %v1508 = vpop.f32.mrf.mxu0
      %1509 = vmatprep.mubr.bf16.mxu0 %v833
      %1510 = vmatmul.mubr.bf16.gmra.mxu0 %v832
      %v1511 = vpop.f32.mrf.mxu0
      %v1512 = vadd.f32 0.0, %v1511
      %v1513 = vpop.f32.mrf.mxu0
      %v1514 = vpop.f32.mrf.mxu0
      %v1515 = vadd.f32 0.0, %v1514
      %v1516 = vpop.f32.mrf.mxu0
      %1517 = vmatprep.mubr.bf16.mxu0 %v842
      %1518 = vmatmul.mubr.bf16.gmra.mxu0 %v841
      %v1519 = vpop.f32.mrf.mxu0
      %v1520 = vadd.f32 0.0, %v1519
      %v1521 = vpop.f32.mrf.mxu0
      %v1522 = vpop.f32.mrf.mxu0
      %v1523 = vadd.f32 0.0, %v1522
      %v1524 = vpop.f32.mrf.mxu0
      %1525 = vmatprep.mubr.bf16.mxu0 %v851
      %1526 = vmatmul.mubr.bf16.gmra.mxu0 %v850
      %v1527 = vpop.f32.mrf.mxu0
      %v1528 = vadd.f32 0.0, %v1527
      %v1529 = vpop.f32.mrf.mxu0
      %v1530 = vpop.f32.mrf.mxu0
      %v1531 = vadd.f32 0.0, %v1530
      %v1532 = vpop.f32.mrf.mxu0
      %1533 = vmatprep.mubr.bf16.mxu0 %v860
      %1534 = vmatmul.mubr.bf16.gmra.mxu0 %v859
      %v1535 = vpop.f32.mrf.mxu0
      %v1536 = vadd.f32 0.0, %v1535
      %v1537 = vpop.f32.mrf.mxu0
      %v1538 = vpop.f32.mrf.mxu0
      %v1539 = vadd.f32 0.0, %v1538
      %v1540 = vpop.f32.mrf.mxu0
      %1541 = vmatprep.mubr.bf16.mxu0 %v869
      %1542 = vmatmul.mubr.bf16.gmra.mxu0 %v868
      %v1543 = vpop.f32.mrf.mxu0
      %v1544 = vadd.f32 0.0, %v1543
      %v1545 = vpop.f32.mrf.mxu0
      %v1546 = vpop.f32.mrf.mxu0
      %v1547 = vadd.f32 0.0, %v1546
      %v1548 = vpop.f32.mrf.mxu0
      %1549 = vmatprep.mubr.bf16.mxu0 %v878
      %1550 = vmatmul.mubr.bf16.gmra.mxu0 %v877
      %v1551 = vpop.f32.mrf.mxu0
      %v1552 = vadd.f32 0.0, %v1551
      %v1553 = vpop.f32.mrf.mxu0
      %v1554 = vpop.f32.mrf.mxu0
      %v1555 = vadd.f32 0.0, %v1554
      %v1556 = vpop.f32.mrf.mxu0
      %1557 = vmatprep.mubr.bf16.mxu0 %v887
      %1558 = vmatmul.mubr.bf16.gmra.mxu0 %v886
      %v1559 = vpop.f32.mrf.mxu0
      %v1560 = vadd.f32 0.0, %v1559
      %v1561 = vpop.f32.mrf.mxu0
      %v1562 = vpop.f32.mrf.mxu0
      %v1563 = vadd.f32 0.0, %v1562
      %v1564 = vpop.f32.mrf.mxu0
      %1565 = vmatprep.mubr.bf16.mxu0 %v896
      %1566 = vmatmul.mubr.bf16.gmra.mxu0 %v895
      %v1567 = vpop.f32.mrf.mxu0
      %v1568 = vadd.f32 0.0, %v1567
      %v1569 = vpop.f32.mrf.mxu0
      %v1570 = vpop.f32.mrf.mxu0
      %v1571 = vadd.f32 0.0, %v1570
      %v1572 = vpop.f32.mrf.mxu0
      %1573 = vmatprep.mubr.bf16.mxu0 %v905
      %1574 = vmatmul.mubr.bf16.gmra.mxu0 %v904
      %v1575 = vpop.f32.mrf.mxu0
      %v1576 = vadd.f32 0.0, %v1575
      %v1577 = vpop.f32.mrf.mxu0
      %v1578 = vpop.f32.mrf.mxu0
      %v1579 = vadd.f32 0.0, %v1578
      %v1580 = vpop.f32.mrf.mxu0
      %1581 = vdwg.mxu0
      %1582 = vmatprep.subr.bf16.mxu0 0
      %1583 = vmatpush1.bf16.msra.mxu0 %v1332
      %1584 = vmatprep.subr.bf16.mxu0 0
      %1585 = vmatpush1.bf16.msra.mxu0 %v1331
      %1586 = vmatprep.subr.bf16.mxu0 0
      %1587 = vmatpush1.bf16.msra.mxu0 %v1330
      %1588 = vmatprep.subr.bf16.mxu0 0
      %1589 = vmatpush1.bf16.msra.mxu0 %v1329
      %1590 = vmatprep.subr.bf16.mxu0 0
      %1591 = vmatpush1.bf16.msra.mxu0 %v1328
      %1592 = vmatprep.subr.bf16.mxu0 0
      %1593 = vmatpush1.bf16.msra.mxu0 %v1327
      %1594 = vmatprep.subr.bf16.mxu0 0
      %1595 = vmatpush1.bf16.msra.mxu0 %v1326
      %1596 = vmatprep.subr.bf16.mxu0 0
      %1597 = vmatpush1.bf16.msra.mxu0 %v1325
      %1598 = vmatprep.subr.bf16.mxu0 0
      %1599 = vmatpush2.bf16.msra.mxu0 %v1340
      %1600 = vmatprep.subr.bf16.mxu0 0
      %1601 = vmatpush2.bf16.msra.mxu0 %v1339
      %1602 = vmatprep.subr.bf16.mxu0 0
      %1603 = vmatpush2.bf16.msra.mxu0 %v1338
      %1604 = vmatprep.subr.bf16.mxu0 0
      %1605 = vmatpush2.bf16.msra.mxu0 %v1337
      %1606 = vmatprep.subr.bf16.mxu0 0
      %1607 = vmatpush2.bf16.msra.mxu0 %v1336
      %1608 = vmatprep.subr.bf16.mxu0 0
      %1609 = vmatpush2.bf16.msra.mxu0 %v1335
      %1610 = vmatprep.subr.bf16.mxu0 0
      %1611 = vmatpush2.bf16.msra.mxu0 %v1334
      %1612 = vmatprep.subr.bf16.mxu0 0
      %1613 = vmatpush2.bf16.msra.mxu0 %v1333
      %1614 = vmatprep.mubr.bf16.mxu0 %v808
      %1615 = vmatmul.mubr.bf16.gmra.mxu0 %v807
      %v1616 = vpop.f32.mrf.mxu0
      %v1617 = vadd.f32 %v1488, %v1616
      %v1618 = vpop.f32.mrf.mxu0
      %v1619 = vpop.f32.mrf.mxu0
      %v1620 = vadd.f32 %v1491, %v1619
      %v1621 = vpop.f32.mrf.mxu0
      %1622 = vmatprep.mubr.bf16.mxu0 %v817
      %1623 = vmatmul.mubr.bf16.gmra.mxu0 %v816
      %v1624 = vpop.f32.mrf.mxu0
      %v1625 = vadd.f32 %v1496, %v1624
      %v1626 = vpop.f32.mrf.mxu0
      %v1627 = vpop.f32.mrf.mxu0
      %v1628 = vadd.f32 %v1499, %v1627
      %v1629 = vpop.f32.mrf.mxu0
      %1630 = vmatprep.mubr.bf16.mxu0 %v826
      %1631 = vmatmul.mubr.bf16.gmra.mxu0 %v825
      %v1632 = vpop.f32.mrf.mxu0
      %v1633 = vadd.f32 %v1504, %v1632
      %v1634 = vpop.f32.mrf.mxu0
      %v1635 = vpop.f32.mrf.mxu0
      %v1636 = vadd.f32 %v1507, %v1635
      %v1637 = vpop.f32.mrf.mxu0
      %1638 = vmatprep.mubr.bf16.mxu0 %v835
      %1639 = vmatmul.mubr.bf16.gmra.mxu0 %v834
      %v1640 = vpop.f32.mrf.mxu0
      %v1641 = vadd.f32 %v1512, %v1640
      %v1642 = vpop.f32.mrf.mxu0
      %v1643 = vpop.f32.mrf.mxu0
      %v1644 = vadd.f32 %v1515, %v1643
      %v1645 = vpop.f32.mrf.mxu0
      %1646 = vmatprep.mubr.bf16.mxu0 %v844
      %1647 = vmatmul.mubr.bf16.gmra.mxu0 %v843
      %v1648 = vpop.f32.mrf.mxu0
      %v1649 = vadd.f32 %v1520, %v1648
      %v1650 = vpop.f32.mrf.mxu0
      %v1651 = vpop.f32.mrf.mxu0
      %v1652 = vadd.f32 %v1523, %v1651
      %v1653 = vpop.f32.mrf.mxu0
      %1654 = vmatprep.mubr.bf16.mxu0 %v853
      %1655 = vmatmul.mubr.bf16.gmra.mxu0 %v852
      %v1656 = vpop.f32.mrf.mxu0
      %v1657 = vadd.f32 %v1528, %v1656
      %v1658 = vpop.f32.mrf.mxu0
      %v1659 = vpop.f32.mrf.mxu0
      %v1660 = vadd.f32 %v1531, %v1659
      %v1661 = vpop.f32.mrf.mxu0
      %1662 = vmatprep.mubr.bf16.mxu0 %v862
      %1663 = vmatmul.mubr.bf16.gmra.mxu0 %v861
      %v1664 = vpop.f32.mrf.mxu0
      %v1665 = vadd.f32 %v1536, %v1664
      %v1666 = vpop.f32.mrf.mxu0
      %v1667 = vpop.f32.mrf.mxu0
      %v1668 = vadd.f32 %v1539, %v1667
      %v1669 = vpop.f32.mrf.mxu0
      %1670 = vmatprep.mubr.bf16.mxu0 %v871
      %1671 = vmatmul.mubr.bf16.gmra.mxu0 %v870
      %v1672 = vpop.f32.mrf.mxu0
      %v1673 = vadd.f32 %v1544, %v1672
      %v1674 = vpop.f32.mrf.mxu0
      %v1675 = vpop.f32.mrf.mxu0
      %v1676 = vadd.f32 %v1547, %v1675
      %v1677 = vpop.f32.mrf.mxu0
      %1678 = vmatprep.mubr.bf16.mxu0 %v880
      %1679 = vmatmul.mubr.bf16.gmra.mxu0 %v879
      %v1680 = vpop.f32.mrf.mxu0
      %v1681 = vadd.f32 %v1552, %v1680
      %v1682 = vpop.f32.mrf.mxu0
      %v1683 = vpop.f32.mrf.mxu0
      %v1684 = vadd.f32 %v1555, %v1683
      %v1685 = vpop.f32.mrf.mxu0
      %1686 = vmatprep.mubr.bf16.mxu0 %v889
      %1687 = vmatmul.mubr.bf16.gmra.mxu0 %v888
      %v1688 = vpop.f32.mrf.mxu0
      %v1689 = vadd.f32 %v1560, %v1688
      %v1690 = vpop.f32.mrf.mxu0
      %v1691 = vpop.f32.mrf.mxu0
      %v1692 = vadd.f32 %v1563, %v1691
      %v1693 = vpop.f32.mrf.mxu0
      %1694 = vmatprep.mubr.bf16.mxu0 %v898
      %1695 = vmatmul.mubr.bf16.gmra.mxu0 %v897
      %v1696 = vpop.f32.mrf.mxu0
      %v1697 = vadd.f32 %v1568, %v1696
      %v1698 = vpop.f32.mrf.mxu0
      %v1699 = vpop.f32.mrf.mxu0
      %v1700 = vadd.f32 %v1571, %v1699
      %v1701 = vpop.f32.mrf.mxu0
      %1702 = vmatprep.mubr.bf16.mxu0 %v907
      %1703 = vmatmul.mubr.bf16.gmra.mxu0 %v906
      %v1704 = vpop.f32.mrf.mxu0
      %v1705 = vadd.f32 %v1576, %v1704
      %v1706 = vpop.f32.mrf.mxu0
      %v1707 = vpop.f32.mrf.mxu0
      %v1708 = vadd.f32 %v1579, %v1707
      %v1709 = vpop.f32.mrf.mxu0
      %1710 = vdwg.mxu0
      %1711 = vmatprep.subr.bf16.mxu0 0
      %1712 = vmatpush1.bf16.msra.mxu0 %v1348
      %1713 = vmatprep.subr.bf16.mxu0 0
      %1714 = vmatpush1.bf16.msra.mxu0 %v1347
      %1715 = vmatprep.subr.bf16.mxu0 0
      %1716 = vmatpush1.bf16.msra.mxu0 %v1346
      %1717 = vmatprep.subr.bf16.mxu0 0
      %1718 = vmatpush1.bf16.msra.mxu0 %v1345
      %1719 = vmatprep.subr.bf16.mxu0 0
      %1720 = vmatpush1.bf16.msra.mxu0 %v1344
      %1721 = vmatprep.subr.bf16.mxu0 0
      %1722 = vmatpush1.bf16.msra.mxu0 %v1343
      %1723 = vmatprep.subr.bf16.mxu0 0
      %1724 = vmatpush1.bf16.msra.mxu0 %v1342
      %1725 = vmatprep.subr.bf16.mxu0 0
      %1726 = vmatpush1.bf16.msra.mxu0 %v1341
      %1727 = vmatprep.subr.bf16.mxu0 0
      %1728 = vmatpush2.bf16.msra.mxu0 %v1356
      %1729 = vmatprep.subr.bf16.mxu0 0
      %1730 = vmatpush2.bf16.msra.mxu0 %v1355
      %1731 = vmatprep.subr.bf16.mxu0 0
      %1732 = vmatpush2.bf16.msra.mxu0 %v1354
      %1733 = vmatprep.subr.bf16.mxu0 0
      %1734 = vmatpush2.bf16.msra.mxu0 %v1353
      %1735 = vmatprep.subr.bf16.mxu0 0
      %1736 = vmatpush2.bf16.msra.mxu0 %v1352
      %1737 = vmatprep.subr.bf16.mxu0 0
      %1738 = vmatpush2.bf16.msra.mxu0 %v1351
      %1739 = vmatprep.subr.bf16.mxu0 0
      %1740 = vmatpush2.bf16.msra.mxu0 %v1350
      %1741 = vmatprep.subr.bf16.mxu0 0
      %1742 = vmatpush2.bf16.msra.mxu0 %v1349
      %1743 = vmatprep.mubr.bf16.mxu0 %v810
      %1744 = vmatmul.mubr.bf16.gmra.mxu0 %v809
      %v1745 = vpop.f32.mrf.mxu0
      %v1746 = vadd.f32 %v1617, %v1745
      %v1747 = vpop.f32.mrf.mxu0
      %v1748 = vpop.f32.mrf.mxu0
      %v1749 = vadd.f32 %v1620, %v1748
      %v1750 = vpop.f32.mrf.mxu0
      %1751 = vmatprep.mubr.bf16.mxu0 %v819
      %1752 = vmatmul.mubr.bf16.gmra.mxu0 %v818
      %v1753 = vpop.f32.mrf.mxu0
      %v1754 = vadd.f32 %v1625, %v1753
      %v1755 = vpop.f32.mrf.mxu0
      %v1756 = vpop.f32.mrf.mxu0
      %v1757 = vadd.f32 %v1628, %v1756
      %v1758 = vpop.f32.mrf.mxu0
      %1759 = vmatprep.mubr.bf16.mxu0 %v828
      %1760 = vmatmul.mubr.bf16.gmra.mxu0 %v827
      %v1761 = vpop.f32.mrf.mxu0
      %v1762 = vadd.f32 %v1633, %v1761
      %v1763 = vpop.f32.mrf.mxu0
      %v1764 = vpop.f32.mrf.mxu0
      %v1765 = vadd.f32 %v1636, %v1764
      %v1766 = vpop.f32.mrf.mxu0
      %1767 = vmatprep.mubr.bf16.mxu0 %v837
      %1768 = vmatmul.mubr.bf16.gmra.mxu0 %v836
      %v1769 = vpop.f32.mrf.mxu0
      %v1770 = vadd.f32 %v1641, %v1769
      %v1771 = vpop.f32.mrf.mxu0
      %v1772 = vpop.f32.mrf.mxu0
      %v1773 = vadd.f32 %v1644, %v1772
      %v1774 = vpop.f32.mrf.mxu0
      %1775 = vmatprep.mubr.bf16.mxu0 %v846
      %1776 = vmatmul.mubr.bf16.gmra.mxu0 %v845
      %v1777 = vpop.f32.mrf.mxu0
      %v1778 = vadd.f32 %v1649, %v1777
      %v1779 = vpop.f32.mrf.mxu0
      %v1780 = vpop.f32.mrf.mxu0
      %v1781 = vadd.f32 %v1652, %v1780
      %v1782 = vpop.f32.mrf.mxu0
      %1783 = vmatprep.mubr.bf16.mxu0 %v855
      %1784 = vmatmul.mubr.bf16.gmra.mxu0 %v854
      %v1785 = vpop.f32.mrf.mxu0
      %v1786 = vadd.f32 %v1657, %v1785
      %v1787 = vpop.f32.mrf.mxu0
      %v1788 = vpop.f32.mrf.mxu0
      %v1789 = vadd.f32 %v1660, %v1788
      %v1790 = vpop.f32.mrf.mxu0
      %1791 = vmatprep.mubr.bf16.mxu0 %v864
      %1792 = vmatmul.mubr.bf16.gmra.mxu0 %v863
      %v1793 = vpop.f32.mrf.mxu0
      %v1794 = vadd.f32 %v1665, %v1793
      %v1795 = vpop.f32.mrf.mxu0
      %v1796 = vpop.f32.mrf.mxu0
      %v1797 = vadd.f32 %v1668, %v1796
      %v1798 = vpop.f32.mrf.mxu0
      %1799 = vmatprep.mubr.bf16.mxu0 %v873
      %1800 = vmatmul.mubr.bf16.gmra.mxu0 %v872
      %v1801 = vpop.f32.mrf.mxu0
      %v1802 = vadd.f32 %v1673, %v1801
      %v1803 = vpop.f32.mrf.mxu0
      %v1804 = vpop.f32.mrf.mxu0
      %v1805 = vadd.f32 %v1676, %v1804
      %v1806 = vpop.f32.mrf.mxu0
      %1807 = vmatprep.mubr.bf16.mxu0 %v882
      %1808 = vmatmul.mubr.bf16.gmra.mxu0 %v881
      %v1809 = vpop.f32.mrf.mxu0
      %v1810 = vadd.f32 %v1681, %v1809
      %v1811 = vpop.f32.mrf.mxu0
      %v1812 = vpop.f32.mrf.mxu0
      %v1813 = vadd.f32 %v1684, %v1812
      %v1814 = vpop.f32.mrf.mxu0
      %1815 = vmatprep.mubr.bf16.mxu0 %v891
      %1816 = vmatmul.mubr.bf16.gmra.mxu0 %v890
      %v1817 = vpop.f32.mrf.mxu0
      %v1818 = vadd.f32 %v1689, %v1817
      %v1819 = vpop.f32.mrf.mxu0
      %v1820 = vpop.f32.mrf.mxu0
      %v1821 = vadd.f32 %v1692, %v1820
      %v1822 = vpop.f32.mrf.mxu0
      %1823 = vmatprep.mubr.bf16.mxu0 %v900
      %1824 = vmatmul.mubr.bf16.gmra.mxu0 %v899
      %v1825 = vpop.f32.mrf.mxu0
      %v1826 = vadd.f32 %v1697, %v1825
      %v1827 = vpop.f32.mrf.mxu0
      %v1828 = vpop.f32.mrf.mxu0
      %v1829 = vadd.f32 %v1700, %v1828
      %v1830 = vpop.f32.mrf.mxu0
      %1831 = vmatprep.mubr.bf16.mxu0 %v909
      %1832 = vmatmul.mubr.bf16.gmra.mxu0 %v908
      %v1833 = vpop.f32.mrf.mxu0
      %v1834 = vadd.f32 %v1705, %v1833
      %v1835 = vpop.f32.mrf.mxu0
      %v1836 = vpop.f32.mrf.mxu0
      %v1837 = vadd.f32 %v1708, %v1836
      %v1838 = vpop.f32.mrf.mxu0
      %1839 = vdwg.mxu0
      %1840 = vmatprep.subr.bf16.mxu0 0
      %1841 = vmatpush1.bf16.msra.mxu0 %v1364
      %1842 = vmatprep.subr.bf16.mxu0 0
      %1843 = vmatpush1.bf16.msra.mxu0 %v1363
      %1844 = vmatprep.subr.bf16.mxu0 0
      %1845 = vmatpush1.bf16.msra.mxu0 %v1362
      %1846 = vmatprep.subr.bf16.mxu0 0
      %1847 = vmatpush1.bf16.msra.mxu0 %v1361
      %1848 = vmatprep.subr.bf16.mxu0 0
      %1849 = vmatpush1.bf16.msra.mxu0 %v1360
      %1850 = vmatprep.subr.bf16.mxu0 0
      %1851 = vmatpush1.bf16.msra.mxu0 %v1359
      %1852 = vmatprep.subr.bf16.mxu0 0
      %1853 = vmatpush1.bf16.msra.mxu0 %v1358
      %1854 = vmatprep.subr.bf16.mxu0 0
      %1855 = vmatpush1.bf16.msra.mxu0 %v1357
      %1856 = vmatprep.subr.bf16.mxu0 0
      %1857 = vmatpush2.bf16.msra.mxu0 %v1372
      %1858 = vmatprep.subr.bf16.mxu0 0
      %1859 = vmatpush2.bf16.msra.mxu0 %v1371
      %1860 = vmatprep.subr.bf16.mxu0 0
      %1861 = vmatpush2.bf16.msra.mxu0 %v1370
      %1862 = vmatprep.subr.bf16.mxu0 0
      %1863 = vmatpush2.bf16.msra.mxu0 %v1369
      %1864 = vmatprep.subr.bf16.mxu0 0
      %1865 = vmatpush2.bf16.msra.mxu0 %v1368
      %1866 = vmatprep.subr.bf16.mxu0 0
      %1867 = vmatpush2.bf16.msra.mxu0 %v1367
      %1868 = vmatprep.subr.bf16.mxu0 0
      %1869 = vmatpush2.bf16.msra.mxu0 %v1366
      %1870 = vmatprep.subr.bf16.mxu0 0
      %1871 = vmatpush2.bf16.msra.mxu0 %v1365
      %1872 = vmatprep.mubr.bf16.mxu0 %v812
      %1873 = vmatmul.mubr.bf16.gmra.mxu0 %v811
      %v1874 = vpop.f32.mrf.mxu0
      %v1875 = vadd.f32 %v1746, %v1874
      %v1876 = vpop.f32.mrf.mxu0
      %v1877 = vpop.f32.mrf.mxu0
      %v1878 = vadd.f32 %v1749, %v1877
      %v1879 = vpop.f32.mrf.mxu0
      %1880 = vmatprep.mubr.bf16.mxu0 %v821
      %1881 = vmatmul.mubr.bf16.gmra.mxu0 %v820
      %v1882 = vpop.f32.mrf.mxu0
      %v1883 = vadd.f32 %v1754, %v1882
      %v1884 = vpop.f32.mrf.mxu0
      %v1885 = vpop.f32.mrf.mxu0
      %v1886 = vadd.f32 %v1757, %v1885
      %v1887 = vpop.f32.mrf.mxu0
      %1888 = vmatprep.mubr.bf16.mxu0 %v830
      %1889 = vmatmul.mubr.bf16.gmra.mxu0 %v829
      %v1890 = vpop.f32.mrf.mxu0
      %v1891 = vadd.f32 %v1762, %v1890
      %v1892 = vpop.f32.mrf.mxu0
      %v1893 = vpop.f32.mrf.mxu0
      %v1894 = vadd.f32 %v1765, %v1893
      %v1895 = vpop.f32.mrf.mxu0
      %1896 = vmatprep.mubr.bf16.mxu0 %v839
      %1897 = vmatmul.mubr.bf16.gmra.mxu0 %v838
      %v1898 = vpop.f32.mrf.mxu0
      %v1899 = vadd.f32 %v1770, %v1898
      %v1900 = vpop.f32.mrf.mxu0
      %v1901 = vpop.f32.mrf.mxu0
      %v1902 = vadd.f32 %v1773, %v1901
      %v1903 = vpop.f32.mrf.mxu0
      %1904 = vmatprep.mubr.bf16.mxu0 %v848
      %1905 = vmatmul.mubr.bf16.gmra.mxu0 %v847
      %v1906 = vpop.f32.mrf.mxu0
      %v1907 = vadd.f32 %v1778, %v1906
      %v1908 = vpop.f32.mrf.mxu0
      %v1909 = vpop.f32.mrf.mxu0
      %v1910 = vadd.f32 %v1781, %v1909
      %v1911 = vpop.f32.mrf.mxu0
      %1912 = vmatprep.mubr.bf16.mxu0 %v857
      %1913 = vmatmul.mubr.bf16.gmra.mxu0 %v856
      %v1914 = vpop.f32.mrf.mxu0
      %v1915 = vadd.f32 %v1786, %v1914
      %v1916 = vpop.f32.mrf.mxu0
      %v1917 = vpop.f32.mrf.mxu0
      %v1918 = vadd.f32 %v1789, %v1917
      %v1919 = vpop.f32.mrf.mxu0
      %1920 = vmatprep.mubr.bf16.mxu0 %v866
      %1921 = vmatmul.mubr.bf16.gmra.mxu0 %v865
      %v1922 = vpop.f32.mrf.mxu0
      %v1923 = vadd.f32 %v1794, %v1922
      %v1924 = vpop.f32.mrf.mxu0
      %v1925 = vpop.f32.mrf.mxu0
      %v1926 = vadd.f32 %v1797, %v1925
      %v1927 = vpop.f32.mrf.mxu0
      %1928 = vmatprep.mubr.bf16.mxu0 %v875
      %1929 = vmatmul.mubr.bf16.gmra.mxu0 %v874
      %v1930 = vpop.f32.mrf.mxu0
      %v1931 = vadd.f32 %v1802, %v1930
      %v1932 = vpop.f32.mrf.mxu0
      %v1933 = vpop.f32.mrf.mxu0
      %v1934 = vadd.f32 %v1805, %v1933
      %v1935 = vpop.f32.mrf.mxu0
      %1936 = vmatprep.mubr.bf16.mxu0 %v884
      %1937 = vmatmul.mubr.bf16.gmra.mxu0 %v883
      %v1938 = vpop.f32.mrf.mxu0
      %v1939 = vadd.f32 %v1810, %v1938
      %v1940 = vpop.f32.mrf.mxu0
      %v1941 = vpop.f32.mrf.mxu0
      %v1942 = vadd.f32 %v1813, %v1941
      %v1943 = vpop.f32.mrf.mxu0
      %1944 = vmatprep.mubr.bf16.mxu0 %v893
      %1945 = vmatmul.mubr.bf16.gmra.mxu0 %v892
      %v1946 = vpop.f32.mrf.mxu0
      %v1947 = vadd.f32 %v1818, %v1946
      %v1948 = vpop.f32.mrf.mxu0
      %v1949 = vpop.f32.mrf.mxu0
      %v1950 = vadd.f32 %v1821, %v1949
      %v1951 = vpop.f32.mrf.mxu0
      %1952 = vmatprep.mubr.bf16.mxu0 %v902
      %1953 = vmatmul.mubr.bf16.gmra.mxu0 %v901
      %v1954 = vpop.f32.mrf.mxu0
      %v1955 = vadd.f32 %v1826, %v1954
      %v1956 = vpop.f32.mrf.mxu0
      %v1957 = vpop.f32.mrf.mxu0
      %v1958 = vadd.f32 %v1829, %v1957
      %v1959 = vpop.f32.mrf.mxu0
      %1960 = vmatprep.mubr.bf16.mxu0 %v911
      %1961 = vmatmul.mubr.bf16.gmra.mxu0 %v910
      %v1962 = vpop.f32.mrf.mxu0
      %v1963 = vadd.f32 %v1834, %v1962
      %v1964 = vpop.f32.mrf.mxu0
      %v1965 = vpop.f32.mrf.mxu0
      %v1966 = vadd.f32 %v1837, %v1965
      %v1967 = vpop.f32.mrf.mxu0
      %1968 = vdwg.mxu0
      %1969 = vmatprep.subr.bf16.mxu0 0
      %1970 = vmatpush1.bf16.msra.mxu0 %v1380
      %1971 = vmatprep.subr.bf16.mxu0 0
      %1972 = vmatpush1.bf16.msra.mxu0 %v1379
      %1973 = vmatprep.subr.bf16.mxu0 0
      %1974 = vmatpush1.bf16.msra.mxu0 %v1378
      %1975 = vmatprep.subr.bf16.mxu0 0
      %1976 = vmatpush1.bf16.msra.mxu0 %v1377
      %1977 = vmatprep.subr.bf16.mxu0 0
      %1978 = vmatpush1.bf16.msra.mxu0 %v1376
      %1979 = vmatprep.subr.bf16.mxu0 0
      %1980 = vmatpush1.bf16.msra.mxu0 %v1375
      %1981 = vmatprep.subr.bf16.mxu0 0
      %1982 = vmatpush1.bf16.msra.mxu0 %v1374
      %1983 = vmatprep.subr.bf16.mxu0 0
      %1984 = vmatpush1.bf16.msra.mxu0 %v1373
      %1985 = vmatprep.subr.bf16.mxu0 0
      %1986 = vmatpush2.bf16.msra.mxu0 0
      %1987 = vmatprep.subr.bf16.mxu0 0
      %1988 = vmatpush2.bf16.msra.mxu0 0
      %1989 = vmatprep.subr.bf16.mxu0 0
      %1990 = vmatpush2.bf16.msra.mxu0 0
      %1991 = vmatprep.subr.bf16.mxu0 0
      %1992 = vmatpush2.bf16.msra.mxu0 0
      %1993 = vmatprep.subr.bf16.mxu0 0
      %1994 = vmatpush2.bf16.msra.mxu0 0
      %1995 = vmatprep.subr.bf16.mxu0 0
      %1996 = vmatpush2.bf16.msra.mxu0 0
      %1997 = vmatprep.subr.bf16.mxu0 0
      %1998 = vmatpush2.bf16.msra.mxu0 0
      %1999 = vmatprep.subr.bf16.mxu0 0
      %2000 = vmatpush2.bf16.msra.mxu0 0
      %2001 = vmatprep.mubr.bf16.mxu0 0
      %2002 = vmatmul.mubr.bf16.gmra.mxu0 %v813
      %v2003 = vpop.f32.mrf.mxu0
      %v2004 = vadd.f32 %v1875, %v2003
      %v2005 = vpop.f32.mrf.mxu0
      %v2006 = vpop.f32.mrf.mxu0
      %v2007 = vadd.f32 %v1878, %v2006
      %v2008 = vpop.f32.mrf.mxu0
      %2009 = vmatprep.mubr.bf16.mxu0 0
      %2010 = vmatmul.mubr.bf16.gmra.mxu0 %v822
      %v2011 = vpop.f32.mrf.mxu0
      %v2012 = vadd.f32 %v1883, %v2011
      %v2013 = vpop.f32.mrf.mxu0
      %v2014 = vpop.f32.mrf.mxu0
      %v2015 = vadd.f32 %v1886, %v2014
      %v2016 = vpop.f32.mrf.mxu0
      %2017 = vmatprep.mubr.bf16.mxu0 0
      %2018 = vmatmul.mubr.bf16.gmra.mxu0 %v831
      %v2019 = vpop.f32.mrf.mxu0
      %v2020 = vadd.f32 %v1891, %v2019
      %v2021 = vpop.f32.mrf.mxu0
      %v2022 = vpop.f32.mrf.mxu0
      %v2023 = vadd.f32 %v1894, %v2022
      %v2024 = vpop.f32.mrf.mxu0
      %2025 = vmatprep.mubr.bf16.mxu0 0
      %2026 = vmatmul.mubr.bf16.gmra.mxu0 %v840
      %v2027 = vpop.f32.mrf.mxu0
      %v2028 = vadd.f32 %v1899, %v2027
      %v2029 = vpop.f32.mrf.mxu0
      %v2030 = vpop.f32.mrf.mxu0
      %v2031 = vadd.f32 %v1902, %v2030
      %v2032 = vpop.f32.mrf.mxu0
      %2033 = vmatprep.mubr.bf16.mxu0 0
      %2034 = vmatmul.mubr.bf16.gmra.mxu0 %v849
      %v2035 = vpop.f32.mrf.mxu0
      %v2036 = vadd.f32 %v1907, %v2035
      %v2037 = vpop.f32.mrf.mxu0
      %v2038 = vpop.f32.mrf.mxu0
      %v2039 = vadd.f32 %v1910, %v2038
      %v2040 = vpop.f32.mrf.mxu0
      %2041 = vmatprep.mubr.bf16.mxu0 0
      %2042 = vmatmul.mubr.bf16.gmra.mxu0 %v858
      %v2043 = vpop.f32.mrf.mxu0
      %v2044 = vadd.f32 %v1915, %v2043
      %v2045 = vpop.f32.mrf.mxu0
      %v2046 = vpop.f32.mrf.mxu0
      %v2047 = vadd.f32 %v1918, %v2046
      %v2048 = vpop.f32.mrf.mxu0
      %2049 = vmatprep.mubr.bf16.mxu0 0
      %2050 = vmatmul.mubr.bf16.gmra.mxu0 %v867
      %v2051 = vpop.f32.mrf.mxu0
      %v2052 = vadd.f32 %v1923, %v2051
      %v2053 = vpop.f32.mrf.mxu0
      %v2054 = vpop.f32.mrf.mxu0
      %v2055 = vadd.f32 %v1926, %v2054
      %v2056 = vpop.f32.mrf.mxu0
      %2057 = vmatprep.mubr.bf16.mxu0 0
      %2058 = vmatmul.mubr.bf16.gmra.mxu0 %v876
      %v2059 = vpop.f32.mrf.mxu0
      %v2060 = vadd.f32 %v1931, %v2059
      %v2061 = vpop.f32.mrf.mxu0
      %v2062 = vpop.f32.mrf.mxu0
      %v2063 = vadd.f32 %v1934, %v2062
      %v2064 = vpop.f32.mrf.mxu0
      %2065 = vmatprep.mubr.bf16.mxu0 0
      %2066 = vmatmul.mubr.bf16.gmra.mxu0 %v885
      %v2067 = vpop.f32.mrf.mxu0
      %v2068 = vadd.f32 %v1939, %v2067
      %v2069 = vpop.f32.mrf.mxu0
      %v2070 = vpop.f32.mrf.mxu0
      %v2071 = vadd.f32 %v1942, %v2070
      %v2072 = vpop.f32.mrf.mxu0
      %2073 = vmatprep.mubr.bf16.mxu0 0
      %2074 = vmatmul.mubr.bf16.gmra.mxu0 %v894
      %v2075 = vpop.f32.mrf.mxu0
      %v2076 = vadd.f32 %v1947, %v2075
      %v2077 = vpop.f32.mrf.mxu0
      %v2078 = vpop.f32.mrf.mxu0
      %v2079 = vadd.f32 %v1950, %v2078
      %v2080 = vpop.f32.mrf.mxu0
      %2081 = vmatprep.mubr.bf16.mxu0 0
      %2082 = vmatmul.mubr.bf16.gmra.mxu0 %v903
      %v2083 = vpop.f32.mrf.mxu0
      %v2084 = vadd.f32 %v1955, %v2083
      %v2085 = vpop.f32.mrf.mxu0
      %v2086 = vpop.f32.mrf.mxu0
      %v2087 = vadd.f32 %v1958, %v2086
      %v2088 = vpop.f32.mrf.mxu0
      %2089 = vmatprep.mubr.bf16.mxu0 0
      %2090 = vmatmul.mubr.bf16.gmra.mxu0 %v912
      %v2091 = vpop.f32.mrf.mxu0
      %v2092 = vadd.f32 %v1963, %v2091
      %v2093 = vpop.f32.mrf.mxu0
      %v2094 = vpop.f32.mrf.mxu0
      %v2095 = vadd.f32 %v1966, %v2094
      %v2096 = vpop.f32.mrf.mxu0
      %2097 = vdwg.mxu0
      %v2098 = vld [vmem:[%s2] sm:$0x1]
      %v2100 = vlaneseq
      %v2101 = vshrl.u32 %v2100, 7
      %v2102 = vsub.s32 0, %v2101
      %v2103 = vrot.slane %v2098, %v2102
      %v2105 = vmul.f32 %v2004, %v2103
      %v2106 = vmul.f32 %v2007, %v2103
      %v2107 = vmul.f32 %v2012, %v2103
      %v2108 = vmul.f32 %v2015, %v2103
      %v2109 = vmul.f32 %v2020, %v2103
      %v2110 = vmul.f32 %v2023, %v2103
      %v2111 = vmul.f32 %v2028, %v2103
      %v2112 = vmul.f32 %v2031, %v2103
      %v2113 = vmul.f32 %v2036, %v2103
      %v2114 = vmul.f32 %v2039, %v2103
      %v2115 = vmul.f32 %v2044, %v2103
      %v2116 = vmul.f32 %v2047, %v2103
      %v2117 = vmul.f32 %v2052, %v2103
      %v2118 = vmul.f32 %v2055, %v2103
      %v2119 = vmul.f32 %v2060, %v2103
      %v2120 = vmul.f32 %v2063, %v2103
      %v2121 = vmul.f32 %v2068, %v2103
      %v2122 = vmul.f32 %v2071, %v2103
      %v2123 = vmul.f32 %v2076, %v2103
      %v2124 = vmul.f32 %v2079, %v2103
      %v2125 = vmul.f32 %v2084, %v2103
      %v2126 = vmul.f32 %v2087, %v2103
      %v2127 = vmul.f32 %v2092, %v2103
      %v2128 = vmul.f32 %v2095, %v2103
      %v2129 = vld [vmem:[%s3] sm:$0x1]
      %v2131 = vlaneseq
      %v2132 = vshrl.u32 %v2131, 7
      %v2133 = vsub.s32 0, %v2132
      %v2134 = vrot.slane %v2129, %v2133
      %v2136 = vadd.f32 %v2105, %v2134
      %v2137 = vadd.f32 %v2106, %v2134
      %v2138 = vadd.f32 %v2107, %v2134
      %v2139 = vadd.f32 %v2108, %v2134
      %v2140 = vadd.f32 %v2109, %v2134
      %v2141 = vadd.f32 %v2110, %v2134
      %v2142 = vadd.f32 %v2111, %v2134
      %v2143 = vadd.f32 %v2112, %v2134
      %v2144 = vadd.f32 %v2113, %v2134
      %v2145 = vadd.f32 %v2114, %v2134
      %v2146 = vadd.f32 %v2115, %v2134
      %v2147 = vadd.f32 %v2116, %v2134
      %v2148 = vadd.f32 %v2117, %v2134
      %v2149 = vadd.f32 %v2118, %v2134
      %v2150 = vadd.f32 %v2119, %v2134
      %v2151 = vadd.f32 %v2120, %v2134
      %v2152 = vadd.f32 %v2121, %v2134
      %v2153 = vadd.f32 %v2122, %v2134
      %v2154 = vadd.f32 %v2123, %v2134
      %v2155 = vadd.f32 %v2124, %v2134
      %v2156 = vadd.f32 %v2125, %v2134
      %v2157 = vadd.f32 %v2126, %v2134
      %v2158 = vadd.f32 %v2127, %v2134
      %v2159 = vadd.f32 %v2128, %v2134
      %v2160 = vmax.f32 %v2136, 0.0
      %v2161 = vmax.f32 %v2137, 0.0
      %v2162 = vmax.f32 %v2138, 0.0
      %v2163 = vmax.f32 %v2139, 0.0
      %v2164 = vmax.f32 %v2140, 0.0
      %v2165 = vmax.f32 %v2141, 0.0
      %v2166 = vmax.f32 %v2142, 0.0
      %v2167 = vmax.f32 %v2143, 0.0
      %v2168 = vmax.f32 %v2144, 0.0
      %v2169 = vmax.f32 %v2145, 0.0
      %v2170 = vmax.f32 %v2146, 0.0
      %v2171 = vmax.f32 %v2147, 0.0
      %v2172 = vmax.f32 %v2148, 0.0
      %v2173 = vmax.f32 %v2149, 0.0
      %v2174 = vmax.f32 %v2150, 0.0
      %v2175 = vmax.f32 %v2151, 0.0
      %v2176 = vmax.f32 %v2152, 0.0
      %v2177 = vmax.f32 %v2153, 0.0
      %v2178 = vmax.f32 %v2154, 0.0
      %v2179 = vmax.f32 %v2155, 0.0
      %v2180 = vmax.f32 %v2156, 0.0
      %v2181 = vmax.f32 %v2157, 0.0
      %v2182 = vmax.f32 %v2158, 0.0
      %v2183 = vmax.f32 %v2159, 0.0
      %2184 = vst [vmem:[%s202] sm:$0xff] %v2160
      %2185 = vst [vmem:[%s202 + $0x8] sm:$0xff] %v2161
      %2186 = vst [vmem:[%s202 + $0x10] sm:$0xff] %v2162
      %2187 = vst [vmem:[%s202 + $0x18] sm:$0xff] %v2163
      %2188 = vst [vmem:[%s202 + $0x20] sm:$0xff] %v2164
      %2189 = vst [vmem:[%s202 + $0x28] sm:$0xff] %v2165
      %2190 = vst [vmem:[%s202 + $0x30] sm:$0xff] %v2166
      %2191 = vst [vmem:[%s202 + $0x38] sm:$0xff] %v2167
      %2192 = vst [vmem:[%s202 + $0x40] sm:$0xff] %v2168
      %2193 = vst [vmem:[%s202 + $0x48] sm:$0xff] %v2169
      %2194 = vst [vmem:[%s202 + $0x50] sm:$0xff] %v2170
      %2195 = vst [vmem:[%s202 + $0x58] sm:$0xff] %v2171
      %2196 = vst [vmem:[%s202 + $0x60] sm:$0xff] %v2172
      %2197 = vst [vmem:[%s202 + $0x68] sm:$0xff] %v2173
      %2198 = vst [vmem:[%s202 + $0x70] sm:$0xff] %v2174
      %2199 = vst [vmem:[%s202 + $0x78] sm:$0xff] %v2175
      %2200 = vst [vmem:[%s202 + $0x80] sm:$0xff] %v2176
      %2201 = vst [vmem:[%s202 + $0x88] sm:$0xff] %v2177
      %2202 = vst [vmem:[%s202 + $0x90] sm:$0xff] %v2178
      %2203 = vst [vmem:[%s202 + $0x98] sm:$0xff] %v2179
      %2204 = vst [vmem:[%s202 + $0xa0] sm:$0xff] %v2180
      %2205 = vst [vmem:[%s202 + $0xa8] sm:$0xff] %v2181
      %2206 = vst [vmem:[%s202 + $0xb0] sm:$0xff] %v2182
      %2207 = vst [vmem:[%s202 + $0xb8] sm:$0xff] %v2183
      %s2208 = smul.u32 24, %s15
      %p2209 = scmp.lt.s32.totalorder %s2208, 47
      %s2210 = scalar_select %p2209, %s2208, 47
      %s2211 = smul.addr %s2210, 8
      %s2212 = scalar_lea.vmem %s4, %s2211
      // Predicated region
      $region37: #{mgn_forward.7} parent=35 // pred_check
        %p2213 = pneg %p122
      $region38: #{mgn_forward.7} parent=35 // pred_check_branch
        %2215 = sbr.rel (%p2213) target = $region40
      $region39: #{mgn_forward.7} parent=35 // pred_region
        %s2216 = smul.u32 24, %s15
      $region40: #{mgn_forward.7} parent=35 // pred_fallthru
        _
    $region36: #{mgn_forward.7} parent=5 // pred_fallthru
      _
    %p2217 = scmp.le.s32.totalorder 2, %s10
    // Predicated region
    $region41: #{mgn_forward.7} parent=5 // pred_check
      %p2218 = pneg %p2217
    $region42: #{mgn_forward.7} parent=5 // pred_check_branch
      %2220 = sbr.rel (%p2218) target = $region44
    $region43: #{mgn_forward.7} parent=5 // pred_region
      %s2221 = ssub.s32 %s10, 2
      // Predicated region
      $region45: #{mgn_forward.7} parent=43 // pred_check
        %p2222 = pneg %p128
      $region46: #{mgn_forward.7} parent=43 // pred_check_branch
        %2224 = sbr.rel (%p2222) target = $region48
      $region47: #{mgn_forward.7} parent=43 // pred_region
        %s2225 = smul.u32 24, %s16
        %p2226 = scmp.lt.s32.totalorder %s2225, 47
        %s2227 = scalar_select %p2226, %s2225, 47
        %s2228 = smul.addr %s2227, 8
        %s2229 = scalar_lea.vmem %s4, %s2228
      $region48: #{mgn_forward.7} parent=43 // pred_fallthru
        _
    $region44: #{mgn_forward.7} parent=5 // pred_fallthru
      _
  $region6: #{mgn_forward.7} parent=0 // loop_footer
    %s14 = sadd.s32 1, %s10
  $region7: #{mgn_forward.7} parent=0 // loop_footer_branch
    %9 = sbr.rel target = $region3
  $region8: #{mgn_forward.7} parent=0 // loop_exit
    _

// kernel: mgn_forward.9
$region0: #{mgn_forward.9}
  #allocation0 [shape = 'u32[]', space=smem, size = 0x4, offset = 0x4, fixed_abs, tag = 'smem constant byte address 0x4 - core index']
  #allocation1 [shape = 'u32[144,128]{1,0:T(1,128)}', space=vmem, size = 0x12000, scoped, tag = 'internal scratch']
  %s0 = inlined_call_operand.vmem [shape: bf16[96,1152], index: 0, kind: input, shape index: {}]
  %s1 = inlined_call_operand.vmem [shape: bf16[1152,128], index: 1, kind: input, shape index: {}]
  %s2 = inlined_call_operand.vmem [shape: f32[1,128], index: 2, kind: input, shape index: {}]
  %s3 = inlined_call_operand.vmem [shape: f32[1,128], index: 3, kind: input, shape index: {}]
  %s4 = inlined_call_operand.vmem [shape: f32[96,128], index: 4, kind: output, shape index: {}]
  %s5 = sld [smem:[#allocation0]]
  $region26: #{mgn_forward.9} parent=0
    _
  %s7 = ssub.s32 1, %s5
  %s8 = scalar_select 0, %s7, %s5
  // Predicated region
  $region2: #{mgn_forward.9} parent=0 // pred_check
    _
  $region3: #{mgn_forward.9} parent=0 // pred_check_branch
    %10 = sbr.rel (0) target = $region5
  $region4: #{mgn_forward.9} parent=0 // pred_region
    _
  $region5: #{mgn_forward.9} parent=0 // pred_fallthru
    _
  // Predicated region
  $region6: #{mgn_forward.9} parent=0 // pred_check
    _
  $region7: #{mgn_forward.9} parent=0 // pred_check_branch
    %12 = sbr.rel (0) target = $region9
  $region8: #{mgn_forward.9} parent=0 // pred_region
    _
  $region9: #{mgn_forward.9} parent=0 // pred_fallthru
    _
  // Predicated region
  $region10: #{mgn_forward.9} parent=0 // pred_check
    _
  $region11: #{mgn_forward.9} parent=0 // pred_check_branch
    %14 = sbr.rel (0) target = $region13
  $region12: #{mgn_forward.9} parent=0 // pred_region
    _
  $region13: #{mgn_forward.9} parent=0 // pred_fallthru
    _
  // Predicated region
  $region14: #{mgn_forward.9} parent=0 // pred_check
    _
  $region15: #{mgn_forward.9} parent=0 // pred_check_branch
    %16 = sbr.rel (0) target = $region17
  $region16: #{mgn_forward.9} parent=0 // pred_region
    _
  $region17: #{mgn_forward.9} parent=0 // pred_fallthru
    _
  %v18 = vld [vmem:[%s0] sm:$0xff]
  %v19 = vld [vmem:[%s0 + $0x8] sm:$0xff]
  %v20 = vld [vmem:[%s0 + $0x10] sm:$0xff]
  %v21 = vld [vmem:[%s0 + $0x18] sm:$0xff]
  %v22 = vld [vmem:[%s0 + $0x20] sm:$0xf]
  %v23 = vld [vmem:[%s0 + $0x24] sm:$0xff]
  %v24 = vld [vmem:[%s0 + $0x2c] sm:$0xff]
  %v25 = vld [vmem:[%s0 + $0x34] sm:$0xff]
  %v26 = vld [vmem:[%s0 + $0x3c] sm:$0xff]
  %v27 = vld [vmem:[%s0 + $0x44] sm:$0xf]
  %v28 = vld [vmem:[%s0 + $0x48] sm:$0xff]
  %v29 = vld [vmem:[%s0 + $0x50] sm:$0xff]
  %v30 = vld [vmem:[%s0 + $0x58] sm:$0xff]
  %v31 = vld [vmem:[%s0 + $0x60] sm:$0xff]
  %v32 = vld [vmem:[%s0 + $0x68] sm:$0xf]
  %v33 = vld [vmem:[%s0 + $0x6c] sm:$0xff]
  %v34 = vld [vmem:[%s0 + $0x74] sm:$0xff]
  %v35 = vld [vmem:[%s0 + $0x7c] sm:$0xff]
  %v36 = vld [vmem:[%s0 + $0x84] sm:$0xff]
  %v37 = vld [vmem:[%s0 + $0x8c] sm:$0xf]
  %v38 = vld [vmem:[%s0 + $0x90] sm:$0xff]
  %v39 = vld [vmem:[%s0 + $0x98] sm:$0xff]
  %v40 = vld [vmem:[%s0 + $0xa0] sm:$0xff]
  %v41 = vld [vmem:[%s0 + $0xa8] sm:$0xff]
  %v42 = vld [vmem:[%s0 + $0xb0] sm:$0xf]
  %v43 = vld [vmem:[%s0 + $0xb4] sm:$0xff]
  %v44 = vld [vmem:[%s0 + $0xbc] sm:$0xff]
  %v45 = vld [vmem:[%s0 + $0xc4] sm:$0xff]
  %v46 = vld [vmem:[%s0 + $0xcc] sm:$0xff]
  %v47 = vld [vmem:[%s0 + $0xd4] sm:$0xf]
  %v48 = vld [vmem:[%s0 + $0xd8] sm:$0xff]
  %v49 = vld [vmem:[%s0 + $0xe0] sm:$0xff]
  %v50 = vld [vmem:[%s0 + $0xe8] sm:$0xff]
  %v51 = vld [vmem:[%s0 + $0xf0] sm:$0xff]
  %v52 = vld [vmem:[%s0 + $0xf8] sm:$0xf]
  %v53 = vld [vmem:[%s0 + $0xfc] sm:$0xff]
  %v54 = vld [vmem:[%s0 + $0x104] sm:$0xff]
  %v55 = vld [vmem:[%s0 + $0x10c] sm:$0xff]
  %v56 = vld [vmem:[%s0 + $0x114] sm:$0xff]
  %v57 = vld [vmem:[%s0 + $0x11c] sm:$0xf]
  %v58 = vld [vmem:[%s0 + $0x120] sm:$0xff]
  %v59 = vld [vmem:[%s0 + $0x128] sm:$0xff]
  %v60 = vld [vmem:[%s0 + $0x130] sm:$0xff]
  %v61 = vld [vmem:[%s0 + $0x138] sm:$0xff]
  %v62 = vld [vmem:[%s0 + $0x140] sm:$0xf]
  %v63 = vld [vmem:[%s0 + $0x144] sm:$0xff]
  %v64 = vld [vmem:[%s0 + $0x14c] sm:$0xff]
  %v65 = vld [vmem:[%s0 + $0x154] sm:$0xff]
  %v66 = vld [vmem:[%s0 + $0x15c] sm:$0xff]
  %v67 = vld [vmem:[%s0 + $0x164] sm:$0xf]
  %v68 = vld [vmem:[%s0 + $0x168] sm:$0xff]
  %v69 = vld [vmem:[%s0 + $0x170] sm:$0xff]
  %v70 = vld [vmem:[%s0 + $0x178] sm:$0xff]
  %v71 = vld [vmem:[%s0 + $0x180] sm:$0xff]
  %v72 = vld [vmem:[%s0 + $0x188] sm:$0xf]
  %v73 = vld [vmem:[%s0 + $0x18c] sm:$0xff]
  %v74 = vld [vmem:[%s0 + $0x194] sm:$0xff]
  %v75 = vld [vmem:[%s0 + $0x19c] sm:$0xff]
  %v76 = vld [vmem:[%s0 + $0x1a4] sm:$0xff]
  %v77 = vld [vmem:[%s0 + $0x1ac] sm:$0xf]
  %v78 = vld [vmem:[%s1] sm:$0xf]
  %v79 = vld [vmem:[%s1 + $0x4] sm:$0xf]
  %v80 = vld [vmem:[%s1 + $0x8] sm:$0xf]
  %v81 = vld [vmem:[%s1 + $0xc] sm:$0xf]
  %v82 = vld [vmem:[%s1 + $0x10] sm:$0xf]
  %v83 = vld [vmem:[%s1 + $0x14] sm:$0xf]
  %v84 = vld [vmem:[%s1 + $0x18] sm:$0xf]
  %v85 = vld [vmem:[%s1 + $0x1c] sm:$0xf]
  %v86 = vld [vmem:[%s1 + $0x20] sm:$0xf]
  %v87 = vld [vmem:[%s1 + $0x24] sm:$0xf]
  %v88 = vld [vmem:[%s1 + $0x28] sm:$0xf]
  %v89 = vld [vmem:[%s1 + $0x2c] sm:$0xf]
  %v90 = vld [vmem:[%s1 + $0x30] sm:$0xf]
  %v91 = vld [vmem:[%s1 + $0x34] sm:$0xf]
  %v92 = vld [vmem:[%s1 + $0x38] sm:$0xf]
  %v93 = vld [vmem:[%s1 + $0x3c] sm:$0xf]
  %v94 = vld [vmem:[%s1 + $0x40] sm:$0xf]
  %v95 = vld [vmem:[%s1 + $0x44] sm:$0xf]
  %v96 = vld [vmem:[%s1 + $0x48] sm:$0xf]
  %v97 = vld [vmem:[%s1 + $0x4c] sm:$0xf]
  %v98 = vld [vmem:[%s1 + $0x50] sm:$0xf]
  %v99 = vld [vmem:[%s1 + $0x54] sm:$0xf]
  %v100 = vld [vmem:[%s1 + $0x58] sm:$0xf]
  %v101 = vld [vmem:[%s1 + $0x5c] sm:$0xf]
  %v102 = vld [vmem:[%s1 + $0x60] sm:$0xf]
  %v103 = vld [vmem:[%s1 + $0x64] sm:$0xf]
  %v104 = vld [vmem:[%s1 + $0x68] sm:$0xf]
  %v105 = vld [vmem:[%s1 + $0x6c] sm:$0xf]
  %v106 = vld [vmem:[%s1 + $0x70] sm:$0xf]
  %v107 = vld [vmem:[%s1 + $0x74] sm:$0xf]
  %v108 = vld [vmem:[%s1 + $0x78] sm:$0xf]
  %v109 = vld [vmem:[%s1 + $0x7c] sm:$0xf]
  %v110 = vld [vmem:[%s1 + $0x80] sm:$0xf]
  %v111 = vld [vmem:[%s1 + $0x84] sm:$0xf]
  %v112 = vld [vmem:[%s1 + $0x88] sm:$0xf]
  %v113 = vld [vmem:[%s1 + $0x8c] sm:$0xf]
  %v114 = vld [vmem:[%s1 + $0x90] sm:$0xf]
  %v115 = vld [vmem:[%s1 + $0x94] sm:$0xf]
  %v116 = vld [vmem:[%s1 + $0x98] sm:$0xf]
  %v117 = vld [vmem:[%s1 + $0x9c] sm:$0xf]
  %v118 = vld [vmem:[%s1 + $0xa0] sm:$0xf]
  %v119 = vld [vmem:[%s1 + $0xa4] sm:$0xf]
  %v120 = vld [vmem:[%s1 + $0xa8] sm:$0xf]
  %v121 = vld [vmem:[%s1 + $0xac] sm:$0xf]
  %v122 = vld [vmem:[%s1 + $0xb0] sm:$0xf]
  %v123 = vld [vmem:[%s1 + $0xb4] sm:$0xf]
  %v124 = vld [vmem:[%s1 + $0xb8] sm:$0xf]
  %v125 = vld [vmem:[%s1 + $0xbc] sm:$0xf]
  %v126 = vld [vmem:[%s1 + $0xc0] sm:$0xf]
  %v127 = vld [vmem:[%s1 + $0xc4] sm:$0xf]
  %v128 = vld [vmem:[%s1 + $0xc8] sm:$0xf]
  %v129 = vld [vmem:[%s1 + $0xcc] sm:$0xf]
  %v130 = vld [vmem:[%s1 + $0xd0] sm:$0xf]
  %v131 = vld [vmem:[%s1 + $0xd4] sm:$0xf]
  %v132 = vld [vmem:[%s1 + $0xd8] sm:$0xf]
  %v133 = vld [vmem:[%s1 + $0xdc] sm:$0xf]
  %v134 = vld [vmem:[%s1 + $0xe0] sm:$0xf]
  %v135 = vld [vmem:[%s1 + $0xe4] sm:$0xf]
  %v136 = vld [vmem:[%s1 + $0xe8] sm:$0xf]
  %v137 = vld [vmem:[%s1 + $0xec] sm:$0xf]
  %v138 = vld [vmem:[%s1 + $0xf0] sm:$0xf]
  %v139 = vld [vmem:[%s1 + $0xf4] sm:$0xf]
  %v140 = vld [vmem:[%s1 + $0xf8] sm:$0xf]
  %v141 = vld [vmem:[%s1 + $0xfc] sm:$0xf]
  %v142 = vld [vmem:[%s1 + $0x100] sm:$0xf]
  %v143 = vld [vmem:[%s1 + $0x104] sm:$0xf]
  %v144 = vld [vmem:[%s1 + $0x108] sm:$0xf]
  %v145 = vld [vmem:[%s1 + $0x10c] sm:$0xf]
  %v146 = vld [vmem:[%s1 + $0x110] sm:$0xf]
  %v147 = vld [vmem:[%s1 + $0x114] sm:$0xf]
  %v148 = vld [vmem:[%s1 + $0x118] sm:$0xf]
  %v149 = vld [vmem:[%s1 + $0x11c] sm:$0xf]
  %v150 = vld [vmem:[%s1 + $0x120] sm:$0xf]
  %v151 = vld [vmem:[%s1 + $0x124] sm:$0xf]
  %v152 = vld [vmem:[%s1 + $0x128] sm:$0xf]
  %v153 = vld [vmem:[%s1 + $0x12c] sm:$0xf]
  %v154 = vld [vmem:[%s1 + $0x130] sm:$0xf]
  %v155 = vld [vmem:[%s1 + $0x134] sm:$0xf]
  %v156 = vld [vmem:[%s1 + $0x138] sm:$0xf]
  %v157 = vld [vmem:[%s1 + $0x13c] sm:$0xf]
  %v158 = vld [vmem:[%s1 + $0x140] sm:$0xf]
  %v159 = vld [vmem:[%s1 + $0x144] sm:$0xf]
  %v160 = vld [vmem:[%s1 + $0x148] sm:$0xf]
  %v161 = vld [vmem:[%s1 + $0x14c] sm:$0xf]
  %v162 = vld [vmem:[%s1 + $0x150] sm:$0xf]
  %v163 = vld [vmem:[%s1 + $0x154] sm:$0xf]
  %v164 = vld [vmem:[%s1 + $0x158] sm:$0xf]
  %v165 = vld [vmem:[%s1 + $0x15c] sm:$0xf]
  %v166 = vld [vmem:[%s1 + $0x160] sm:$0xf]
  %v167 = vld [vmem:[%s1 + $0x164] sm:$0xf]
  %v168 = vld [vmem:[%s1 + $0x168] sm:$0xf]
  %v169 = vld [vmem:[%s1 + $0x16c] sm:$0xf]
  %v170 = vld [vmem:[%s1 + $0x170] sm:$0xf]
  %v171 = vld [vmem:[%s1 + $0x174] sm:$0xf]
  %v172 = vld [vmem:[%s1 + $0x178] sm:$0xf]
  %v173 = vld [vmem:[%s1 + $0x17c] sm:$0xf]
  %v174 = vld [vmem:[%s1 + $0x180] sm:$0xf]
  %v175 = vld [vmem:[%s1 + $0x184] sm:$0xf]
  %v176 = vld [vmem:[%s1 + $0x188] sm:$0xf]
  %v177 = vld [vmem:[%s1 + $0x18c] sm:$0xf]
  %v178 = vld [vmem:[%s1 + $0x190] sm:$0xf]
  %v179 = vld [vmem:[%s1 + $0x194] sm:$0xf]
  %v180 = vld [vmem:[%s1 + $0x198] sm:$0xf]
  %v181 = vld [vmem:[%s1 + $0x19c] sm:$0xf]
  %v182 = vld [vmem:[%s1 + $0x1a0] sm:$0xf]
  %v183 = vld [vmem:[%s1 + $0x1a4] sm:$0xf]
  %v184 = vld [vmem:[%s1 + $0x1a8] sm:$0xf]
  %v185 = vld [vmem:[%s1 + $0x1ac] sm:$0xf]
  %v186 = vld [vmem:[%s1 + $0x1b0] sm:$0xf]
  %v187 = vld [vmem:[%s1 + $0x1b4] sm:$0xf]
  %v188 = vld [vmem:[%s1 + $0x1b8] sm:$0xf]
  %v189 = vld [vmem:[%s1 + $0x1bc] sm:$0xf]
  %v190 = vld [vmem:[%s1 + $0x1c0] sm:$0xf]
  %v191 = vld [vmem:[%s1 + $0x1c4] sm:$0xf]
  %v192 = vld [vmem:[%s1 + $0x1c8] sm:$0xf]
  %v193 = vld [vmem:[%s1 + $0x1cc] sm:$0xf]
  %v194 = vld [vmem:[%s1 + $0x1d0] sm:$0xf]
  %v195 = vld [vmem:[%s1 + $0x1d4] sm:$0xf]
  %v196 = vld [vmem:[%s1 + $0x1d8] sm:$0xf]
  %v197 = vld [vmem:[%s1 + $0x1dc] sm:$0xf]
  %v198 = vld [vmem:[%s1 + $0x1e0] sm:$0xf]
  %v199 = vld [vmem:[%s1 + $0x1e4] sm:$0xf]
  %v200 = vld [vmem:[%s1 + $0x1e8] sm:$0xf]
  %v201 = vld [vmem:[%s1 + $0x1ec] sm:$0xf]
  %v202 = vld [vmem:[%s1 + $0x1f0] sm:$0xf]
  %v203 = vld [vmem:[%s1 + $0x1f4] sm:$0xf]
  %v204 = vld [vmem:[%s1 + $0x1f8] sm:$0xf]
  %v205 = vld [vmem:[%s1 + $0x1fc] sm:$0xf]
  %v206 = vld [vmem:[%s1 + $0x200] sm:$0xf]
  %v207 = vld [vmem:[%s1 + $0x204] sm:$0xf]
  %v208 = vld [vmem:[%s1 + $0x208] sm:$0xf]
  %v209 = vld [vmem:[%s1 + $0x20c] sm:$0xf]
  %v210 = vld [vmem:[%s1 + $0x210] sm:$0xf]
  %v211 = vld [vmem:[%s1 + $0x214] sm:$0xf]
  %v212 = vld [vmem:[%s1 + $0x218] sm:$0xf]
  %v213 = vld [vmem:[%s1 + $0x21c] sm:$0xf]
  %v214 = vld [vmem:[%s1 + $0x220] sm:$0xf]
  %v215 = vld [vmem:[%s1 + $0x224] sm:$0xf]
  %v216 = vld [vmem:[%s1 + $0x228] sm:$0xf]
  %v217 = vld [vmem:[%s1 + $0x22c] sm:$0xf]
  %v218 = vld [vmem:[%s1 + $0x230] sm:$0xf]
  %v219 = vld [vmem:[%s1 + $0x234] sm:$0xf]
  %v220 = vld [vmem:[%s1 + $0x238] sm:$0xf]
  %v221 = vld [vmem:[%s1 + $0x23c] sm:$0xf]
  %v282 = vunpack.c.l.b16 %v18
  %v283 = vunpack.c.h.b16 %v18
  %v284 = vunpack.c.l.b16 %v19
  %v285 = vunpack.c.h.b16 %v19
  %v286 = vunpack.c.l.b16 %v20
  %v287 = vunpack.c.h.b16 %v20
  %v288 = vunpack.c.l.b16 %v21
  %v289 = vunpack.c.h.b16 %v21
  %v290 = vunpack.c.l.b16 %v22
  %v291 = vunpack.c.l.b16 %v23
  %v292 = vunpack.c.h.b16 %v23
  %v293 = vunpack.c.l.b16 %v24
  %v294 = vunpack.c.h.b16 %v24
  %v295 = vunpack.c.l.b16 %v25
  %v296 = vunpack.c.h.b16 %v25
  %v297 = vunpack.c.l.b16 %v26
  %v298 = vunpack.c.h.b16 %v26
  %v299 = vunpack.c.l.b16 %v27
  %v300 = vunpack.c.l.b16 %v28
  %v301 = vunpack.c.h.b16 %v28
  %v302 = vunpack.c.l.b16 %v29
  %v303 = vunpack.c.h.b16 %v29
  %v304 = vunpack.c.l.b16 %v30
  %v305 = vunpack.c.h.b16 %v30
  %v306 = vunpack.c.l.b16 %v31
  %v307 = vunpack.c.h.b16 %v31
  %v308 = vunpack.c.l.b16 %v32
  %v309 = vunpack.c.l.b16 %v33
  %v310 = vunpack.c.h.b16 %v33
  %v311 = vunpack.c.l.b16 %v34
  %v312 = vunpack.c.h.b16 %v34
  %v313 = vunpack.c.l.b16 %v35
  %v314 = vunpack.c.h.b16 %v35
  %v315 = vunpack.c.l.b16 %v36
  %v316 = vunpack.c.h.b16 %v36
  %v317 = vunpack.c.l.b16 %v37
  %v318 = vunpack.c.l.b16 %v38
  %v319 = vunpack.c.h.b16 %v38
  %v320 = vunpack.c.l.b16 %v39
  %v321 = vunpack.c.h.b16 %v39
  %v322 = vunpack.c.l.b16 %v40
  %v323 = vunpack.c.h.b16 %v40
  %v324 = vunpack.c.l.b16 %v41
  %v325 = vunpack.c.h.b16 %v41
  %v326 = vunpack.c.l.b16 %v42
  %v327 = vunpack.c.l.b16 %v43
  %v328 = vunpack.c.h.b16 %v43
  %v329 = vunpack.c.l.b16 %v44
  %v330 = vunpack.c.h.b16 %v44
  %v331 = vunpack.c.l.b16 %v45
  %v332 = vunpack.c.h.b16 %v45
  %v333 = vunpack.c.l.b16 %v46
  %v334 = vunpack.c.h.b16 %v46
  %v335 = vunpack.c.l.b16 %v47
  %v336 = vunpack.c.l.b16 %v48
  %v337 = vunpack.c.h.b16 %v48
  %v338 = vunpack.c.l.b16 %v49
  %v339 = vunpack.c.h.b16 %v49
  %v340 = vunpack.c.l.b16 %v50
  %v341 = vunpack.c.h.b16 %v50
  %v342 = vunpack.c.l.b16 %v51
  %v343 = vunpack.c.h.b16 %v51
  %v344 = vunpack.c.l.b16 %v52
  %v345 = vunpack.c.l.b16 %v53
  %v346 = vunpack.c.h.b16 %v53
  %v347 = vunpack.c.l.b16 %v54
  %v348 = vunpack.c.h.b16 %v54
  %v349 = vunpack.c.l.b16 %v55
  %v350 = vunpack.c.h.b16 %v55
  %v351 = vunpack.c.l.b16 %v56
  %v352 = vunpack.c.h.b16 %v56
  %v353 = vunpack.c.l.b16 %v57
  %v354 = vunpack.c.l.b16 %v58
  %v355 = vunpack.c.h.b16 %v58
  %v356 = vunpack.c.l.b16 %v59
  %v357 = vunpack.c.h.b16 %v59
  %v358 = vunpack.c.l.b16 %v60
  %v359 = vunpack.c.h.b16 %v60
  %v360 = vunpack.c.l.b16 %v61
  %v361 = vunpack.c.h.b16 %v61
  %v362 = vunpack.c.l.b16 %v62
  %v363 = vunpack.c.l.b16 %v63
  %v364 = vunpack.c.h.b16 %v63
  %v365 = vunpack.c.l.b16 %v64
  %v366 = vunpack.c.h.b16 %v64
  %v367 = vunpack.c.l.b16 %v65
  %v368 = vunpack.c.h.b16 %v65
  %v369 = vunpack.c.l.b16 %v66
  %v370 = vunpack.c.h.b16 %v66
  %v371 = vunpack.c.l.b16 %v67
  %v372 = vunpack.c.l.b16 %v68
  %v373 = vunpack.c.h.b16 %v68
  %v374 = vunpack.c.l.b16 %v69
  %v375 = vunpack.c.h.b16 %v69
  %v376 = vunpack.c.l.b16 %v70
  %v377 = vunpack.c.h.b16 %v70
  %v378 = vunpack.c.l.b16 %v71
  %v379 = vunpack.c.h.b16 %v71
  %v380 = vunpack.c.l.b16 %v72
  %v381 = vunpack.c.l.b16 %v73
  %v382 = vunpack.c.h.b16 %v73
  %v383 = vunpack.c.l.b16 %v74
  %v384 = vunpack.c.h.b16 %v74
  %v385 = vunpack.c.l.b16 %v75
  %v386 = vunpack.c.h.b16 %v75
  %v387 = vunpack.c.l.b16 %v76
  %v388 = vunpack.c.h.b16 %v76
  %v389 = vunpack.c.l.b16 %v77
  %v390 = vpack.c.b16 %v291, %v282
  %v391 = vpack.c.b16 %v292, %v283
  %v392 = vpack.c.b16 %v293, %v284
  %v393 = vpack.c.b16 %v294, %v285
  %v394 = vpack.c.b16 %v295, %v286
  %v395 = vpack.c.b16 %v296, %v287
  %v396 = vpack.c.b16 %v297, %v288
  %v397 = vpack.c.b16 %v298, %v289
  %v398 = vpack.c.b16 %v299, %v290
  %v399 = vpack.c.b16 %v309, %v300
  %v400 = vpack.c.b16 %v310, %v301
  %v401 = vpack.c.b16 %v311, %v302
  %v402 = vpack.c.b16 %v312, %v303
  %v403 = vpack.c.b16 %v313, %v304
  %v404 = vpack.c.b16 %v314, %v305
  %v405 = vpack.c.b16 %v315, %v306
  %v406 = vpack.c.b16 %v316, %v307
  %v407 = vpack.c.b16 %v317, %v308
  %v408 = vpack.c.b16 %v327, %v318
  %v409 = vpack.c.b16 %v328, %v319
  %v410 = vpack.c.b16 %v329, %v320
  %v411 = vpack.c.b16 %v330, %v321
  %v412 = vpack.c.b16 %v331, %v322
  %v413 = vpack.c.b16 %v332, %v323
  %v414 = vpack.c.b16 %v333, %v324
  %v415 = vpack.c.b16 %v334, %v325
  %v416 = vpack.c.b16 %v335, %v326
  %v417 = vpack.c.b16 %v345, %v336
  %v418 = vpack.c.b16 %v346, %v337
  %v419 = vpack.c.b16 %v347, %v338
  %v420 = vpack.c.b16 %v348, %v339
  %v421 = vpack.c.b16 %v349, %v340
  %v422 = vpack.c.b16 %v350, %v341
  %v423 = vpack.c.b16 %v351, %v342
  %v424 = vpack.c.b16 %v352, %v343
  %v425 = vpack.c.b16 %v353, %v344
  %v426 = vpack.c.b16 %v363, %v354
  %v427 = vpack.c.b16 %v364, %v355
  %v428 = vpack.c.b16 %v365, %v356
  %v429 = vpack.c.b16 %v366, %v357
  %v430 = vpack.c.b16 %v367, %v358
  %v431 = vpack.c.b16 %v368, %v359
  %v432 = vpack.c.b16 %v369, %v360
  %v433 = vpack.c.b16 %v370, %v361
  %v434 = vpack.c.b16 %v371, %v362
  %v435 = vpack.c.b16 %v381, %v372
  %v436 = vpack.c.b16 %v382, %v373
  %v437 = vpack.c.b16 %v383, %v374
  %v438 = vpack.c.b16 %v384, %v375
  %v439 = vpack.c.b16 %v385, %v376
  %v440 = vpack.c.b16 %v386, %v377
  %v441 = vpack.c.b16 %v387, %v378
  %v442 = vpack.c.b16 %v388, %v379
  %v443 = vpack.c.b16 %v389, %v380
  %v642 = vunpack.c.l.b16 %v78
  %v643 = vunpack.c.l.b16 %v79
  %v644 = vunpack.c.l.b16 %v80
  %v645 = vunpack.c.l.b16 %v81
  %v646 = vunpack.c.l.b16 %v82
  %v647 = vunpack.c.l.b16 %v83
  %v648 = vunpack.c.l.b16 %v84
  %v649 = vunpack.c.l.b16 %v85
  %v650 = vunpack.c.l.b16 %v86
  %v651 = vunpack.c.l.b16 %v87
  %v652 = vunpack.c.l.b16 %v88
  %v653 = vunpack.c.l.b16 %v89
  %v654 = vunpack.c.l.b16 %v90
  %v655 = vunpack.c.l.b16 %v91
  %v656 = vunpack.c.l.b16 %v92
  %v657 = vunpack.c.l.b16 %v93
  %v658 = vunpack.c.l.b16 %v94
  %v659 = vunpack.c.l.b16 %v95
  %v660 = vunpack.c.l.b16 %v96
  %v661 = vunpack.c.l.b16 %v97
  %v662 = vunpack.c.l.b16 %v98
  %v663 = vunpack.c.l.b16 %v99
  %v664 = vunpack.c.l.b16 %v100
  %v665 = vunpack.c.l.b16 %v101
  %v666 = vunpack.c.l.b16 %v102
  %v667 = vunpack.c.l.b16 %v103
  %v668 = vunpack.c.l.b16 %v104
  %v669 = vunpack.c.l.b16 %v105
  %v670 = vunpack.c.l.b16 %v106
  %v671 = vunpack.c.l.b16 %v107
  %v672 = vunpack.c.l.b16 %v108
  %v673 = vunpack.c.l.b16 %v109
  %v674 = vunpack.c.l.b16 %v110
  %v675 = vunpack.c.l.b16 %v111
  %v676 = vunpack.c.l.b16 %v112
  %v677 = vunpack.c.l.b16 %v113
  %v678 = vunpack.c.l.b16 %v114
  %v679 = vunpack.c.l.b16 %v115
  %v680 = vunpack.c.l.b16 %v116
  %v681 = vunpack.c.l.b16 %v117
  %v682 = vunpack.c.l.b16 %v118
  %v683 = vunpack.c.l.b16 %v119
  %v684 = vunpack.c.l.b16 %v120
  %v685 = vunpack.c.l.b16 %v121
  %v686 = vunpack.c.l.b16 %v122
  %v687 = vunpack.c.l.b16 %v123
  %v688 = vunpack.c.l.b16 %v124
  %v689 = vunpack.c.l.b16 %v125
  %v690 = vunpack.c.l.b16 %v126
  %v691 = vunpack.c.l.b16 %v127
  %v692 = vunpack.c.l.b16 %v128
  %v693 = vunpack.c.l.b16 %v129
  %v694 = vunpack.c.l.b16 %v130
  %v695 = vunpack.c.l.b16 %v131
  %v696 = vunpack.c.l.b16 %v132
  %v697 = vunpack.c.l.b16 %v133
  %v698 = vunpack.c.l.b16 %v134
  %v699 = vunpack.c.l.b16 %v135
  %v700 = vunpack.c.l.b16 %v136
  %v701 = vunpack.c.l.b16 %v137
  %v702 = vunpack.c.l.b16 %v138
  %v703 = vunpack.c.l.b16 %v139
  %v704 = vunpack.c.l.b16 %v140
  %v705 = vunpack.c.l.b16 %v141
  %v706 = vunpack.c.l.b16 %v142
  %v707 = vunpack.c.l.b16 %v143
  %v708 = vunpack.c.l.b16 %v144
  %v709 = vunpack.c.l.b16 %v145
  %v710 = vunpack.c.l.b16 %v146
  %v711 = vunpack.c.l.b16 %v147
  %v712 = vunpack.c.l.b16 %v148
  %v713 = vunpack.c.l.b16 %v149
  %v714 = vunpack.c.l.b16 %v150
  %v715 = vunpack.c.l.b16 %v151
  %v716 = vunpack.c.l.b16 %v152
  %v717 = vunpack.c.l.b16 %v153
  %v718 = vunpack.c.l.b16 %v154
  %v719 = vunpack.c.l.b16 %v155
  %v720 = vunpack.c.l.b16 %v156
  %v721 = vunpack.c.l.b16 %v157
  %v722 = vunpack.c.l.b16 %v158
  %v723 = vunpack.c.l.b16 %v159
  %v724 = vunpack.c.l.b16 %v160
  %v725 = vunpack.c.l.b16 %v161
  %v726 = vunpack.c.l.b16 %v162
  %v727 = vunpack.c.l.b16 %v163
  %v728 = vunpack.c.l.b16 %v164
  %v729 = vunpack.c.l.b16 %v165
  %v730 = vunpack.c.l.b16 %v166
  %v731 = vunpack.c.l.b16 %v167
  %v732 = vunpack.c.l.b16 %v168
  %v733 = vunpack.c.l.b16 %v169
  %v734 = vunpack.c.l.b16 %v170
  %v735 = vunpack.c.l.b16 %v171
  %v736 = vunpack.c.l.b16 %v172
  %v737 = vunpack.c.l.b16 %v173
  %v738 = vunpack.c.l.b16 %v174
  %v739 = vunpack.c.l.b16 %v175
  %v740 = vunpack.c.l.b16 %v176
  %v741 = vunpack.c.l.b16 %v177
  %v742 = vunpack.c.l.b16 %v178
  %v743 = vunpack.c.l.b16 %v179
  %v744 = vunpack.c.l.b16 %v180
  %v745 = vunpack.c.l.b16 %v181
  %v746 = vunpack.c.l.b16 %v182
  %v747 = vunpack.c.l.b16 %v183
  %v748 = vunpack.c.l.b16 %v184
  %v749 = vunpack.c.l.b16 %v185
  %v750 = vunpack.c.l.b16 %v186
  %v751 = vunpack.c.l.b16 %v187
  %v752 = vunpack.c.l.b16 %v188
  %v753 = vunpack.c.l.b16 %v189
  %v754 = vunpack.c.l.b16 %v190
  %v755 = vunpack.c.l.b16 %v191
  %v756 = vunpack.c.l.b16 %v192
  %v757 = vunpack.c.l.b16 %v193
  %v758 = vunpack.c.l.b16 %v194
  %v759 = vunpack.c.l.b16 %v195
  %v760 = vunpack.c.l.b16 %v196
  %v761 = vunpack.c.l.b16 %v197
  %v762 = vunpack.c.l.b16 %v198
  %v763 = vunpack.c.l.b16 %v199
  %v764 = vunpack.c.l.b16 %v200
  %v765 = vunpack.c.l.b16 %v201
  %v766 = vunpack.c.l.b16 %v202
  %v767 = vunpack.c.l.b16 %v203
  %v768 = vunpack.c.l.b16 %v204
  %v769 = vunpack.c.l.b16 %v205
  %v770 = vunpack.c.l.b16 %v206
  %v771 = vunpack.c.l.b16 %v207
  %v772 = vunpack.c.l.b16 %v208
  %v773 = vunpack.c.l.b16 %v209
  %v774 = vunpack.c.l.b16 %v210
  %v775 = vunpack.c.l.b16 %v211
  %v776 = vunpack.c.l.b16 %v212
  %v777 = vunpack.c.l.b16 %v213
  %v778 = vunpack.c.l.b16 %v214
  %v779 = vunpack.c.l.b16 %v215
  %v780 = vunpack.c.l.b16 %v216
  %v781 = vunpack.c.l.b16 %v217
  %v782 = vunpack.c.l.b16 %v218
  %v783 = vunpack.c.l.b16 %v219
  %v784 = vunpack.c.l.b16 %v220
  %v785 = vunpack.c.l.b16 %v221
  %v786 = vpack.c.b16 %v643, %v642
  %v787 = vpack.c.b16 %v645, %v644
  %v788 = vpack.c.b16 %v647, %v646
  %v789 = vpack.c.b16 %v649, %v648
  %v790 = vpack.c.b16 %v651, %v650
  %v791 = vpack.c.b16 %v653, %v652
  %v792 = vpack.c.b16 %v655, %v654
  %v793 = vpack.c.b16 %v657, %v656
  %v794 = vpack.c.b16 %v659, %v658
  %v795 = vpack.c.b16 %v661, %v660
  %v796 = vpack.c.b16 %v663, %v662
  %v797 = vpack.c.b16 %v665, %v664
  %v798 = vpack.c.b16 %v667, %v666
  %v799 = vpack.c.b16 %v669, %v668
  %v800 = vpack.c.b16 %v671, %v670
  %v801 = vpack.c.b16 %v673, %v672
  %v802 = vpack.c.b16 %v675, %v674
  %v803 = vpack.c.b16 %v677, %v676
  %v804 = vpack.c.b16 %v679, %v678
  %v805 = vpack.c.b16 %v681, %v680
  %v806 = vpack.c.b16 %v683, %v682
  %v807 = vpack.c.b16 %v685, %v684
  %v808 = vpack.c.b16 %v687, %v686
  %v809 = vpack.c.b16 %v689, %v688
  %v810 = vpack.c.b16 %v691, %v690
  %v811 = vpack.c.b16 %v693, %v692
  %v812 = vpack.c.b16 %v695, %v694
  %v813 = vpack.c.b16 %v697, %v696
  %v814 = vpack.c.b16 %v699, %v698
  %v815 = vpack.c.b16 %v701, %v700
  %v816 = vpack.c.b16 %v703, %v702
  %v817 = vpack.c.b16 %v705, %v704
  %v818 = vpack.c.b16 %v707, %v706
  %v819 = vpack.c.b16 %v709, %v708
  %v820 = vpack.c.b16 %v711, %v710
  %v821 = vpack.c.b16 %v713, %v712
  %v822 = vpack.c.b16 %v715, %v714
  %v823 = vpack.c.b16 %v717, %v716
  %v824 = vpack.c.b16 %v719, %v718
  %v825 = vpack.c.b16 %v721, %v720
  %v826 = vpack.c.b16 %v723, %v722
  %v827 = vpack.c.b16 %v725, %v724
  %v828 = vpack.c.b16 %v727, %v726
  %v829 = vpack.c.b16 %v729, %v728
  %v830 = vpack.c.b16 %v731, %v730
  %v831 = vpack.c.b16 %v733, %v732
  %v832 = vpack.c.b16 %v735, %v734
  %v833 = vpack.c.b16 %v737, %v736
  %v834 = vpack.c.b16 %v739, %v738
  %v835 = vpack.c.b16 %v741, %v740
  %v836 = vpack.c.b16 %v743, %v742
  %v837 = vpack.c.b16 %v745, %v744
  %v838 = vpack.c.b16 %v747, %v746
  %v839 = vpack.c.b16 %v749, %v748
  %v840 = vpack.c.b16 %v751, %v750
  %v841 = vpack.c.b16 %v753, %v752
  %v842 = vpack.c.b16 %v755, %v754
  %v843 = vpack.c.b16 %v757, %v756
  %v844 = vpack.c.b16 %v759, %v758
  %v845 = vpack.c.b16 %v761, %v760
  %v846 = vpack.c.b16 %v763, %v762
  %v847 = vpack.c.b16 %v765, %v764
  %v848 = vpack.c.b16 %v767, %v766
  %v849 = vpack.c.b16 %v769, %v768
  %v850 = vpack.c.b16 %v771, %v770
  %v851 = vpack.c.b16 %v773, %v772
  %v852 = vpack.c.b16 %v775, %v774
  %v853 = vpack.c.b16 %v777, %v776
  %v854 = vpack.c.b16 %v779, %v778
  %v855 = vpack.c.b16 %v781, %v780
  %v856 = vpack.c.b16 %v783, %v782
  %v857 = vpack.c.b16 %v785, %v784
  %930 = vmatprep.subr.bf16.mxu0 0
  %931 = vmatpush1.bf16.msra.mxu0 %v793
  %932 = vmatprep.subr.bf16.mxu0 0
  %933 = vmatpush1.bf16.msra.mxu0 %v792
  %934 = vmatprep.subr.bf16.mxu0 0
  %935 = vmatpush1.bf16.msra.mxu0 %v791
  %936 = vmatprep.subr.bf16.mxu0 0
  %937 = vmatpush1.bf16.msra.mxu0 %v790
  %938 = vmatprep.subr.bf16.mxu0 0
  %939 = vmatpush1.bf16.msra.mxu0 %v789
  %940 = vmatprep.subr.bf16.mxu0 0
  %941 = vmatpush1.bf16.msra.mxu0 %v788
  %942 = vmatprep.subr.bf16.mxu0 0
  %943 = vmatpush1.bf16.msra.mxu0 %v787
  %944 = vmatprep.subr.bf16.mxu0 0
  %945 = vmatpush1.bf16.msra.mxu0 %v786
  %946 = vmatprep.subr.bf16.mxu0 0
  %947 = vmatpush2.bf16.msra.mxu0 %v801
  %948 = vmatprep.subr.bf16.mxu0 0
  %949 = vmatpush2.bf16.msra.mxu0 %v800
  %950 = vmatprep.subr.bf16.mxu0 0
  %951 = vmatpush2.bf16.msra.mxu0 %v799
  %952 = vmatprep.subr.bf16.mxu0 0
  %953 = vmatpush2.bf16.msra.mxu0 %v798
  %954 = vmatprep.subr.bf16.mxu0 0
  %955 = vmatpush2.bf16.msra.mxu0 %v797
  %956 = vmatprep.subr.bf16.mxu0 0
  %957 = vmatpush2.bf16.msra.mxu0 %v796
  %958 = vmatprep.subr.bf16.mxu0 0
  %959 = vmatpush2.bf16.msra.mxu0 %v795
  %960 = vmatprep.subr.bf16.mxu0 0
  %961 = vmatpush2.bf16.msra.mxu0 %v794
  %962 = vmatprep.mubr.bf16.mxu0 %v391
  %963 = vmatmul.mubr.bf16.gmra.mxu0 %v390
  %v964 = vpop.f32.mrf.mxu0
  %v965 = vadd.f32 0.0, %v964
  %v966 = vpop.f32.mrf.mxu0
  %v967 = vpop.f32.mrf.mxu0
  %v968 = vadd.f32 0.0, %v967
  %v969 = vpop.f32.mrf.mxu0
  %970 = vmatprep.mubr.bf16.mxu0 %v400
  %971 = vmatmul.mubr.bf16.gmra.mxu0 %v399
  %v972 = vpop.f32.mrf.mxu0
  %v973 = vadd.f32 0.0, %v972
  %v974 = vpop.f32.mrf.mxu0
  %v975 = vpop.f32.mrf.mxu0
  %v976 = vadd.f32 0.0, %v975
  %v977 = vpop.f32.mrf.mxu0
  %978 = vmatprep.mubr.bf16.mxu0 %v409
  %979 = vmatmul.mubr.bf16.gmra.mxu0 %v408
  %v980 = vpop.f32.mrf.mxu0
  %v981 = vadd.f32 0.0, %v980
  %v982 = vpop.f32.mrf.mxu0
  %v983 = vpop.f32.mrf.mxu0
  %v984 = vadd.f32 0.0, %v983
  %v985 = vpop.f32.mrf.mxu0
  %986 = vmatprep.mubr.bf16.mxu0 %v418
  %987 = vmatmul.mubr.bf16.gmra.mxu0 %v417
  %v988 = vpop.f32.mrf.mxu0
  %v989 = vadd.f32 0.0, %v988
  %v990 = vpop.f32.mrf.mxu0
  %v991 = vpop.f32.mrf.mxu0
  %v992 = vadd.f32 0.0, %v991
  %v993 = vpop.f32.mrf.mxu0
  %994 = vmatprep.mubr.bf16.mxu0 %v427
  %995 = vmatmul.mubr.bf16.gmra.mxu0 %v426
  %v996 = vpop.f32.mrf.mxu0
  %v997 = vadd.f32 0.0, %v996
  %v998 = vpop.f32.mrf.mxu0
  %v999 = vpop.f32.mrf.mxu0
  %v1000 = vadd.f32 0.0, %v999
  %v1001 = vpop.f32.mrf.mxu0
  %1002 = vmatprep.mubr.bf16.mxu0 %v436
  %1003 = vmatmul.mubr.bf16.gmra.mxu0 %v435
  %v1004 = vpop.f32.mrf.mxu0
  %v1005 = vadd.f32 0.0, %v1004
  %v1006 = vpop.f32.mrf.mxu0
  %v1007 = vpop.f32.mrf.mxu0
  %v1008 = vadd.f32 0.0, %v1007
  %v1009 = vpop.f32.mrf.mxu0
  %1010 = vdwg.mxu0
  %1011 = vmatprep.subr.bf16.mxu0 0
  %1012 = vmatpush1.bf16.msra.mxu0 %v809
  %1013 = vmatprep.subr.bf16.mxu0 0
  %1014 = vmatpush1.bf16.msra.mxu0 %v808
  %1015 = vmatprep.subr.bf16.mxu0 0
  %1016 = vmatpush1.bf16.msra.mxu0 %v807
  %1017 = vmatprep.subr.bf16.mxu0 0
  %1018 = vmatpush1.bf16.msra.mxu0 %v806
  %1019 = vmatprep.subr.bf16.mxu0 0
  %1020 = vmatpush1.bf16.msra.mxu0 %v805
  %1021 = vmatprep.subr.bf16.mxu0 0
  %1022 = vmatpush1.bf16.msra.mxu0 %v804
  %1023 = vmatprep.subr.bf16.mxu0 0
  %1024 = vmatpush1.bf16.msra.mxu0 %v803
  %1025 = vmatprep.subr.bf16.mxu0 0
  %1026 = vmatpush1.bf16.msra.mxu0 %v802
  %1027 = vmatprep.subr.bf16.mxu0 0
  %1028 = vmatpush2.bf16.msra.mxu0 %v817
  %1029 = vmatprep.subr.bf16.mxu0 0
  %1030 = vmatpush2.bf16.msra.mxu0 %v816
  %1031 = vmatprep.subr.bf16.mxu0 0
  %1032 = vmatpush2.bf16.msra.mxu0 %v815
  %1033 = vmatprep.subr.bf16.mxu0 0
  %1034 = vmatpush2.bf16.msra.mxu0 %v814
  %1035 = vmatprep.subr.bf16.mxu0 0
  %1036 = vmatpush2.bf16.msra.mxu0 %v813
  %1037 = vmatprep.subr.bf16.mxu0 0
  %1038 = vmatpush2.bf16.msra.mxu0 %v812
  %1039 = vmatprep.subr.bf16.mxu0 0
  %1040 = vmatpush2.bf16.msra.mxu0 %v811
  %1041 = vmatprep.subr.bf16.mxu0 0
  %1042 = vmatpush2.bf16.msra.mxu0 %v810
  %1043 = vmatprep.mubr.bf16.mxu0 %v393
  %1044 = vmatmul.mubr.bf16.gmra.mxu0 %v392
  %v1045 = vpop.f32.mrf.mxu0
  %v1046 = vadd.f32 %v965, %v1045
  %v1047 = vpop.f32.mrf.mxu0
  %v1048 = vpop.f32.mrf.mxu0
  %v1049 = vadd.f32 %v968, %v1048
  %v1050 = vpop.f32.mrf.mxu0
  %1051 = vmatprep.mubr.bf16.mxu0 %v402
  %1052 = vmatmul.mubr.bf16.gmra.mxu0 %v401
  %v1053 = vpop.f32.mrf.mxu0
  %v1054 = vadd.f32 %v973, %v1053
  %v1055 = vpop.f32.mrf.mxu0
  %v1056 = vpop.f32.mrf.mxu0
  %v1057 = vadd.f32 %v976, %v1056
  %v1058 = vpop.f32.mrf.mxu0
  %1059 = vmatprep.mubr.bf16.mxu0 %v411
  %1060 = vmatmul.mubr.bf16.gmra.mxu0 %v410
  %v1061 = vpop.f32.mrf.mxu0
  %v1062 = vadd.f32 %v981, %v1061
  %v1063 = vpop.f32.mrf.mxu0
  %v1064 = vpop.f32.mrf.mxu0
  %v1065 = vadd.f32 %v984, %v1064
  %v1066 = vpop.f32.mrf.mxu0
  %1067 = vmatprep.mubr.bf16.mxu0 %v420
  %1068 = vmatmul.mubr.bf16.gmra.mxu0 %v419
  %v1069 = vpop.f32.mrf.mxu0
  %v1070 = vadd.f32 %v989, %v1069
  %v1071 = vpop.f32.mrf.mxu0
  %v1072 = vpop.f32.mrf.mxu0
  %v1073 = vadd.f32 %v992, %v1072
  %v1074 = vpop.f32.mrf.mxu0
  %1075 = vmatprep.mubr.bf16.mxu0 %v429
  %1076 = vmatmul.mubr.bf16.gmra.mxu0 %v428
  %v1077 = vpop.f32.mrf.mxu0
  %v1078 = vadd.f32 %v997, %v1077
  %v1079 = vpop.f32.mrf.mxu0
  %v1080 = vpop.f32.mrf.mxu0
  %v1081 = vadd.f32 %v1000, %v1080
  %v1082 = vpop.f32.mrf.mxu0
  %1083 = vmatprep.mubr.bf16.mxu0 %v438
  %1084 = vmatmul.mubr.bf16.gmra.mxu0 %v437
  %v1085 = vpop.f32.mrf.mxu0
  %v1086 = vadd.f32 %v1005, %v1085
  %v1087 = vpop.f32.mrf.mxu0
  %v1088 = vpop.f32.mrf.mxu0
  %v1089 = vadd.f32 %v1008, %v1088
  %v1090 = vpop.f32.mrf.mxu0
  %1091 = vdwg.mxu0
  %1092 = vmatprep.subr.bf16.mxu0 0
  %1093 = vmatpush1.bf16.msra.mxu0 %v825
  %1094 = vmatprep.subr.bf16.mxu0 0
  %1095 = vmatpush1.bf16.msra.mxu0 %v824
  %1096 = vmatprep.subr.bf16.mxu0 0
  %1097 = vmatpush1.bf16.msra.mxu0 %v823
  %1098 = vmatprep.subr.bf16.mxu0 0
  %1099 = vmatpush1.bf16.msra.mxu0 %v822
  %1100 = vmatprep.subr.bf16.mxu0 0
  %1101 = vmatpush1.bf16.msra.mxu0 %v821
  %1102 = vmatprep.subr.bf16.mxu0 0
  %1103 = vmatpush1.bf16.msra.mxu0 %v820
  %1104 = vmatprep.subr.bf16.mxu0 0
  %1105 = vmatpush1.bf16.msra.mxu0 %v819
  %1106 = vmatprep.subr.bf16.mxu0 0
  %1107 = vmatpush1.bf16.msra.mxu0 %v818
  %1108 = vmatprep.subr.bf16.mxu0 0
  %1109 = vmatpush2.bf16.msra.mxu0 %v833
  %1110 = vmatprep.subr.bf16.mxu0 0
  %1111 = vmatpush2.bf16.msra.mxu0 %v832
  %1112 = vmatprep.subr.bf16.mxu0 0
  %1113 = vmatpush2.bf16.msra.mxu0 %v831
  %1114 = vmatprep.subr.bf16.mxu0 0
  %1115 = vmatpush2.bf16.msra.mxu0 %v830
  %1116 = vmatprep.subr.bf16.mxu0 0
  %1117 = vmatpush2.bf16.msra.mxu0 %v829
  %1118 = vmatprep.subr.bf16.mxu0 0
  %1119 = vmatpush2.bf16.msra.mxu0 %v828
  %1120 = vmatprep.subr.bf16.mxu0 0
  %1121 = vmatpush2.bf16.msra.mxu0 %v827
  %1122 = vmatprep.subr.bf16.mxu0 0
  %1123 = vmatpush2.bf16.msra.mxu0 %v826
  %1124 = vmatprep.mubr.bf16.mxu0 %v395
  %1125 = vmatmul.mubr.bf16.gmra.mxu0 %v394
  %v1126 = vpop.f32.mrf.mxu0
  %v1127 = vadd.f32 %v1046, %v1126
  %v1128 = vpop.f32.mrf.mxu0
  %v1129 = vpop.f32.mrf.mxu0
  %v1130 = vadd.f32 %v1049, %v1129
  %v1131 = vpop.f32.mrf.mxu0
  %1132 = vmatprep.mubr.bf16.mxu0 %v404
  %1133 = vmatmul.mubr.bf16.gmra.mxu0 %v403
  %v1134 = vpop.f32.mrf.mxu0
  %v1135 = vadd.f32 %v1054, %v1134
  %v1136 = vpop.f32.mrf.mxu0
  %v1137 = vpop.f32.mrf.mxu0
  %v1138 = vadd.f32 %v1057, %v1137
  %v1139 = vpop.f32.mrf.mxu0
  %1140 = vmatprep.mubr.bf16.mxu0 %v413
  %1141 = vmatmul.mubr.bf16.gmra.mxu0 %v412
  %v1142 = vpop.f32.mrf.mxu0
  %v1143 = vadd.f32 %v1062, %v1142
  %v1144 = vpop.f32.mrf.mxu0
  %v1145 = vpop.f32.mrf.mxu0
  %v1146 = vadd.f32 %v1065, %v1145
  %v1147 = vpop.f32.mrf.mxu0
  %1148 = vmatprep.mubr.bf16.mxu0 %v422
  %1149 = vmatmul.mubr.bf16.gmra.mxu0 %v421
  %v1150 = vpop.f32.mrf.mxu0
  %v1151 = vadd.f32 %v1070, %v1150
  %v1152 = vpop.f32.mrf.mxu0
  %v1153 = vpop.f32.mrf.mxu0
  %v1154 = vadd.f32 %v1073, %v1153
  %v1155 = vpop.f32.mrf.mxu0
  %1156 = vmatprep.mubr.bf16.mxu0 %v431
  %1157 = vmatmul.mubr.bf16.gmra.mxu0 %v430
  %v1158 = vpop.f32.mrf.mxu0
  %v1159 = vadd.f32 %v1078, %v1158
  %v1160 = vpop.f32.mrf.mxu0
  %v1161 = vpop.f32.mrf.mxu0
  %v1162 = vadd.f32 %v1081, %v1161
  %v1163 = vpop.f32.mrf.mxu0
  %1164 = vmatprep.mubr.bf16.mxu0 %v440
  %1165 = vmatmul.mubr.bf16.gmra.mxu0 %v439
  %v1166 = vpop.f32.mrf.mxu0
  %v1167 = vadd.f32 %v1086, %v1166
  %v1168 = vpop.f32.mrf.mxu0
  %v1169 = vpop.f32.mrf.mxu0
  %v1170 = vadd.f32 %v1089, %v1169
  %v1171 = vpop.f32.mrf.mxu0
  %1172 = vdwg.mxu0
  %1173 = vmatprep.subr.bf16.mxu0 0
  %1174 = vmatpush1.bf16.msra.mxu0 %v841
  %1175 = vmatprep.subr.bf16.mxu0 0
  %1176 = vmatpush1.bf16.msra.mxu0 %v840
  %1177 = vmatprep.subr.bf16.mxu0 0
  %1178 = vmatpush1.bf16.msra.mxu0 %v839
  %1179 = vmatprep.subr.bf16.mxu0 0
  %1180 = vmatpush1.bf16.msra.mxu0 %v838
  %1181 = vmatprep.subr.bf16.mxu0 0
  %1182 = vmatpush1.bf16.msra.mxu0 %v837
  %1183 = vmatprep.subr.bf16.mxu0 0
  %1184 = vmatpush1.bf16.msra.mxu0 %v836
  %1185 = vmatprep.subr.bf16.mxu0 0
  %1186 = vmatpush1.bf16.msra.mxu0 %v835
  %1187 = vmatprep.subr.bf16.mxu0 0
  %1188 = vmatpush1.bf16.msra.mxu0 %v834
  %1189 = vmatprep.subr.bf16.mxu0 0
  %1190 = vmatpush2.bf16.msra.mxu0 %v849
  %1191 = vmatprep.subr.bf16.mxu0 0
  %1192 = vmatpush2.bf16.msra.mxu0 %v848
  %1193 = vmatprep.subr.bf16.mxu0 0
  %1194 = vmatpush2.bf16.msra.mxu0 %v847
  %1195 = vmatprep.subr.bf16.mxu0 0
  %1196 = vmatpush2.bf16.msra.mxu0 %v846
  %1197 = vmatprep.subr.bf16.mxu0 0
  %1198 = vmatpush2.bf16.msra.mxu0 %v845
  %1199 = vmatprep.subr.bf16.mxu0 0
  %1200 = vmatpush2.bf16.msra.mxu0 %v844
  %1201 = vmatprep.subr.bf16.mxu0 0
  %1202 = vmatpush2.bf16.msra.mxu0 %v843
  %1203 = vmatprep.subr.bf16.mxu0 0
  %1204 = vmatpush2.bf16.msra.mxu0 %v842
  %1205 = vmatprep.mubr.bf16.mxu0 %v397
  %1206 = vmatmul.mubr.bf16.gmra.mxu0 %v396
  %v1207 = vpop.f32.mrf.mxu0
  %v1208 = vadd.f32 %v1127, %v1207
  %v1209 = vpop.f32.mrf.mxu0
  %v1210 = vpop.f32.mrf.mxu0
  %v1211 = vadd.f32 %v1130, %v1210
  %v1212 = vpop.f32.mrf.mxu0
  %1213 = vmatprep.mubr.bf16.mxu0 %v406
  %1214 = vmatmul.mubr.bf16.gmra.mxu0 %v405
  %v1215 = vpop.f32.mrf.mxu0
  %v1216 = vadd.f32 %v1135, %v1215
  %v1217 = vpop.f32.mrf.mxu0
  %v1218 = vpop.f32.mrf.mxu0
  %v1219 = vadd.f32 %v1138, %v1218
  %v1220 = vpop.f32.mrf.mxu0
  %1221 = vmatprep.mubr.bf16.mxu0 %v415
  %1222 = vmatmul.mubr.bf16.gmra.mxu0 %v414
  %v1223 = vpop.f32.mrf.mxu0
  %v1224 = vadd.f32 %v1143, %v1223
  %v1225 = vpop.f32.mrf.mxu0
  %v1226 = vpop.f32.mrf.mxu0
  %v1227 = vadd.f32 %v1146, %v1226
  %v1228 = vpop.f32.mrf.mxu0
  %1229 = vmatprep.mubr.bf16.mxu0 %v424
  %1230 = vmatmul.mubr.bf16.gmra.mxu0 %v423
  %v1231 = vpop.f32.mrf.mxu0
  %v1232 = vadd.f32 %v1151, %v1231
  %v1233 = vpop.f32.mrf.mxu0
  %v1234 = vpop.f32.mrf.mxu0
  %v1235 = vadd.f32 %v1154, %v1234
  %v1236 = vpop.f32.mrf.mxu0
  %1237 = vmatprep.mubr.bf16.mxu0 %v433
  %1238 = vmatmul.mubr.bf16.gmra.mxu0 %v432
  %v1239 = vpop.f32.mrf.mxu0
  %v1240 = vadd.f32 %v1159, %v1239
  %v1241 = vpop.f32.mrf.mxu0
  %v1242 = vpop.f32.mrf.mxu0
  %v1243 = vadd.f32 %v1162, %v1242
  %v1244 = vpop.f32.mrf.mxu0
  %1245 = vmatprep.mubr.bf16.mxu0 %v442
  %1246 = vmatmul.mubr.bf16.gmra.mxu0 %v441
  %v1247 = vpop.f32.mrf.mxu0
  %v1248 = vadd.f32 %v1167, %v1247
  %v1249 = vpop.f32.mrf.mxu0
  %v1250 = vpop.f32.mrf.mxu0
  %v1251 = vadd.f32 %v1170, %v1250
  %v1252 = vpop.f32.mrf.mxu0
  %1253 = vdwg.mxu0
  %1254 = vmatprep.subr.bf16.mxu0 0
  %1255 = vmatpush1.bf16.msra.mxu0 %v857
  %1256 = vmatprep.subr.bf16.mxu0 0
  %1257 = vmatpush1.bf16.msra.mxu0 %v856
  %1258 = vmatprep.subr.bf16.mxu0 0
  %1259 = vmatpush1.bf16.msra.mxu0 %v855
  %1260 = vmatprep.subr.bf16.mxu0 0
  %1261 = vmatpush1.bf16.msra.mxu0 %v854
  %1262 = vmatprep.subr.bf16.mxu0 0
  %1263 = vmatpush1.bf16.msra.mxu0 %v853
  %1264 = vmatprep.subr.bf16.mxu0 0
  %1265 = vmatpush1.bf16.msra.mxu0 %v852
  %1266 = vmatprep.subr.bf16.mxu0 0
  %1267 = vmatpush1.bf16.msra.mxu0 %v851
  %1268 = vmatprep.subr.bf16.mxu0 0
  %1269 = vmatpush1.bf16.msra.mxu0 %v850
  %1270 = vmatprep.subr.bf16.mxu0 0
  %1271 = vmatpush2.bf16.msra.mxu0 0
  %1272 = vmatprep.subr.bf16.mxu0 0
  %1273 = vmatpush2.bf16.msra.mxu0 0
  %1274 = vmatprep.subr.bf16.mxu0 0
  %1275 = vmatpush2.bf16.msra.mxu0 0
  %1276 = vmatprep.subr.bf16.mxu0 0
  %1277 = vmatpush2.bf16.msra.mxu0 0
  %1278 = vmatprep.subr.bf16.mxu0 0
  %1279 = vmatpush2.bf16.msra.mxu0 0
  %1280 = vmatprep.subr.bf16.mxu0 0
  %1281 = vmatpush2.bf16.msra.mxu0 0
  %1282 = vmatprep.subr.bf16.mxu0 0
  %1283 = vmatpush2.bf16.msra.mxu0 0
  %1284 = vmatprep.subr.bf16.mxu0 0
  %1285 = vmatpush2.bf16.msra.mxu0 0
  %1286 = vmatprep.mubr.bf16.mxu0 0
  %1287 = vmatmul.mubr.bf16.gmra.mxu0 %v398
  %v1288 = vpop.f32.mrf.mxu0
  %v1289 = vadd.f32 %v1208, %v1288
  %v1290 = vpop.f32.mrf.mxu0
  %v1291 = vpop.f32.mrf.mxu0
  %v1292 = vadd.f32 %v1211, %v1291
  %v1293 = vpop.f32.mrf.mxu0
  %1294 = vmatprep.mubr.bf16.mxu0 0
  %1295 = vmatmul.mubr.bf16.gmra.mxu0 %v407
  %v1296 = vpop.f32.mrf.mxu0
  %v1297 = vadd.f32 %v1216, %v1296
  %v1298 = vpop.f32.mrf.mxu0
  %v1299 = vpop.f32.mrf.mxu0
  %v1300 = vadd.f32 %v1219, %v1299
  %v1301 = vpop.f32.mrf.mxu0
  %1302 = vmatprep.mubr.bf16.mxu0 0
  %1303 = vmatmul.mubr.bf16.gmra.mxu0 %v416
  %v1304 = vpop.f32.mrf.mxu0
  %v1305 = vadd.f32 %v1224, %v1304
  %v1306 = vpop.f32.mrf.mxu0
  %v1307 = vpop.f32.mrf.mxu0
  %v1308 = vadd.f32 %v1227, %v1307
  %v1309 = vpop.f32.mrf.mxu0
  %1310 = vmatprep.mubr.bf16.mxu0 0
  %1311 = vmatmul.mubr.bf16.gmra.mxu0 %v425
  %v1312 = vpop.f32.mrf.mxu0
  %v1313 = vadd.f32 %v1232, %v1312
  %v1314 = vpop.f32.mrf.mxu0
  %v1315 = vpop.f32.mrf.mxu0
  %v1316 = vadd.f32 %v1235, %v1315
  %v1317 = vpop.f32.mrf.mxu0
  %1318 = vmatprep.mubr.bf16.mxu0 0
  %1319 = vmatmul.mubr.bf16.gmra.mxu0 %v434
  %v1320 = vpop.f32.mrf.mxu0
  %v1321 = vadd.f32 %v1240, %v1320
  %v1322 = vpop.f32.mrf.mxu0
  %v1323 = vpop.f32.mrf.mxu0
  %v1324 = vadd.f32 %v1243, %v1323
  %v1325 = vpop.f32.mrf.mxu0
  %1326 = vmatprep.mubr.bf16.mxu0 0
  %1327 = vmatmul.mubr.bf16.gmra.mxu0 %v443
  %v1328 = vpop.f32.mrf.mxu0
  %v1329 = vadd.f32 %v1248, %v1328
  %v1330 = vpop.f32.mrf.mxu0
  %v1331 = vpop.f32.mrf.mxu0
  %v1332 = vadd.f32 %v1251, %v1331
  %v1333 = vpop.f32.mrf.mxu0
  %1334 = vdwg.mxu0
  %v1335 = vld [vmem:[%s2] sm:$0x1]
  %v1337 = vlaneseq
  %v1338 = vshrl.u32 %v1337, 7
  %v1339 = vsub.s32 0, %v1338
  %v1340 = vrot.slane %v1335, %v1339
  %v1342 = vmul.f32 %v1289, %v1340
  %v1343 = vmul.f32 %v1292, %v1340
  %v1344 = vmul.f32 %v1297, %v1340
  %v1345 = vmul.f32 %v1300, %v1340
  %v1346 = vmul.f32 %v1305, %v1340
  %v1347 = vmul.f32 %v1308, %v1340
  %v1348 = vmul.f32 %v1313, %v1340
  %v1349 = vmul.f32 %v1316, %v1340
  %v1350 = vmul.f32 %v1321, %v1340
  %v1351 = vmul.f32 %v1324, %v1340
  %v1352 = vmul.f32 %v1329, %v1340
  %v1353 = vmul.f32 %v1332, %v1340
  %v1354 = vld [vmem:[%s3] sm:$0x1]
  %v1356 = vlaneseq
  %v1357 = vshrl.u32 %v1356, 7
  %v1358 = vsub.s32 0, %v1357
  %v1359 = vrot.slane %v1354, %v1358
  %v1361 = vadd.f32 %v1342, %v1359
  %v1362 = vadd.f32 %v1343, %v1359
  %v1363 = vadd.f32 %v1344, %v1359
  %v1364 = vadd.f32 %v1345, %v1359
  %v1365 = vadd.f32 %v1346, %v1359
  %v1366 = vadd.f32 %v1347, %v1359
  %v1367 = vadd.f32 %v1348, %v1359
  %v1368 = vadd.f32 %v1349, %v1359
  %v1369 = vadd.f32 %v1350, %v1359
  %v1370 = vadd.f32 %v1351, %v1359
  %v1371 = vadd.f32 %v1352, %v1359
  %v1372 = vadd.f32 %v1353, %v1359
  %v1373 = vmax.f32 %v1361, 0.0
  %v1374 = vmax.f32 %v1362, 0.0
  %v1375 = vmax.f32 %v1363, 0.0
  %v1376 = vmax.f32 %v1364, 0.0
  %v1377 = vmax.f32 %v1365, 0.0
  %v1378 = vmax.f32 %v1366, 0.0
  %v1379 = vmax.f32 %v1367, 0.0
  %v1380 = vmax.f32 %v1368, 0.0
  %v1381 = vmax.f32 %v1369, 0.0
  %v1382 = vmax.f32 %v1370, 0.0
  %v1383 = vmax.f32 %v1371, 0.0
  %v1384 = vmax.f32 %v1372, 0.0
  %1385 = vst [vmem:[%s4] sm:$0xff] %v1373
  %1386 = vst [vmem:[%s4 + $0x8] sm:$0xff] %v1374
  %1387 = vst [vmem:[%s4 + $0x10] sm:$0xff] %v1375
  %1388 = vst [vmem:[%s4 + $0x18] sm:$0xff] %v1376
  %1389 = vst [vmem:[%s4 + $0x20] sm:$0xff] %v1377
  %1390 = vst [vmem:[%s4 + $0x28] sm:$0xff] %v1378
  %1391 = vst [vmem:[%s4 + $0x30] sm:$0xff] %v1379
  %1392 = vst [vmem:[%s4 + $0x38] sm:$0xff] %v1380
  %1393 = vst [vmem:[%s4 + $0x40] sm:$0xff] %v1381
  %1394 = vst [vmem:[%s4 + $0x48] sm:$0xff] %v1382
  %1395 = vst [vmem:[%s4 + $0x50] sm:$0xff] %v1383
  %1396 = vst [vmem:[%s4 + $0x58] sm:$0xff] %v1384
  // Predicated region
  $region18: #{mgn_forward.9} parent=0 // pred_check
    _
  $region19: #{mgn_forward.9} parent=0 // pred_check_branch
    %1398 = sbr.rel (0) target = $region21
  $region20: #{mgn_forward.9} parent=0 // pred_region
    _
  $region21: #{mgn_forward.9} parent=0 // pred_fallthru
    _
  // Predicated region
  $region22: #{mgn_forward.9} parent=0 // pred_check
    _
  $region23: #{mgn_forward.9} parent=0 // pred_check_branch
    %1400 = sbr.rel (0) target = $region25
  $region24: #{mgn_forward.9} parent=0 // pred_region
    _
  $region25: #{mgn_forward.9} parent=0 // pred_fallthru
    _

// kernel: mgn_forward.11
$region0: #{mgn_forward.11}
  #allocation0 [shape = 'u32[]', space=smem, size = 0x4, offset = 0x4, fixed_abs, tag = 'smem constant byte address 0x4 - core index']
  #allocation1 [shape = 'u32[144,128]{1,0:T(1,128)}', space=vmem, size = 0x12000, scoped, tag = 'internal scratch']
  %s0 = inlined_call_operand.vmem [shape: f32[2,12,4,128], index: 0, kind: input, shape index: {}]
  %s1 = inlined_call_operand.vmem [shape: f32[2,24,8,128], index: 1, kind: input, shape index: {}, may-alias: {1,2}]
  %s2 = inlined_call_operand.vmem [shape: f32[2,24,8,128], index: 2, kind: input, shape index: {}, may-alias: {1,2}]
  %s3 = inlined_call_operand.vmem [shape: f32[128,128], index: 3, kind: input, shape index: {}]
  %s4 = inlined_call_operand.vmem [shape: f32[1,128], index: 4, kind: input, shape index: {}]
  %s5 = inlined_call_operand.vmem [shape: f32[1,128], index: 5, kind: input, shape index: {}]
  %s6 = inlined_call_operand.vmem [shape: f32[8,128,768], index: 6, kind: input, shape index: {}]
  %s7 = inlined_call_operand.vmem [shape: f32[8,1,768], index: 7, kind: input, shape index: {}]
  %s8 = inlined_call_operand.vmem [shape: f32[16,128], index: 8, kind: output, shape index: {0}]
  %s9 = inlined_call_operand.vmem [shape: f32[8,2,768], index: 9, kind: output, shape index: {1}]
  %10 = xla_tuple %s8, %s9
  %s11 = sld [smem:[#allocation0]]
  $region50: #{mgn_forward.11} parent=0
    _
  %s13 = ssub.s32 1, %s11
  %s14 = scalar_select 0, %s13, %s11
  // Predicated region
  $region2: #{mgn_forward.11} parent=0 // pred_check
    _
  $region3: #{mgn_forward.11} parent=0 // pred_check_branch
    %16 = sbr.rel (0) target = $region5
  $region4: #{mgn_forward.11} parent=0 // pred_region
    _
  $region5: #{mgn_forward.11} parent=0 // pred_fallthru
    _
  // Predicated region
  $region6: #{mgn_forward.11} parent=0 // pred_check
    _
  $region7: #{mgn_forward.11} parent=0 // pred_check_branch
    %18 = sbr.rel (0) target = $region9
  $region8: #{mgn_forward.11} parent=0 // pred_region
    _
  $region9: #{mgn_forward.11} parent=0 // pred_fallthru
    _
  // Predicated region
  $region10: #{mgn_forward.11} parent=0 // pred_check
    _
  $region11: #{mgn_forward.11} parent=0 // pred_check_branch
    %20 = sbr.rel (0) target = $region13
  $region12: #{mgn_forward.11} parent=0 // pred_region
    _
  $region13: #{mgn_forward.11} parent=0 // pred_fallthru
    _
  // Predicated region
  $region14: #{mgn_forward.11} parent=0 // pred_check
    _
  $region15: #{mgn_forward.11} parent=0 // pred_check_branch
    %22 = sbr.rel (0) target = $region17
  $region16: #{mgn_forward.11} parent=0 // pred_region
    _
  $region17: #{mgn_forward.11} parent=0 // pred_fallthru
    _
  // Predicated region
  $region18: #{mgn_forward.11} parent=0 // pred_check
    _
  $region19: #{mgn_forward.11} parent=0 // pred_check_branch
    %24 = sbr.rel (0) target = $region21
  $region20: #{mgn_forward.11} parent=0 // pred_region
    _
  $region21: #{mgn_forward.11} parent=0 // pred_fallthru
    _
  // Predicated region
  $region22: #{mgn_forward.11} parent=0 // pred_check
    _
  $region23: #{mgn_forward.11} parent=0 // pred_check_branch
    %26 = sbr.rel (0) target = $region25
  $region24: #{mgn_forward.11} parent=0 // pred_region
    _
  $region25: #{mgn_forward.11} parent=0 // pred_fallthru
    _
  // Predicated region
  $region26: #{mgn_forward.11} parent=0 // pred_check
    _
  $region27: #{mgn_forward.11} parent=0 // pred_check_branch
    %28 = sbr.rel (0) target = $region29
  $region28: #{mgn_forward.11} parent=0 // pred_region
    _
  $region29: #{mgn_forward.11} parent=0 // pred_fallthru
    _
  // Predicated region
  $region30: #{mgn_forward.11} parent=0 // pred_check
    _
  $region31: #{mgn_forward.11} parent=0 // pred_check_branch
    %30 = sbr.rel (0) target = $region33
  $region32: #{mgn_forward.11} parent=0 // pred_region
    _
  $region33: #{mgn_forward.11} parent=0 // pred_fallthru
    _
  %v31 = vld [vmem:[%s0] sm:$0xf]
  %v32 = vld [vmem:[%s0 + $0x4] sm:$0xf]
  %v33 = vld [vmem:[%s0 + $0x8] sm:$0xf]
  %v34 = vld [vmem:[%s0 + $0xc] sm:$0xf]
  %v35 = vld [vmem:[%s0 + $0x10] sm:$0xf]
  %v36 = vld [vmem:[%s0 + $0x14] sm:$0xf]
  %v37 = vld [vmem:[%s0 + $0x18] sm:$0xf]
  %v38 = vld [vmem:[%s0 + $0x1c] sm:$0xf]
  %v39 = vld [vmem:[%s0 + $0x20] sm:$0xf]
  %v40 = vld [vmem:[%s0 + $0x24] sm:$0xf]
  %v41 = vld [vmem:[%s0 + $0x28] sm:$0xf]
  %v42 = vld [vmem:[%s0 + $0x2c] sm:$0xf]
  %v43 = vld [vmem:[%s0 + $0x30] sm:$0xf]
  %v44 = vld [vmem:[%s0 + $0x34] sm:$0xf]
  %v45 = vld [vmem:[%s0 + $0x38] sm:$0xf]
  %v46 = vld [vmem:[%s0 + $0x3c] sm:$0xf]
  %v47 = vld [vmem:[%s0 + $0x40] sm:$0xf]
  %v48 = vld [vmem:[%s0 + $0x44] sm:$0xf]
  %v49 = vld [vmem:[%s0 + $0x48] sm:$0xf]
  %v50 = vld [vmem:[%s0 + $0x4c] sm:$0xf]
  %v51 = vld [vmem:[%s0 + $0x50] sm:$0xf]
  %v52 = vld [vmem:[%s0 + $0x54] sm:$0xf]
  %v53 = vld [vmem:[%s0 + $0x58] sm:$0xf]
  %v54 = vld [vmem:[%s0 + $0x5c] sm:$0xf]
  %v55 = vld [vmem:[%s1] sm:$0xff]
  %v56 = vld [vmem:[%s1 + $0x8] sm:$0xff]
  %v57 = vld [vmem:[%s1 + $0x10] sm:$0xff]
  %v58 = vld [vmem:[%s1 + $0x18] sm:$0xff]
  %v59 = vld [vmem:[%s1 + $0x20] sm:$0xff]
  %v60 = vld [vmem:[%s1 + $0x28] sm:$0xff]
  %v61 = vld [vmem:[%s1 + $0x30] sm:$0xff]
  %v62 = vld [vmem:[%s1 + $0x38] sm:$0xff]
  %v63 = vld [vmem:[%s1 + $0x40] sm:$0xff]
  %v64 = vld [vmem:[%s1 + $0x48] sm:$0xff]
  %v65 = vld [vmem:[%s1 + $0x50] sm:$0xff]
  %v66 = vld [vmem:[%s1 + $0x58] sm:$0xff]
  %v67 = vld [vmem:[%s1 + $0x60] sm:$0xff]
  %v68 = vld [vmem:[%s1 + $0x68] sm:$0xff]
  %v69 = vld [vmem:[%s1 + $0x70] sm:$0xff]
  %v70 = vld [vmem:[%s1 + $0x78] sm:$0xff]
  %v71 = vld [vmem:[%s1 + $0x80] sm:$0xff]
  %v72 = vld [vmem:[%s1 + $0x88] sm:$0xff]
  %v73 = vld [vmem:[%s1 + $0x90] sm:$0xff]
  %v74 = vld [vmem:[%s1 + $0x98] sm:$0xff]
  %v75 = vld [vmem:[%s1 + $0xa0] sm:$0xff]
  %v76 = vld [vmem:[%s1 + $0xa8] sm:$0xff]
  %v77 = vld [vmem:[%s1 + $0xb0] sm:$0xff]
  %v78 = vld [vmem:[%s1 + $0xb8] sm:$0xff]
  %v79 = vld [vmem:[%s1 + $0xc0] sm:$0xff]
  %v80 = vld [vmem:[%s1 + $0xc8] sm:$0xff]
  %v81 = vld [vmem:[%s1 + $0xd0] sm:$0xff]
  %v82 = vld [vmem:[%s1 + $0xd8] sm:$0xff]
  %v83 = vld [vmem:[%s1 + $0xe0] sm:$0xff]
  %v84 = vld [vmem:[%s1 + $0xe8] sm:$0xff]
  %v85 = vld [vmem:[%s1 + $0xf0] sm:$0xff]
  %v86 = vld [vmem:[%s1 + $0xf8] sm:$0xff]
  %v87 = vld [vmem:[%s1 + $0x100] sm:$0xff]
  %v88 = vld [vmem:[%s1 + $0x108] sm:$0xff]
  %v89 = vld [vmem:[%s1 + $0x110] sm:$0xff]
  %v90 = vld [vmem:[%s1 + $0x118] sm:$0xff]
  %v91 = vld [vmem:[%s1 + $0x120] sm:$0xff]
  %v92 = vld [vmem:[%s1 + $0x128] sm:$0xff]
  %v93 = vld [vmem:[%s1 + $0x130] sm:$0xff]
  %v94 = vld [vmem:[%s1 + $0x138] sm:$0xff]
  %v95 = vld [vmem:[%s1 + $0x140] sm:$0xff]
  %v96 = vld [vmem:[%s1 + $0x148] sm:$0xff]
  %v97 = vld [vmem:[%s1 + $0x150] sm:$0xff]
  %v98 = vld [vmem:[%s1 + $0x158] sm:$0xff]
  %v99 = vld [vmem:[%s1 + $0x160] sm:$0xff]
  %v100 = vld [vmem:[%s1 + $0x168] sm:$0xff]
  %v101 = vld [vmem:[%s1 + $0x170] sm:$0xff]
  %v102 = vld [vmem:[%s1 + $0x178] sm:$0xff]
  %v103 = vld [vmem:[%s2] sm:$0xff]
  %v104 = vld [vmem:[%s2 + $0x8] sm:$0xff]
  %v105 = vld [vmem:[%s2 + $0x10] sm:$0xff]
  %v106 = vld [vmem:[%s2 + $0x18] sm:$0xff]
  %v107 = vld [vmem:[%s2 + $0x20] sm:$0xff]
  %v108 = vld [vmem:[%s2 + $0x28] sm:$0xff]
  %v109 = vld [vmem:[%s2 + $0x30] sm:$0xff]
  %v110 = vld [vmem:[%s2 + $0x38] sm:$0xff]
  %v111 = vld [vmem:[%s2 + $0x40] sm:$0xff]
  %v112 = vld [vmem:[%s2 + $0x48] sm:$0xff]
  %v113 = vld [vmem:[%s2 + $0x50] sm:$0xff]
  %v114 = vld [vmem:[%s2 + $0x58] sm:$0xff]
  %v115 = vld [vmem:[%s2 + $0x60] sm:$0xff]
  %v116 = vld [vmem:[%s2 + $0x68] sm:$0xff]
  %v117 = vld [vmem:[%s2 + $0x70] sm:$0xff]
  %v118 = vld [vmem:[%s2 + $0x78] sm:$0xff]
  %v119 = vld [vmem:[%s2 + $0x80] sm:$0xff]
  %v120 = vld [vmem:[%s2 + $0x88] sm:$0xff]
  %v121 = vld [vmem:[%s2 + $0x90] sm:$0xff]
  %v122 = vld [vmem:[%s2 + $0x98] sm:$0xff]
  %v123 = vld [vmem:[%s2 + $0xa0] sm:$0xff]
  %v124 = vld [vmem:[%s2 + $0xa8] sm:$0xff]
  %v125 = vld [vmem:[%s2 + $0xb0] sm:$0xff]
  %v126 = vld [vmem:[%s2 + $0xb8] sm:$0xff]
  %v127 = vld [vmem:[%s2 + $0xc0] sm:$0xff]
  %v128 = vld [vmem:[%s2 + $0xc8] sm:$0xff]
  %v129 = vld [vmem:[%s2 + $0xd0] sm:$0xff]
  %v130 = vld [vmem:[%s2 + $0xd8] sm:$0xff]
  %v131 = vld [vmem:[%s2 + $0xe0] sm:$0xff]
  %v132 = vld [vmem:[%s2 + $0xe8] sm:$0xff]
  %v133 = vld [vmem:[%s2 + $0xf0] sm:$0xff]
  %v134 = vld [vmem:[%s2 + $0xf8] sm:$0xff]
  %v135 = vld [vmem:[%s2 + $0x100] sm:$0xff]
  %v136 = vld [vmem:[%s2 + $0x108] sm:$0xff]
  %v137 = vld [vmem:[%s2 + $0x110] sm:$0xff]
  %v138 = vld [vmem:[%s2 + $0x118] sm:$0xff]
  %v139 = vld [vmem:[%s2 + $0x120] sm:$0xff]
  %v140 = vld [vmem:[%s2 + $0x128] sm:$0xff]
  %v141 = vld [vmem:[%s2 + $0x130] sm:$0xff]
  %v142 = vld [vmem:[%s2 + $0x138] sm:$0xff]
  %v143 = vld [vmem:[%s2 + $0x140] sm:$0xff]
  %v144 = vld [vmem:[%s2 + $0x148] sm:$0xff]
  %v145 = vld [vmem:[%s2 + $0x150] sm:$0xff]
  %v146 = vld [vmem:[%s2 + $0x158] sm:$0xff]
  %v147 = vld [vmem:[%s2 + $0x160] sm:$0xff]
  %v148 = vld [vmem:[%s2 + $0x168] sm:$0xff]
  %v149 = vld [vmem:[%s2 + $0x170] sm:$0xff]
  %v150 = vld [vmem:[%s2 + $0x178] sm:$0xff]
  %vm151 = vcmask 1043456
  %v152 = vsel %vm151, %v31, -inf
  %v153 = vrot.slane %v152, 4
  %v154 = vmax.f32 %v152, %v153
  %v155 = vrot.slane %v154, 2
  %v156 = vmax.f32 %v154, %v155
  %v157 = vrot.slane %v156, 1
  %v158 = vmax.f32 %v156, %v157
  %v159 = vsel %vm151, %v32, -inf
  %v160 = vrot.slane %v159, 4
  %v161 = vmax.f32 %v159, %v160
  %v162 = vrot.slane %v161, 2
  %v163 = vmax.f32 %v161, %v162
  %v164 = vrot.slane %v163, 1
  %v165 = vmax.f32 %v163, %v164
  %v166 = vsel %vm151, %v33, -inf
  %v167 = vrot.slane %v166, 4
  %v168 = vmax.f32 %v166, %v167
  %v169 = vrot.slane %v168, 2
  %v170 = vmax.f32 %v168, %v169
  %v171 = vrot.slane %v170, 1
  %v172 = vmax.f32 %v170, %v171
  %v173 = vsel %vm151, %v34, -inf
  %v174 = vrot.slane %v173, 4
  %v175 = vmax.f32 %v173, %v174
  %v176 = vrot.slane %v175, 2
  %v177 = vmax.f32 %v175, %v176
  %v178 = vrot.slane %v177, 1
  %v179 = vmax.f32 %v177, %v178
  %v180 = vsel %vm151, %v35, -inf
  %v181 = vrot.slane %v180, 4
  %v182 = vmax.f32 %v180, %v181
  %v183 = vrot.slane %v182, 2
  %v184 = vmax.f32 %v182, %v183
  %v185 = vrot.slane %v184, 1
  %v186 = vmax.f32 %v184, %v185
  %v187 = vsel %vm151, %v36, -inf
  %v188 = vrot.slane %v187, 4
  %v189 = vmax.f32 %v187, %v188
  %v190 = vrot.slane %v189, 2
  %v191 = vmax.f32 %v189, %v190
  %v192 = vrot.slane %v191, 1
  %v193 = vmax.f32 %v191, %v192
  %v194 = vsel %vm151, %v37, -inf
  %v195 = vrot.slane %v194, 4
  %v196 = vmax.f32 %v194, %v195
  %v197 = vrot.slane %v196, 2
  %v198 = vmax.f32 %v196, %v197
  %v199 = vrot.slane %v198, 1
  %v200 = vmax.f32 %v198, %v199
  %v201 = vsel %vm151, %v38, -inf
  %v202 = vrot.slane %v201, 4
  %v203 = vmax.f32 %v201, %v202
  %v204 = vrot.slane %v203, 2
  %v205 = vmax.f32 %v203, %v204
  %v206 = vrot.slane %v205, 1
  %v207 = vmax.f32 %v205, %v206
  %v208 = vsel %vm151, %v39, -inf
  %v209 = vrot.slane %v208, 4
  %v210 = vmax.f32 %v208, %v209
  %v211 = vrot.slane %v210, 2
  %v212 = vmax.f32 %v210, %v211
  %v213 = vrot.slane %v212, 1
  %v214 = vmax.f32 %v212, %v213
  %v215 = vsel %vm151, %v40, -inf
  %v216 = vrot.slane %v215, 4
  %v217 = vmax.f32 %v215, %v216
  %v218 = vrot.slane %v217, 2
  %v219 = vmax.f32 %v217, %v218
  %v220 = vrot.slane %v219, 1
  %v221 = vmax.f32 %v219, %v220
  %v222 = vsel %vm151, %v41, -inf
  %v223 = vrot.slane %v222, 4
  %v224 = vmax.f32 %v222, %v223
  %v225 = vrot.slane %v224, 2
  %v226 = vmax.f32 %v224, %v225
  %v227 = vrot.slane %v226, 1
  %v228 = vmax.f32 %v226, %v227
  %v229 = vsel %vm151, %v42, -inf
  %v230 = vrot.slane %v229, 4
  %v231 = vmax.f32 %v229, %v230
  %v232 = vrot.slane %v231, 2
  %v233 = vmax.f32 %v231, %v232
  %v234 = vrot.slane %v233, 1
  %v235 = vmax.f32 %v233, %v234
  %v236 = vsel %vm151, %v43, -inf
  %v237 = vrot.slane %v236, 4
  %v238 = vmax.f32 %v236, %v237
  %v239 = vrot.slane %v238, 2
  %v240 = vmax.f32 %v238, %v239
  %v241 = vrot.slane %v240, 1
  %v242 = vmax.f32 %v240, %v241
  %v243 = vsel %vm151, %v44, -inf
  %v244 = vrot.slane %v243, 4
  %v245 = vmax.f32 %v243, %v244
  %v246 = vrot.slane %v245, 2
  %v247 = vmax.f32 %v245, %v246
  %v248 = vrot.slane %v247, 1
  %v249 = vmax.f32 %v247, %v248
  %v250 = vsel %vm151, %v45, -inf
  %v251 = vrot.slane %v250, 4
  %v252 = vmax.f32 %v250, %v251
  %v253 = vrot.slane %v252, 2
  %v254 = vmax.f32 %v252, %v253
  %v255 = vrot.slane %v254, 1
  %v256 = vmax.f32 %v254, %v255
  %v257 = vsel %vm151, %v46, -inf
  %v258 = vrot.slane %v257, 4
  %v259 = vmax.f32 %v257, %v258
  %v260 = vrot.slane %v259, 2
  %v261 = vmax.f32 %v259, %v260
  %v262 = vrot.slane %v261, 1
  %v263 = vmax.f32 %v261, %v262
  %v264 = vsel %vm151, %v47, -inf
  %v265 = vrot.slane %v264, 4
  %v266 = vmax.f32 %v264, %v265
  %v267 = vrot.slane %v266, 2
  %v268 = vmax.f32 %v266, %v267
  %v269 = vrot.slane %v268, 1
  %v270 = vmax.f32 %v268, %v269
  %v271 = vsel %vm151, %v48, -inf
  %v272 = vrot.slane %v271, 4
  %v273 = vmax.f32 %v271, %v272
  %v274 = vrot.slane %v273, 2
  %v275 = vmax.f32 %v273, %v274
  %v276 = vrot.slane %v275, 1
  %v277 = vmax.f32 %v275, %v276
  %v278 = vsel %vm151, %v49, -inf
  %v279 = vrot.slane %v278, 4
  %v280 = vmax.f32 %v278, %v279
  %v281 = vrot.slane %v280, 2
  %v282 = vmax.f32 %v280, %v281
  %v283 = vrot.slane %v282, 1
  %v284 = vmax.f32 %v282, %v283
  %v285 = vsel %vm151, %v50, -inf
  %v286 = vrot.slane %v285, 4
  %v287 = vmax.f32 %v285, %v286
  %v288 = vrot.slane %v287, 2
  %v289 = vmax.f32 %v287, %v288
  %v290 = vrot.slane %v289, 1
  %v291 = vmax.f32 %v289, %v290
  %v292 = vsel %vm151, %v51, -inf
  %v293 = vrot.slane %v292, 4
  %v294 = vmax.f32 %v292, %v293
  %v295 = vrot.slane %v294, 2
  %v296 = vmax.f32 %v294, %v295
  %v297 = vrot.slane %v296, 1
  %v298 = vmax.f32 %v296, %v297
  %v299 = vsel %vm151, %v52, -inf
  %v300 = vrot.slane %v299, 4
  %v301 = vmax.f32 %v299, %v300
  %v302 = vrot.slane %v301, 2
  %v303 = vmax.f32 %v301, %v302
  %v304 = vrot.slane %v303, 1
  %v305 = vmax.f32 %v303, %v304
  %v306 = vsel %vm151, %v53, -inf
  %v307 = vrot.slane %v306, 4
  %v308 = vmax.f32 %v306, %v307
  %v309 = vrot.slane %v308, 2
  %v310 = vmax.f32 %v308, %v309
  %v311 = vrot.slane %v310, 1
  %v312 = vmax.f32 %v310, %v311
  %v313 = vsel %vm151, %v54, -inf
  %v314 = vrot.slane %v313, 4
  %v315 = vmax.f32 %v313, %v314
  %v316 = vrot.slane %v315, 2
  %v317 = vmax.f32 %v315, %v316
  %v318 = vrot.slane %v317, 1
  %v319 = vmax.f32 %v317, %v318
  %v320 = vmax.f32 %v158, %v172
  %v321 = vmax.f32 %v165, %v179
  %v322 = vmax.f32 %v320, %v186
  %v323 = vmax.f32 %v321, %v193
  %v324 = vmax.f32 %v322, %v200
  %v325 = vmax.f32 %v323, %v207
  %v326 = vmax.f32 %v324, %v214
  %v327 = vmax.f32 %v325, %v221
  %v328 = vmax.f32 %v326, %v228
  %v329 = vmax.f32 %v327, %v235
  %v330 = vmax.f32 %v328, %v329
  %v331 = vmax.f32 %v242, %v256
  %v332 = vmax.f32 %v249, %v263
  %v333 = vmax.f32 %v331, %v270
  %v334 = vmax.f32 %v332, %v277
  %v335 = vmax.f32 %v333, %v284
  %v336 = vmax.f32 %v334, %v291
  %v337 = vmax.f32 %v335, %v298
  %v338 = vmax.f32 %v336, %v305
  %v339 = vmax.f32 %v337, %v312
  %v340 = vmax.f32 %v338, %v319
  %v341 = vmax.f32 %v339, %v340
  %v342 = vrot.slane %v55, 4
  %v343 = vmax.f32 %v55, %v342
  %v344 = vrot.slane %v343, 2
  %v345 = vmax.f32 %v343, %v344
  %v346 = vrot.slane %v345, 1
  %v347 = vmax.f32 %v345, %v346
  %v348 = vrot.slane %v56, 4
  %v349 = vmax.f32 %v56, %v348
  %v350 = vrot.slane %v349, 2
  %v351 = vmax.f32 %v349, %v350
  %v352 = vrot.slane %v351, 1
  %v353 = vmax.f32 %v351, %v352
  %v354 = vrot.slane %v57, 4
  %v355 = vmax.f32 %v57, %v354
  %v356 = vrot.slane %v355, 2
  %v357 = vmax.f32 %v355, %v356
  %v358 = vrot.slane %v357, 1
  %v359 = vmax.f32 %v357, %v358
  %v360 = vrot.slane %v58, 4
  %v361 = vmax.f32 %v58, %v360
  %v362 = vrot.slane %v361, 2
  %v363 = vmax.f32 %v361, %v362
  %v364 = vrot.slane %v363, 1
  %v365 = vmax.f32 %v363, %v364
  %v366 = vrot.slane %v59, 4
  %v367 = vmax.f32 %v59, %v366
  %v368 = vrot.slane %v367, 2
  %v369 = vmax.f32 %v367, %v368
  %v370 = vrot.slane %v369, 1
  %v371 = vmax.f32 %v369, %v370
  %v372 = vrot.slane %v60, 4
  %v373 = vmax.f32 %v60, %v372
  %v374 = vrot.slane %v373, 2
  %v375 = vmax.f32 %v373, %v374
  %v376 = vrot.slane %v375, 1
  %v377 = vmax.f32 %v375, %v376
  %v378 = vrot.slane %v61, 4
  %v379 = vmax.f32 %v61, %v378
  %v380 = vrot.slane %v379, 2
  %v381 = vmax.f32 %v379, %v380
  %v382 = vrot.slane %v381, 1
  %v383 = vmax.f32 %v381, %v382
  %v384 = vrot.slane %v62, 4
  %v385 = vmax.f32 %v62, %v384
  %v386 = vrot.slane %v385, 2
  %v387 = vmax.f32 %v385, %v386
  %v388 = vrot.slane %v387, 1
  %v389 = vmax.f32 %v387, %v388
  %v390 = vrot.slane %v63, 4
  %v391 = vmax.f32 %v63, %v390
  %v392 = vrot.slane %v391, 2
  %v393 = vmax.f32 %v391, %v392
  %v394 = vrot.slane %v393, 1
  %v395 = vmax.f32 %v393, %v394
  %v396 = vrot.slane %v64, 4
  %v397 = vmax.f32 %v64, %v396
  %v398 = vrot.slane %v397, 2
  %v399 = vmax.f32 %v397, %v398
  %v400 = vrot.slane %v399, 1
  %v401 = vmax.f32 %v399, %v400
  %v402 = vrot.slane %v65, 4
  %v403 = vmax.f32 %v65, %v402
  %v404 = vrot.slane %v403, 2
  %v405 = vmax.f32 %v403, %v404
  %v406 = vrot.slane %v405, 1
  %v407 = vmax.f32 %v405, %v406
  %v408 = vrot.slane %v66, 4
  %v409 = vmax.f32 %v66, %v408
  %v410 = vrot.slane %v409, 2
  %v411 = vmax.f32 %v409, %v410
  %v412 = vrot.slane %v411, 1
  %v413 = vmax.f32 %v411, %v412
  %v414 = vrot.slane %v67, 4
  %v415 = vmax.f32 %v67, %v414
  %v416 = vrot.slane %v415, 2
  %v417 = vmax.f32 %v415, %v416
  %v418 = vrot.slane %v417, 1
  %v419 = vmax.f32 %v417, %v418
  %v420 = vrot.slane %v68, 4
  %v421 = vmax.f32 %v68, %v420
  %v422 = vrot.slane %v421, 2
  %v423 = vmax.f32 %v421, %v422
  %v424 = vrot.slane %v423, 1
  %v425 = vmax.f32 %v423, %v424
  %v426 = vrot.slane %v69, 4
  %v427 = vmax.f32 %v69, %v426
  %v428 = vrot.slane %v427, 2
  %v429 = vmax.f32 %v427, %v428
  %v430 = vrot.slane %v429, 1
  %v431 = vmax.f32 %v429, %v430
  %v432 = vrot.slane %v70, 4
  %v433 = vmax.f32 %v70, %v432
  %v434 = vrot.slane %v433, 2
  %v435 = vmax.f32 %v433, %v434
  %v436 = vrot.slane %v435, 1
  %v437 = vmax.f32 %v435, %v436
  %v438 = vrot.slane %v71, 4
  %v439 = vmax.f32 %v71, %v438
  %v440 = vrot.slane %v439, 2
  %v441 = vmax.f32 %v439, %v440
  %v442 = vrot.slane %v441, 1
  %v443 = vmax.f32 %v441, %v442
  %v444 = vrot.slane %v72, 4
  %v445 = vmax.f32 %v72, %v444
  %v446 = vrot.slane %v445, 2
  %v447 = vmax.f32 %v445, %v446
  %v448 = vrot.slane %v447, 1
  %v449 = vmax.f32 %v447, %v448
  %v450 = vrot.slane %v73, 4
  %v451 = vmax.f32 %v73, %v450
  %v452 = vrot.slane %v451, 2
  %v453 = vmax.f32 %v451, %v452
  %v454 = vrot.slane %v453, 1
  %v455 = vmax.f32 %v453, %v454
  %v456 = vrot.slane %v74, 4
  %v457 = vmax.f32 %v74, %v456
  %v458 = vrot.slane %v457, 2
  %v459 = vmax.f32 %v457, %v458
  %v460 = vrot.slane %v459, 1
  %v461 = vmax.f32 %v459, %v460
  %v462 = vrot.slane %v75, 4
  %v463 = vmax.f32 %v75, %v462
  %v464 = vrot.slane %v463, 2
  %v465 = vmax.f32 %v463, %v464
  %v466 = vrot.slane %v465, 1
  %v467 = vmax.f32 %v465, %v466
  %v468 = vrot.slane %v76, 4
  %v469 = vmax.f32 %v76, %v468
  %v470 = vrot.slane %v469, 2
  %v471 = vmax.f32 %v469, %v470
  %v472 = vrot.slane %v471, 1
  %v473 = vmax.f32 %v471, %v472
  %v474 = vrot.slane %v77, 4
  %v475 = vmax.f32 %v77, %v474
  %v476 = vrot.slane %v475, 2
  %v477 = vmax.f32 %v475, %v476
  %v478 = vrot.slane %v477, 1
  %v479 = vmax.f32 %v477, %v478
  %v480 = vrot.slane %v78, 4
  %v481 = vmax.f32 %v78, %v480
  %v482 = vrot.slane %v481, 2
  %v483 = vmax.f32 %v481, %v482
  %v484 = vrot.slane %v483, 1
  %v485 = vmax.f32 %v483, %v484
  %v486 = vrot.slane %v79, 4
  %v487 = vmax.f32 %v79, %v486
  %v488 = vrot.slane %v487, 2
  %v489 = vmax.f32 %v487, %v488
  %v490 = vrot.slane %v489, 1
  %v491 = vmax.f32 %v489, %v490
  %v492 = vrot.slane %v80, 4
  %v493 = vmax.f32 %v80, %v492
  %v494 = vrot.slane %v493, 2
  %v495 = vmax.f32 %v493, %v494
  %v496 = vrot.slane %v495, 1
  %v497 = vmax.f32 %v495, %v496
  %v498 = vrot.slane %v81, 4
  %v499 = vmax.f32 %v81, %v498
  %v500 = vrot.slane %v499, 2
  %v501 = vmax.f32 %v499, %v500
  %v502 = vrot.slane %v501, 1
  %v503 = vmax.f32 %v501, %v502
  %v504 = vrot.slane %v82, 4
  %v505 = vmax.f32 %v82, %v504
  %v506 = vrot.slane %v505, 2
  %v507 = vmax.f32 %v505, %v506
  %v508 = vrot.slane %v507, 1
  %v509 = vmax.f32 %v507, %v508
  %v510 = vrot.slane %v83, 4
  %v511 = vmax.f32 %v83, %v510
  %v512 = vrot.slane %v511, 2
  %v513 = vmax.f32 %v511, %v512
  %v514 = vrot.slane %v513, 1
  %v515 = vmax.f32 %v513, %v514
  %v516 = vrot.slane %v84, 4
  %v517 = vmax.f32 %v84, %v516
  %v518 = vrot.slane %v517, 2
  %v519 = vmax.f32 %v517, %v518
  %v520 = vrot.slane %v519, 1
  %v521 = vmax.f32 %v519, %v520
  %v522 = vrot.slane %v85, 4
  %v523 = vmax.f32 %v85, %v522
  %v524 = vrot.slane %v523, 2
  %v525 = vmax.f32 %v523, %v524
  %v526 = vrot.slane %v525, 1
  %v527 = vmax.f32 %v525, %v526
  %v528 = vrot.slane %v86, 4
  %v529 = vmax.f32 %v86, %v528
  %v530 = vrot.slane %v529, 2
  %v531 = vmax.f32 %v529, %v530
  %v532 = vrot.slane %v531, 1
  %v533 = vmax.f32 %v531, %v532
  %v534 = vrot.slane %v87, 4
  %v535 = vmax.f32 %v87, %v534
  %v536 = vrot.slane %v535, 2
  %v537 = vmax.f32 %v535, %v536
  %v538 = vrot.slane %v537, 1
  %v539 = vmax.f32 %v537, %v538
  %v540 = vrot.slane %v88, 4
  %v541 = vmax.f32 %v88, %v540
  %v542 = vrot.slane %v541, 2
  %v543 = vmax.f32 %v541, %v542
  %v544 = vrot.slane %v543, 1
  %v545 = vmax.f32 %v543, %v544
  %v546 = vrot.slane %v89, 4
  %v547 = vmax.f32 %v89, %v546
  %v548 = vrot.slane %v547, 2
  %v549 = vmax.f32 %v547, %v548
  %v550 = vrot.slane %v549, 1
  %v551 = vmax.f32 %v549, %v550
  %v552 = vrot.slane %v90, 4
  %v553 = vmax.f32 %v90, %v552
  %v554 = vrot.slane %v553, 2
  %v555 = vmax.f32 %v553, %v554
  %v556 = vrot.slane %v555, 1
  %v557 = vmax.f32 %v555, %v556
  %v558 = vrot.slane %v91, 4
  %v559 = vmax.f32 %v91, %v558
  %v560 = vrot.slane %v559, 2
  %v561 = vmax.f32 %v559, %v560
  %v562 = vrot.slane %v561, 1
  %v563 = vmax.f32 %v561, %v562
  %v564 = vrot.slane %v92, 4
  %v565 = vmax.f32 %v92, %v564
  %v566 = vrot.slane %v565, 2
  %v567 = vmax.f32 %v565, %v566
  %v568 = vrot.slane %v567, 1
  %v569 = vmax.f32 %v567, %v568
  %v570 = vrot.slane %v93, 4
  %v571 = vmax.f32 %v93, %v570
  %v572 = vrot.slane %v571, 2
  %v573 = vmax.f32 %v571, %v572
  %v574 = vrot.slane %v573, 1
  %v575 = vmax.f32 %v573, %v574
  %v576 = vrot.slane %v94, 4
  %v577 = vmax.f32 %v94, %v576
  %v578 = vrot.slane %v577, 2
  %v579 = vmax.f32 %v577, %v578
  %v580 = vrot.slane %v579, 1
  %v581 = vmax.f32 %v579, %v580
  %v582 = vrot.slane %v95, 4
  %v583 = vmax.f32 %v95, %v582
  %v584 = vrot.slane %v583, 2
  %v585 = vmax.f32 %v583, %v584
  %v586 = vrot.slane %v585, 1
  %v587 = vmax.f32 %v585, %v586
  %v588 = vrot.slane %v96, 4
  %v589 = vmax.f32 %v96, %v588
  %v590 = vrot.slane %v589, 2
  %v591 = vmax.f32 %v589, %v590
  %v592 = vrot.slane %v591, 1
  %v593 = vmax.f32 %v591, %v592
  %v594 = vrot.slane %v97, 4
  %v595 = vmax.f32 %v97, %v594
  %v596 = vrot.slane %v595, 2
  %v597 = vmax.f32 %v595, %v596
  %v598 = vrot.slane %v597, 1
  %v599 = vmax.f32 %v597, %v598
  %v600 = vrot.slane %v98, 4
  %v601 = vmax.f32 %v98, %v600
  %v602 = vrot.slane %v601, 2
  %v603 = vmax.f32 %v601, %v602
  %v604 = vrot.slane %v603, 1
  %v605 = vmax.f32 %v603, %v604
  %v606 = vrot.slane %v99, 4
  %v607 = vmax.f32 %v99, %v606
  %v608 = vrot.slane %v607, 2
  %v609 = vmax.f32 %v607, %v608
  %v610 = vrot.slane %v609, 1
  %v611 = vmax.f32 %v609, %v610
  %v612 = vrot.slane %v100, 4
  %v613 = vmax.f32 %v100, %v612
  %v614 = vrot.slane %v613, 2
  %v615 = vmax.f32 %v613, %v614
  %v616 = vrot.slane %v615, 1
  %v617 = vmax.f32 %v615, %v616
  %v618 = vrot.slane %v101, 4
  %v619 = vmax.f32 %v101, %v618
  %v620 = vrot.slane %v619, 2
  %v621 = vmax.f32 %v619, %v620
  %v622 = vrot.slane %v621, 1
  %v623 = vmax.f32 %v621, %v622
  %v624 = vrot.slane %v102, 4
  %v625 = vmax.f32 %v102, %v624
  %v626 = vrot.slane %v625, 2
  %v627 = vmax.f32 %v625, %v626
  %v628 = vrot.slane %v627, 1
  %v629 = vmax.f32 %v627, %v628
  %v630 = vmax.f32 %v347, %v359
  %v631 = vmax.f32 %v353, %v365
  %v632 = vmax.f32 %v630, %v371
  %v633 = vmax.f32 %v631, %v377
  %v634 = vmax.f32 %v632, %v383
  %v635 = vmax.f32 %v633, %v389
  %v636 = vmax.f32 %v634, %v395
  %v637 = vmax.f32 %v635, %v401
  %v638 = vmax.f32 %v636, %v407
  %v639 = vmax.f32 %v637, %v413
  %v640 = vmax.f32 %v638, %v419
  %v641 = vmax.f32 %v639, %v425
  %v642 = vmax.f32 %v640, %v431
  %v643 = vmax.f32 %v641, %v437
  %v644 = vmax.f32 %v642, %v443
  %v645 = vmax.f32 %v643, %v449
  %v646 = vmax.f32 %v644, %v455
  %v647 = vmax.f32 %v645, %v461
  %v648 = vmax.f32 %v646, %v467
  %v649 = vmax.f32 %v647, %v473
  %v650 = vmax.f32 %v648, %v479
  %v651 = vmax.f32 %v649, %v485
  %v652 = vmax.f32 %v650, %v651
  %v653 = vmax.f32 %v491, %v503
  %v654 = vmax.f32 %v497, %v509
  %v655 = vmax.f32 %v653, %v515
  %v656 = vmax.f32 %v654, %v521
  %v657 = vmax.f32 %v655, %v527
  %v658 = vmax.f32 %v656, %v533
  %v659 = vmax.f32 %v657, %v539
  %v660 = vmax.f32 %v658, %v545
  %v661 = vmax.f32 %v659, %v551
  %v662 = vmax.f32 %v660, %v557
  %v663 = vmax.f32 %v661, %v563
  %v664 = vmax.f32 %v662, %v569
  %v665 = vmax.f32 %v663, %v575
  %v666 = vmax.f32 %v664, %v581
  %v667 = vmax.f32 %v665, %v587
  %v668 = vmax.f32 %v666, %v593
  %v669 = vmax.f32 %v667, %v599
  %v670 = vmax.f32 %v668, %v605
  %v671 = vmax.f32 %v669, %v611
  %v672 = vmax.f32 %v670, %v617
  %v673 = vmax.f32 %v671, %v623
  %v674 = vmax.f32 %v672, %v629
  %v675 = vmax.f32 %v673, %v674
  %v676 = vrot.slane %v103, 4
  %v677 = vmax.f32 %v103, %v676
  %v678 = vrot.slane %v677, 2
  %v679 = vmax.f32 %v677, %v678
  %v680 = vrot.slane %v679, 1
  %v681 = vmax.f32 %v679, %v680
  %v682 = vrot.slane %v104, 4
  %v683 = vmax.f32 %v104, %v682
  %v684 = vrot.slane %v683, 2
  %v685 = vmax.f32 %v683, %v684
  %v686 = vrot.slane %v685, 1
  %v687 = vmax.f32 %v685, %v686
  %v688 = vrot.slane %v105, 4
  %v689 = vmax.f32 %v105, %v688
  %v690 = vrot.slane %v689, 2
  %v691 = vmax.f32 %v689, %v690
  %v692 = vrot.slane %v691, 1
  %v693 = vmax.f32 %v691, %v692
  %v694 = vrot.slane %v106, 4
  %v695 = vmax.f32 %v106, %v694
  %v696 = vrot.slane %v695, 2
  %v697 = vmax.f32 %v695, %v696
  %v698 = vrot.slane %v697, 1
  %v699 = vmax.f32 %v697, %v698
  %v700 = vrot.slane %v107, 4
  %v701 = vmax.f32 %v107, %v700
  %v702 = vrot.slane %v701, 2
  %v703 = vmax.f32 %v701, %v702
  %v704 = vrot.slane %v703, 1
  %v705 = vmax.f32 %v703, %v704
  %v706 = vrot.slane %v108, 4
  %v707 = vmax.f32 %v108, %v706
  %v708 = vrot.slane %v707, 2
  %v709 = vmax.f32 %v707, %v708
  %v710 = vrot.slane %v709, 1
  %v711 = vmax.f32 %v709, %v710
  %v712 = vrot.slane %v109, 4
  %v713 = vmax.f32 %v109, %v712
  %v714 = vrot.slane %v713, 2
  %v715 = vmax.f32 %v713, %v714
  %v716 = vrot.slane %v715, 1
  %v717 = vmax.f32 %v715, %v716
  %v718 = vrot.slane %v110, 4
  %v719 = vmax.f32 %v110, %v718
  %v720 = vrot.slane %v719, 2
  %v721 = vmax.f32 %v719, %v720
  %v722 = vrot.slane %v721, 1
  %v723 = vmax.f32 %v721, %v722
  %v724 = vrot.slane %v111, 4
  %v725 = vmax.f32 %v111, %v724
  %v726 = vrot.slane %v725, 2
  %v727 = vmax.f32 %v725, %v726
  %v728 = vrot.slane %v727, 1
  %v729 = vmax.f32 %v727, %v728
  %v730 = vrot.slane %v112, 4
  %v731 = vmax.f32 %v112, %v730
  %v732 = vrot.slane %v731, 2
  %v733 = vmax.f32 %v731, %v732
  %v734 = vrot.slane %v733, 1
  %v735 = vmax.f32 %v733, %v734
  %v736 = vrot.slane %v113, 4
  %v737 = vmax.f32 %v113, %v736
  %v738 = vrot.slane %v737, 2
  %v739 = vmax.f32 %v737, %v738
  %v740 = vrot.slane %v739, 1
  %v741 = vmax.f32 %v739, %v740
  %v742 = vrot.slane %v114, 4
  %v743 = vmax.f32 %v114, %v742
  %v744 = vrot.slane %v743, 2
  %v745 = vmax.f32 %v743, %v744
  %v746 = vrot.slane %v745, 1
  %v747 = vmax.f32 %v745, %v746
  %v748 = vrot.slane %v115, 4
  %v749 = vmax.f32 %v115, %v748
  %v750 = vrot.slane %v749, 2
  %v751 = vmax.f32 %v749, %v750
  %v752 = vrot.slane %v751, 1
  %v753 = vmax.f32 %v751, %v752
  %v754 = vrot.slane %v116, 4
  %v755 = vmax.f32 %v116, %v754
  %v756 = vrot.slane %v755, 2
  %v757 = vmax.f32 %v755, %v756
  %v758 = vrot.slane %v757, 1
  %v759 = vmax.f32 %v757, %v758
  %v760 = vrot.slane %v117, 4
  %v761 = vmax.f32 %v117, %v760
  %v762 = vrot.slane %v761, 2
  %v763 = vmax.f32 %v761, %v762
  %v764 = vrot.slane %v763, 1
  %v765 = vmax.f32 %v763, %v764
  %v766 = vrot.slane %v118, 4
  %v767 = vmax.f32 %v118, %v766
  %v768 = vrot.slane %v767, 2
  %v769 = vmax.f32 %v767, %v768
  %v770 = vrot.slane %v769, 1
  %v771 = vmax.f32 %v769, %v770
  %v772 = vrot.slane %v119, 4
  %v773 = vmax.f32 %v119, %v772
  %v774 = vrot.slane %v773, 2
  %v775 = vmax.f32 %v773, %v774
  %v776 = vrot.slane %v775, 1
  %v777 = vmax.f32 %v775, %v776
  %v778 = vrot.slane %v120, 4
  %v779 = vmax.f32 %v120, %v778
  %v780 = vrot.slane %v779, 2
  %v781 = vmax.f32 %v779, %v780
  %v782 = vrot.slane %v781, 1
  %v783 = vmax.f32 %v781, %v782
  %v784 = vrot.slane %v121, 4
  %v785 = vmax.f32 %v121, %v784
  %v786 = vrot.slane %v785, 2
  %v787 = vmax.f32 %v785, %v786
  %v788 = vrot.slane %v787, 1
  %v789 = vmax.f32 %v787, %v788
  %v790 = vrot.slane %v122, 4
  %v791 = vmax.f32 %v122, %v790
  %v792 = vrot.slane %v791, 2
  %v793 = vmax.f32 %v791, %v792
  %v794 = vrot.slane %v793, 1
  %v795 = vmax.f32 %v793, %v794
  %v796 = vrot.slane %v123, 4
  %v797 = vmax.f32 %v123, %v796
  %v798 = vrot.slane %v797, 2
  %v799 = vmax.f32 %v797, %v798
  %v800 = vrot.slane %v799, 1
  %v801 = vmax.f32 %v799, %v800
  %v802 = vrot.slane %v124, 4
  %v803 = vmax.f32 %v124, %v802
  %v804 = vrot.slane %v803, 2
  %v805 = vmax.f32 %v803, %v804
  %v806 = vrot.slane %v805, 1
  %v807 = vmax.f32 %v805, %v806
  %v808 = vrot.slane %v125, 4
  %v809 = vmax.f32 %v125, %v808
  %v810 = vrot.slane %v809, 2
  %v811 = vmax.f32 %v809, %v810
  %v812 = vrot.slane %v811, 1
  %v813 = vmax.f32 %v811, %v812
  %v814 = vrot.slane %v126, 4
  %v815 = vmax.f32 %v126, %v814
  %v816 = vrot.slane %v815, 2
  %v817 = vmax.f32 %v815, %v816
  %v818 = vrot.slane %v817, 1
  %v819 = vmax.f32 %v817, %v818
  %v820 = vrot.slane %v127, 4
  %v821 = vmax.f32 %v127, %v820
  %v822 = vrot.slane %v821, 2
  %v823 = vmax.f32 %v821, %v822
  %v824 = vrot.slane %v823, 1
  %v825 = vmax.f32 %v823, %v824
  %v826 = vrot.slane %v128, 4
  %v827 = vmax.f32 %v128, %v826
  %v828 = vrot.slane %v827, 2
  %v829 = vmax.f32 %v827, %v828
  %v830 = vrot.slane %v829, 1
  %v831 = vmax.f32 %v829, %v830
  %v832 = vrot.slane %v129, 4
  %v833 = vmax.f32 %v129, %v832
  %v834 = vrot.slane %v833, 2
  %v835 = vmax.f32 %v833, %v834
  %v836 = vrot.slane %v835, 1
  %v837 = vmax.f32 %v835, %v836
  %v838 = vrot.slane %v130, 4
  %v839 = vmax.f32 %v130, %v838
  %v840 = vrot.slane %v839, 2
  %v841 = vmax.f32 %v839, %v840
  %v842 = vrot.slane %v841, 1
  %v843 = vmax.f32 %v841, %v842
  %v844 = vrot.slane %v131, 4
  %v845 = vmax.f32 %v131, %v844
  %v846 = vrot.slane %v845, 2
  %v847 = vmax.f32 %v845, %v846
  %v848 = vrot.slane %v847, 1
  %v849 = vmax.f32 %v847, %v848
  %v850 = vrot.slane %v132, 4
  %v851 = vmax.f32 %v132, %v850
  %v852 = vrot.slane %v851, 2
  %v853 = vmax.f32 %v851, %v852
  %v854 = vrot.slane %v853, 1
  %v855 = vmax.f32 %v853, %v854
  %v856 = vrot.slane %v133, 4
  %v857 = vmax.f32 %v133, %v856
  %v858 = vrot.slane %v857, 2
  %v859 = vmax.f32 %v857, %v858
  %v860 = vrot.slane %v859, 1
  %v861 = vmax.f32 %v859, %v860
  %v862 = vrot.slane %v134, 4
  %v863 = vmax.f32 %v134, %v862
  %v864 = vrot.slane %v863, 2
  %v865 = vmax.f32 %v863, %v864
  %v866 = vrot.slane %v865, 1
  %v867 = vmax.f32 %v865, %v866
  %v868 = vrot.slane %v135, 4
  %v869 = vmax.f32 %v135, %v868
  %v870 = vrot.slane %v869, 2
  %v871 = vmax.f32 %v869, %v870
  %v872 = vrot.slane %v871, 1
  %v873 = vmax.f32 %v871, %v872
  %v874 = vrot.slane %v136, 4
  %v875 = vmax.f32 %v136, %v874
  %v876 = vrot.slane %v875, 2
  %v877 = vmax.f32 %v875, %v876
  %v878 = vrot.slane %v877, 1
  %v879 = vmax.f32 %v877, %v878
  %v880 = vrot.slane %v137, 4
  %v881 = vmax.f32 %v137, %v880
  %v882 = vrot.slane %v881, 2
  %v883 = vmax.f32 %v881, %v882
  %v884 = vrot.slane %v883, 1
  %v885 = vmax.f32 %v883, %v884
  %v886 = vrot.slane %v138, 4
  %v887 = vmax.f32 %v138, %v886
  %v888 = vrot.slane %v887, 2
  %v889 = vmax.f32 %v887, %v888
  %v890 = vrot.slane %v889, 1
  %v891 = vmax.f32 %v889, %v890
  %v892 = vrot.slane %v139, 4
  %v893 = vmax.f32 %v139, %v892
  %v894 = vrot.slane %v893, 2
  %v895 = vmax.f32 %v893, %v894
  %v896 = vrot.slane %v895, 1
  %v897 = vmax.f32 %v895, %v896
  %v898 = vrot.slane %v140, 4
  %v899 = vmax.f32 %v140, %v898
  %v900 = vrot.slane %v899, 2
  %v901 = vmax.f32 %v899, %v900
  %v902 = vrot.slane %v901, 1
  %v903 = vmax.f32 %v901, %v902
  %v904 = vrot.slane %v141, 4
  %v905 = vmax.f32 %v141, %v904
  %v906 = vrot.slane %v905, 2
  %v907 = vmax.f32 %v905, %v906
  %v908 = vrot.slane %v907, 1
  %v909 = vmax.f32 %v907, %v908
  %v910 = vrot.slane %v142, 4
  %v911 = vmax.f32 %v142, %v910
  %v912 = vrot.slane %v911, 2
  %v913 = vmax.f32 %v911, %v912
  %v914 = vrot.slane %v913, 1
  %v915 = vmax.f32 %v913, %v914
  %v916 = vrot.slane %v143, 4
  %v917 = vmax.f32 %v143, %v916
  %v918 = vrot.slane %v917, 2
  %v919 = vmax.f32 %v917, %v918
  %v920 = vrot.slane %v919, 1
  %v921 = vmax.f32 %v919, %v920
  %v922 = vrot.slane %v144, 4
  %v923 = vmax.f32 %v144, %v922
  %v924 = vrot.slane %v923, 2
  %v925 = vmax.f32 %v923, %v924
  %v926 = vrot.slane %v925, 1
  %v927 = vmax.f32 %v925, %v926
  %v928 = vrot.slane %v145, 4
  %v929 = vmax.f32 %v145, %v928
  %v930 = vrot.slane %v929, 2
  %v931 = vmax.f32 %v929, %v930
  %v932 = vrot.slane %v931, 1
  %v933 = vmax.f32 %v931, %v932
  %v934 = vrot.slane %v146, 4
  %v935 = vmax.f32 %v146, %v934
  %v936 = vrot.slane %v935, 2
  %v937 = vmax.f32 %v935, %v936
  %v938 = vrot.slane %v937, 1
  %v939 = vmax.f32 %v937, %v938
  %v940 = vrot.slane %v147, 4
  %v941 = vmax.f32 %v147, %v940
  %v942 = vrot.slane %v941, 2
  %v943 = vmax.f32 %v941, %v942
  %v944 = vrot.slane %v943, 1
  %v945 = vmax.f32 %v943, %v944
  %v946 = vrot.slane %v148, 4
  %v947 = vmax.f32 %v148, %v946
  %v948 = vrot.slane %v947, 2
  %v949 = vmax.f32 %v947, %v948
  %v950 = vrot.slane %v949, 1
  %v951 = vmax.f32 %v949, %v950
  %v952 = vrot.slane %v149, 4
  %v953 = vmax.f32 %v149, %v952
  %v954 = vrot.slane %v953, 2
  %v955 = vmax.f32 %v953, %v954
  %v956 = vrot.slane %v955, 1
  %v957 = vmax.f32 %v955, %v956
  %v958 = vrot.slane %v150, 4
  %v959 = vmax.f32 %v150, %v958
  %v960 = vrot.slane %v959, 2
  %v961 = vmax.f32 %v959, %v960
  %v962 = vrot.slane %v961, 1
  %v963 = vmax.f32 %v961, %v962
  %v964 = vmax.f32 %v681, %v693
  %v965 = vmax.f32 %v687, %v699
  %v966 = vmax.f32 %v964, %v705
  %v967 = vmax.f32 %v965, %v711
  %v968 = vmax.f32 %v966, %v717
  %v969 = vmax.f32 %v967, %v723
  %v970 = vmax.f32 %v968, %v729
  %v971 = vmax.f32 %v969, %v735
  %v972 = vmax.f32 %v970, %v741
  %v973 = vmax.f32 %v971, %v747
  %v974 = vmax.f32 %v972, %v753
  %v975 = vmax.f32 %v973, %v759
  %v976 = vmax.f32 %v974, %v765
  %v977 = vmax.f32 %v975, %v771
  %v978 = vmax.f32 %v976, %v777
  %v979 = vmax.f32 %v977, %v783
  %v980 = vmax.f32 %v978, %v789
  %v981 = vmax.f32 %v979, %v795
  %v982 = vmax.f32 %v980, %v801
  %v983 = vmax.f32 %v981, %v807
  %v984 = vmax.f32 %v982, %v813
  %v985 = vmax.f32 %v983, %v819
  %v986 = vmax.f32 %v984, %v985
  %v987 = vmax.f32 %v825, %v837
  %v988 = vmax.f32 %v831, %v843
  %v989 = vmax.f32 %v987, %v849
  %v990 = vmax.f32 %v988, %v855
  %v991 = vmax.f32 %v989, %v861
  %v992 = vmax.f32 %v990, %v867
  %v993 = vmax.f32 %v991, %v873
  %v994 = vmax.f32 %v992, %v879
  %v995 = vmax.f32 %v993, %v885
  %v996 = vmax.f32 %v994, %v891
  %v997 = vmax.f32 %v995, %v897
  %v998 = vmax.f32 %v996, %v903
  %v999 = vmax.f32 %v997, %v909
  %v1000 = vmax.f32 %v998, %v915
  %v1001 = vmax.f32 %v999, %v921
  %v1002 = vmax.f32 %v1000, %v927
  %v1003 = vmax.f32 %v1001, %v933
  %v1004 = vmax.f32 %v1002, %v939
  %v1005 = vmax.f32 %v1003, %v945
  %v1006 = vmax.f32 %v1004, %v951
  %v1007 = vmax.f32 %v1005, %v957
  %v1008 = vmax.f32 %v1006, %v963
  %v1009 = vmax.f32 %v1007, %v1008
  %v1010 = vmax.f32 %v638, %v639
  %v1011 = vmax.f32 %v661, %v662
  %v1012 = vmax.f32 %v419, %v431
  %v1013 = vmax.f32 %v425, %v437
  %v1014 = vmax.f32 %v1012, %v443
  %v1015 = vmax.f32 %v1013, %v449
  %v1016 = vmax.f32 %v1014, %v455
  %v1017 = vmax.f32 %v1015, %v461
  %v1018 = vmax.f32 %v1016, %v467
  %v1019 = vmax.f32 %v1017, %v473
  %v1020 = vmax.f32 %v1018, %v479
  %v1021 = vmax.f32 %v1019, %v485
  %v1022 = vmax.f32 %v1020, %v1021
  %v1023 = vmax.f32 %v563, %v575
  %v1024 = vmax.f32 %v569, %v581
  %v1025 = vmax.f32 %v1023, %v587
  %v1026 = vmax.f32 %v1024, %v593
  %v1027 = vmax.f32 %v1025, %v599
  %v1028 = vmax.f32 %v1026, %v605
  %v1029 = vmax.f32 %v1027, %v611
  %v1030 = vmax.f32 %v1028, %v617
  %v1031 = vmax.f32 %v1029, %v623
  %v1032 = vmax.f32 %v1030, %v629
  %v1033 = vmax.f32 %v1031, %v1032
  %v1034 = vmax.f32 %v968, %v969
  %v1035 = vmax.f32 %v991, %v992
  %v1036 = vmax.f32 %v729, %v741
  %v1037 = vmax.f32 %v735, %v747
  %v1038 = vmax.f32 %v1036, %v753
  %v1039 = vmax.f32 %v1037, %v759
  %v1040 = vmax.f32 %v1038, %v765
  %v1041 = vmax.f32 %v1039, %v771
  %v1042 = vmax.f32 %v1040, %v1041
  %v1043 = vmax.f32 %v873, %v885
  %v1044 = vmax.f32 %v879, %v891
  %v1045 = vmax.f32 %v1043, %v897
  %v1046 = vmax.f32 %v1044, %v903
  %v1047 = vmax.f32 %v1045, %v909
  %v1048 = vmax.f32 %v1046, %v915
  %v1049 = vmax.f32 %v1047, %v1048
  %v1050 = vmax.f32 %v777, %v789
  %v1051 = vmax.f32 %v783, %v795
  %v1052 = vmax.f32 %v1050, %v801
  %v1053 = vmax.f32 %v1051, %v807
  %v1054 = vmax.f32 %v1052, %v813
  %v1055 = vmax.f32 %v1053, %v819
  %v1056 = vmax.f32 %v1054, %v1055
  %v1057 = vmax.f32 %v921, %v933
  %v1058 = vmax.f32 %v927, %v939
  %v1059 = vmax.f32 %v1057, %v945
  %v1060 = vmax.f32 %v1058, %v951
  %v1061 = vmax.f32 %v1059, %v957
  %v1062 = vmax.f32 %v1060, %v963
  %v1063 = vmax.f32 %v1061, %v1062
  %vm1066 = vcmask 1041409
  %v1067 = vsel %vm1066, %v341, %v330
  %vm1071 = vcmask 1043459
  %v1072 = vsel %vm1071, %v675, %v652
  %vm1076 = vcmask 1045509
  %v1077 = vsel %vm1076, %v1009, %v986
  %vm1081 = vcmask 1047559
  %v1082 = vsel %vm1081, %v1011, %v1010
  %v1086 = vsel %vm1066, %v1033, %v1022
  %v1090 = vsel %vm1071, %v1035, %v1034
  %v1094 = vsel %vm1076, %v1049, %v1042
  %v1098 = vsel %vm1081, %v1063, %v1056
  %vm1100 = vcmask 1041408
  %v1101 = vsel %vm1100, %v1067, %v1072
  %v1102 = vsel %vm151, %v1101, %v1077
  %vm1103 = vcmask 1045504
  %v1104 = vsel %vm1103, %v1102, %v1082
  %v1105 = vsel %vm1100, %v1086, %v1090
  %v1106 = vsel %vm151, %v1105, %v1094
  %v1107 = vsel %vm1103, %v1106, %v1098
  %v1108 = vld [vmem:[%s3] sm:$0xff]
  %v1109 = vld [vmem:[%s3 + $0x8] sm:$0xff]
  %v1110 = vld [vmem:[%s3 + $0x10] sm:$0xff]
  %v1111 = vld [vmem:[%s3 + $0x18] sm:$0xff]
  %v1112 = vld [vmem:[%s3 + $0x20] sm:$0xff]
  %v1113 = vld [vmem:[%s3 + $0x28] sm:$0xff]
  %v1114 = vld [vmem:[%s3 + $0x30] sm:$0xff]
  %v1115 = vld [vmem:[%s3 + $0x38] sm:$0xff]
  %v1116 = vld [vmem:[%s3 + $0x40] sm:$0xff]
  %v1117 = vld [vmem:[%s3 + $0x48] sm:$0xff]
  %v1118 = vld [vmem:[%s3 + $0x50] sm:$0xff]
  %v1119 = vld [vmem:[%s3 + $0x58] sm:$0xff]
  %v1120 = vld [vmem:[%s3 + $0x60] sm:$0xff]
  %v1121 = vld [vmem:[%s3 + $0x68] sm:$0xff]
  %v1122 = vld [vmem:[%s3 + $0x70] sm:$0xff]
  %v1123 = vld [vmem:[%s3 + $0x78] sm:$0xff]
  %1124 = vmatprep.subr.mxu0 0.0
  %1125 = vmatpush1.msra.mxu0 %v1123
  %1126 = vmatprep.subr.mxu0 0.0
  %1127 = vmatpush1.msra.mxu0 %v1122
  %1128 = vmatprep.subr.mxu0 0.0
  %1129 = vmatpush1.msra.mxu0 %v1121
  %1130 = vmatprep.subr.mxu0 0.0
  %1131 = vmatpush1.msra.mxu0 %v1120
  %1132 = vmatprep.subr.mxu0 0.0
  %1133 = vmatpush1.msra.mxu0 %v1119
  %1134 = vmatprep.subr.mxu0 0.0
  %1135 = vmatpush1.msra.mxu0 %v1118
  %1136 = vmatprep.subr.mxu0 0.0
  %1137 = vmatpush1.msra.mxu0 %v1117
  %1138 = vmatprep.subr.mxu0 0.0
  %1139 = vmatpush1.msra.mxu0 %v1116
  %1140 = vmatprep.subr.mxu0 0.0
  %1141 = vmatpush1.msra.mxu0 %v1115
  %1142 = vmatprep.subr.mxu0 0.0
  %1143 = vmatpush1.msra.mxu0 %v1114
  %1144 = vmatprep.subr.mxu0 0.0
  %1145 = vmatpush1.msra.mxu0 %v1113
  %1146 = vmatprep.subr.mxu0 0.0
  %1147 = vmatpush1.msra.mxu0 %v1112
  %1148 = vmatprep.subr.mxu0 0.0
  %1149 = vmatpush1.msra.mxu0 %v1111
  %1150 = vmatprep.subr.mxu0 0.0
  %1151 = vmatpush1.msra.mxu0 %v1110
  %1152 = vmatprep.subr.mxu0 0.0
  %1153 = vmatpush1.msra.mxu0 %v1109
  %1154 = vmatprep.subr.mxu0 0.0
  %1155 = vmatpush1.msra.mxu0 %v1108
  %1156 = vmatprep.subr.mxu0 0.0
  %1157 = vmatpush2.msra.mxu0 0.0
  %1158 = vmatprep.subr.mxu0 0.0
  %1159 = vmatpush2.msra.mxu0 0.0
  %1160 = vmatprep.subr.mxu0 0.0
  %1161 = vmatpush2.msra.mxu0 0.0
  %1162 = vmatprep.subr.mxu0 0.0
  %1163 = vmatpush2.msra.mxu0 0.0
  %1164 = vmatprep.subr.mxu0 0.0
  %1165 = vmatpush2.msra.mxu0 0.0
  %1166 = vmatprep.subr.mxu0 0.0
  %1167 = vmatpush2.msra.mxu0 0.0
  %1168 = vmatprep.subr.mxu0 0.0
  %1169 = vmatpush2.msra.mxu0 0.0
  %1170 = vmatprep.subr.mxu0 0.0
  %1171 = vmatpush2.msra.mxu0 0.0
  %1172 = vmatprep.subr.mxu0 0.0
  %1173 = vmatpush2.msra.mxu0 0.0
  %1174 = vmatprep.subr.mxu0 0.0
  %1175 = vmatpush2.msra.mxu0 0.0
  %1176 = vmatprep.subr.mxu0 0.0
  %1177 = vmatpush2.msra.mxu0 0.0
  %1178 = vmatprep.subr.mxu0 0.0
  %1179 = vmatpush2.msra.mxu0 0.0
  %1180 = vmatprep.subr.mxu0 0.0
  %1181 = vmatpush2.msra.mxu0 0.0
  %1182 = vmatprep.subr.mxu0 0.0
  %1183 = vmatpush2.msra.mxu0 0.0
  %1184 = vmatprep.subr.mxu0 0.0
  %1185 = vmatpush2.msra.mxu0 0.0
  %1186 = vmatprep.subr.mxu0 0.0
  %1187 = vmatpush2.msra.mxu0 0.0
  %1188 = vmatprep.mubr.f32.mxu0 0.0
  %1189 = vmatmul.mubr.f32.gmra.mxu0 %v1104
  %v1190 = vpop.f32.mrf.mxu0
  %v1191 = vadd.f32 0.0, %v1190
  %v1192 = vpop.f32.mrf.mxu0
  %1193 = vmatprep.mubr.f32.mxu0 0.0
  %1194 = vmatmul.mubr.f32.gmra.mxu0 %v1107
  %v1195 = vpop.f32.mrf.mxu0
  %v1196 = vadd.f32 0.0, %v1195
  %v1197 = vpop.f32.mrf.mxu0
  %1198 = vdwg.mxu0
  %v1199 = vld [vmem:[%s4] sm:$0x1]
  %v1201 = vlaneseq
  %v1202 = vshrl.u32 %v1201, 7
  %v1203 = vsub.s32 0, %v1202
  %v1204 = vrot.slane %v1199, %v1203
  %v1206 = vmul.f32 %v1191, %v1204
  %v1207 = vmul.f32 %v1196, %v1204
  %v1208 = vld [vmem:[%s5] sm:$0x1]
  %v1210 = vlaneseq
  %v1211 = vshrl.u32 %v1210, 7
  %v1212 = vsub.s32 0, %v1211
  %v1213 = vrot.slane %v1208, %v1212
  %v1215 = vadd.f32 %v1206, %v1213
  %v1216 = vadd.f32 %v1207, %v1213
  %v1217 = vmax.f32 %v1215, 0.0
  %v1218 = vmax.f32 %v1216, 0.0
  %1219 = vst [vmem:[%s8] sm:$0xff] %v1217
  %1220 = vst [vmem:[%s8 + $0x8] sm:$0xff] %v1218
  %v1221 = vld [vmem:[%s6] sm:$0xff]
  %v1222 = vld [vmem:[%s6 + $0x8] sm:$0xff]
  %v1223 = vld [vmem:[%s6 + $0x10] sm:$0xff]
  %v1224 = vld [vmem:[%s6 + $0x18] sm:$0xff]
  %v1225 = vld [vmem:[%s6 + $0x20] sm:$0xff]
  %v1226 = vld [vmem:[%s6 + $0x28] sm:$0xff]
  %v1227 = vld [vmem:[%s6 + $0x30] sm:$0xff]
  %v1228 = vld [vmem:[%s6 + $0x38] sm:$0xff]
  %v1229 = vld [vmem:[%s6 + $0x40] sm:$0xff]
  %v1230 = vld [vmem:[%s6 + $0x48] sm:$0xff]
  %v1231 = vld [vmem:[%s6 + $0x50] sm:$0xff]
  %v1232 = vld [vmem:[%s6 + $0x58] sm:$0xff]
  %v1233 = vld [vmem:[%s6 + $0x60] sm:$0xff]
  %v1234 = vld [vmem:[%s6 + $0x68] sm:$0xff]
  %v1235 = vld [vmem:[%s6 + $0x70] sm:$0xff]
  %v1236 = vld [vmem:[%s6 + $0x78] sm:$0xff]
  %v1237 = vld [vmem:[%s6 + $0x80] sm:$0xff]
  %v1238 = vld [vmem:[%s6 + $0x88] sm:$0xff]
  %v1239 = vld [vmem:[%s6 + $0x90] sm:$0xff]
  %v1240 = vld [vmem:[%s6 + $0x98] sm:$0xff]
  %v1241 = vld [vmem:[%s6 + $0xa0] sm:$0xff]
  %v1242 = vld [vmem:[%s6 + $0xa8] sm:$0xff]
  %v1243 = vld [vmem:[%s6 + $0xb0] sm:$0xff]
  %v1244 = vld [vmem:[%s6 + $0xb8] sm:$0xff]
  %v1245 = vld [vmem:[%s6 + $0xc0] sm:$0xff]
  %v1246 = vld [vmem:[%s6 + $0xc8] sm:$0xff]
  %v1247 = vld [vmem:[%s6 + $0xd0] sm:$0xff]
  %v1248 = vld [vmem:[%s6 + $0xd8] sm:$0xff]
  %v1249 = vld [vmem:[%s6 + $0xe0] sm:$0xff]
  %v1250 = vld [vmem:[%s6 + $0xe8] sm:$0xff]
  %v1251 = vld [vmem:[%s6 + $0xf0] sm:$0xff]
  %v1252 = vld [vmem:[%s6 + $0xf8] sm:$0xff]
  %v1253 = vld [vmem:[%s6 + $0x100] sm:$0xff]
  %v1254 = vld [vmem:[%s6 + $0x108] sm:$0xff]
  %v1255 = vld [vmem:[%s6 + $0x110] sm:$0xff]
  %v1256 = vld [vmem:[%s6 + $0x118] sm:$0xff]
  %v1257 = vld [vmem:[%s6 + $0x120] sm:$0xff]
  %v1258 = vld [vmem:[%s6 + $0x128] sm:$0xff]
  %v1259 = vld [vmem:[%s6 + $0x130] sm:$0xff]
  %v1260 = vld [vmem:[%s6 + $0x138] sm:$0xff]
  %v1261 = vld [vmem:[%s6 + $0x140] sm:$0xff]
  %v1262 = vld [vmem:[%s6 + $0x148] sm:$0xff]
  %v1263 = vld [vmem:[%s6 + $0x150] sm:$0xff]
  %v1264 = vld [vmem:[%s6 + $0x158] sm:$0xff]
  %v1265 = vld [vmem:[%s6 + $0x160] sm:$0xff]
  %v1266 = vld [vmem:[%s6 + $0x168] sm:$0xff]
  %v1267 = vld [vmem:[%s6 + $0x170] sm:$0xff]
  %v1268 = vld [vmem:[%s6 + $0x178] sm:$0xff]
  %v1269 = vld [vmem:[%s6 + $0x180] sm:$0xff]
  %v1270 = vld [vmem:[%s6 + $0x188] sm:$0xff]
  %v1271 = vld [vmem:[%s6 + $0x190] sm:$0xff]
  %v1272 = vld [vmem:[%s6 + $0x198] sm:$0xff]
  %v1273 = vld [vmem:[%s6 + $0x1a0] sm:$0xff]
  %v1274 = vld [vmem:[%s6 + $0x1a8] sm:$0xff]
  %v1275 = vld [vmem:[%s6 + $0x1b0] sm:$0xff]
  %v1276 = vld [vmem:[%s6 + $0x1b8] sm:$0xff]
  %v1277 = vld [vmem:[%s6 + $0x1c0] sm:$0xff]
  %v1278 = vld [vmem:[%s6 + $0x1c8] sm:$0xff]
  %v1279 = vld [vmem:[%s6 + $0x1d0] sm:$0xff]
  %v1280 = vld [vmem:[%s6 + $0x1d8] sm:$0xff]
  %v1281 = vld [vmem:[%s6 + $0x1e0] sm:$0xff]
  %v1282 = vld [vmem:[%s6 + $0x1e8] sm:$0xff]
  %v1283 = vld [vmem:[%s6 + $0x1f0] sm:$0xff]
  %v1284 = vld [vmem:[%s6 + $0x1f8] sm:$0xff]
  %v1285 = vld [vmem:[%s6 + $0x200] sm:$0xff]
  %v1286 = vld [vmem:[%s6 + $0x208] sm:$0xff]
  %v1287 = vld [vmem:[%s6 + $0x210] sm:$0xff]
  %v1288 = vld [vmem:[%s6 + $0x218] sm:$0xff]
  %v1289 = vld [vmem:[%s6 + $0x220] sm:$0xff]
  %v1290 = vld [vmem:[%s6 + $0x228] sm:$0xff]
  %v1291 = vld [vmem:[%s6 + $0x230] sm:$0xff]
  %v1292 = vld [vmem:[%s6 + $0x238] sm:$0xff]
  %v1293 = vld [vmem:[%s6 + $0x240] sm:$0xff]
  %v1294 = vld [vmem:[%s6 + $0x248] sm:$0xff]
  %v1295 = vld [vmem:[%s6 + $0x250] sm:$0xff]
  %v1296 = vld [vmem:[%s6 + $0x258] sm:$0xff]
  %v1297 = vld [vmem:[%s6 + $0x260] sm:$0xff]
  %v1298 = vld [vmem:[%s6 + $0x268] sm:$0xff]
  %v1299 = vld [vmem:[%s6 + $0x270] sm:$0xff]
  %v1300 = vld [vmem:[%s6 + $0x278] sm:$0xff]
  %v1301 = vld [vmem:[%s6 + $0x280] sm:$0xff]
  %v1302 = vld [vmem:[%s6 + $0x288] sm:$0xff]
  %v1303 = vld [vmem:[%s6 + $0x290] sm:$0xff]
  %v1304 = vld [vmem:[%s6 + $0x298] sm:$0xff]
  %v1305 = vld [vmem:[%s6 + $0x2a0] sm:$0xff]
  %v1306 = vld [vmem:[%s6 + $0x2a8] sm:$0xff]
  %v1307 = vld [vmem:[%s6 + $0x2b0] sm:$0xff]
  %v1308 = vld [vmem:[%s6 + $0x2b8] sm:$0xff]
  %v1309 = vld [vmem:[%s6 + $0x2c0] sm:$0xff]
  %v1310 = vld [vmem:[%s6 + $0x2c8] sm:$0xff]
  %v1311 = vld [vmem:[%s6 + $0x2d0] sm:$0xff]
  %v1312 = vld [vmem:[%s6 + $0x2d8] sm:$0xff]
  %v1313 = vld [vmem:[%s6 + $0x2e0] sm:$0xff]
  %v1314 = vld [vmem:[%s6 + $0x2e8] sm:$0xff]
  %v1315 = vld [vmem:[%s6 + $0x2f0] sm:$0xff]
  %v1316 = vld [vmem:[%s6 + $0x2f8] sm:$0xff]
  %v1317 = vld [vmem:[%s7] sm:$0x3f]
  %v1319 = vlaneseq
  %v1320 = vshrl.u32 %v1319, 7
  %v1321 = vsub.s32 0, %v1320
  %v1322 = vrot.slane %v1317, %v1321
  %v1323 = vlaneseq
  %v1324 = vshrl.u32 %v1323, 7
  %v1325 = vsub.s32 1, %v1324
  %v1326 = vrot.slane %v1317, %v1325
  %v1327 = vlaneseq
  %v1328 = vshrl.u32 %v1327, 7
  %v1329 = vsub.s32 2, %v1328
  %v1330 = vrot.slane %v1317, %v1329
  %v1331 = vlaneseq
  %v1332 = vshrl.u32 %v1331, 7
  %v1333 = vsub.s32 3, %v1332
  %v1334 = vrot.slane %v1317, %v1333
  %v1335 = vlaneseq
  %v1336 = vshrl.u32 %v1335, 7
  %v1337 = vsub.s32 4, %v1336
  %v1338 = vrot.slane %v1317, %v1337
  %v1339 = vlaneseq
  %v1340 = vshrl.u32 %v1339, 7
  %v1341 = vsub.s32 5, %v1340
  %v1342 = vrot.slane %v1317, %v1341
  %1349 = vmatprep.subr.mxu0 %v1312
  %1350 = vmatpush1.msra.mxu0 %v1311
  %1351 = vmatprep.subr.mxu0 %v1306
  %1352 = vmatpush1.msra.mxu0 %v1305
  %1353 = vmatprep.subr.mxu0 %v1300
  %1354 = vmatpush1.msra.mxu0 %v1299
  %1355 = vmatprep.subr.mxu0 %v1294
  %1356 = vmatpush1.msra.mxu0 %v1293
  %1357 = vmatprep.subr.mxu0 %v1288
  %1358 = vmatpush1.msra.mxu0 %v1287
  %1359 = vmatprep.subr.mxu0 %v1282
  %1360 = vmatpush1.msra.mxu0 %v1281
  %1361 = vmatprep.subr.mxu0 %v1276
  %1362 = vmatpush1.msra.mxu0 %v1275
  %1363 = vmatprep.subr.mxu0 %v1270
  %1364 = vmatpush1.msra.mxu0 %v1269
  %1365 = vmatprep.subr.mxu0 %v1264
  %1366 = vmatpush1.msra.mxu0 %v1263
  %1367 = vmatprep.subr.mxu0 %v1258
  %1368 = vmatpush1.msra.mxu0 %v1257
  %1369 = vmatprep.subr.mxu0 %v1252
  %1370 = vmatpush1.msra.mxu0 %v1251
  %1371 = vmatprep.subr.mxu0 %v1246
  %1372 = vmatpush1.msra.mxu0 %v1245
  %1373 = vmatprep.subr.mxu0 %v1240
  %1374 = vmatpush1.msra.mxu0 %v1239
  %1375 = vmatprep.subr.mxu0 %v1234
  %1376 = vmatpush1.msra.mxu0 %v1233
  %1377 = vmatprep.subr.mxu0 %v1228
  %1378 = vmatpush1.msra.mxu0 %v1227
  %1379 = vmatprep.subr.mxu0 %v1222
  %1380 = vmatpush1.msra.mxu0 %v1221
  %1381 = vmatprep.subr.mxu0 0.0
  %1382 = vmatpush2.msra.mxu0 0.0
  %1383 = vmatprep.subr.mxu0 0.0
  %1384 = vmatpush2.msra.mxu0 0.0
  %1385 = vmatprep.subr.mxu0 0.0
  %1386 = vmatpush2.msra.mxu0 0.0
  %1387 = vmatprep.subr.mxu0 0.0
  %1388 = vmatpush2.msra.mxu0 0.0
  %1389 = vmatprep.subr.mxu0 0.0
  %1390 = vmatpush2.msra.mxu0 0.0
  %1391 = vmatprep.subr.mxu0 0.0
  %1392 = vmatpush2.msra.mxu0 0.0
  %1393 = vmatprep.subr.mxu0 0.0
  %1394 = vmatpush2.msra.mxu0 0.0
  %1395 = vmatprep.subr.mxu0 0.0
  %1396 = vmatpush2.msra.mxu0 0.0
  %1397 = vmatprep.subr.mxu0 0.0
  %1398 = vmatpush2.msra.mxu0 0.0
  %1399 = vmatprep.subr.mxu0 0.0
  %1400 = vmatpush2.msra.mxu0 0.0
  %1401 = vmatprep.subr.mxu0 0.0
  %1402 = vmatpush2.msra.mxu0 0.0
  %1403 = vmatprep.subr.mxu0 0.0
  %1404 = vmatpush2.msra.mxu0 0.0
  %1405 = vmatprep.subr.mxu0 0.0
  %1406 = vmatpush2.msra.mxu0 0.0
  %1407 = vmatprep.subr.mxu0 0.0
  %1408 = vmatpush2.msra.mxu0 0.0
  %1409 = vmatprep.subr.mxu0 0.0
  %1410 = vmatpush2.msra.mxu0 0.0
  %1411 = vmatprep.subr.mxu0 0.0
  %1412 = vmatpush2.msra.mxu0 0.0
  %1413 = vmatprep.mubr.f32.mxu0 0.0
  %1414 = vmatmul.mubr.f32.gmra.mxu0 %v1217
  %v1415 = vpop.f32.mrf.mxu0
  %v1416 = vadd.f32 %v1322, %v1415
  %v1417 = vpop.f32.mrf.mxu0
  %v1418 = vadd.f32 %v1326, %v1417
  %1419 = vdwg.mxu0
  %1420 = vmatprep.subr.mxu0 %v1314
  %1421 = vmatpush1.msra.mxu0 %v1313
  %1422 = vmatprep.subr.mxu0 %v1308
  %1423 = vmatpush1.msra.mxu0 %v1307
  %1424 = vmatprep.subr.mxu0 %v1302
  %1425 = vmatpush1.msra.mxu0 %v1301
  %1426 = vmatprep.subr.mxu0 %v1296
  %1427 = vmatpush1.msra.mxu0 %v1295
  %1428 = vmatprep.subr.mxu0 %v1290
  %1429 = vmatpush1.msra.mxu0 %v1289
  %1430 = vmatprep.subr.mxu0 %v1284
  %1431 = vmatpush1.msra.mxu0 %v1283
  %1432 = vmatprep.subr.mxu0 %v1278
  %1433 = vmatpush1.msra.mxu0 %v1277
  %1434 = vmatprep.subr.mxu0 %v1272
  %1435 = vmatpush1.msra.mxu0 %v1271
  %1436 = vmatprep.subr.mxu0 %v1266
  %1437 = vmatpush1.msra.mxu0 %v1265
  %1438 = vmatprep.subr.mxu0 %v1260
  %1439 = vmatpush1.msra.mxu0 %v1259
  %1440 = vmatprep.subr.mxu0 %v1254
  %1441 = vmatpush1.msra.mxu0 %v1253
  %1442 = vmatprep.subr.mxu0 %v1248
  %1443 = vmatpush1.msra.mxu0 %v1247
  %1444 = vmatprep.subr.mxu0 %v1242
  %1445 = vmatpush1.msra.mxu0 %v1241
  %1446 = vmatprep.subr.mxu0 %v1236
  %1447 = vmatpush1.msra.mxu0 %v1235
  %1448 = vmatprep.subr.mxu0 %v1230
  %1449 = vmatpush1.msra.mxu0 %v1229
  %1450 = vmatprep.subr.mxu0 %v1224
  %1451 = vmatpush1.msra.mxu0 %v1223
  %1452 = vmatprep.subr.mxu0 0.0
  %1453 = vmatpush2.msra.mxu0 0.0
  %1454 = vmatprep.subr.mxu0 0.0
  %1455 = vmatpush2.msra.mxu0 0.0
  %1456 = vmatprep.subr.mxu0 0.0
  %1457 = vmatpush2.msra.mxu0 0.0
  %1458 = vmatprep.subr.mxu0 0.0
  %1459 = vmatpush2.msra.mxu0 0.0
  %1460 = vmatprep.subr.mxu0 0.0
  %1461 = vmatpush2.msra.mxu0 0.0
  %1462 = vmatprep.subr.mxu0 0.0
  %1463 = vmatpush2.msra.mxu0 0.0
  %1464 = vmatprep.subr.mxu0 0.0
  %1465 = vmatpush2.msra.mxu0 0.0
  %1466 = vmatprep.subr.mxu0 0.0
  %1467 = vmatpush2.msra.mxu0 0.0
  %1468 = vmatprep.subr.mxu0 0.0
  %1469 = vmatpush2.msra.mxu0 0.0
  %1470 = vmatprep.subr.mxu0 0.0
  %1471 = vmatpush2.msra.mxu0 0.0
  %1472 = vmatprep.subr.mxu0 0.0
  %1473 = vmatpush2.msra.mxu0 0.0
  %1474 = vmatprep.subr.mxu0 0.0
  %1475 = vmatpush2.msra.mxu0 0.0
  %1476 = vmatprep.subr.mxu0 0.0
  %1477 = vmatpush2.msra.mxu0 0.0
  %1478 = vmatprep.subr.mxu0 0.0
  %1479 = vmatpush2.msra.mxu0 0.0
  %1480 = vmatprep.subr.mxu0 0.0
  %1481 = vmatpush2.msra.mxu0 0.0
  %1482 = vmatprep.subr.mxu0 0.0
  %1483 = vmatpush2.msra.mxu0 0.0
  %1484 = vmatprep.mubr.f32.mxu0 0.0
  %1485 = vmatmul.mubr.f32.gmra.mxu0 %v1217
  %v1486 = vpop.f32.mrf.mxu0
  %v1487 = vadd.f32 %v1330, %v1486
  %v1488 = vpop.f32.mrf.mxu0
  %v1489 = vadd.f32 %v1334, %v1488
  %1490 = vdwg.mxu0
  %1491 = vmatprep.subr.mxu0 %v1316
  %1492 = vmatpush1.msra.mxu0 %v1315
  %1493 = vmatprep.subr.mxu0 %v1310
  %1494 = vmatpush1.msra.mxu0 %v1309
  %1495 = vmatprep.subr.mxu0 %v1304
  %1496 = vmatpush1.msra.mxu0 %v1303
  %1497 = vmatprep.subr.mxu0 %v1298
  %1498 = vmatpush1.msra.mxu0 %v1297
  %1499 = vmatprep.subr.mxu0 %v1292
  %1500 = vmatpush1.msra.mxu0 %v1291
  %1501 = vmatprep.subr.mxu0 %v1286
  %1502 = vmatpush1.msra.mxu0 %v1285
  %1503 = vmatprep.subr.mxu0 %v1280
  %1504 = vmatpush1.msra.mxu0 %v1279
  %1505 = vmatprep.subr.mxu0 %v1274
  %1506 = vmatpush1.msra.mxu0 %v1273
  %1507 = vmatprep.subr.mxu0 %v1268
  %1508 = vmatpush1.msra.mxu0 %v1267
  %1509 = vmatprep.subr.mxu0 %v1262
  %1510 = vmatpush1.msra.mxu0 %v1261
  %1511 = vmatprep.subr.mxu0 %v1256
  %1512 = vmatpush1.msra.mxu0 %v1255
  %1513 = vmatprep.subr.mxu0 %v1250
  %1514 = vmatpush1.msra.mxu0 %v1249
  %1515 = vmatprep.subr.mxu0 %v1244
  %1516 = vmatpush1.msra.mxu0 %v1243
  %1517 = vmatprep.subr.mxu0 %v1238
  %1518 = vmatpush1.msra.mxu0 %v1237
  %1519 = vmatprep.subr.mxu0 %v1232
  %1520 = vmatpush1.msra.mxu0 %v1231
  %1521 = vmatprep.subr.mxu0 %v1226
  %1522 = vmatpush1.msra.mxu0 %v1225
  %1523 = vmatprep.subr.mxu0 0.0
  %1524 = vmatpush2.msra.mxu0 0.0
  %1525 = vmatprep.subr.mxu0 0.0
  %1526 = vmatpush2.msra.mxu0 0.0
  %1527 = vmatprep.subr.mxu0 0.0
  %1528 = vmatpush2.msra.mxu0 0.0
  %1529 = vmatprep.subr.mxu0 0.0
  %1530 = vmatpush2.msra.mxu0 0.0
  %1531 = vmatprep.subr.mxu0 0.0
  %1532 = vmatpush2.msra.mxu0 0.0
  %1533 = vmatprep.subr.mxu0 0.0
  %1534 = vmatpush2.msra.mxu0 0.0
  %1535 = vmatprep.subr.mxu0 0.0
  %1536 = vmatpush2.msra.mxu0 0.0
  %1537 = vmatprep.subr.mxu0 0.0
  %1538 = vmatpush2.msra.mxu0 0.0
  %1539 = vmatprep.subr.mxu0 0.0
  %1540 = vmatpush2.msra.mxu0 0.0
  %1541 = vmatprep.subr.mxu0 0.0
  %1542 = vmatpush2.msra.mxu0 0.0
  %1543 = vmatprep.subr.mxu0 0.0
  %1544 = vmatpush2.msra.mxu0 0.0
  %1545 = vmatprep.subr.mxu0 0.0
  %1546 = vmatpush2.msra.mxu0 0.0
  %1547 = vmatprep.subr.mxu0 0.0
  %1548 = vmatpush2.msra.mxu0 0.0
  %1549 = vmatprep.subr.mxu0 0.0
  %1550 = vmatpush2.msra.mxu0 0.0
  %1551 = vmatprep.subr.mxu0 0.0
  %1552 = vmatpush2.msra.mxu0 0.0
  %1553 = vmatprep.subr.mxu0 0.0
  %1554 = vmatpush2.msra.mxu0 0.0
  %1555 = vmatprep.mubr.f32.mxu0 0.0
  %1556 = vmatmul.mubr.f32.gmra.mxu0 %v1217
  %v1557 = vpop.f32.mrf.mxu0
  %v1558 = vadd.f32 %v1338, %v1557
  %v1559 = vpop.f32.mrf.mxu0
  %v1560 = vadd.f32 %v1342, %v1559
  %1561 = vdwg.mxu0
  %v1568 = vcombine.low %v1416, %v1418
  %v1569 = vcombine.low %v1487, %v1489
  %v1571 = vunpack.c.l.s4 1983009808
  %v1572 = vunpack.c.0.s8 %v1571
  %v1573 = vlaneseq
  %v1574 = vshrl.u32 %v1573, 7
  %v1575 = vsub.s32 %v1572, %v1574
  %v1576 = vrot.slane %v1568, %v1575
  %v1578 = vunpack.c.l.s4 1983009808
  %v1579 = vunpack.c.0.s8 %v1578
  %v1580 = vlaneseq
  %v1581 = vshrl.u32 %v1580, 7
  %v1582 = vsub.s32 %v1579, %v1581
  %v1583 = vrot.slane %v1569, %v1582
  %v1584 = vcombine.low %v1576, %v1583
  %v1585 = vcombine.low %v1558, %v1560
  %v1587 = vunpack.c.l.s4 1983009808
  %v1588 = vunpack.c.0.s8 %v1587
  %v1589 = vlaneseq
  %v1590 = vshrl.u32 %v1589, 7
  %v1591 = vsub.s32 %v1588, %v1590
  %v1592 = vrot.slane %v1585, %v1591
  %1595 = vst [vmem:[%s9] sm:$0xff] %v1584
  %1596 = vst [vmem:[%s9 + $0x8] sm:$0xf] %v1592
  %s1597 = scalar_lea.vmem %s6, 768
  %v1598 = vld [vmem:[%s1597] sm:$0xff]
  %v1599 = vld [vmem:[%s1597 + $0x8] sm:$0xff]
  %v1600 = vld [vmem:[%s1597 + $0x10] sm:$0xff]
  %v1601 = vld [vmem:[%s1597 + $0x18] sm:$0xff]
  %v1602 = vld [vmem:[%s1597 + $0x20] sm:$0xff]
  %v1603 = vld [vmem:[%s1597 + $0x28] sm:$0xff]
  %v1604 = vld [vmem:[%s1597 + $0x30] sm:$0xff]
  %v1605 = vld [vmem:[%s1597 + $0x38] sm:$0xff]
  %v1606 = vld [vmem:[%s1597 + $0x40] sm:$0xff]
  %v1607 = vld [vmem:[%s1597 + $0x48] sm:$0xff]
  %v1608 = vld [vmem:[%s1597 + $0x50] sm:$0xff]
  %v1609 = vld [vmem:[%s1597 + $0x58] sm:$0xff]
  %v1610 = vld [vmem:[%s1597 + $0x60] sm:$0xff]
  %v1611 = vld [vmem:[%s1597 + $0x68] sm:$0xff]
  %v1612 = vld [vmem:[%s1597 + $0x70] sm:$0xff]
  %v1613 = vld [vmem:[%s1597 + $0x78] sm:$0xff]
  %v1614 = vld [vmem:[%s1597 + $0x80] sm:$0xff]
  %v1615 = vld [vmem:[%s1597 + $0x88] sm:$0xff]
  %v1616 = vld [vmem:[%s1597 + $0x90] sm:$0xff]
  %v1617 = vld [vmem:[%s1597 + $0x98] sm:$0xff]
  %v1618 = vld [vmem:[%s1597 + $0xa0] sm:$0xff]
  %v1619 = vld [vmem:[%s1597 + $0xa8] sm:$0xff]
  %v1620 = vld [vmem:[%s1597 + $0xb0] sm:$0xff]
  %v1621 = vld [vmem:[%s1597 + $0xb8] sm:$0xff]
  %v1622 = vld [vmem:[%s1597 + $0xc0] sm:$0xff]
  %v1623 = vld [vmem:[%s1597 + $0xc8] sm:$0xff]
  %v1624 = vld [vmem:[%s1597 + $0xd0] sm:$0xff]
  %v1625 = vld [vmem:[%s1597 + $0xd8] sm:$0xff]
  %v1626 = vld [vmem:[%s1597 + $0xe0] sm:$0xff]
  %v1627 = vld [vmem:[%s1597 + $0xe8] sm:$0xff]
  %v1628 = vld [vmem:[%s1597 + $0xf0] sm:$0xff]
  %v1629 = vld [vmem:[%s1597 + $0xf8] sm:$0xff]
  %v1630 = vld [vmem:[%s1597 + $0x100] sm:$0xff]
  %v1631 = vld [vmem:[%s1597 + $0x108] sm:$0xff]
  %v1632 = vld [vmem:[%s1597 + $0x110] sm:$0xff]
  %v1633 = vld [vmem:[%s1597 + $0x118] sm:$0xff]
  %v1634 = vld [vmem:[%s1597 + $0x120] sm:$0xff]
  %v1635 = vld [vmem:[%s1597 + $0x128] sm:$0xff]
  %v1636 = vld [vmem:[%s1597 + $0x130] sm:$0xff]
  %v1637 = vld [vmem:[%s1597 + $0x138] sm:$0xff]
  %v1638 = vld [vmem:[%s1597 + $0x140] sm:$0xff]
  %v1639 = vld [vmem:[%s1597 + $0x148] sm:$0xff]
  %v1640 = vld [vmem:[%s1597 + $0x150] sm:$0xff]
  %v1641 = vld [vmem:[%s1597 + $0x158] sm:$0xff]
  %v1642 = vld [vmem:[%s1597 + $0x160] sm:$0xff]
  %v1643 = vld [vmem:[%s1597 + $0x168] sm:$0xff]
  %v1644 = vld [vmem:[%s1597 + $0x170] sm:$0xff]
  %v1645 = vld [vmem:[%s1597 + $0x178] sm:$0xff]
  %v1646 = vld [vmem:[%s1597 + $0x180] sm:$0xff]
  %v1647 = vld [vmem:[%s1597 + $0x188] sm:$0xff]
  %v1648 = vld [vmem:[%s1597 + $0x190] sm:$0xff]
  %v1649 = vld [vmem:[%s1597 + $0x198] sm:$0xff]
  %v1650 = vld [vmem:[%s1597 + $0x1a0] sm:$0xff]
  %v1651 = vld [vmem:[%s1597 + $0x1a8] sm:$0xff]
  %v1652 = vld [vmem:[%s1597 + $0x1b0] sm:$0xff]
  %v1653 = vld [vmem:[%s1597 + $0x1b8] sm:$0xff]
  %v1654 = vld [vmem:[%s1597 + $0x1c0] sm:$0xff]
  %v1655 = vld [vmem:[%s1597 + $0x1c8] sm:$0xff]
  %v1656 = vld [vmem:[%s1597 + $0x1d0] sm:$0xff]
  %v1657 = vld [vmem:[%s1597 + $0x1d8] sm:$0xff]
  %v1658 = vld [vmem:[%s1597 + $0x1e0] sm:$0xff]
  %v1659 = vld [vmem:[%s1597 + $0x1e8] sm:$0xff]
  %v1660 = vld [vmem:[%s1597 + $0x1f0] sm:$0xff]
  %v1661 = vld [vmem:[%s1597 + $0x1f8] sm:$0xff]
  %v1662 = vld [vmem:[%s1597 + $0x200] sm:$0xff]
  %v1663 = vld [vmem:[%s1597 + $0x208] sm:$0xff]
  %v1664 = vld [vmem:[%s1597 + $0x210] sm:$0xff]
  %v1665 = vld [vmem:[%s1597 + $0x218] sm:$0xff]
  %v1666 = vld [vmem:[%s1597 + $0x220] sm:$0xff]
  %v1667 = vld [vmem:[%s1597 + $0x228] sm:$0xff]
  %v1668 = vld [vmem:[%s1597 + $0x230] sm:$0xff]
  %v1669 = vld [vmem:[%s1597 + $0x238] sm:$0xff]
  %v1670 = vld [vmem:[%s1597 + $0x240] sm:$0xff]
  %v1671 = vld [vmem:[%s1597 + $0x248] sm:$0xff]
  %v1672 = vld [vmem:[%s1597 + $0x250] sm:$0xff]
  %v1673 = vld [vmem:[%s1597 + $0x258] sm:$0xff]
  %v1674 = vld [vmem:[%s1597 + $0x260] sm:$0xff]
  %v1675 = vld [vmem:[%s1597 + $0x268] sm:$0xff]
  %v1676 = vld [vmem:[%s1597 + $0x270] sm:$0xff]
  %v1677 = vld [vmem:[%s1597 + $0x278] sm:$0xff]
  %v1678 = vld [vmem:[%s1597 + $0x280] sm:$0xff]
  %v1679 = vld [vmem:[%s1597 + $0x288] sm:$0xff]
  %v1680 = vld [vmem:[%s1597 + $0x290] sm:$0xff]
  %v1681 = vld [vmem:[%s1597 + $0x298] sm:$0xff]
  %v1682 = vld [vmem:[%s1597 + $0x2a0] sm:$0xff]
  %v1683 = vld [vmem:[%s1597 + $0x2a8] sm:$0xff]
  %v1684 = vld [vmem:[%s1597 + $0x2b0] sm:$0xff]
  %v1685 = vld [vmem:[%s1597 + $0x2b8] sm:$0xff]
  %v1686 = vld [vmem:[%s1597 + $0x2c0] sm:$0xff]
  %v1687 = vld [vmem:[%s1597 + $0x2c8] sm:$0xff]
  %v1688 = vld [vmem:[%s1597 + $0x2d0] sm:$0xff]
  %v1689 = vld [vmem:[%s1597 + $0x2d8] sm:$0xff]
  %v1690 = vld [vmem:[%s1597 + $0x2e0] sm:$0xff]
  %v1691 = vld [vmem:[%s1597 + $0x2e8] sm:$0xff]
  %v1692 = vld [vmem:[%s1597 + $0x2f0] sm:$0xff]
  %v1693 = vld [vmem:[%s1597 + $0x2f8] sm:$0xff]
  %s1694 = scalar_lea.vmem %s7, 6
  %v1695 = vld [vmem:[%s1694] sm:$0x3f]
  %v1697 = vlaneseq
  %v1698 = vshrl.u32 %v1697, 7
  %v1699 = vsub.s32 0, %v1698
  %v1700 = vrot.slane %v1695, %v1699
  %v1701 = vlaneseq
  %v1702 = vshrl.u32 %v1701, 7
  %v1703 = vsub.s32 1, %v1702
  %v1704 = vrot.slane %v1695, %v1703
  %v1705 = vlaneseq
  %v1706 = vshrl.u32 %v1705, 7
  %v1707 = vsub.s32 2, %v1706
  %v1708 = vrot.slane %v1695, %v1707
  %v1709 = vlaneseq
  %v1710 = vshrl.u32 %v1709, 7
  %v1711 = vsub.s32 3, %v1710
  %v1712 = vrot.slane %v1695, %v1711
  %v1713 = vlaneseq
  %v1714 = vshrl.u32 %v1713, 7
  %v1715 = vsub.s32 4, %v1714
  %v1716 = vrot.slane %v1695, %v1715
  %v1717 = vlaneseq
  %v1718 = vshrl.u32 %v1717, 7
  %v1719 = vsub.s32 5, %v1718
  %v1720 = vrot.slane %v1695, %v1719
  %v1728 = vrot.slane %v1217, 2
  %1730 = vmatprep.subr.mxu0 %v1689
  %1731 = vmatpush1.msra.mxu0 %v1688
  %1732 = vmatprep.subr.mxu0 %v1683
  %1733 = vmatpush1.msra.mxu0 %v1682
  %1734 = vmatprep.subr.mxu0 %v1677
  %1735 = vmatpush1.msra.mxu0 %v1676
  %1736 = vmatprep.subr.mxu0 %v1671
  %1737 = vmatpush1.msra.mxu0 %v1670
  %1738 = vmatprep.subr.mxu0 %v1665
  %1739 = vmatpush1.msra.mxu0 %v1664
  %1740 = vmatprep.subr.mxu0 %v1659
  %1741 = vmatpush1.msra.mxu0 %v1658
  %1742 = vmatprep.subr.mxu0 %v1653
  %1743 = vmatpush1.msra.mxu0 %v1652
  %1744 = vmatprep.subr.mxu0 %v1647
  %1745 = vmatpush1.msra.mxu0 %v1646
  %1746 = vmatprep.subr.mxu0 %v1641
  %1747 = vmatpush1.msra.mxu0 %v1640
  %1748 = vmatprep.subr.mxu0 %v1635
  %1749 = vmatpush1.msra.mxu0 %v1634
  %1750 = vmatprep.subr.mxu0 %v1629
  %1751 = vmatpush1.msra.mxu0 %v1628
  %1752 = vmatprep.subr.mxu0 %v1623
  %1753 = vmatpush1.msra.mxu0 %v1622
  %1754 = vmatprep.subr.mxu0 %v1617
  %1755 = vmatpush1.msra.mxu0 %v1616
  %1756 = vmatprep.subr.mxu0 %v1611
  %1757 = vmatpush1.msra.mxu0 %v1610
  %1758 = vmatprep.subr.mxu0 %v1605
  %1759 = vmatpush1.msra.mxu0 %v1604
  %1760 = vmatprep.subr.mxu0 %v1599
  %1761 = vmatpush1.msra.mxu0 %v1598
  %1762 = vmatprep.subr.mxu0 0.0
  %1763 = vmatpush2.msra.mxu0 0.0
  %1764 = vmatprep.subr.mxu0 0.0
  %1765 = vmatpush2.msra.mxu0 0.0
  %1766 = vmatprep.subr.mxu0 0.0
  %1767 = vmatpush2.msra.mxu0 0.0
  %1768 = vmatprep.subr.mxu0 0.0
  %1769 = vmatpush2.msra.mxu0 0.0
  %1770 = vmatprep.subr.mxu0 0.0
  %1771 = vmatpush2.msra.mxu0 0.0
  %1772 = vmatprep.subr.mxu0 0.0
  %1773 = vmatpush2.msra.mxu0 0.0
  %1774 = vmatprep.subr.mxu0 0.0
  %1775 = vmatpush2.msra.mxu0 0.0
  %1776 = vmatprep.subr.mxu0 0.0
  %1777 = vmatpush2.msra.mxu0 0.0
  %1778 = vmatprep.subr.mxu0 0.0
  %1779 = vmatpush2.msra.mxu0 0.0
  %1780 = vmatprep.subr.mxu0 0.0
  %1781 = vmatpush2.msra.mxu0 0.0
  %1782 = vmatprep.subr.mxu0 0.0
  %1783 = vmatpush2.msra.mxu0 0.0
  %1784 = vmatprep.subr.mxu0 0.0
  %1785 = vmatpush2.msra.mxu0 0.0
  %1786 = vmatprep.subr.mxu0 0.0
  %1787 = vmatpush2.msra.mxu0 0.0
  %1788 = vmatprep.subr.mxu0 0.0
  %1789 = vmatpush2.msra.mxu0 0.0
  %1790 = vmatprep.subr.mxu0 0.0
  %1791 = vmatpush2.msra.mxu0 0.0
  %1792 = vmatprep.subr.mxu0 0.0
  %1793 = vmatpush2.msra.mxu0 0.0
  %1794 = vmatprep.mubr.f32.mxu0 0.0
  %1795 = vmatmul.mubr.f32.gmra.mxu0 %v1728
  %v1796 = vpop.f32.mrf.mxu0
  %v1797 = vadd.f32 %v1700, %v1796
  %v1798 = vpop.f32.mrf.mxu0
  %v1799 = vadd.f32 %v1704, %v1798
  %1800 = vdwg.mxu0
  %1801 = vmatprep.subr.mxu0 %v1691
  %1802 = vmatpush1.msra.mxu0 %v1690
  %1803 = vmatprep.subr.mxu0 %v1685
  %1804 = vmatpush1.msra.mxu0 %v1684
  %1805 = vmatprep.subr.mxu0 %v1679
  %1806 = vmatpush1.msra.mxu0 %v1678
  %1807 = vmatprep.subr.mxu0 %v1673
  %1808 = vmatpush1.msra.mxu0 %v1672
  %1809 = vmatprep.subr.mxu0 %v1667
  %1810 = vmatpush1.msra.mxu0 %v1666
  %1811 = vmatprep.subr.mxu0 %v1661
  %1812 = vmatpush1.msra.mxu0 %v1660
  %1813 = vmatprep.subr.mxu0 %v1655
  %1814 = vmatpush1.msra.mxu0 %v1654
  %1815 = vmatprep.subr.mxu0 %v1649
  %1816 = vmatpush1.msra.mxu0 %v1648
  %1817 = vmatprep.subr.mxu0 %v1643
  %1818 = vmatpush1.msra.mxu0 %v1642
  %1819 = vmatprep.subr.mxu0 %v1637
  %1820 = vmatpush1.msra.mxu0 %v1636
  %1821 = vmatprep.subr.mxu0 %v1631
  %1822 = vmatpush1.msra.mxu0 %v1630
  %1823 = vmatprep.subr.mxu0 %v1625
  %1824 = vmatpush1.msra.mxu0 %v1624
  %1825 = vmatprep.subr.mxu0 %v1619
  %1826 = vmatpush1.msra.mxu0 %v1618
  %1827 = vmatprep.subr.mxu0 %v1613
  %1828 = vmatpush1.msra.mxu0 %v1612
  %1829 = vmatprep.subr.mxu0 %v1607
  %1830 = vmatpush1.msra.mxu0 %v1606
  %1831 = vmatprep.subr.mxu0 %v1601
  %1832 = vmatpush1.msra.mxu0 %v1600
  %1833 = vmatprep.subr.mxu0 0.0
  %1834 = vmatpush2.msra.mxu0 0.0
  %1835 = vmatprep.subr.mxu0 0.0
  %1836 = vmatpush2.msra.mxu0 0.0
  %1837 = vmatprep.subr.mxu0 0.0
  %1838 = vmatpush2.msra.mxu0 0.0
  %1839 = vmatprep.subr.mxu0 0.0
  %1840 = vmatpush2.msra.mxu0 0.0
  %1841 = vmatprep.subr.mxu0 0.0
  %1842 = vmatpush2.msra.mxu0 0.0
  %1843 = vmatprep.subr.mxu0 0.0
  %1844 = vmatpush2.msra.mxu0 0.0
  %1845 = vmatprep.subr.mxu0 0.0
  %1846 = vmatpush2.msra.mxu0 0.0
  %1847 = vmatprep.subr.mxu0 0.0
  %1848 = vmatpush2.msra.mxu0 0.0
  %1849 = vmatprep.subr.mxu0 0.0
  %1850 = vmatpush2.msra.mxu0 0.0
  %1851 = vmatprep.subr.mxu0 0.0
  %1852 = vmatpush2.msra.mxu0 0.0
  %1853 = vmatprep.subr.mxu0 0.0
  %1854 = vmatpush2.msra.mxu0 0.0
  %1855 = vmatprep.subr.mxu0 0.0
  %1856 = vmatpush2.msra.mxu0 0.0
  %1857 = vmatprep.subr.mxu0 0.0
  %1858 = vmatpush2.msra.mxu0 0.0
  %1859 = vmatprep.subr.mxu0 0.0
  %1860 = vmatpush2.msra.mxu0 0.0
  %1861 = vmatprep.subr.mxu0 0.0
  %1862 = vmatpush2.msra.mxu0 0.0
  %1863 = vmatprep.subr.mxu0 0.0
  %1864 = vmatpush2.msra.mxu0 0.0
  %1865 = vmatprep.mubr.f32.mxu0 0.0
  %1866 = vmatmul.mubr.f32.gmra.mxu0 %v1728
  %v1867 = vpop.f32.mrf.mxu0
  %v1868 = vadd.f32 %v1708, %v1867
  %v1869 = vpop.f32.mrf.mxu0
  %v1870 = vadd.f32 %v1712, %v1869
  %1871 = vdwg.mxu0
  %1872 = vmatprep.subr.mxu0 %v1693
  %1873 = vmatpush1.msra.mxu0 %v1692
  %1874 = vmatprep.subr.mxu0 %v1687
  %1875 = vmatpush1.msra.mxu0 %v1686
  %1876 = vmatprep.subr.mxu0 %v1681
  %1877 = vmatpush1.msra.mxu0 %v1680
  %1878 = vmatprep.subr.mxu0 %v1675
  %1879 = vmatpush1.msra.mxu0 %v1674
  %1880 = vmatprep.subr.mxu0 %v1669
  %1881 = vmatpush1.msra.mxu0 %v1668
  %1882 = vmatprep.subr.mxu0 %v1663
  %1883 = vmatpush1.msra.mxu0 %v1662
  %1884 = vmatprep.subr.mxu0 %v1657
  %1885 = vmatpush1.msra.mxu0 %v1656
  %1886 = vmatprep.subr.mxu0 %v1651
  %1887 = vmatpush1.msra.mxu0 %v1650
  %1888 = vmatprep.subr.mxu0 %v1645
  %1889 = vmatpush1.msra.mxu0 %v1644
  %1890 = vmatprep.subr.mxu0 %v1639
  %1891 = vmatpush1.msra.mxu0 %v1638
  %1892 = vmatprep.subr.mxu0 %v1633
  %1893 = vmatpush1.msra.mxu0 %v1632
  %1894 = vmatprep.subr.mxu0 %v1627
  %1895 = vmatpush1.msra.mxu0 %v1626
  %1896 = vmatprep.subr.mxu0 %v1621
  %1897 = vmatpush1.msra.mxu0 %v1620
  %1898 = vmatprep.subr.mxu0 %v1615
  %1899 = vmatpush1.msra.mxu0 %v1614
  %1900 = vmatprep.subr.mxu0 %v1609
  %1901 = vmatpush1.msra.mxu0 %v1608
  %1902 = vmatprep.subr.mxu0 %v1603
  %1903 = vmatpush1.msra.mxu0 %v1602
  %1904 = vmatprep.subr.mxu0 0.0
  %1905 = vmatpush2.msra.mxu0 0.0
  %1906 = vmatprep.subr.mxu0 0.0
  %1907 = vmatpush2.msra.mxu0 0.0
  %1908 = vmatprep.subr.mxu0 0.0
  %1909 = vmatpush2.msra.mxu0 0.0
  %1910 = vmatprep.subr.mxu0 0.0
  %1911 = vmatpush2.msra.mxu0 0.0
  %1912 = vmatprep.subr.mxu0 0.0
  %1913 = vmatpush2.msra.mxu0 0.0
  %1914 = vmatprep.subr.mxu0 0.0
  %1915 = vmatpush2.msra.mxu0 0.0
  %1916 = vmatprep.subr.mxu0 0.0
  %1917 = vmatpush2.msra.mxu0 0.0
  %1918 = vmatprep.subr.mxu0 0.0
  %1919 = vmatpush2.msra.mxu0 0.0
  %1920 = vmatprep.subr.mxu0 0.0
  %1921 = vmatpush2.msra.mxu0 0.0
  %1922 = vmatprep.subr.mxu0 0.0
  %1923 = vmatpush2.msra.mxu0 0.0
  %1924 = vmatprep.subr.mxu0 0.0
  %1925 = vmatpush2.msra.mxu0 0.0
  %1926 = vmatprep.subr.mxu0 0.0
  %1927 = vmatpush2.msra.mxu0 0.0
  %1928 = vmatprep.subr.mxu0 0.0
  %1929 = vmatpush2.msra.mxu0 0.0
  %1930 = vmatprep.subr.mxu0 0.0
  %1931 = vmatpush2.msra.mxu0 0.0
  %1932 = vmatprep.subr.mxu0 0.0
  %1933 = vmatpush2.msra.mxu0 0.0
  %1934 = vmatprep.subr.mxu0 0.0
  %1935 = vmatpush2.msra.mxu0 0.0
  %1936 = vmatprep.mubr.f32.mxu0 0.0
  %1937 = vmatmul.mubr.f32.gmra.mxu0 %v1728
  %v1938 = vpop.f32.mrf.mxu0
  %v1939 = vadd.f32 %v1716, %v1938
  %v1940 = vpop.f32.mrf.mxu0
  %v1941 = vadd.f32 %v1720, %v1940
  %1942 = vdwg.mxu0
  %v1949 = vcombine.low %v1797, %v1799
  %v1950 = vcombine.low %v1868, %v1870
  %v1952 = vunpack.c.l.s4 1983009808
  %v1953 = vunpack.c.0.s8 %v1952
  %v1954 = vlaneseq
  %v1955 = vshrl.u32 %v1954, 7
  %v1956 = vsub.s32 %v1953, %v1955
  %v1957 = vrot.slane %v1949, %v1956
  %v1959 = vunpack.c.l.s4 1983009808
  %v1960 = vunpack.c.0.s8 %v1959
  %v1961 = vlaneseq
  %v1962 = vshrl.u32 %v1961, 7
  %v1963 = vsub.s32 %v1960, %v1962
  %v1964 = vrot.slane %v1950, %v1963
  %v1965 = vcombine.low %v1957, %v1964
  %v1966 = vcombine.low %v1939, %v1941
  %v1968 = vunpack.c.l.s4 1983009808
  %v1969 = vunpack.c.0.s8 %v1968
  %v1970 = vlaneseq
  %v1971 = vshrl.u32 %v1970, 7
  %v1972 = vsub.s32 %v1969, %v1971
  %v1973 = vrot.slane %v1966, %v1972
  %s1976 = scalar_lea.vmem %s9, 12
  %1977 = vst [vmem:[%s1976] sm:$0xff] %v1965
  %1978 = vst [vmem:[%s1976 + $0x8] sm:$0xf] %v1973
  %s1979 = scalar_lea.vmem %s6, 1536
  %v1980 = vld [vmem:[%s1979] sm:$0xff]
  %v1981 = vld [vmem:[%s1979 + $0x8] sm:$0xff]
  %v1982 = vld [vmem:[%s1979 + $0x10] sm:$0xff]
  %v1983 = vld [vmem:[%s1979 + $0x18] sm:$0xff]
  %v1984 = vld [vmem:[%s1979 + $0x20] sm:$0xff]
  %v1985 = vld [vmem:[%s1979 + $0x28] sm:$0xff]
  %v1986 = vld [vmem:[%s1979 + $0x30] sm:$0xff]
  %v1987 = vld [vmem:[%s1979 + $0x38] sm:$0xff]
  %v1988 = vld [vmem:[%s1979 + $0x40] sm:$0xff]
  %v1989 = vld [vmem:[%s1979 + $0x48] sm:$0xff]
  %v1990 = vld [vmem:[%s1979 + $0x50] sm:$0xff]
  %v1991 = vld [vmem:[%s1979 + $0x58] sm:$0xff]
  %v1992 = vld [vmem:[%s1979 + $0x60] sm:$0xff]
  %v1993 = vld [vmem:[%s1979 + $0x68] sm:$0xff]
  %v1994 = vld [vmem:[%s1979 + $0x70] sm:$0xff]
  %v1995 = vld [vmem:[%s1979 + $0x78] sm:$0xff]
  %v1996 = vld [vmem:[%s1979 + $0x80] sm:$0xff]
  %v1997 = vld [vmem:[%s1979 + $0x88] sm:$0xff]
  %v1998 = vld [vmem:[%s1979 + $0x90] sm:$0xff]
  %v1999 = vld [vmem:[%s1979 + $0x98] sm:$0xff]
  %v2000 = vld [vmem:[%s1979 + $0xa0] sm:$0xff]
  %v2001 = vld [vmem:[%s1979 + $0xa8] sm:$0xff]
  %v2002 = vld [vmem:[%s1979 + $0xb0] sm:$0xff]
  %v2003 = vld [vmem:[%s1979 + $0xb8] sm:$0xff]
  %v2004 = vld [vmem:[%s1979 + $0xc0] sm:$0xff]
  %v2005 = vld [vmem:[%s1979 + $0xc8] sm:$0xff]
  %v2006 = vld [vmem:[%s1979 + $0xd0] sm:$0xff]
  %v2007 = vld [vmem:[%s1979 + $0xd8] sm:$0xff]
  %v2008 = vld [vmem:[%s1979 + $0xe0] sm:$0xff]
  %v2009 = vld [vmem:[%s1979 + $0xe8] sm:$0xff]
  %v2010 = vld [vmem:[%s1979 + $0xf0] sm:$0xff]
  %v2011 = vld [vmem:[%s1979 + $0xf8] sm:$0xff]
  %v2012 = vld [vmem:[%s1979 + $0x100] sm:$0xff]
  %v2013 = vld [vmem:[%s1979 + $0x108] sm:$0xff]
  %v2014 = vld [vmem:[%s1979 + $0x110] sm:$0xff]
  %v2015 = vld [vmem:[%s1979 + $0x118] sm:$0xff]
  %v2016 = vld [vmem:[%s1979 + $0x120] sm:$0xff]
  %v2017 = vld [vmem:[%s1979 + $0x128] sm:$0xff]
  %v2018 = vld [vmem:[%s1979 + $0x130] sm:$0xff]
  %v2019 = vld [vmem:[%s1979 + $0x138] sm:$0xff]
  %v2020 = vld [vmem:[%s1979 + $0x140] sm:$0xff]
  %v2021 = vld [vmem:[%s1979 + $0x148] sm:$0xff]
  %v2022 = vld [vmem:[%s1979 + $0x150] sm:$0xff]
  %v2023 = vld [vmem:[%s1979 + $0x158] sm:$0xff]
  %v2024 = vld [vmem:[%s1979 + $0x160] sm:$0xff]
  %v2025 = vld [vmem:[%s1979 + $0x168] sm:$0xff]
  %v2026 = vld [vmem:[%s1979 + $0x170] sm:$0xff]
  %v2027 = vld [vmem:[%s1979 + $0x178] sm:$0xff]
  %v2028 = vld [vmem:[%s1979 + $0x180] sm:$0xff]
  %v2029 = vld [vmem:[%s1979 + $0x188] sm:$0xff]
  %v2030 = vld [vmem:[%s1979 + $0x190] sm:$0xff]
  %v2031 = vld [vmem:[%s1979 + $0x198] sm:$0xff]
  %v2032 = vld [vmem:[%s1979 + $0x1a0] sm:$0xff]
  %v2033 = vld [vmem:[%s1979 + $0x1a8] sm:$0xff]
  %v2034 = vld [vmem:[%s1979 + $0x1b0] sm:$0xff]
  %v2035 = vld [vmem:[%s1979 + $0x1b8] sm:$0xff]
  %v2036 = vld [vmem:[%s1979 + $0x1c0] sm:$0xff]
  %v2037 = vld [vmem:[%s1979 + $0x1c8] sm:$0xff]
  %v2038 = vld [vmem:[%s1979 + $0x1d0] sm:$0xff]
  %v2039 = vld [vmem:[%s1979 + $0x1d8] sm:$0xff]
  %v2040 = vld [vmem:[%s1979 + $0x1e0] sm:$0xff]
  %v2041 = vld [vmem:[%s1979 + $0x1e8] sm:$0xff]
  %v2042 = vld [vmem:[%s1979 + $0x1f0] sm:$0xff]
  %v2043 = vld [vmem:[%s1979 + $0x1f8] sm:$0xff]
  %v2044 = vld [vmem:[%s1979 + $0x200] sm:$0xff]
  %v2045 = vld [vmem:[%s1979 + $0x208] sm:$0xff]
  %v2046 = vld [vmem:[%s1979 + $0x210] sm:$0xff]
  %v2047 = vld [vmem:[%s1979 + $0x218] sm:$0xff]
  %v2048 = vld [vmem:[%s1979 + $0x220] sm:$0xff]
  %v2049 = vld [vmem:[%s1979 + $0x228] sm:$0xff]
  %v2050 = vld [vmem:[%s1979 + $0x230] sm:$0xff]
  %v2051 = vld [vmem:[%s1979 + $0x238] sm:$0xff]
  %v2052 = vld [vmem:[%s1979 + $0x240] sm:$0xff]
  %v2053 = vld [vmem:[%s1979 + $0x248] sm:$0xff]
  %v2054 = vld [vmem:[%s1979 + $0x250] sm:$0xff]
  %v2055 = vld [vmem:[%s1979 + $0x258] sm:$0xff]
  %v2056 = vld [vmem:[%s1979 + $0x260] sm:$0xff]
  %v2057 = vld [vmem:[%s1979 + $0x268] sm:$0xff]
  %v2058 = vld [vmem:[%s1979 + $0x270] sm:$0xff]
  %v2059 = vld [vmem:[%s1979 + $0x278] sm:$0xff]
  %v2060 = vld [vmem:[%s1979 + $0x280] sm:$0xff]
  %v2061 = vld [vmem:[%s1979 + $0x288] sm:$0xff]
  %v2062 = vld [vmem:[%s1979 + $0x290] sm:$0xff]
  %v2063 = vld [vmem:[%s1979 + $0x298] sm:$0xff]
  %v2064 = vld [vmem:[%s1979 + $0x2a0] sm:$0xff]
  %v2065 = vld [vmem:[%s1979 + $0x2a8] sm:$0xff]
  %v2066 = vld [vmem:[%s1979 + $0x2b0] sm:$0xff]
  %v2067 = vld [vmem:[%s1979 + $0x2b8] sm:$0xff]
  %v2068 = vld [vmem:[%s1979 + $0x2c0] sm:$0xff]
  %v2069 = vld [vmem:[%s1979 + $0x2c8] sm:$0xff]
  %v2070 = vld [vmem:[%s1979 + $0x2d0] sm:$0xff]
  %v2071 = vld [vmem:[%s1979 + $0x2d8] sm:$0xff]
  %v2072 = vld [vmem:[%s1979 + $0x2e0] sm:$0xff]
  %v2073 = vld [vmem:[%s1979 + $0x2e8] sm:$0xff]
  %v2074 = vld [vmem:[%s1979 + $0x2f0] sm:$0xff]
  %v2075 = vld [vmem:[%s1979 + $0x2f8] sm:$0xff]
  %s2076 = scalar_lea.vmem %s7, 12
  %v2077 = vld [vmem:[%s2076] sm:$0x3f]
  %v2079 = vlaneseq
  %v2080 = vshrl.u32 %v2079, 7
  %v2081 = vsub.s32 0, %v2080
  %v2082 = vrot.slane %v2077, %v2081
  %v2083 = vlaneseq
  %v2084 = vshrl.u32 %v2083, 7
  %v2085 = vsub.s32 1, %v2084
  %v2086 = vrot.slane %v2077, %v2085
  %v2087 = vlaneseq
  %v2088 = vshrl.u32 %v2087, 7
  %v2089 = vsub.s32 2, %v2088
  %v2090 = vrot.slane %v2077, %v2089
  %v2091 = vlaneseq
  %v2092 = vshrl.u32 %v2091, 7
  %v2093 = vsub.s32 3, %v2092
  %v2094 = vrot.slane %v2077, %v2093
  %v2095 = vlaneseq
  %v2096 = vshrl.u32 %v2095, 7
  %v2097 = vsub.s32 4, %v2096
  %v2098 = vrot.slane %v2077, %v2097
  %v2099 = vlaneseq
  %v2100 = vshrl.u32 %v2099, 7
  %v2101 = vsub.s32 5, %v2100
  %v2102 = vrot.slane %v2077, %v2101
  %v2109 = vrot.slane %v1217, 4
  %2111 = vmatprep.subr.mxu0 %v2071
  %2112 = vmatpush1.msra.mxu0 %v2070
  %2113 = vmatprep.subr.mxu0 %v2065
  %2114 = vmatpush1.msra.mxu0 %v2064
  %2115 = vmatprep.subr.mxu0 %v2059
  %2116 = vmatpush1.msra.mxu0 %v2058
  %2117 = vmatprep.subr.mxu0 %v2053
  %2118 = vmatpush1.msra.mxu0 %v2052
  %2119 = vmatprep.subr.mxu0 %v2047
  %2120 = vmatpush1.msra.mxu0 %v2046
  %2121 = vmatprep.subr.mxu0 %v2041
  %2122 = vmatpush1.msra.mxu0 %v2040
  %2123 = vmatprep.subr.mxu0 %v2035
  %2124 = vmatpush1.msra.mxu0 %v2034
  %2125 = vmatprep.subr.mxu0 %v2029
  %2126 = vmatpush1.msra.mxu0 %v2028
  %2127 = vmatprep.subr.mxu0 %v2023
  %2128 = vmatpush1.msra.mxu0 %v2022
  %2129 = vmatprep.subr.mxu0 %v2017
  %2130 = vmatpush1.msra.mxu0 %v2016
  %2131 = vmatprep.subr.mxu0 %v2011
  %2132 = vmatpush1.msra.mxu0 %v2010
  %2133 = vmatprep.subr.mxu0 %v2005
  %2134 = vmatpush1.msra.mxu0 %v2004
  %2135 = vmatprep.subr.mxu0 %v1999
  %2136 = vmatpush1.msra.mxu0 %v1998
  %2137 = vmatprep.subr.mxu0 %v1993
  %2138 = vmatpush1.msra.mxu0 %v1992
  %2139 = vmatprep.subr.mxu0 %v1987
  %2140 = vmatpush1.msra.mxu0 %v1986
  %2141 = vmatprep.subr.mxu0 %v1981
  %2142 = vmatpush1.msra.mxu0 %v1980
  %2143 = vmatprep.subr.mxu0 0.0
  %2144 = vmatpush2.msra.mxu0 0.0
  %2145 = vmatprep.subr.mxu0 0.0
  %2146 = vmatpush2.msra.mxu0 0.0
  %2147 = vmatprep.subr.mxu0 0.0
  %2148 = vmatpush2.msra.mxu0 0.0
  %2149 = vmatprep.subr.mxu0 0.0
  %2150 = vmatpush2.msra.mxu0 0.0
  %2151 = vmatprep.subr.mxu0 0.0
  %2152 = vmatpush2.msra.mxu0 0.0
  %2153 = vmatprep.subr.mxu0 0.0
  %2154 = vmatpush2.msra.mxu0 0.0
  %2155 = vmatprep.subr.mxu0 0.0
  %2156 = vmatpush2.msra.mxu0 0.0
  %2157 = vmatprep.subr.mxu0 0.0
  %2158 = vmatpush2.msra.mxu0 0.0
  %2159 = vmatprep.subr.mxu0 0.0
  %2160 = vmatpush2.msra.mxu0 0.0
  %2161 = vmatprep.subr.mxu0 0.0
  %2162 = vmatpush2.msra.mxu0 0.0
  %2163 = vmatprep.subr.mxu0 0.0
  %2164 = vmatpush2.msra.mxu0 0.0
  %2165 = vmatprep.subr.mxu0 0.0
  %2166 = vmatpush2.msra.mxu0 0.0
  %2167 = vmatprep.subr.mxu0 0.0
  %2168 = vmatpush2.msra.mxu0 0.0
  %2169 = vmatprep.subr.mxu0 0.0
  %2170 = vmatpush2.msra.mxu0 0.0
  %2171 = vmatprep.subr.mxu0 0.0
  %2172 = vmatpush2.msra.mxu0 0.0
  %2173 = vmatprep.subr.mxu0 0.0
  %2174 = vmatpush2.msra.mxu0 0.0
  %2175 = vmatprep.mubr.f32.mxu0 0.0
  %2176 = vmatmul.mubr.f32.gmra.mxu0 %v2109
  %v2177 = vpop.f32.mrf.mxu0
  %v2178 = vadd.f32 %v2082, %v2177
  %v2179 = vpop.f32.mrf.mxu0
  %v2180 = vadd.f32 %v2086, %v2179
  %2181 = vdwg.mxu0
  %2182 = vmatprep.subr.mxu0 %v2073
  %2183 = vmatpush1.msra.mxu0 %v2072
  %2184 = vmatprep.subr.mxu0 %v2067
  %2185 = vmatpush1.msra.mxu0 %v2066
  %2186 = vmatprep.subr.mxu0 %v2061
  %2187 = vmatpush1.msra.mxu0 %v2060
  %2188 = vmatprep.subr.mxu0 %v2055
  %2189 = vmatpush1.msra.mxu0 %v2054
  %2190 = vmatprep.subr.mxu0 %v2049
  %2191 = vmatpush1.msra.mxu0 %v2048
  %2192 = vmatprep.subr.mxu0 %v2043
  %2193 = vmatpush1.msra.mxu0 %v2042
  %2194 = vmatprep.subr.mxu0 %v2037
  %2195 = vmatpush1.msra.mxu0 %v2036
  %2196 = vmatprep.subr.mxu0 %v2031
  %2197 = vmatpush1.msra.mxu0 %v2030
  %2198 = vmatprep.subr.mxu0 %v2025
  %2199 = vmatpush1.msra.mxu0 %v2024
  %2200 = vmatprep.subr.mxu0 %v2019
  %2201 = vmatpush1.msra.mxu0 %v2018
  %2202 = vmatprep.subr.mxu0 %v2013
  %2203 = vmatpush1.msra.mxu0 %v2012
  %2204 = vmatprep.subr.mxu0 %v2007
  %2205 = vmatpush1.msra.mxu0 %v2006
  %2206 = vmatprep.subr.mxu0 %v2001
  %2207 = vmatpush1.msra.mxu0 %v2000
  %2208 = vmatprep.subr.mxu0 %v1995
  %2209 = vmatpush1.msra.mxu0 %v1994
  %2210 = vmatprep.subr.mxu0 %v1989
  %2211 = vmatpush1.msra.mxu0 %v1988
  %2212 = vmatprep.subr.mxu0 %v1983
  %2213 = vmatpush1.msra.mxu0 %v1982
  %2214 = vmatprep.subr.mxu0 0.0
  %2215 = vmatpush2.msra.mxu0 0.0
  %2216 = vmatprep.subr.mxu0 0.0
  %2217 = vmatpush2.msra.mxu0 0.0
  %2218 = vmatprep.subr.mxu0 0.0
  %2219 = vmatpush2.msra.mxu0 0.0
  %2220 = vmatprep.subr.mxu0 0.0
  %2221 = vmatpush2.msra.mxu0 0.0
  %2222 = vmatprep.subr.mxu0 0.0
  %2223 = vmatpush2.msra.mxu0 0.0
  %2224 = vmatprep.subr.mxu0 0.0
  %2225 = vmatpush2.msra.mxu0 0.0
  %2226 = vmatprep.subr.mxu0 0.0
  %2227 = vmatpush2.msra.mxu0 0.0
  %2228 = vmatprep.subr.mxu0 0.0
  %2229 = vmatpush2.msra.mxu0 0.0
  %2230 = vmatprep.subr.mxu0 0.0
  %2231 = vmatpush2.msra.mxu0 0.0
  %2232 = vmatprep.subr.mxu0 0.0
  %2233 = vmatpush2.msra.mxu0 0.0
  %2234 = vmatprep.subr.mxu0 0.0
  %2235 = vmatpush2.msra.mxu0 0.0
  %2236 = vmatprep.subr.mxu0 0.0
  %2237 = vmatpush2.msra.mxu0 0.0
  %2238 = vmatprep.subr.mxu0 0.0
  %2239 = vmatpush2.msra.mxu0 0.0
  %2240 = vmatprep.subr.mxu0 0.0
  %2241 = vmatpush2.msra.mxu0 0.0
  %2242 = vmatprep.subr.mxu0 0.0
  %2243 = vmatpush2.msra.mxu0 0.0
  %2244 = vmatprep.subr.mxu0 0.0
  %2245 = vmatpush2.msra.mxu0 0.0
  %2246 = vmatprep.mubr.f32.mxu0 0.0
  %2247 = vmatmul.mubr.f32.gmra.mxu0 %v2109
  %v2248 = vpop.f32.mrf.mxu0
  %v2249 = vadd.f32 %v2090, %v2248
  %v2250 = vpop.f32.mrf.mxu0
  %v2251 = vadd.f32 %v2094, %v2250
  %2252 = vdwg.mxu0
  %2253 = vmatprep.subr.mxu0 %v2075
  %2254 = vmatpush1.msra.mxu0 %v2074
  %2255 = vmatprep.subr.mxu0 %v2069
  %2256 = vmatpush1.msra.mxu0 %v2068
  %2257 = vmatprep.subr.mxu0 %v2063
  %2258 = vmatpush1.msra.mxu0 %v2062
  %2259 = vmatprep.subr.mxu0 %v2057
  %2260 = vmatpush1.msra.mxu0 %v2056
  %2261 = vmatprep.subr.mxu0 %v2051
  %2262 = vmatpush1.msra.mxu0 %v2050
  %2263 = vmatprep.subr.mxu0 %v2045
  %2264 = vmatpush1.msra.mxu0 %v2044
  %2265 = vmatprep.subr.mxu0 %v2039
  %2266 = vmatpush1.msra.mxu0 %v2038
  %2267 = vmatprep.subr.mxu0 %v2033
  %2268 = vmatpush1.msra.mxu0 %v2032
  %2269 = vmatprep.subr.mxu0 %v2027
  %2270 = vmatpush1.msra.mxu0 %v2026
  %2271 = vmatprep.subr.mxu0 %v2021
  %2272 = vmatpush1.msra.mxu0 %v2020
  %2273 = vmatprep.subr.mxu0 %v2015
  %2274 = vmatpush1.msra.mxu0 %v2014
  %2275 = vmatprep.subr.mxu0 %v2009
  %2276 = vmatpush1.msra.mxu0 %v2008
  %2277 = vmatprep.subr.mxu0 %v2003
  %2278 = vmatpush1.msra.mxu0 %v2002
  %2279 = vmatprep.subr.mxu0 %v1997
  %2280 = vmatpush1.msra.mxu0 %v1996
  %2281 = vmatprep.subr.mxu0 %v1991
  %2282 = vmatpush1.msra.mxu0 %v1990
  %2283 = vmatprep.subr.mxu0 %v1985
  %2284 = vmatpush1.msra.mxu0 %v1984
  %2285 = vmatprep.subr.mxu0 0.0
  %2286 = vmatpush2.msra.mxu0 0.0
  %2287 = vmatprep.subr.mxu0 0.0
  %2288 = vmatpush2.msra.mxu0 0.0
  %2289 = vmatprep.subr.mxu0 0.0
  %2290 = vmatpush2.msra.mxu0 0.0
  %2291 = vmatprep.subr.mxu0 0.0
  %2292 = vmatpush2.msra.mxu0 0.0
  %2293 = vmatprep.subr.mxu0 0.0
  %2294 = vmatpush2.msra.mxu0 0.0
  %2295 = vmatprep.subr.mxu0 0.0
  %2296 = vmatpush2.msra.mxu0 0.0
  %2297 = vmatprep.subr.mxu0 0.0
  %2298 = vmatpush2.msra.mxu0 0.0
  %2299 = vmatprep.subr.mxu0 0.0
  %2300 = vmatpush2.msra.mxu0 0.0
  %2301 = vmatprep.subr.mxu0 0.0
  %2302 = vmatpush2.msra.mxu0 0.0
  %2303 = vmatprep.subr.mxu0 0.0
  %2304 = vmatpush2.msra.mxu0 0.0
  %2305 = vmatprep.subr.mxu0 0.0
  %2306 = vmatpush2.msra.mxu0 0.0
  %2307 = vmatprep.subr.mxu0 0.0
  %2308 = vmatpush2.msra.mxu0 0.0
  %2309 = vmatprep.subr.mxu0 0.0
  %2310 = vmatpush2.msra.mxu0 0.0
  %2311 = vmatprep.subr.mxu0 0.0
  %2312 = vmatpush2.msra.mxu0 0.0
  %2313 = vmatprep.subr.mxu0 0.0
  %2314 = vmatpush2.msra.mxu0 0.0
  %2315 = vmatprep.subr.mxu0 0.0
  %2316 = vmatpush2.msra.mxu0 0.0
  %2317 = vmatprep.mubr.f32.mxu0 0.0
  %2318 = vmatmul.mubr.f32.gmra.mxu0 %v2109
  %v2319 = vpop.f32.mrf.mxu0
  %v2320 = vadd.f32 %v2098, %v2319
  %v2321 = vpop.f32.mrf.mxu0
  %v2322 = vadd.f32 %v2102, %v2321
  %2323 = vdwg.mxu0
  %v2330 = vcombine.low %v2178, %v2180
  %v2331 = vcombine.low %v2249, %v2251
  %v2333 = vunpack.c.l.s4 1983009808
  %v2334 = vunpack.c.0.s8 %v2333
  %v2335 = vlaneseq
  %v2336 = vshrl.u32 %v2335, 7
  %v2337 = vsub.s32 %v2334, %v2336
  %v2338 = vrot.slane %v2330, %v2337
  %v2340 = vunpack.c.l.s4 1983009808
  %v2341 = vunpack.c.0.s8 %v2340
  %v2342 = vlaneseq
  %v2343 = vshrl.u32 %v2342, 7
  %v2344 = vsub.s32 %v2341, %v2343
  %v2345 = vrot.slane %v2331, %v2344
  %v2346 = vcombine.low %v2338, %v2345
  %v2347 = vcombine.low %v2320, %v2322
  %v2349 = vunpack.c.l.s4 1983009808
  %v2350 = vunpack.c.0.s8 %v2349
  %v2351 = vlaneseq
  %v2352 = vshrl.u32 %v2351, 7
  %v2353 = vsub.s32 %v2350, %v2352
  %v2354 = vrot.slane %v2347, %v2353
  %s2357 = scalar_lea.vmem %s9, 24
  %2358 = vst [vmem:[%s2357] sm:$0xff] %v2346
  %2359 = vst [vmem:[%s2357 + $0x8] sm:$0xf] %v2354
  %s2360 = scalar_lea.vmem %s6, 2304
  %v2361 = vld [vmem:[%s2360] sm:$0xff]
  %v2362 = vld [vmem:[%s2360 + $0x8] sm:$0xff]
  %v2363 = vld [vmem:[%s2360 + $0x10] sm:$0xff]
  %v2364 = vld [vmem:[%s2360 + $0x18] sm:$0xff]
  %v2365 = vld [vmem:[%s2360 + $0x20] sm:$0xff]
  %v2366 = vld [vmem:[%s2360 + $0x28] sm:$0xff]
  %v2367 = vld [vmem:[%s2360 + $0x30] sm:$0xff]
  %v2368 = vld [vmem:[%s2360 + $0x38] sm:$0xff]
  %v2369 = vld [vmem:[%s2360 + $0x40] sm:$0xff]
  %v2370 = vld [vmem:[%s2360 + $0x48] sm:$0xff]
  %v2371 = vld [vmem:[%s2360 + $0x50] sm:$0xff]
  %v2372 = vld [vmem:[%s2360 + $0x58] sm:$0xff]
  %v2373 = vld [vmem:[%s2360 + $0x60] sm:$0xff]
  %v2374 = vld [vmem:[%s2360 + $0x68] sm:$0xff]
  %v2375 = vld [vmem:[%s2360 + $0x70] sm:$0xff]
  %v2376 = vld [vmem:[%s2360 + $0x78] sm:$0xff]
  %v2377 = vld [vmem:[%s2360 + $0x80] sm:$0xff]
  %v2378 = vld [vmem:[%s2360 + $0x88] sm:$0xff]
  %v2379 = vld [vmem:[%s2360 + $0x90] sm:$0xff]
  %v2380 = vld [vmem:[%s2360 + $0x98] sm:$0xff]
  %v2381 = vld [vmem:[%s2360 + $0xa0] sm:$0xff]
  %v2382 = vld [vmem:[%s2360 + $0xa8] sm:$0xff]
  %v2383 = vld [vmem:[%s2360 + $0xb0] sm:$0xff]
  %v2384 = vld [vmem:[%s2360 + $0xb8] sm:$0xff]
  %v2385 = vld [vmem:[%s2360 + $0xc0] sm:$0xff]
  %v2386 = vld [vmem:[%s2360 + $0xc8] sm:$0xff]
  %v2387 = vld [vmem:[%s2360 + $0xd0] sm:$0xff]
  %v2388 = vld [vmem:[%s2360 + $0xd8] sm:$0xff]
  %v2389 = vld [vmem:[%s2360 + $0xe0] sm:$0xff]
  %v2390 = vld [vmem:[%s2360 + $0xe8] sm:$0xff]
  %v2391 = vld [vmem:[%s2360 + $0xf0] sm:$0xff]
  %v2392 = vld [vmem:[%s2360 + $0xf8] sm:$0xff]
  %v2393 = vld [vmem:[%s2360 + $0x100] sm:$0xff]
  %v2394 = vld [vmem:[%s2360 + $0x108] sm:$0xff]
  %v2395 = vld [vmem:[%s2360 + $0x110] sm:$0xff]
  %v2396 = vld [vmem:[%s2360 + $0x118] sm:$0xff]
  %v2397 = vld [vmem:[%s2360 + $0x120] sm:$0xff]
  %v2398 = vld [vmem:[%s2360 + $0x128] sm:$0xff]
  %v2399 = vld [vmem:[%s2360 + $0x130] sm:$0xff]
  %v2400 = vld [vmem:[%s2360 + $0x138] sm:$0xff]
  %v2401 = vld [vmem:[%s2360 + $0x140] sm:$0xff]
  %v2402 = vld [vmem:[%s2360 + $0x148] sm:$0xff]
  %v2403 = vld [vmem:[%s2360 + $0x150] sm:$0xff]
  %v2404 = vld [vmem:[%s2360 + $0x158] sm:$0xff]
  %v2405 = vld [vmem:[%s2360 + $0x160] sm:$0xff]
  %v2406 = vld [vmem:[%s2360 + $0x168] sm:$0xff]
  %v2407 = vld [vmem:[%s2360 + $0x170] sm:$0xff]
  %v2408 = vld [vmem:[%s2360 + $0x178] sm:$0xff]
  %v2409 = vld [vmem:[%s2360 + $0x180] sm:$0xff]
  %v2410 = vld [vmem:[%s2360 + $0x188] sm:$0xff]
  %v2411 = vld [vmem:[%s2360 + $0x190] sm:$0xff]
  %v2412 = vld [vmem:[%s2360 + $0x198] sm:$0xff]
  %v2413 = vld [vmem:[%s2360 + $0x1a0] sm:$0xff]
  %v2414 = vld [vmem:[%s2360 + $0x1a8] sm:$0xff]
  %v2415 = vld [vmem:[%s2360 + $0x1b0] sm:$0xff]
  %v2416 = vld [vmem:[%s2360 + $0x1b8] sm:$0xff]
  %v2417 = vld [vmem:[%s2360 + $0x1c0] sm:$0xff]
  %v2418 = vld [vmem:[%s2360 + $0x1c8] sm:$0xff]
  %v2419 = vld [vmem:[%s2360 + $0x1d0] sm:$0xff]
  %v2420 = vld [vmem:[%s2360 + $0x1d8] sm:$0xff]
  %v2421 = vld [vmem:[%s2360 + $0x1e0] sm:$0xff]
  %v2422 = vld [vmem:[%s2360 + $0x1e8] sm:$0xff]
  %v2423 = vld [vmem:[%s2360 + $0x1f0] sm:$0xff]
  %v2424 = vld [vmem:[%s2360 + $0x1f8] sm:$0xff]
  %v2425 = vld [vmem:[%s2360 + $0x200] sm:$0xff]
  %v2426 = vld [vmem:[%s2360 + $0x208] sm:$0xff]
  %v2427 = vld [vmem:[%s2360 + $0x210] sm:$0xff]
  %v2428 = vld [vmem:[%s2360 + $0x218] sm:$0xff]
  %v2429 = vld [vmem:[%s2360 + $0x220] sm:$0xff]
  %v2430 = vld [vmem:[%s2360 + $0x228] sm:$0xff]
  %v2431 = vld [vmem:[%s2360 + $0x230] sm:$0xff]
  %v2432 = vld [vmem:[%s2360 + $0x238] sm:$0xff]
  %v2433 = vld [vmem:[%s2360 + $0x240] sm:$0xff]
  %v2434 = vld [vmem:[%s2360 + $0x248] sm:$0xff]
  %v2435 = vld [vmem:[%s2360 + $0x250] sm:$0xff]
  %v2436 = vld [vmem:[%s2360 + $0x258] sm:$0xff]
  %v2437 = vld [vmem:[%s2360 + $0x260] sm:$0xff]
  %v2438 = vld [vmem:[%s2360 + $0x268] sm:$0xff]
  %v2439 = vld [vmem:[%s2360 + $0x270] sm:$0xff]
  %v2440 = vld [vmem:[%s2360 + $0x278] sm:$0xff]
  %v2441 = vld [vmem:[%s2360 + $0x280] sm:$0xff]
  %v2442 = vld [vmem:[%s2360 + $0x288] sm:$0xff]
  %v2443 = vld [vmem:[%s2360 + $0x290] sm:$0xff]
  %v2444 = vld [vmem:[%s2360 + $0x298] sm:$0xff]
  %v2445 = vld [vmem:[%s2360 + $0x2a0] sm:$0xff]
  %v2446 = vld [vmem:[%s2360 + $0x2a8] sm:$0xff]
  %v2447 = vld [vmem:[%s2360 + $0x2b0] sm:$0xff]
  %v2448 = vld [vmem:[%s2360 + $0x2b8] sm:$0xff]
  %v2449 = vld [vmem:[%s2360 + $0x2c0] sm:$0xff]
  %v2450 = vld [vmem:[%s2360 + $0x2c8] sm:$0xff]
  %v2451 = vld [vmem:[%s2360 + $0x2d0] sm:$0xff]
  %v2452 = vld [vmem:[%s2360 + $0x2d8] sm:$0xff]
  %v2453 = vld [vmem:[%s2360 + $0x2e0] sm:$0xff]
  %v2454 = vld [vmem:[%s2360 + $0x2e8] sm:$0xff]
  %v2455 = vld [vmem:[%s2360 + $0x2f0] sm:$0xff]
  %v2456 = vld [vmem:[%s2360 + $0x2f8] sm:$0xff]
  %s2457 = scalar_lea.vmem %s7, 18
  %v2458 = vld [vmem:[%s2457] sm:$0x3f]
  %v2460 = vlaneseq
  %v2461 = vshrl.u32 %v2460, 7
  %v2462 = vsub.s32 0, %v2461
  %v2463 = vrot.slane %v2458, %v2462
  %v2464 = vlaneseq
  %v2465 = vshrl.u32 %v2464, 7
  %v2466 = vsub.s32 1, %v2465
  %v2467 = vrot.slane %v2458, %v2466
  %v2468 = vlaneseq
  %v2469 = vshrl.u32 %v2468, 7
  %v2470 = vsub.s32 2, %v2469
  %v2471 = vrot.slane %v2458, %v2470
  %v2472 = vlaneseq
  %v2473 = vshrl.u32 %v2472, 7
  %v2474 = vsub.s32 3, %v2473
  %v2475 = vrot.slane %v2458, %v2474
  %v2476 = vlaneseq
  %v2477 = vshrl.u32 %v2476, 7
  %v2478 = vsub.s32 4, %v2477
  %v2479 = vrot.slane %v2458, %v2478
  %v2480 = vlaneseq
  %v2481 = vshrl.u32 %v2480, 7
  %v2482 = vsub.s32 5, %v2481
  %v2483 = vrot.slane %v2458, %v2482
  %v2490 = vrot.slane %v1217, 6
  %2492 = vmatprep.subr.mxu0 %v2452
  %2493 = vmatpush1.msra.mxu0 %v2451
  %2494 = vmatprep.subr.mxu0 %v2446
  %2495 = vmatpush1.msra.mxu0 %v2445
  %2496 = vmatprep.subr.mxu0 %v2440
  %2497 = vmatpush1.msra.mxu0 %v2439
  %2498 = vmatprep.subr.mxu0 %v2434
  %2499 = vmatpush1.msra.mxu0 %v2433
  %2500 = vmatprep.subr.mxu0 %v2428
  %2501 = vmatpush1.msra.mxu0 %v2427
  %2502 = vmatprep.subr.mxu0 %v2422
  %2503 = vmatpush1.msra.mxu0 %v2421
  %2504 = vmatprep.subr.mxu0 %v2416
  %2505 = vmatpush1.msra.mxu0 %v2415
  %2506 = vmatprep.subr.mxu0 %v2410
  %2507 = vmatpush1.msra.mxu0 %v2409
  %2508 = vmatprep.subr.mxu0 %v2404
  %2509 = vmatpush1.msra.mxu0 %v2403
  %2510 = vmatprep.subr.mxu0 %v2398
  %2511 = vmatpush1.msra.mxu0 %v2397
  %2512 = vmatprep.subr.mxu0 %v2392
  %2513 = vmatpush1.msra.mxu0 %v2391
  %2514 = vmatprep.subr.mxu0 %v2386
  %2515 = vmatpush1.msra.mxu0 %v2385
  %2516 = vmatprep.subr.mxu0 %v2380
  %2517 = vmatpush1.msra.mxu0 %v2379
  %2518 = vmatprep.subr.mxu0 %v2374
  %2519 = vmatpush1.msra.mxu0 %v2373
  %2520 = vmatprep.subr.mxu0 %v2368
  %2521 = vmatpush1.msra.mxu0 %v2367
  %2522 = vmatprep.subr.mxu0 %v2362
  %2523 = vmatpush1.msra.mxu0 %v2361
  %2524 = vmatprep.subr.mxu0 0.0
  %2525 = vmatpush2.msra.mxu0 0.0
  %2526 = vmatprep.subr.mxu0 0.0
  %2527 = vmatpush2.msra.mxu0 0.0
  %2528 = vmatprep.subr.mxu0 0.0
  %2529 = vmatpush2.msra.mxu0 0.0
  %2530 = vmatprep.subr.mxu0 0.0
  %2531 = vmatpush2.msra.mxu0 0.0
  %2532 = vmatprep.subr.mxu0 0.0
  %2533 = vmatpush2.msra.mxu0 0.0
  %2534 = vmatprep.subr.mxu0 0.0
  %2535 = vmatpush2.msra.mxu0 0.0
  %2536 = vmatprep.subr.mxu0 0.0
  %2537 = vmatpush2.msra.mxu0 0.0
  %2538 = vmatprep.subr.mxu0 0.0
  %2539 = vmatpush2.msra.mxu0 0.0
  %2540 = vmatprep.subr.mxu0 0.0
  %2541 = vmatpush2.msra.mxu0 0.0
  %2542 = vmatprep.subr.mxu0 0.0
  %2543 = vmatpush2.msra.mxu0 0.0
  %2544 = vmatprep.subr.mxu0 0.0
  %2545 = vmatpush2.msra.mxu0 0.0
  %2546 = vmatprep.subr.mxu0 0.0
  %2547 = vmatpush2.msra.mxu0 0.0
  %2548 = vmatprep.subr.mxu0 0.0
  %2549 = vmatpush2.msra.mxu0 0.0
  %2550 = vmatprep.subr.mxu0 0.0
  %2551 = vmatpush2.msra.mxu0 0.0
  %2552 = vmatprep.subr.mxu0 0.0
  %2553 = vmatpush2.msra.mxu0 0.0
  %2554 = vmatprep.subr.mxu0 0.0
  %2555 = vmatpush2.msra.mxu0 0.0
  %2556 = vmatprep.mubr.f32.mxu0 0.0
  %2557 = vmatmul.mubr.f32.gmra.mxu0 %v2490
  %v2558 = vpop.f32.mrf.mxu0
  %v2559 = vadd.f32 %v2463, %v2558
  %v2560 = vpop.f32.mrf.mxu0
  %v2561 = vadd.f32 %v2467, %v2560
  %2562 = vdwg.mxu0
  %2563 = vmatprep.subr.mxu0 %v2454
  %2564 = vmatpush1.msra.mxu0 %v2453
  %2565 = vmatprep.subr.mxu0 %v2448
  %2566 = vmatpush1.msra.mxu0 %v2447
  %2567 = vmatprep.subr.mxu0 %v2442
  %2568 = vmatpush1.msra.mxu0 %v2441
  %2569 = vmatprep.subr.mxu0 %v2436
  %2570 = vmatpush1.msra.mxu0 %v2435
  %2571 = vmatprep.subr.mxu0 %v2430
  %2572 = vmatpush1.msra.mxu0 %v2429
  %2573 = vmatprep.subr.mxu0 %v2424
  %2574 = vmatpush1.msra.mxu0 %v2423
  %2575 = vmatprep.subr.mxu0 %v2418
  %2576 = vmatpush1.msra.mxu0 %v2417
  %2577 = vmatprep.subr.mxu0 %v2412
  %2578 = vmatpush1.msra.mxu0 %v2411
  %2579 = vmatprep.subr.mxu0 %v2406
  %2580 = vmatpush1.msra.mxu0 %v2405
  %2581 = vmatprep.subr.mxu0 %v2400
  %2582 = vmatpush1.msra.mxu0 %v2399
  %2583 = vmatprep.subr.mxu0 %v2394
  %2584 = vmatpush1.msra.mxu0 %v2393
  %2585 = vmatprep.subr.mxu0 %v2388
  %2586 = vmatpush1.msra.mxu0 %v2387
  %2587 = vmatprep.subr.mxu0 %v2382
  %2588 = vmatpush1.msra.mxu0 %v2381
  %2589 = vmatprep.subr.mxu0 %v2376
  %2590 = vmatpush1.msra.mxu0 %v2375
  %2591 = vmatprep.subr.mxu0 %v2370
  %2592 = vmatpush1.msra.mxu0 %v2369
  %2593 = vmatprep.subr.mxu0 %v2364
  %2594 = vmatpush1.msra.mxu0 %v2363
  %2595 = vmatprep.subr.mxu0 0.0
  %2596 = vmatpush2.msra.mxu0 0.0
  %2597 = vmatprep.subr.mxu0 0.0
  %2598 = vmatpush2.msra.mxu0 0.0
  %2599 = vmatprep.subr.mxu0 0.0
  %2600 = vmatpush2.msra.mxu0 0.0
  %2601 = vmatprep.subr.mxu0 0.0
  %2602 = vmatpush2.msra.mxu0 0.0
  %2603 = vmatprep.subr.mxu0 0.0
  %2604 = vmatpush2.msra.mxu0 0.0
  %2605 = vmatprep.subr.mxu0 0.0
  %2606 = vmatpush2.msra.mxu0 0.0
  %2607 = vmatprep.subr.mxu0 0.0
  %2608 = vmatpush2.msra.mxu0 0.0
  %2609 = vmatprep.subr.mxu0 0.0
  %2610 = vmatpush2.msra.mxu0 0.0
  %2611 = vmatprep.subr.mxu0 0.0
  %2612 = vmatpush2.msra.mxu0 0.0
  %2613 = vmatprep.subr.mxu0 0.0
  %2614 = vmatpush2.msra.mxu0 0.0
  %2615 = vmatprep.subr.mxu0 0.0
  %2616 = vmatpush2.msra.mxu0 0.0
  %2617 = vmatprep.subr.mxu0 0.0
  %2618 = vmatpush2.msra.mxu0 0.0
  %2619 = vmatprep.subr.mxu0 0.0
  %2620 = vmatpush2.msra.mxu0 0.0
  %2621 = vmatprep.subr.mxu0 0.0
  %2622 = vmatpush2.msra.mxu0 0.0
  %2623 = vmatprep.subr.mxu0 0.0
  %2624 = vmatpush2.msra.mxu0 0.0
  %2625 = vmatprep.subr.mxu0 0.0
  %2626 = vmatpush2.msra.mxu0 0.0
  %2627 = vmatprep.mubr.f32.mxu0 0.0
  %2628 = vmatmul.mubr.f32.gmra.mxu0 %v2490
  %v2629 = vpop.f32.mrf.mxu0
  %v2630 = vadd.f32 %v2471, %v2629
  %v2631 = vpop.f32.mrf.mxu0
  %v2632 = vadd.f32 %v2475, %v2631
  %2633 = vdwg.mxu0
  %2634 = vmatprep.subr.mxu0 %v2456
  %2635 = vmatpush1.msra.mxu0 %v2455
  %2636 = vmatprep.subr.mxu0 %v2450
  %2637 = vmatpush1.msra.mxu0 %v2449
  %2638 = vmatprep.subr.mxu0 %v2444
  %2639 = vmatpush1.msra.mxu0 %v2443
  %2640 = vmatprep.subr.mxu0 %v2438
  %2641 = vmatpush1.msra.mxu0 %v2437
  %2642 = vmatprep.subr.mxu0 %v2432
  %2643 = vmatpush1.msra.mxu0 %v2431
  %2644 = vmatprep.subr.mxu0 %v2426
  %2645 = vmatpush1.msra.mxu0 %v2425
  %2646 = vmatprep.subr.mxu0 %v2420
  %2647 = vmatpush1.msra.mxu0 %v2419
  %2648 = vmatprep.subr.mxu0 %v2414
  %2649 = vmatpush1.msra.mxu0 %v2413
  %2650 = vmatprep.subr.mxu0 %v2408
  %2651 = vmatpush1.msra.mxu0 %v2407
  %2652 = vmatprep.subr.mxu0 %v2402
  %2653 = vmatpush1.msra.mxu0 %v2401
  %2654 = vmatprep.subr.mxu0 %v2396
  %2655 = vmatpush1.msra.mxu0 %v2395
  %2656 = vmatprep.subr.mxu0 %v2390
  %2657 = vmatpush1.msra.mxu0 %v2389
  %2658 = vmatprep.subr.mxu0 %v2384
  %2659 = vmatpush1.msra.mxu0 %v2383
  %2660 = vmatprep.subr.mxu0 %v2378
  %2661 = vmatpush1.msra.mxu0 %v2377
  %2662 = vmatprep.subr.mxu0 %v2372
  %2663 = vmatpush1.msra.mxu0 %v2371
  %2664 = vmatprep.subr.mxu0 %v2366
  %2665 = vmatpush1.msra.mxu0 %v2365
  %2666 = vmatprep.subr.mxu0 0.0
  %2667 = vmatpush2.msra.mxu0 0.0
  %2668 = vmatprep.subr.mxu0 0.0
  %2669 = vmatpush2.msra.mxu0 0.0
  %2670 = vmatprep.subr.mxu0 0.0
  %2671 = vmatpush2.msra.mxu0 0.0
  %2672 = vmatprep.subr.mxu0 0.0
  %2673 = vmatpush2.msra.mxu0 0.0
  %2674 = vmatprep.subr.mxu0 0.0
  %2675 = vmatpush2.msra.mxu0 0.0
  %2676 = vmatprep.subr.mxu0 0.0
  %2677 = vmatpush2.msra.mxu0 0.0
  %2678 = vmatprep.subr.mxu0 0.0
  %2679 = vmatpush2.msra.mxu0 0.0
  %2680 = vmatprep.subr.mxu0 0.0
  %2681 = vmatpush2.msra.mxu0 0.0
  %2682 = vmatprep.subr.mxu0 0.0
  %2683 = vmatpush2.msra.mxu0 0.0
  %2684 = vmatprep.subr.mxu0 0.0
  %2685 = vmatpush2.msra.mxu0 0.0
  %2686 = vmatprep.subr.mxu0 0.0
  %2687 = vmatpush2.msra.mxu0 0.0
  %2688 = vmatprep.subr.mxu0 0.0
  %2689 = vmatpush2.msra.mxu0 0.0
  %2690 = vmatprep.subr.mxu0 0.0
  %2691 = vmatpush2.msra.mxu0 0.0
  %2692 = vmatprep.subr.mxu0 0.0
  %2693 = vmatpush2.msra.mxu0 0.0
  %2694 = vmatprep.subr.mxu0 0.0
  %2695 = vmatpush2.msra.mxu0 0.0
  %2696 = vmatprep.subr.mxu0 0.0
  %2697 = vmatpush2.msra.mxu0 0.0
  %2698 = vmatprep.mubr.f32.mxu0 0.0
  %2699 = vmatmul.mubr.f32.gmra.mxu0 %v2490
  %v2700 = vpop.f32.mrf.mxu0
  %v2701 = vadd.f32 %v2479, %v2700
  %v2702 = vpop.f32.mrf.mxu0
  %v2703 = vadd.f32 %v2483, %v2702
  %2704 = vdwg.mxu0
  %v2711 = vcombine.low %v2559, %v2561
  %v2712 = vcombine.low %v2630, %v2632
  %v2714 = vunpack.c.l.s4 1983009808
  %v2715 = vunpack.c.0.s8 %v2714
  %v2716 = vlaneseq
  %v2717 = vshrl.u32 %v2716, 7
  %v2718 = vsub.s32 %v2715, %v2717
  %v2719 = vrot.slane %v2711, %v2718
  %v2721 = vunpack.c.l.s4 1983009808
  %v2722 = vunpack.c.0.s8 %v2721
  %v2723 = vlaneseq
  %v2724 = vshrl.u32 %v2723, 7
  %v2725 = vsub.s32 %v2722, %v2724
  %v2726 = vrot.slane %v2712, %v2725
  %v2727 = vcombine.low %v2719, %v2726
  %v2728 = vcombine.low %v2701, %v2703
  %v2730 = vunpack.c.l.s4 1983009808
  %v2731 = vunpack.c.0.s8 %v2730
  %v2732 = vlaneseq
  %v2733 = vshrl.u32 %v2732, 7
  %v2734 = vsub.s32 %v2731, %v2733
  %v2735 = vrot.slane %v2728, %v2734
  %s2738 = scalar_lea.vmem %s9, 36
  %2739 = vst [vmem:[%s2738] sm:$0xff] %v2727
  %2740 = vst [vmem:[%s2738 + $0x8] sm:$0xf] %v2735
  %s2741 = scalar_lea.vmem %s6, 3072
  %v2742 = vld [vmem:[%s2741] sm:$0xff]
  %v2743 = vld [vmem:[%s2741 + $0x8] sm:$0xff]
  %v2744 = vld [vmem:[%s2741 + $0x10] sm:$0xff]
  %v2745 = vld [vmem:[%s2741 + $0x18] sm:$0xff]
  %v2746 = vld [vmem:[%s2741 + $0x20] sm:$0xff]
  %v2747 = vld [vmem:[%s2741 + $0x28] sm:$0xff]
  %v2748 = vld [vmem:[%s2741 + $0x30] sm:$0xff]
  %v2749 = vld [vmem:[%s2741 + $0x38] sm:$0xff]
  %v2750 = vld [vmem:[%s2741 + $0x40] sm:$0xff]
  %v2751 = vld [vmem:[%s2741 + $0x48] sm:$0xff]
  %v2752 = vld [vmem:[%s2741 + $0x50] sm:$0xff]
  %v2753 = vld [vmem:[%s2741 + $0x58] sm:$0xff]
  %v2754 = vld [vmem:[%s2741 + $0x60] sm:$0xff]
  %v2755 = vld [vmem:[%s2741 + $0x68] sm:$0xff]
  %v2756 = vld [vmem:[%s2741 + $0x70] sm:$0xff]
  %v2757 = vld [vmem:[%s2741 + $0x78] sm:$0xff]
  %v2758 = vld [vmem:[%s2741 + $0x80] sm:$0xff]
  %v2759 = vld [vmem:[%s2741 + $0x88] sm:$0xff]
  %v2760 = vld [vmem:[%s2741 + $0x90] sm:$0xff]
  %v2761 = vld [vmem:[%s2741 + $0x98] sm:$0xff]
  %v2762 = vld [vmem:[%s2741 + $0xa0] sm:$0xff]
  %v2763 = vld [vmem:[%s2741 + $0xa8] sm:$0xff]
  %v2764 = vld [vmem:[%s2741 + $0xb0] sm:$0xff]
  %v2765 = vld [vmem:[%s2741 + $0xb8] sm:$0xff]
  %v2766 = vld [vmem:[%s2741 + $0xc0] sm:$0xff]
  %v2767 = vld [vmem:[%s2741 + $0xc8] sm:$0xff]
  %v2768 = vld [vmem:[%s2741 + $0xd0] sm:$0xff]
  %v2769 = vld [vmem:[%s2741 + $0xd8] sm:$0xff]
  %v2770 = vld [vmem:[%s2741 + $0xe0] sm:$0xff]
  %v2771 = vld [vmem:[%s2741 + $0xe8] sm:$0xff]
  %v2772 = vld [vmem:[%s2741 + $0xf0] sm:$0xff]
  %v2773 = vld [vmem:[%s2741 + $0xf8] sm:$0xff]
  %v2774 = vld [vmem:[%s2741 + $0x100] sm:$0xff]
  %v2775 = vld [vmem:[%s2741 + $0x108] sm:$0xff]
  %v2776 = vld [vmem:[%s2741 + $0x110] sm:$0xff]
  %v2777 = vld [vmem:[%s2741 + $0x118] sm:$0xff]
  %v2778 = vld [vmem:[%s2741 + $0x120] sm:$0xff]
  %v2779 = vld [vmem:[%s2741 + $0x128] sm:$0xff]
  %v2780 = vld [vmem:[%s2741 + $0x130] sm:$0xff]
  %v2781 = vld [vmem:[%s2741 + $0x138] sm:$0xff]
  %v2782 = vld [vmem:[%s2741 + $0x140] sm:$0xff]
  %v2783 = vld [vmem:[%s2741 + $0x148] sm:$0xff]
  %v2784 = vld [vmem:[%s2741 + $0x150] sm:$0xff]
  %v2785 = vld [vmem:[%s2741 + $0x158] sm:$0xff]
  %v2786 = vld [vmem:[%s2741 + $0x160] sm:$0xff]
  %v2787 = vld [vmem:[%s2741 + $0x168] sm:$0xff]
  %v2788 = vld [vmem:[%s2741 + $0x170] sm:$0xff]
  %v2789 = vld [vmem:[%s2741 + $0x178] sm:$0xff]
  %v2790 = vld [vmem:[%s2741 + $0x180] sm:$0xff]
  %v2791 = vld [vmem:[%s2741 + $0x188] sm:$0xff]
  %v2792 = vld [vmem:[%s2741 + $0x190] sm:$0xff]
  %v2793 = vld [vmem:[%s2741 + $0x198] sm:$0xff]
  %v2794 = vld [vmem:[%s2741 + $0x1a0] sm:$0xff]
  %v2795 = vld [vmem:[%s2741 + $0x1a8] sm:$0xff]
  %v2796 = vld [vmem:[%s2741 + $0x1b0] sm:$0xff]
  %v2797 = vld [vmem:[%s2741 + $0x1b8] sm:$0xff]
  %v2798 = vld [vmem:[%s2741 + $0x1c0] sm:$0xff]
  %v2799 = vld [vmem:[%s2741 + $0x1c8] sm:$0xff]
  %v2800 = vld [vmem:[%s2741 + $0x1d0] sm:$0xff]
  %v2801 = vld [vmem:[%s2741 + $0x1d8] sm:$0xff]
  %v2802 = vld [vmem:[%s2741 + $0x1e0] sm:$0xff]
  %v2803 = vld [vmem:[%s2741 + $0x1e8] sm:$0xff]
  %v2804 = vld [vmem:[%s2741 + $0x1f0] sm:$0xff]
  %v2805 = vld [vmem:[%s2741 + $0x1f8] sm:$0xff]
  %v2806 = vld [vmem:[%s2741 + $0x200] sm:$0xff]
  %v2807 = vld [vmem:[%s2741 + $0x208] sm:$0xff]
  %v2808 = vld [vmem:[%s2741 + $0x210] sm:$0xff]
  %v2809 = vld [vmem:[%s2741 + $0x218] sm:$0xff]
  %v2810 = vld [vmem:[%s2741 + $0x220] sm:$0xff]
  %v2811 = vld [vmem:[%s2741 + $0x228] sm:$0xff]
  %v2812 = vld [vmem:[%s2741 + $0x230] sm:$0xff]
  %v2813 = vld [vmem:[%s2741 + $0x238] sm:$0xff]
  %v2814 = vld [vmem:[%s2741 + $0x240] sm:$0xff]
  %v2815 = vld [vmem:[%s2741 + $0x248] sm:$0xff]
  %v2816 = vld [vmem:[%s2741 + $0x250] sm:$0xff]
  %v2817 = vld [vmem:[%s2741 + $0x258] sm:$0xff]
  %v2818 = vld [vmem:[%s2741 + $0x260] sm:$0xff]
  %v2819 = vld [vmem:[%s2741 + $0x268] sm:$0xff]
  %v2820 = vld [vmem:[%s2741 + $0x270] sm:$0xff]
  %v2821 = vld [vmem:[%s2741 + $0x278] sm:$0xff]
  %v2822 = vld [vmem:[%s2741 + $0x280] sm:$0xff]
  %v2823 = vld [vmem:[%s2741 + $0x288] sm:$0xff]
  %v2824 = vld [vmem:[%s2741 + $0x290] sm:$0xff]
  %v2825 = vld [vmem:[%s2741 + $0x298] sm:$0xff]
  %v2826 = vld [vmem:[%s2741 + $0x2a0] sm:$0xff]
  %v2827 = vld [vmem:[%s2741 + $0x2a8] sm:$0xff]
  %v2828 = vld [vmem:[%s2741 + $0x2b0] sm:$0xff]
  %v2829 = vld [vmem:[%s2741 + $0x2b8] sm:$0xff]
  %v2830 = vld [vmem:[%s2741 + $0x2c0] sm:$0xff]
  %v2831 = vld [vmem:[%s2741 + $0x2c8] sm:$0xff]
  %v2832 = vld [vmem:[%s2741 + $0x2d0] sm:$0xff]
  %v2833 = vld [vmem:[%s2741 + $0x2d8] sm:$0xff]
  %v2834 = vld [vmem:[%s2741 + $0x2e0] sm:$0xff]
  %v2835 = vld [vmem:[%s2741 + $0x2e8] sm:$0xff]
  %v2836 = vld [vmem:[%s2741 + $0x2f0] sm:$0xff]
  %v2837 = vld [vmem:[%s2741 + $0x2f8] sm:$0xff]
  %s2838 = scalar_lea.vmem %s7, 24
  %v2839 = vld [vmem:[%s2838] sm:$0x3f]
  %v2841 = vlaneseq
  %v2842 = vshrl.u32 %v2841, 7
  %v2843 = vsub.s32 0, %v2842
  %v2844 = vrot.slane %v2839, %v2843
  %v2845 = vlaneseq
  %v2846 = vshrl.u32 %v2845, 7
  %v2847 = vsub.s32 1, %v2846
  %v2848 = vrot.slane %v2839, %v2847
  %v2849 = vlaneseq
  %v2850 = vshrl.u32 %v2849, 7
  %v2851 = vsub.s32 2, %v2850
  %v2852 = vrot.slane %v2839, %v2851
  %v2853 = vlaneseq
  %v2854 = vshrl.u32 %v2853, 7
  %v2855 = vsub.s32 3, %v2854
  %v2856 = vrot.slane %v2839, %v2855
  %v2857 = vlaneseq
  %v2858 = vshrl.u32 %v2857, 7
  %v2859 = vsub.s32 4, %v2858
  %v2860 = vrot.slane %v2839, %v2859
  %v2861 = vlaneseq
  %v2862 = vshrl.u32 %v2861, 7
  %v2863 = vsub.s32 5, %v2862
  %v2864 = vrot.slane %v2839, %v2863
  %2871 = vmatprep.subr.mxu0 %v2833
  %2872 = vmatpush1.msra.mxu0 %v2832
  %2873 = vmatprep.subr.mxu0 %v2827
  %2874 = vmatpush1.msra.mxu0 %v2826
  %2875 = vmatprep.subr.mxu0 %v2821
  %2876 = vmatpush1.msra.mxu0 %v2820
  %2877 = vmatprep.subr.mxu0 %v2815
  %2878 = vmatpush1.msra.mxu0 %v2814
  %2879 = vmatprep.subr.mxu0 %v2809
  %2880 = vmatpush1.msra.mxu0 %v2808
  %2881 = vmatprep.subr.mxu0 %v2803
  %2882 = vmatpush1.msra.mxu0 %v2802
  %2883 = vmatprep.subr.mxu0 %v2797
  %2884 = vmatpush1.msra.mxu0 %v2796
  %2885 = vmatprep.subr.mxu0 %v2791
  %2886 = vmatpush1.msra.mxu0 %v2790
  %2887 = vmatprep.subr.mxu0 %v2785
  %2888 = vmatpush1.msra.mxu0 %v2784
  %2889 = vmatprep.subr.mxu0 %v2779
  %2890 = vmatpush1.msra.mxu0 %v2778
  %2891 = vmatprep.subr.mxu0 %v2773
  %2892 = vmatpush1.msra.mxu0 %v2772
  %2893 = vmatprep.subr.mxu0 %v2767
  %2894 = vmatpush1.msra.mxu0 %v2766
  %2895 = vmatprep.subr.mxu0 %v2761
  %2896 = vmatpush1.msra.mxu0 %v2760
  %2897 = vmatprep.subr.mxu0 %v2755
  %2898 = vmatpush1.msra.mxu0 %v2754
  %2899 = vmatprep.subr.mxu0 %v2749
  %2900 = vmatpush1.msra.mxu0 %v2748
  %2901 = vmatprep.subr.mxu0 %v2743
  %2902 = vmatpush1.msra.mxu0 %v2742
  %2903 = vmatprep.subr.mxu0 0.0
  %2904 = vmatpush2.msra.mxu0 0.0
  %2905 = vmatprep.subr.mxu0 0.0
  %2906 = vmatpush2.msra.mxu0 0.0
  %2907 = vmatprep.subr.mxu0 0.0
  %2908 = vmatpush2.msra.mxu0 0.0
  %2909 = vmatprep.subr.mxu0 0.0
  %2910 = vmatpush2.msra.mxu0 0.0
  %2911 = vmatprep.subr.mxu0 0.0
  %2912 = vmatpush2.msra.mxu0 0.0
  %2913 = vmatprep.subr.mxu0 0.0
  %2914 = vmatpush2.msra.mxu0 0.0
  %2915 = vmatprep.subr.mxu0 0.0
  %2916 = vmatpush2.msra.mxu0 0.0
  %2917 = vmatprep.subr.mxu0 0.0
  %2918 = vmatpush2.msra.mxu0 0.0
  %2919 = vmatprep.subr.mxu0 0.0
  %2920 = vmatpush2.msra.mxu0 0.0
  %2921 = vmatprep.subr.mxu0 0.0
  %2922 = vmatpush2.msra.mxu0 0.0
  %2923 = vmatprep.subr.mxu0 0.0
  %2924 = vmatpush2.msra.mxu0 0.0
  %2925 = vmatprep.subr.mxu0 0.0
  %2926 = vmatpush2.msra.mxu0 0.0
  %2927 = vmatprep.subr.mxu0 0.0
  %2928 = vmatpush2.msra.mxu0 0.0
  %2929 = vmatprep.subr.mxu0 0.0
  %2930 = vmatpush2.msra.mxu0 0.0
  %2931 = vmatprep.subr.mxu0 0.0
  %2932 = vmatpush2.msra.mxu0 0.0
  %2933 = vmatprep.subr.mxu0 0.0
  %2934 = vmatpush2.msra.mxu0 0.0
  %2935 = vmatprep.mubr.f32.mxu0 0.0
  %2936 = vmatmul.mubr.f32.gmra.mxu0 %v1218
  %v2937 = vpop.f32.mrf.mxu0
  %v2938 = vadd.f32 %v2844, %v2937
  %v2939 = vpop.f32.mrf.mxu0
  %v2940 = vadd.f32 %v2848, %v2939
  %2941 = vdwg.mxu0
  %2942 = vmatprep.subr.mxu0 %v2835
  %2943 = vmatpush1.msra.mxu0 %v2834
  %2944 = vmatprep.subr.mxu0 %v2829
  %2945 = vmatpush1.msra.mxu0 %v2828
  %2946 = vmatprep.subr.mxu0 %v2823
  %2947 = vmatpush1.msra.mxu0 %v2822
  %2948 = vmatprep.subr.mxu0 %v2817
  %2949 = vmatpush1.msra.mxu0 %v2816
  %2950 = vmatprep.subr.mxu0 %v2811
  %2951 = vmatpush1.msra.mxu0 %v2810
  %2952 = vmatprep.subr.mxu0 %v2805
  %2953 = vmatpush1.msra.mxu0 %v2804
  %2954 = vmatprep.subr.mxu0 %v2799
  %2955 = vmatpush1.msra.mxu0 %v2798
  %2956 = vmatprep.subr.mxu0 %v2793
  %2957 = vmatpush1.msra.mxu0 %v2792
  %2958 = vmatprep.subr.mxu0 %v2787
  %2959 = vmatpush1.msra.mxu0 %v2786
  %2960 = vmatprep.subr.mxu0 %v2781
  %2961 = vmatpush1.msra.mxu0 %v2780
  %2962 = vmatprep.subr.mxu0 %v2775
  %2963 = vmatpush1.msra.mxu0 %v2774
  %2964 = vmatprep.subr.mxu0 %v2769
  %2965 = vmatpush1.msra.mxu0 %v2768
  %2966 = vmatprep.subr.mxu0 %v2763
  %2967 = vmatpush1.msra.mxu0 %v2762
  %2968 = vmatprep.subr.mxu0 %v2757
  %2969 = vmatpush1.msra.mxu0 %v2756
  %2970 = vmatprep.subr.mxu0 %v2751
  %2971 = vmatpush1.msra.mxu0 %v2750
  %2972 = vmatprep.subr.mxu0 %v2745
  %2973 = vmatpush1.msra.mxu0 %v2744
  %2974 = vmatprep.subr.mxu0 0.0
  %2975 = vmatpush2.msra.mxu0 0.0
  %2976 = vmatprep.subr.mxu0 0.0
  %2977 = vmatpush2.msra.mxu0 0.0
  %2978 = vmatprep.subr.mxu0 0.0
  %2979 = vmatpush2.msra.mxu0 0.0
  %2980 = vmatprep.subr.mxu0 0.0
  %2981 = vmatpush2.msra.mxu0 0.0
  %2982 = vmatprep.subr.mxu0 0.0
  %2983 = vmatpush2.msra.mxu0 0.0
  %2984 = vmatprep.subr.mxu0 0.0
  %2985 = vmatpush2.msra.mxu0 0.0
  %2986 = vmatprep.subr.mxu0 0.0
  %2987 = vmatpush2.msra.mxu0 0.0
  %2988 = vmatprep.subr.mxu0 0.0
  %2989 = vmatpush2.msra.mxu0 0.0
  %2990 = vmatprep.subr.mxu0 0.0
  %2991 = vmatpush2.msra.mxu0 0.0
  %2992 = vmatprep.subr.mxu0 0.0
  %2993 = vmatpush2.msra.mxu0 0.0
  %2994 = vmatprep.subr.mxu0 0.0
  %2995 = vmatpush2.msra.mxu0 0.0
  %2996 = vmatprep.subr.mxu0 0.0
  %2997 = vmatpush2.msra.mxu0 0.0
  %2998 = vmatprep.subr.mxu0 0.0
  %2999 = vmatpush2.msra.mxu0 0.0
  %3000 = vmatprep.subr.mxu0 0.0
  %3001 = vmatpush2.msra.mxu0 0.0
  %3002 = vmatprep.subr.mxu0 0.0
  %3003 = vmatpush2.msra.mxu0 0.0
  %3004 = vmatprep.subr.mxu0 0.0
  %3005 = vmatpush2.msra.mxu0 0.0
  %3006 = vmatprep.mubr.f32.mxu0 0.0
  %3007 = vmatmul.mubr.f32.gmra.mxu0 %v1218
  %v3008 = vpop.f32.mrf.mxu0
  %v3009 = vadd.f32 %v2852, %v3008
  %v3010 = vpop.f32.mrf.mxu0
  %v3011 = vadd.f32 %v2856, %v3010
  %3012 = vdwg.mxu0
  %3013 = vmatprep.subr.mxu0 %v2837
  %3014 = vmatpush1.msra.mxu0 %v2836
  %3015 = vmatprep.subr.mxu0 %v2831
  %3016 = vmatpush1.msra.mxu0 %v2830
  %3017 = vmatprep.subr.mxu0 %v2825
  %3018 = vmatpush1.msra.mxu0 %v2824
  %3019 = vmatprep.subr.mxu0 %v2819
  %3020 = vmatpush1.msra.mxu0 %v2818
  %3021 = vmatprep.subr.mxu0 %v2813
  %3022 = vmatpush1.msra.mxu0 %v2812
  %3023 = vmatprep.subr.mxu0 %v2807
  %3024 = vmatpush1.msra.mxu0 %v2806
  %3025 = vmatprep.subr.mxu0 %v2801
  %3026 = vmatpush1.msra.mxu0 %v2800
  %3027 = vmatprep.subr.mxu0 %v2795
  %3028 = vmatpush1.msra.mxu0 %v2794
  %3029 = vmatprep.subr.mxu0 %v2789
  %3030 = vmatpush1.msra.mxu0 %v2788
  %3031 = vmatprep.subr.mxu0 %v2783
  %3032 = vmatpush1.msra.mxu0 %v2782
  %3033 = vmatprep.subr.mxu0 %v2777
  %3034 = vmatpush1.msra.mxu0 %v2776
  %3035 = vmatprep.subr.mxu0 %v2771
  %3036 = vmatpush1.msra.mxu0 %v2770
  %3037 = vmatprep.subr.mxu0 %v2765
  %3038 = vmatpush1.msra.mxu0 %v2764
  %3039 = vmatprep.subr.mxu0 %v2759
  %3040 = vmatpush1.msra.mxu0 %v2758
  %3041 = vmatprep.subr.mxu0 %v2753
  %3042 = vmatpush1.msra.mxu0 %v2752
  %3043 = vmatprep.subr.mxu0 %v2747
  %3044 = vmatpush1.msra.mxu0 %v2746
  %3045 = vmatprep.subr.mxu0 0.0
  %3046 = vmatpush2.msra.mxu0 0.0
  %3047 = vmatprep.subr.mxu0 0.0
  %3048 = vmatpush2.msra.mxu0 0.0
  %3049 = vmatprep.subr.mxu0 0.0
  %3050 = vmatpush2.msra.mxu0 0.0
  %3051 = vmatprep.subr.mxu0 0.0
  %3052 = vmatpush2.msra.mxu0 0.0
  %3053 = vmatprep.subr.mxu0 0.0
  %3054 = vmatpush2.msra.mxu0 0.0
  %3055 = vmatprep.subr.mxu0 0.0
  %3056 = vmatpush2.msra.mxu0 0.0
  %3057 = vmatprep.subr.mxu0 0.0
  %3058 = vmatpush2.msra.mxu0 0.0
  %3059 = vmatprep.subr.mxu0 0.0
  %3060 = vmatpush2.msra.mxu0 0.0
  %3061 = vmatprep.subr.mxu0 0.0
  %3062 = vmatpush2.msra.mxu0 0.0
  %3063 = vmatprep.subr.mxu0 0.0
  %3064 = vmatpush2.msra.mxu0 0.0
  %3065 = vmatprep.subr.mxu0 0.0
  %3066 = vmatpush2.msra.mxu0 0.0
  %3067 = vmatprep.subr.mxu0 0.0
  %3068 = vmatpush2.msra.mxu0 0.0
  %3069 = vmatprep.subr.mxu0 0.0
  %3070 = vmatpush2.msra.mxu0 0.0
  %3071 = vmatprep.subr.mxu0 0.0
  %3072 = vmatpush2.msra.mxu0 0.0
  %3073 = vmatprep.subr.mxu0 0.0
  %3074 = vmatpush2.msra.mxu0 0.0
  %3075 = vmatprep.subr.mxu0 0.0
  %3076 = vmatpush2.msra.mxu0 0.0
  %3077 = vmatprep.mubr.f32.mxu0 0.0
  %3078 = vmatmul.mubr.f32.gmra.mxu0 %v1218
  %v3079 = vpop.f32.mrf.mxu0
  %v3080 = vadd.f32 %v2860, %v3079
  %v3081 = vpop.f32.mrf.mxu0
  %v3082 = vadd.f32 %v2864, %v3081
  %3083 = vdwg.mxu0
  %v3090 = vcombine.low %v2938, %v2940
  %v3091 = vcombine.low %v3009, %v3011
  %v3093 = vunpack.c.l.s4 1983009808
  %v3094 = vunpack.c.0.s8 %v3093
  %v3095 = vlaneseq
  %v3096 = vshrl.u32 %v3095, 7
  %v3097 = vsub.s32 %v3094, %v3096
  %v3098 = vrot.slane %v3090, %v3097
  %v3100 = vunpack.c.l.s4 1983009808
  %v3101 = vunpack.c.0.s8 %v3100
  %v3102 = vlaneseq
  %v3103 = vshrl.u32 %v3102, 7
  %v3104 = vsub.s32 %v3101, %v3103
  %v3105 = vrot.slane %v3091, %v3104
  %v3106 = vcombine.low %v3098, %v3105
  %v3107 = vcombine.low %v3080, %v3082
  %v3109 = vunpack.c.l.s4 1983009808
  %v3110 = vunpack.c.0.s8 %v3109
  %v3111 = vlaneseq
  %v3112 = vshrl.u32 %v3111, 7
  %v3113 = vsub.s32 %v3110, %v3112
  %v3114 = vrot.slane %v3107, %v3113
  %s3117 = scalar_lea.vmem %s9, 48
  %3118 = vst [vmem:[%s3117] sm:$0xff] %v3106
  %3119 = vst [vmem:[%s3117 + $0x8] sm:$0xf] %v3114
  %s3120 = scalar_lea.vmem %s6, 3840
  %v3121 = vld [vmem:[%s3120] sm:$0xff]
  %v3122 = vld [vmem:[%s3120 + $0x8] sm:$0xff]
  %v3123 = vld [vmem:[%s3120 + $0x10] sm:$0xff]
  %v3124 = vld [vmem:[%s3120 + $0x18] sm:$0xff]
  %v3125 = vld [vmem:[%s3120 + $0x20] sm:$0xff]
  %v3126 = vld [vmem:[%s3120 + $0x28] sm:$0xff]
  %v3127 = vld [vmem:[%s3120 + $0x30] sm:$0xff]
  %v3128 = vld [vmem:[%s3120 + $0x38] sm:$0xff]
  %v3129 = vld [vmem:[%s3120 + $0x40] sm:$0xff]
  %v3130 = vld [vmem:[%s3120 + $0x48] sm:$0xff]
  %v3131 = vld [vmem:[%s3120 + $0x50] sm:$0xff]
  %v3132 = vld [vmem:[%s3120 + $0x58] sm:$0xff]
  %v3133 = vld [vmem:[%s3120 + $0x60] sm:$0xff]
  %v3134 = vld [vmem:[%s3120 + $0x68] sm:$0xff]
  %v3135 = vld [vmem:[%s3120 + $0x70] sm:$0xff]
  %v3136 = vld [vmem:[%s3120 + $0x78] sm:$0xff]
  %v3137 = vld [vmem:[%s3120 + $0x80] sm:$0xff]
  %v3138 = vld [vmem:[%s3120 + $0x88] sm:$0xff]
  %v3139 = vld [vmem:[%s3120 + $0x90] sm:$0xff]
  %v3140 = vld [vmem:[%s3120 + $0x98] sm:$0xff]
  %v3141 = vld [vmem:[%s3120 + $0xa0] sm:$0xff]
  %v3142 = vld [vmem:[%s3120 + $0xa8] sm:$0xff]
  %v3143 = vld [vmem:[%s3120 + $0xb0] sm:$0xff]
  %v3144 = vld [vmem:[%s3120 + $0xb8] sm:$0xff]
  %v3145 = vld [vmem:[%s3120 + $0xc0] sm:$0xff]
  %v3146 = vld [vmem:[%s3120 + $0xc8] sm:$0xff]
  %v3147 = vld [vmem:[%s3120 + $0xd0] sm:$0xff]
  %v3148 = vld [vmem:[%s3120 + $0xd8] sm:$0xff]
  %v3149 = vld [vmem:[%s3120 + $0xe0] sm:$0xff]
  %v3150 = vld [vmem:[%s3120 + $0xe8] sm:$0xff]
  %v3151 = vld [vmem:[%s3120 + $0xf0] sm:$0xff]
  %v3152 = vld [vmem:[%s3120 + $0xf8] sm:$0xff]
  %v3153 = vld [vmem:[%s3120 + $0x100] sm:$0xff]
  %v3154 = vld [vmem:[%s3120 + $0x108] sm:$0xff]
  %v3155 = vld [vmem:[%s3120 + $0x110] sm:$0xff]
  %v3156 = vld [vmem:[%s3120 + $0x118] sm:$0xff]
  %v3157 = vld [vmem:[%s3120 + $0x120] sm:$0xff]
  %v3158 = vld [vmem:[%s3120 + $0x128] sm:$0xff]
  %v3159 = vld [vmem:[%s3120 + $0x130] sm:$0xff]
  %v3160 = vld [vmem:[%s3120 + $0x138] sm:$0xff]
  %v3161 = vld [vmem:[%s3120 + $0x140] sm:$0xff]
  %v3162 = vld [vmem:[%s3120 + $0x148] sm:$0xff]
  %v3163 = vld [vmem:[%s3120 + $0x150] sm:$0xff]
  %v3164 = vld [vmem:[%s3120 + $0x158] sm:$0xff]
  %v3165 = vld [vmem:[%s3120 + $0x160] sm:$0xff]
  %v3166 = vld [vmem:[%s3120 + $0x168] sm:$0xff]
  %v3167 = vld [vmem:[%s3120 + $0x170] sm:$0xff]
  %v3168 = vld [vmem:[%s3120 + $0x178] sm:$0xff]
  %v3169 = vld [vmem:[%s3120 + $0x180] sm:$0xff]
  %v3170 = vld [vmem:[%s3120 + $0x188] sm:$0xff]
  %v3171 = vld [vmem:[%s3120 + $0x190] sm:$0xff]
  %v3172 = vld [vmem:[%s3120 + $0x198] sm:$0xff]
  %v3173 = vld [vmem:[%s3120 + $0x1a0] sm:$0xff]
  %v3174 = vld [vmem:[%s3120 + $0x1a8] sm:$0xff]
  %v3175 = vld [vmem:[%s3120 + $0x1b0] sm:$0xff]
  %v3176 = vld [vmem:[%s3120 + $0x1b8] sm:$0xff]
  %v3177 = vld [vmem:[%s3120 + $0x1c0] sm:$0xff]
  %v3178 = vld [vmem:[%s3120 + $0x1c8] sm:$0xff]
  %v3179 = vld [vmem:[%s3120 + $0x1d0] sm:$0xff]
  %v3180 = vld [vmem:[%s3120 + $0x1d8] sm:$0xff]
  %v3181 = vld [vmem:[%s3120 + $0x1e0] sm:$0xff]
  %v3182 = vld [vmem:[%s3120 + $0x1e8] sm:$0xff]
  %v3183 = vld [vmem:[%s3120 + $0x1f0] sm:$0xff]
  %v3184 = vld [vmem:[%s3120 + $0x1f8] sm:$0xff]
  %v3185 = vld [vmem:[%s3120 + $0x200] sm:$0xff]
  %v3186 = vld [vmem:[%s3120 + $0x208] sm:$0xff]
  %v3187 = vld [vmem:[%s3120 + $0x210] sm:$0xff]
  %v3188 = vld [vmem:[%s3120 + $0x218] sm:$0xff]
  %v3189 = vld [vmem:[%s3120 + $0x220] sm:$0xff]
  %v3190 = vld [vmem:[%s3120 + $0x228] sm:$0xff]
  %v3191 = vld [vmem:[%s3120 + $0x230] sm:$0xff]
  %v3192 = vld [vmem:[%s3120 + $0x238] sm:$0xff]
  %v3193 = vld [vmem:[%s3120 + $0x240] sm:$0xff]
  %v3194 = vld [vmem:[%s3120 + $0x248] sm:$0xff]
  %v3195 = vld [vmem:[%s3120 + $0x250] sm:$0xff]
  %v3196 = vld [vmem:[%s3120 + $0x258] sm:$0xff]
  %v3197 = vld [vmem:[%s3120 + $0x260] sm:$0xff]
  %v3198 = vld [vmem:[%s3120 + $0x268] sm:$0xff]
  %v3199 = vld [vmem:[%s3120 + $0x270] sm:$0xff]
  %v3200 = vld [vmem:[%s3120 + $0x278] sm:$0xff]
  %v3201 = vld [vmem:[%s3120 + $0x280] sm:$0xff]
  %v3202 = vld [vmem:[%s3120 + $0x288] sm:$0xff]
  %v3203 = vld [vmem:[%s3120 + $0x290] sm:$0xff]
  %v3204 = vld [vmem:[%s3120 + $0x298] sm:$0xff]
  %v3205 = vld [vmem:[%s3120 + $0x2a0] sm:$0xff]
  %v3206 = vld [vmem:[%s3120 + $0x2a8] sm:$0xff]
  %v3207 = vld [vmem:[%s3120 + $0x2b0] sm:$0xff]
  %v3208 = vld [vmem:[%s3120 + $0x2b8] sm:$0xff]
  %v3209 = vld [vmem:[%s3120 + $0x2c0] sm:$0xff]
  %v3210 = vld [vmem:[%s3120 + $0x2c8] sm:$0xff]
  %v3211 = vld [vmem:[%s3120 + $0x2d0] sm:$0xff]
  %v3212 = vld [vmem:[%s3120 + $0x2d8] sm:$0xff]
  %v3213 = vld [vmem:[%s3120 + $0x2e0] sm:$0xff]
  %v3214 = vld [vmem:[%s3120 + $0x2e8] sm:$0xff]
  %v3215 = vld [vmem:[%s3120 + $0x2f0] sm:$0xff]
  %v3216 = vld [vmem:[%s3120 + $0x2f8] sm:$0xff]
  %s3217 = scalar_lea.vmem %s7, 30
  %v3218 = vld [vmem:[%s3217] sm:$0x3f]
  %v3220 = vlaneseq
  %v3221 = vshrl.u32 %v3220, 7
  %v3222 = vsub.s32 0, %v3221
  %v3223 = vrot.slane %v3218, %v3222
  %v3224 = vlaneseq
  %v3225 = vshrl.u32 %v3224, 7
  %v3226 = vsub.s32 1, %v3225
  %v3227 = vrot.slane %v3218, %v3226
  %v3228 = vlaneseq
  %v3229 = vshrl.u32 %v3228, 7
  %v3230 = vsub.s32 2, %v3229
  %v3231 = vrot.slane %v3218, %v3230
  %v3232 = vlaneseq
  %v3233 = vshrl.u32 %v3232, 7
  %v3234 = vsub.s32 3, %v3233
  %v3235 = vrot.slane %v3218, %v3234
  %v3236 = vlaneseq
  %v3237 = vshrl.u32 %v3236, 7
  %v3238 = vsub.s32 4, %v3237
  %v3239 = vrot.slane %v3218, %v3238
  %v3240 = vlaneseq
  %v3241 = vshrl.u32 %v3240, 7
  %v3242 = vsub.s32 5, %v3241
  %v3243 = vrot.slane %v3218, %v3242
  %v3251 = vrot.slane %v1218, 2
  %3253 = vmatprep.subr.mxu0 %v3212
  %3254 = vmatpush1.msra.mxu0 %v3211
  %3255 = vmatprep.subr.mxu0 %v3206
  %3256 = vmatpush1.msra.mxu0 %v3205
  %3257 = vmatprep.subr.mxu0 %v3200
  %3258 = vmatpush1.msra.mxu0 %v3199
  %3259 = vmatprep.subr.mxu0 %v3194
  %3260 = vmatpush1.msra.mxu0 %v3193
  %3261 = vmatprep.subr.mxu0 %v3188
  %3262 = vmatpush1.msra.mxu0 %v3187
  %3263 = vmatprep.subr.mxu0 %v3182
  %3264 = vmatpush1.msra.mxu0 %v3181
  %3265 = vmatprep.subr.mxu0 %v3176
  %3266 = vmatpush1.msra.mxu0 %v3175
  %3267 = vmatprep.subr.mxu0 %v3170
  %3268 = vmatpush1.msra.mxu0 %v3169
  %3269 = vmatprep.subr.mxu0 %v3164
  %3270 = vmatpush1.msra.mxu0 %v3163
  %3271 = vmatprep.subr.mxu0 %v3158
  %3272 = vmatpush1.msra.mxu0 %v3157
  %3273 = vmatprep.subr.mxu0 %v3152
  %3274 = vmatpush1.msra.mxu0 %v3151
  %3275 = vmatprep.subr.mxu0 %v3146
  %3276 = vmatpush1.msra.mxu0 %v3145
  %3277 = vmatprep.subr.mxu0 %v3140
  %3278 = vmatpush1.msra.mxu0 %v3139
  %3279 = vmatprep.subr.mxu0 %v3134
  %3280 = vmatpush1.msra.mxu0 %v3133
  %3281 = vmatprep.subr.mxu0 %v3128
  %3282 = vmatpush1.msra.mxu0 %v3127
  %3283 = vmatprep.subr.mxu0 %v3122
  %3284 = vmatpush1.msra.mxu0 %v3121
  %3285 = vmatprep.subr.mxu0 0.0
  %3286 = vmatpush2.msra.mxu0 0.0
  %3287 = vmatprep.subr.mxu0 0.0
  %3288 = vmatpush2.msra.mxu0 0.0
  %3289 = vmatprep.subr.mxu0 0.0
  %3290 = vmatpush2.msra.mxu0 0.0
  %3291 = vmatprep.subr.mxu0 0.0
  %3292 = vmatpush2.msra.mxu0 0.0
  %3293 = vmatprep.subr.mxu0 0.0
  %3294 = vmatpush2.msra.mxu0 0.0
  %3295 = vmatprep.subr.mxu0 0.0
  %3296 = vmatpush2.msra.mxu0 0.0
  %3297 = vmatprep.subr.mxu0 0.0
  %3298 = vmatpush2.msra.mxu0 0.0
  %3299 = vmatprep.subr.mxu0 0.0
  %3300 = vmatpush2.msra.mxu0 0.0
  %3301 = vmatprep.subr.mxu0 0.0
  %3302 = vmatpush2.msra.mxu0 0.0
  %3303 = vmatprep.subr.mxu0 0.0
  %3304 = vmatpush2.msra.mxu0 0.0
  %3305 = vmatprep.subr.mxu0 0.0
  %3306 = vmatpush2.msra.mxu0 0.0
  %3307 = vmatprep.subr.mxu0 0.0
  %3308 = vmatpush2.msra.mxu0 0.0
  %3309 = vmatprep.subr.mxu0 0.0
  %3310 = vmatpush2.msra.mxu0 0.0
  %3311 = vmatprep.subr.mxu0 0.0
  %3312 = vmatpush2.msra.mxu0 0.0
  %3313 = vmatprep.subr.mxu0 0.0
  %3314 = vmatpush2.msra.mxu0 0.0
  %3315 = vmatprep.subr.mxu0 0.0
  %3316 = vmatpush2.msra.mxu0 0.0
  %3317 = vmatprep.mubr.f32.mxu0 0.0
  %3318 = vmatmul.mubr.f32.gmra.mxu0 %v3251
  %v3319 = vpop.f32.mrf.mxu0
  %v3320 = vadd.f32 %v3223, %v3319
  %v3321 = vpop.f32.mrf.mxu0
  %v3322 = vadd.f32 %v3227, %v3321
  %3323 = vdwg.mxu0
  %3324 = vmatprep.subr.mxu0 %v3214
  %3325 = vmatpush1.msra.mxu0 %v3213
  %3326 = vmatprep.subr.mxu0 %v3208
  %3327 = vmatpush1.msra.mxu0 %v3207
  %3328 = vmatprep.subr.mxu0 %v3202
  %3329 = vmatpush1.msra.mxu0 %v3201
  %3330 = vmatprep.subr.mxu0 %v3196
  %3331 = vmatpush1.msra.mxu0 %v3195
  %3332 = vmatprep.subr.mxu0 %v3190
  %3333 = vmatpush1.msra.mxu0 %v3189
  %3334 = vmatprep.subr.mxu0 %v3184
  %3335 = vmatpush1.msra.mxu0 %v3183
  %3336 = vmatprep.subr.mxu0 %v3178
  %3337 = vmatpush1.msra.mxu0 %v3177
  %3338 = vmatprep.subr.mxu0 %v3172
  %3339 = vmatpush1.msra.mxu0 %v3171
  %3340 = vmatprep.subr.mxu0 %v3166
  %3341 = vmatpush1.msra.mxu0 %v3165
  %3342 = vmatprep.subr.mxu0 %v3160
  %3343 = vmatpush1.msra.mxu0 %v3159
  %3344 = vmatprep.subr.mxu0 %v3154
  %3345 = vmatpush1.msra.mxu0 %v3153
  %3346 = vmatprep.subr.mxu0 %v3148
  %3347 = vmatpush1.msra.mxu0 %v3147
  %3348 = vmatprep.subr.mxu0 %v3142
  %3349 = vmatpush1.msra.mxu0 %v3141
  %3350 = vmatprep.subr.mxu0 %v3136
  %3351 = vmatpush1.msra.mxu0 %v3135
  %3352 = vmatprep.subr.mxu0 %v3130
  %3353 = vmatpush1.msra.mxu0 %v3129
  %3354 = vmatprep.subr.mxu0 %v3124
  %3355 = vmatpush1.msra.mxu0 %v3123
  %3356 = vmatprep.subr.mxu0 0.0
  %3357 = vmatpush2.msra.mxu0 0.0
  %3358 = vmatprep.subr.mxu0 0.0
  %3359 = vmatpush2.msra.mxu0 0.0
  %3360 = vmatprep.subr.mxu0 0.0
  %3361 = vmatpush2.msra.mxu0 0.0
  %3362 = vmatprep.subr.mxu0 0.0
  %3363 = vmatpush2.msra.mxu0 0.0
  %3364 = vmatprep.subr.mxu0 0.0
  %3365 = vmatpush2.msra.mxu0 0.0
  %3366 = vmatprep.subr.mxu0 0.0
  %3367 = vmatpush2.msra.mxu0 0.0
  %3368 = vmatprep.subr.mxu0 0.0
  %3369 = vmatpush2.msra.mxu0 0.0
  %3370 = vmatprep.subr.mxu0 0.0
  %3371 = vmatpush2.msra.mxu0 0.0
  %3372 = vmatprep.subr.mxu0 0.0
  %3373 = vmatpush2.msra.mxu0 0.0
  %3374 = vmatprep.subr.mxu0 0.0
  %3375 = vmatpush2.msra.mxu0 0.0
  %3376 = vmatprep.subr.mxu0 0.0
  %3377 = vmatpush2.msra.mxu0 0.0
  %3378 = vmatprep.subr.mxu0 0.0
  %3379 = vmatpush2.msra.mxu0 0.0
  %3380 = vmatprep.subr.mxu0 0.0
  %3381 = vmatpush2.msra.mxu0 0.0
  %3382 = vmatprep.subr.mxu0 0.0
  %3383 = vmatpush2.msra.mxu0 0.0
  %3384 = vmatprep.subr.mxu0 0.0
  %3385 = vmatpush2.msra.mxu0 0.0
  %3386 = vmatprep.subr.mxu0 0.0
  %3387 = vmatpush2.msra.mxu0 0.0
  %3388 = vmatprep.mubr.f32.mxu0 0.0
  %3389 = vmatmul.mubr.f32.gmra.mxu0 %v3251
  %v3390 = vpop.f32.mrf.mxu0
  %v3391 = vadd.f32 %v3231, %v3390
  %v3392 = vpop.f32.mrf.mxu0
  %v3393 = vadd.f32 %v3235, %v3392
  %3394 = vdwg.mxu0
  %3395 = vmatprep.subr.mxu0 %v3216
  %3396 = vmatpush1.msra.mxu0 %v3215
  %3397 = vmatprep.subr.mxu0 %v3210
  %3398 = vmatpush1.msra.mxu0 %v3209
  %3399 = vmatprep.subr.mxu0 %v3204
  %3400 = vmatpush1.msra.mxu0 %v3203
  %3401 = vmatprep.subr.mxu0 %v3198
  %3402 = vmatpush1.msra.mxu0 %v3197
  %3403 = vmatprep.subr.mxu0 %v3192
  %3404 = vmatpush1.msra.mxu0 %v3191
  %3405 = vmatprep.subr.mxu0 %v3186
  %3406 = vmatpush1.msra.mxu0 %v3185
  %3407 = vmatprep.subr.mxu0 %v3180
  %3408 = vmatpush1.msra.mxu0 %v3179
  %3409 = vmatprep.subr.mxu0 %v3174
  %3410 = vmatpush1.msra.mxu0 %v3173
  %3411 = vmatprep.subr.mxu0 %v3168
  %3412 = vmatpush1.msra.mxu0 %v3167
  %3413 = vmatprep.subr.mxu0 %v3162
  %3414 = vmatpush1.msra.mxu0 %v3161
  %3415 = vmatprep.subr.mxu0 %v3156
  %3416 = vmatpush1.msra.mxu0 %v3155
  %3417 = vmatprep.subr.mxu0 %v3150
  %3418 = vmatpush1.msra.mxu0 %v3149
  %3419 = vmatprep.subr.mxu0 %v3144
  %3420 = vmatpush1.msra.mxu0 %v3143
  %3421 = vmatprep.subr.mxu0 %v3138
  %3422 = vmatpush1.msra.mxu0 %v3137
  %3423 = vmatprep.subr.mxu0 %v3132
  %3424 = vmatpush1.msra.mxu0 %v3131
  %3425 = vmatprep.subr.mxu0 %v3126
  %3426 = vmatpush1.msra.mxu0 %v3125
  %3427 = vmatprep.subr.mxu0 0.0
  %3428 = vmatpush2.msra.mxu0 0.0
  %3429 = vmatprep.subr.mxu0 0.0
  %3430 = vmatpush2.msra.mxu0 0.0
  %3431 = vmatprep.subr.mxu0 0.0
  %3432 = vmatpush2.msra.mxu0 0.0
  %3433 = vmatprep.subr.mxu0 0.0
  %3434 = vmatpush2.msra.mxu0 0.0
  %3435 = vmatprep.subr.mxu0 0.0
  %3436 = vmatpush2.msra.mxu0 0.0
  %3437 = vmatprep.subr.mxu0 0.0
  %3438 = vmatpush2.msra.mxu0 0.0
  %3439 = vmatprep.subr.mxu0 0.0
  %3440 = vmatpush2.msra.mxu0 0.0
  %3441 = vmatprep.subr.mxu0 0.0
  %3442 = vmatpush2.msra.mxu0 0.0
  %3443 = vmatprep.subr.mxu0 0.0
  %3444 = vmatpush2.msra.mxu0 0.0
  %3445 = vmatprep.subr.mxu0 0.0
  %3446 = vmatpush2.msra.mxu0 0.0
  %3447 = vmatprep.subr.mxu0 0.0
  %3448 = vmatpush2.msra.mxu0 0.0
  %3449 = vmatprep.subr.mxu0 0.0
  %3450 = vmatpush2.msra.mxu0 0.0
  %3451 = vmatprep.subr.mxu0 0.0
  %3452 = vmatpush2.msra.mxu0 0.0
  %3453 = vmatprep.subr.mxu0 0.0
  %3454 = vmatpush2.msra.mxu0 0.0
  %3455 = vmatprep.subr.mxu0 0.0
  %3456 = vmatpush2.msra.mxu0 0.0
  %3457 = vmatprep.subr.mxu0 0.0
  %3458 = vmatpush2.msra.mxu0 0.0
  %3459 = vmatprep.mubr.f32.mxu0 0.0
  %3460 = vmatmul.mubr.f32.gmra.mxu0 %v3251
  %v3461 = vpop.f32.mrf.mxu0
  %v3462 = vadd.f32 %v3239, %v3461
  %v3463 = vpop.f32.mrf.mxu0
  %v3464 = vadd.f32 %v3243, %v3463
  %3465 = vdwg.mxu0
  %v3472 = vcombine.low %v3320, %v3322
  %v3473 = vcombine.low %v3391, %v3393
  %v3475 = vunpack.c.l.s4 1983009808
  %v3476 = vunpack.c.0.s8 %v3475
  %v3477 = vlaneseq
  %v3478 = vshrl.u32 %v3477, 7
  %v3479 = vsub.s32 %v3476, %v3478
  %v3480 = vrot.slane %v3472, %v3479
  %v3482 = vunpack.c.l.s4 1983009808
  %v3483 = vunpack.c.0.s8 %v3482
  %v3484 = vlaneseq
  %v3485 = vshrl.u32 %v3484, 7
  %v3486 = vsub.s32 %v3483, %v3485
  %v3487 = vrot.slane %v3473, %v3486
  %v3488 = vcombine.low %v3480, %v3487
  %v3489 = vcombine.low %v3462, %v3464
  %v3491 = vunpack.c.l.s4 1983009808
  %v3492 = vunpack.c.0.s8 %v3491
  %v3493 = vlaneseq
  %v3494 = vshrl.u32 %v3493, 7
  %v3495 = vsub.s32 %v3492, %v3494
  %v3496 = vrot.slane %v3489, %v3495
  %s3499 = scalar_lea.vmem %s9, 60
  %3500 = vst [vmem:[%s3499] sm:$0xff] %v3488
  %3501 = vst [vmem:[%s3499 + $0x8] sm:$0xf] %v3496
  %s3502 = scalar_lea.vmem %s6, 4608
  %v3503 = vld [vmem:[%s3502] sm:$0xff]
  %v3504 = vld [vmem:[%s3502 + $0x8] sm:$0xff]
  %v3505 = vld [vmem:[%s3502 + $0x10] sm:$0xff]
  %v3506 = vld [vmem:[%s3502 + $0x18] sm:$0xff]
  %v3507 = vld [vmem:[%s3502 + $0x20] sm:$0xff]
  %v3508 = vld [vmem:[%s3502 + $0x28] sm:$0xff]
  %v3509 = vld [vmem:[%s3502 + $0x30] sm:$0xff]
  %v3510 = vld [vmem:[%s3502 + $0x38] sm:$0xff]
  %v3511 = vld [vmem:[%s3502 + $0x40] sm:$0xff]
  %v3512 = vld [vmem:[%s3502 + $0x48] sm:$0xff]
  %v3513 = vld [vmem:[%s3502 + $0x50] sm:$0xff]
  %v3514 = vld [vmem:[%s3502 + $0x58] sm:$0xff]
  %v3515 = vld [vmem:[%s3502 + $0x60] sm:$0xff]
  %v3516 = vld [vmem:[%s3502 + $0x68] sm:$0xff]
  %v3517 = vld [vmem:[%s3502 + $0x70] sm:$0xff]
  %v3518 = vld [vmem:[%s3502 + $0x78] sm:$0xff]
  %v3519 = vld [vmem:[%s3502 + $0x80] sm:$0xff]
  %v3520 = vld [vmem:[%s3502 + $0x88] sm:$0xff]
  %v3521 = vld [vmem:[%s3502 + $0x90] sm:$0xff]
  %v3522 = vld [vmem:[%s3502 + $0x98] sm:$0xff]
  %v3523 = vld [vmem:[%s3502 + $0xa0] sm:$0xff]
  %v3524 = vld [vmem:[%s3502 + $0xa8] sm:$0xff]
  %v3525 = vld [vmem:[%s3502 + $0xb0] sm:$0xff]
  %v3526 = vld [vmem:[%s3502 + $0xb8] sm:$0xff]
  %v3527 = vld [vmem:[%s3502 + $0xc0] sm:$0xff]
  %v3528 = vld [vmem:[%s3502 + $0xc8] sm:$0xff]
  %v3529 = vld [vmem:[%s3502 + $0xd0] sm:$0xff]
  %v3530 = vld [vmem:[%s3502 + $0xd8] sm:$0xff]
  %v3531 = vld [vmem:[%s3502 + $0xe0] sm:$0xff]
  %v3532 = vld [vmem:[%s3502 + $0xe8] sm:$0xff]
  %v3533 = vld [vmem:[%s3502 + $0xf0] sm:$0xff]
  %v3534 = vld [vmem:[%s3502 + $0xf8] sm:$0xff]
  %v3535 = vld [vmem:[%s3502 + $0x100] sm:$0xff]
  %v3536 = vld [vmem:[%s3502 + $0x108] sm:$0xff]
  %v3537 = vld [vmem:[%s3502 + $0x110] sm:$0xff]
  %v3538 = vld [vmem:[%s3502 + $0x118] sm:$0xff]
  %v3539 = vld [vmem:[%s3502 + $0x120] sm:$0xff]
  %v3540 = vld [vmem:[%s3502 + $0x128] sm:$0xff]
  %v3541 = vld [vmem:[%s3502 + $0x130] sm:$0xff]
  %v3542 = vld [vmem:[%s3502 + $0x138] sm:$0xff]
  %v3543 = vld [vmem:[%s3502 + $0x140] sm:$0xff]
  %v3544 = vld [vmem:[%s3502 + $0x148] sm:$0xff]
  %v3545 = vld [vmem:[%s3502 + $0x150] sm:$0xff]
  %v3546 = vld [vmem:[%s3502 + $0x158] sm:$0xff]
  %v3547 = vld [vmem:[%s3502 + $0x160] sm:$0xff]
  %v3548 = vld [vmem:[%s3502 + $0x168] sm:$0xff]
  %v3549 = vld [vmem:[%s3502 + $0x170] sm:$0xff]
  %v3550 = vld [vmem:[%s3502 + $0x178] sm:$0xff]
  %v3551 = vld [vmem:[%s3502 + $0x180] sm:$0xff]
  %v3552 = vld [vmem:[%s3502 + $0x188] sm:$0xff]
  %v3553 = vld [vmem:[%s3502 + $0x190] sm:$0xff]
  %v3554 = vld [vmem:[%s3502 + $0x198] sm:$0xff]
  %v3555 = vld [vmem:[%s3502 + $0x1a0] sm:$0xff]
  %v3556 = vld [vmem:[%s3502 + $0x1a8] sm:$0xff]
  %v3557 = vld [vmem:[%s3502 + $0x1b0] sm:$0xff]
  %v3558 = vld [vmem:[%s3502 + $0x1b8] sm:$0xff]
  %v3559 = vld [vmem:[%s3502 + $0x1c0] sm:$0xff]
  %v3560 = vld [vmem:[%s3502 + $0x1c8] sm:$0xff]
  %v3561 = vld [vmem:[%s3502 + $0x1d0] sm:$0xff]
  %v3562 = vld [vmem:[%s3502 + $0x1d8] sm:$0xff]
  %v3563 = vld [vmem:[%s3502 + $0x1e0] sm:$0xff]
  %v3564 = vld [vmem:[%s3502 + $0x1e8] sm:$0xff]
  %v3565 = vld [vmem:[%s3502 + $0x1f0] sm:$0xff]
  %v3566 = vld [vmem:[%s3502 + $0x1f8] sm:$0xff]
  %v3567 = vld [vmem:[%s3502 + $0x200] sm:$0xff]
  %v3568 = vld [vmem:[%s3502 + $0x208] sm:$0xff]
  %v3569 = vld [vmem:[%s3502 + $0x210] sm:$0xff]
  %v3570 = vld [vmem:[%s3502 + $0x218] sm:$0xff]
  %v3571 = vld [vmem:[%s3502 + $0x220] sm:$0xff]
  %v3572 = vld [vmem:[%s3502 + $0x228] sm:$0xff]
  %v3573 = vld [vmem:[%s3502 + $0x230] sm:$0xff]
  %v3574 = vld [vmem:[%s3502 + $0x238] sm:$0xff]
  %v3575 = vld [vmem:[%s3502 + $0x240] sm:$0xff]
  %v3576 = vld [vmem:[%s3502 + $0x248] sm:$0xff]
  %v3577 = vld [vmem:[%s3502 + $0x250] sm:$0xff]
  %v3578 = vld [vmem:[%s3502 + $0x258] sm:$0xff]
  %v3579 = vld [vmem:[%s3502 + $0x260] sm:$0xff]
  %v3580 = vld [vmem:[%s3502 + $0x268] sm:$0xff]
  %v3581 = vld [vmem:[%s3502 + $0x270] sm:$0xff]
  %v3582 = vld [vmem:[%s3502 + $0x278] sm:$0xff]
  %v3583 = vld [vmem:[%s3502 + $0x280] sm:$0xff]
  %v3584 = vld [vmem:[%s3502 + $0x288] sm:$0xff]
  %v3585 = vld [vmem:[%s3502 + $0x290] sm:$0xff]
  %v3586 = vld [vmem:[%s3502 + $0x298] sm:$0xff]
  %v3587 = vld [vmem:[%s3502 + $0x2a0] sm:$0xff]
  %v3588 = vld [vmem:[%s3502 + $0x2a8] sm:$0xff]
  %v3589 = vld [vmem:[%s3502 + $0x2b0] sm:$0xff]
  %v3590 = vld [vmem:[%s3502 + $0x2b8] sm:$0xff]
  %v3591 = vld [vmem:[%s3502 + $0x2c0] sm:$0xff]
  %v3592 = vld [vmem:[%s3502 + $0x2c8] sm:$0xff]
  %v3593 = vld [vmem:[%s3502 + $0x2d0] sm:$0xff]
  %v3594 = vld [vmem:[%s3502 + $0x2d8] sm:$0xff]
  %v3595 = vld [vmem:[%s3502 + $0x2e0] sm:$0xff]
  %v3596 = vld [vmem:[%s3502 + $0x2e8] sm:$0xff]
  %v3597 = vld [vmem:[%s3502 + $0x2f0] sm:$0xff]
  %v3598 = vld [vmem:[%s3502 + $0x2f8] sm:$0xff]
  %s3599 = scalar_lea.vmem %s7, 36
  %v3600 = vld [vmem:[%s3599] sm:$0x3f]
  %v3602 = vlaneseq
  %v3603 = vshrl.u32 %v3602, 7
  %v3604 = vsub.s32 0, %v3603
  %v3605 = vrot.slane %v3600, %v3604
  %v3606 = vlaneseq
  %v3607 = vshrl.u32 %v3606, 7
  %v3608 = vsub.s32 1, %v3607
  %v3609 = vrot.slane %v3600, %v3608
  %v3610 = vlaneseq
  %v3611 = vshrl.u32 %v3610, 7
  %v3612 = vsub.s32 2, %v3611
  %v3613 = vrot.slane %v3600, %v3612
  %v3614 = vlaneseq
  %v3615 = vshrl.u32 %v3614, 7
  %v3616 = vsub.s32 3, %v3615
  %v3617 = vrot.slane %v3600, %v3616
  %v3618 = vlaneseq
  %v3619 = vshrl.u32 %v3618, 7
  %v3620 = vsub.s32 4, %v3619
  %v3621 = vrot.slane %v3600, %v3620
  %v3622 = vlaneseq
  %v3623 = vshrl.u32 %v3622, 7
  %v3624 = vsub.s32 5, %v3623
  %v3625 = vrot.slane %v3600, %v3624
  %v3632 = vrot.slane %v1218, 4
  %3634 = vmatprep.subr.mxu0 %v3594
  %3635 = vmatpush1.msra.mxu0 %v3593
  %3636 = vmatprep.subr.mxu0 %v3588
  %3637 = vmatpush1.msra.mxu0 %v3587
  %3638 = vmatprep.subr.mxu0 %v3582
  %3639 = vmatpush1.msra.mxu0 %v3581
  %3640 = vmatprep.subr.mxu0 %v3576
  %3641 = vmatpush1.msra.mxu0 %v3575
  %3642 = vmatprep.subr.mxu0 %v3570
  %3643 = vmatpush1.msra.mxu0 %v3569
  %3644 = vmatprep.subr.mxu0 %v3564
  %3645 = vmatpush1.msra.mxu0 %v3563
  %3646 = vmatprep.subr.mxu0 %v3558
  %3647 = vmatpush1.msra.mxu0 %v3557
  %3648 = vmatprep.subr.mxu0 %v3552
  %3649 = vmatpush1.msra.mxu0 %v3551
  %3650 = vmatprep.subr.mxu0 %v3546
  %3651 = vmatpush1.msra.mxu0 %v3545
  %3652 = vmatprep.subr.mxu0 %v3540
  %3653 = vmatpush1.msra.mxu0 %v3539
  %3654 = vmatprep.subr.mxu0 %v3534
  %3655 = vmatpush1.msra.mxu0 %v3533
  %3656 = vmatprep.subr.mxu0 %v3528
  %3657 = vmatpush1.msra.mxu0 %v3527
  %3658 = vmatprep.subr.mxu0 %v3522
  %3659 = vmatpush1.msra.mxu0 %v3521
  %3660 = vmatprep.subr.mxu0 %v3516
  %3661 = vmatpush1.msra.mxu0 %v3515
  %3662 = vmatprep.subr.mxu0 %v3510
  %3663 = vmatpush1.msra.mxu0 %v3509
  %3664 = vmatprep.subr.mxu0 %v3504
  %3665 = vmatpush1.msra.mxu0 %v3503
  %3666 = vmatprep.subr.mxu0 0.0
  %3667 = vmatpush2.msra.mxu0 0.0
  %3668 = vmatprep.subr.mxu0 0.0
  %3669 = vmatpush2.msra.mxu0 0.0
  %3670 = vmatprep.subr.mxu0 0.0
  %3671 = vmatpush2.msra.mxu0 0.0
  %3672 = vmatprep.subr.mxu0 0.0
  %3673 = vmatpush2.msra.mxu0 0.0
  %3674 = vmatprep.subr.mxu0 0.0
  %3675 = vmatpush2.msra.mxu0 0.0
  %3676 = vmatprep.subr.mxu0 0.0
  %3677 = vmatpush2.msra.mxu0 0.0
  %3678 = vmatprep.subr.mxu0 0.0
  %3679 = vmatpush2.msra.mxu0 0.0
  %3680 = vmatprep.subr.mxu0 0.0
  %3681 = vmatpush2.msra.mxu0 0.0
  %3682 = vmatprep.subr.mxu0 0.0
  %3683 = vmatpush2.msra.mxu0 0.0
  %3684 = vmatprep.subr.mxu0 0.0
  %3685 = vmatpush2.msra.mxu0 0.0
  %3686 = vmatprep.subr.mxu0 0.0
  %3687 = vmatpush2.msra.mxu0 0.0
  %3688 = vmatprep.subr.mxu0 0.0
  %3689 = vmatpush2.msra.mxu0 0.0
  %3690 = vmatprep.subr.mxu0 0.0
  %3691 = vmatpush2.msra.mxu0 0.0
  %3692 = vmatprep.subr.mxu0 0.0
  %3693 = vmatpush2.msra.mxu0 0.0
  %3694 = vmatprep.subr.mxu0 0.0
  %3695 = vmatpush2.msra.mxu0 0.0
  %3696 = vmatprep.subr.mxu0 0.0
  %3697 = vmatpush2.msra.mxu0 0.0
  %3698 = vmatprep.mubr.f32.mxu0 0.0
  %3699 = vmatmul.mubr.f32.gmra.mxu0 %v3632
  %v3700 = vpop.f32.mrf.mxu0
  %v3701 = vadd.f32 %v3605, %v3700
  %v3702 = vpop.f32.mrf.mxu0
  %v3703 = vadd.f32 %v3609, %v3702
  %3704 = vdwg.mxu0
  %3705 = vmatprep.subr.mxu0 %v3596
  %3706 = vmatpush1.msra.mxu0 %v3595
  %3707 = vmatprep.subr.mxu0 %v3590
  %3708 = vmatpush1.msra.mxu0 %v3589
  %3709 = vmatprep.subr.mxu0 %v3584
  %3710 = vmatpush1.msra.mxu0 %v3583
  %3711 = vmatprep.subr.mxu0 %v3578
  %3712 = vmatpush1.msra.mxu0 %v3577
  %3713 = vmatprep.subr.mxu0 %v3572
  %3714 = vmatpush1.msra.mxu0 %v3571
  %3715 = vmatprep.subr.mxu0 %v3566
  %3716 = vmatpush1.msra.mxu0 %v3565
  %3717 = vmatprep.subr.mxu0 %v3560
  %3718 = vmatpush1.msra.mxu0 %v3559
  %3719 = vmatprep.subr.mxu0 %v3554
  %3720 = vmatpush1.msra.mxu0 %v3553
  %3721 = vmatprep.subr.mxu0 %v3548
  %3722 = vmatpush1.msra.mxu0 %v3547
  %3723 = vmatprep.subr.mxu0 %v3542
  %3724 = vmatpush1.msra.mxu0 %v3541
  %3725 = vmatprep.subr.mxu0 %v3536
  %3726 = vmatpush1.msra.mxu0 %v3535
  %3727 = vmatprep.subr.mxu0 %v3530
  %3728 = vmatpush1.msra.mxu0 %v3529
  %3729 = vmatprep.subr.mxu0 %v3524
  %3730 = vmatpush1.msra.mxu0 %v3523
  %3731 = vmatprep.subr.mxu0 %v3518
  %3732 = vmatpush1.msra.mxu0 %v3517
  %3733 = vmatprep.subr.mxu0 %v3512
  %3734 = vmatpush1.msra.mxu0 %v3511
  %3735 = vmatprep.subr.mxu0 %v3506
  %3736 = vmatpush1.msra.mxu0 %v3505
  %3737 = vmatprep.subr.mxu0 0.0
  %3738 = vmatpush2.msra.mxu0 0.0
  %3739 = vmatprep.subr.mxu0 0.0
  %3740 = vmatpush2.msra.mxu0 0.0
  %3741 = vmatprep.subr.mxu0 0.0
  %3742 = vmatpush2.msra.mxu0 0.0
  %3743 = vmatprep.subr.mxu0 0.0
  %3744 = vmatpush2.msra.mxu0 0.0
  %3745 = vmatprep.subr.mxu0 0.0
  %3746 = vmatpush2.msra.mxu0 0.0
  %3747 = vmatprep.subr.mxu0 0.0
  %3748 = vmatpush2.msra.mxu0 0.0
  %3749 = vmatprep.subr.mxu0 0.0
  %3750 = vmatpush2.msra.mxu0 0.0
  %3751 = vmatprep.subr.mxu0 0.0
  %3752 = vmatpush2.msra.mxu0 0.0
  %3753 = vmatprep.subr.mxu0 0.0
  %3754 = vmatpush2.msra.mxu0 0.0
  %3755 = vmatprep.subr.mxu0 0.0
  %3756 = vmatpush2.msra.mxu0 0.0
  %3757 = vmatprep.subr.mxu0 0.0
  %3758 = vmatpush2.msra.mxu0 0.0
  %3759 = vmatprep.subr.mxu0 0.0
  %3760 = vmatpush2.msra.mxu0 0.0
  %3761 = vmatprep.subr.mxu0 0.0
  %3762 = vmatpush2.msra.mxu0 0.0
  %3763 = vmatprep.subr.mxu0 0.0
  %3764 = vmatpush2.msra.mxu0 0.0
  %3765 = vmatprep.subr.mxu0 0.0
  %3766 = vmatpush2.msra.mxu0 0.0
  %3767 = vmatprep.subr.mxu0 0.0
  %3768 = vmatpush2.msra.mxu0 0.0
  %3769 = vmatprep.mubr.f32.mxu0 0.0
  %3770 = vmatmul.mubr.f32.gmra.mxu0 %v3632
  %v3771 = vpop.f32.mrf.mxu0
  %v3772 = vadd.f32 %v3613, %v3771
  %v3773 = vpop.f32.mrf.mxu0
  %v3774 = vadd.f32 %v3617, %v3773
  %3775 = vdwg.mxu0
  %3776 = vmatprep.subr.mxu0 %v3598
  %3777 = vmatpush1.msra.mxu0 %v3597
  %3778 = vmatprep.subr.mxu0 %v3592
  %3779 = vmatpush1.msra.mxu0 %v3591
  %3780 = vmatprep.subr.mxu0 %v3586
  %3781 = vmatpush1.msra.mxu0 %v3585
  %3782 = vmatprep.subr.mxu0 %v3580
  %3783 = vmatpush1.msra.mxu0 %v3579
  %3784 = vmatprep.subr.mxu0 %v3574
  %3785 = vmatpush1.msra.mxu0 %v3573
  %3786 = vmatprep.subr.mxu0 %v3568
  %3787 = vmatpush1.msra.mxu0 %v3567
  %3788 = vmatprep.subr.mxu0 %v3562
  %3789 = vmatpush1.msra.mxu0 %v3561
  %3790 = vmatprep.subr.mxu0 %v3556
  %3791 = vmatpush1.msra.mxu0 %v3555
  %3792 = vmatprep.subr.mxu0 %v3550
  %3793 = vmatpush1.msra.mxu0 %v3549
  %3794 = vmatprep.subr.mxu0 %v3544
  %3795 = vmatpush1.msra.mxu0 %v3543
  %3796 = vmatprep.subr.mxu0 %v3538
  %3797 = vmatpush1.msra.mxu0 %v3537
  %3798 = vmatprep.subr.mxu0 %v3532
  %3799 = vmatpush1.msra.mxu0 %v3531
  %3800 = vmatprep.subr.mxu0 %v3526
  %3801 = vmatpush1.msra.mxu0 %v3525
  %3802 = vmatprep.subr.mxu0 %v3520
  %3803 = vmatpush1.msra.mxu0 %v3519
  %3804 = vmatprep.subr.mxu0 %v3514
  %3805 = vmatpush1.msra.mxu0 %v3513
  %3806 = vmatprep.subr.mxu0 %v3508
  %3807 = vmatpush1.msra.mxu0 %v3507
  %3808 = vmatprep.subr.mxu0 0.0
  %3809 = vmatpush2.msra.mxu0 0.0
  %3810 = vmatprep.subr.mxu0 0.0
  %3811 = vmatpush2.msra.mxu0 0.0
  %3812 = vmatprep.subr.mxu0 0.0
  %3813 = vmatpush2.msra.mxu0 0.0
  %3814 = vmatprep.subr.mxu0 0.0
  %3815 = vmatpush2.msra.mxu0 0.0
  %3816 = vmatprep.subr.mxu0 0.0
  %3817 = vmatpush2.msra.mxu0 0.0
  %3818 = vmatprep.subr.mxu0 0.0
  %3819 = vmatpush2.msra.mxu0 0.0
  %3820 = vmatprep.subr.mxu0 0.0
  %3821 = vmatpush2.msra.mxu0 0.0
  %3822 = vmatprep.subr.mxu0 0.0
  %3823 = vmatpush2.msra.mxu0 0.0
  %3824 = vmatprep.subr.mxu0 0.0
  %3825 = vmatpush2.msra.mxu0 0.0
  %3826 = vmatprep.subr.mxu0 0.0
  %3827 = vmatpush2.msra.mxu0 0.0
  %3828 = vmatprep.subr.mxu0 0.0
  %3829 = vmatpush2.msra.mxu0 0.0
  %3830 = vmatprep.subr.mxu0 0.0
  %3831 = vmatpush2.msra.mxu0 0.0
  %3832 = vmatprep.subr.mxu0 0.0
  %3833 = vmatpush2.msra.mxu0 0.0
  %3834 = vmatprep.subr.mxu0 0.0
  %3835 = vmatpush2.msra.mxu0 0.0
  %3836 = vmatprep.subr.mxu0 0.0
  %3837 = vmatpush2.msra.mxu0 0.0
  %3838 = vmatprep.subr.mxu0 0.0
  %3839 = vmatpush2.msra.mxu0 0.0
  %3840 = vmatprep.mubr.f32.mxu0 0.0
  %3841 = vmatmul.mubr.f32.gmra.mxu0 %v3632
  %v3842 = vpop.f32.mrf.mxu0
  %v3843 = vadd.f32 %v3621, %v3842
  %v3844 = vpop.f32.mrf.mxu0
  %v3845 = vadd.f32 %v3625, %v3844
  %3846 = vdwg.mxu0
  %v3853 = vcombine.low %v3701, %v3703
  %v3854 = vcombine.low %v3772, %v3774
  %v3856 = vunpack.c.l.s4 1983009808
  %v3857 = vunpack.c.0.s8 %v3856
  %v3858 = vlaneseq
  %v3859 = vshrl.u32 %v3858, 7
  %v3860 = vsub.s32 %v3857, %v3859
  %v3861 = vrot.slane %v3853, %v3860
  %v3863 = vunpack.c.l.s4 1983009808
  %v3864 = vunpack.c.0.s8 %v3863
  %v3865 = vlaneseq
  %v3866 = vshrl.u32 %v3865, 7
  %v3867 = vsub.s32 %v3864, %v3866
  %v3868 = vrot.slane %v3854, %v3867
  %v3869 = vcombine.low %v3861, %v3868
  %v3870 = vcombine.low %v3843, %v3845
  %v3872 = vunpack.c.l.s4 1983009808
  %v3873 = vunpack.c.0.s8 %v3872
  %v3874 = vlaneseq
  %v3875 = vshrl.u32 %v3874, 7
  %v3876 = vsub.s32 %v3873, %v3875
  %v3877 = vrot.slane %v3870, %v3876
  %s3880 = scalar_lea.vmem %s9, 72
  %3881 = vst [vmem:[%s3880] sm:$0xff] %v3869
  %3882 = vst [vmem:[%s3880 + $0x8] sm:$0xf] %v3877
  %s3883 = scalar_lea.vmem %s6, 5376
  %v3884 = vld [vmem:[%s3883] sm:$0xff]
  %v3885 = vld [vmem:[%s3883 + $0x8] sm:$0xff]
  %v3886 = vld [vmem:[%s3883 + $0x10] sm:$0xff]
  %v3887 = vld [vmem:[%s3883 + $0x18] sm:$0xff]
  %v3888 = vld [vmem:[%s3883 + $0x20] sm:$0xff]
  %v3889 = vld [vmem:[%s3883 + $0x28] sm:$0xff]
  %v3890 = vld [vmem:[%s3883 + $0x30] sm:$0xff]
  %v3891 = vld [vmem:[%s3883 + $0x38] sm:$0xff]
  %v3892 = vld [vmem:[%s3883 + $0x40] sm:$0xff]
  %v3893 = vld [vmem:[%s3883 + $0x48] sm:$0xff]
  %v3894 = vld [vmem:[%s3883 + $0x50] sm:$0xff]
  %v3895 = vld [vmem:[%s3883 + $0x58] sm:$0xff]
  %v3896 = vld [vmem:[%s3883 + $0x60] sm:$0xff]
  %v3897 = vld [vmem:[%s3883 + $0x68] sm:$0xff]
  %v3898 = vld [vmem:[%s3883 + $0x70] sm:$0xff]
  %v3899 = vld [vmem:[%s3883 + $0x78] sm:$0xff]
  %v3900 = vld [vmem:[%s3883 + $0x80] sm:$0xff]
  %v3901 = vld [vmem:[%s3883 + $0x88] sm:$0xff]
  %v3902 = vld [vmem:[%s3883 + $0x90] sm:$0xff]
  %v3903 = vld [vmem:[%s3883 + $0x98] sm:$0xff]
  %v3904 = vld [vmem:[%s3883 + $0xa0] sm:$0xff]
  %v3905 = vld [vmem:[%s3883 + $0xa8] sm:$0xff]
  %v3906 = vld [vmem:[%s3883 + $0xb0] sm:$0xff]
  %v3907 = vld [vmem:[%s3883 + $0xb8] sm:$0xff]
  %v3908 = vld [vmem:[%s3883 + $0xc0] sm:$0xff]
  %v3909 = vld [vmem:[%s3883 + $0xc8] sm:$0xff]
  %v3910 = vld [vmem:[%s3883 + $0xd0] sm:$0xff]
  %v3911 = vld [vmem:[%s3883 + $0xd8] sm:$0xff]
  %v3912 = vld [vmem:[%s3883 + $0xe0] sm:$0xff]
  %v3913 = vld [vmem:[%s3883 + $0xe8] sm:$0xff]
  %v3914 = vld [vmem:[%s3883 + $0xf0] sm:$0xff]
  %v3915 = vld [vmem:[%s3883 + $0xf8] sm:$0xff]
  %v3916 = vld [vmem:[%s3883 + $0x100] sm:$0xff]
  %v3917 = vld [vmem:[%s3883 + $0x108] sm:$0xff]
  %v3918 = vld [vmem:[%s3883 + $0x110] sm:$0xff]
  %v3919 = vld [vmem:[%s3883 + $0x118] sm:$0xff]
  %v3920 = vld [vmem:[%s3883 + $0x120] sm:$0xff]
  %v3921 = vld [vmem:[%s3883 + $0x128] sm:$0xff]
  %v3922 = vld [vmem:[%s3883 + $0x130] sm:$0xff]
  %v3923 = vld [vmem:[%s3883 + $0x138] sm:$0xff]
  %v3924 = vld [vmem:[%s3883 + $0x140] sm:$0xff]
  %v3925 = vld [vmem:[%s3883 + $0x148] sm:$0xff]
  %v3926 = vld [vmem:[%s3883 + $0x150] sm:$0xff]
  %v3927 = vld [vmem:[%s3883 + $0x158] sm:$0xff]
  %v3928 = vld [vmem:[%s3883 + $0x160] sm:$0xff]
  %v3929 = vld [vmem:[%s3883 + $0x168] sm:$0xff]
  %v3930 = vld [vmem:[%s3883 + $0x170] sm:$0xff]
  %v3931 = vld [vmem:[%s3883 + $0x178] sm:$0xff]
  %v3932 = vld [vmem:[%s3883 + $0x180] sm:$0xff]
  %v3933 = vld [vmem:[%s3883 + $0x188] sm:$0xff]
  %v3934 = vld [vmem:[%s3883 + $0x190] sm:$0xff]
  %v3935 = vld [vmem:[%s3883 + $0x198] sm:$0xff]
  %v3936 = vld [vmem:[%s3883 + $0x1a0] sm:$0xff]
  %v3937 = vld [vmem:[%s3883 + $0x1a8] sm:$0xff]
  %v3938 = vld [vmem:[%s3883 + $0x1b0] sm:$0xff]
  %v3939 = vld [vmem:[%s3883 + $0x1b8] sm:$0xff]
  %v3940 = vld [vmem:[%s3883 + $0x1c0] sm:$0xff]
  %v3941 = vld [vmem:[%s3883 + $0x1c8] sm:$0xff]
  %v3942 = vld [vmem:[%s3883 + $0x1d0] sm:$0xff]
  %v3943 = vld [vmem:[%s3883 + $0x1d8] sm:$0xff]
  %v3944 = vld [vmem:[%s3883 + $0x1e0] sm:$0xff]
  %v3945 = vld [vmem:[%s3883 + $0x1e8] sm:$0xff]
  %v3946 = vld [vmem:[%s3883 + $0x1f0] sm:$0xff]
  %v3947 = vld [vmem:[%s3883 + $0x1f8] sm:$0xff]
  %v3948 = vld [vmem:[%s3883 + $0x200] sm:$0xff]
  %v3949 = vld [vmem:[%s3883 + $0x208] sm:$0xff]
  %v3950 = vld [vmem:[%s3883 + $0x210] sm:$0xff]
  %v3951 = vld [vmem:[%s3883 + $0x218] sm:$0xff]
  %v3952 = vld [vmem:[%s3883 + $0x220] sm:$0xff]
  %v3953 = vld [vmem:[%s3883 + $0x228] sm:$0xff]
  %v3954 = vld [vmem:[%s3883 + $0x230] sm:$0xff]
  %v3955 = vld [vmem:[%s3883 + $0x238] sm:$0xff]
  %v3956 = vld [vmem:[%s3883 + $0x240] sm:$0xff]
  %v3957 = vld [vmem:[%s3883 + $0x248] sm:$0xff]
  %v3958 = vld [vmem:[%s3883 + $0x250] sm:$0xff]
  %v3959 = vld [vmem:[%s3883 + $0x258] sm:$0xff]
  %v3960 = vld [vmem:[%s3883 + $0x260] sm:$0xff]
  %v3961 = vld [vmem:[%s3883 + $0x268] sm:$0xff]
  %v3962 = vld [vmem:[%s3883 + $0x270] sm:$0xff]
  %v3963 = vld [vmem:[%s3883 + $0x278] sm:$0xff]
  %v3964 = vld [vmem:[%s3883 + $0x280] sm:$0xff]
  %v3965 = vld [vmem:[%s3883 + $0x288] sm:$0xff]
  %v3966 = vld [vmem:[%s3883 + $0x290] sm:$0xff]
  %v3967 = vld [vmem:[%s3883 + $0x298] sm:$0xff]
  %v3968 = vld [vmem:[%s3883 + $0x2a0] sm:$0xff]
  %v3969 = vld [vmem:[%s3883 + $0x2a8] sm:$0xff]
  %v3970 = vld [vmem:[%s3883 + $0x2b0] sm:$0xff]
  %v3971 = vld [vmem:[%s3883 + $0x2b8] sm:$0xff]
  %v3972 = vld [vmem:[%s3883 + $0x2c0] sm:$0xff]
  %v3973 = vld [vmem:[%s3883 + $0x2c8] sm:$0xff]
  %v3974 = vld [vmem:[%s3883 + $0x2d0] sm:$0xff]
  %v3975 = vld [vmem:[%s3883 + $0x2d8] sm:$0xff]
  %v3976 = vld [vmem:[%s3883 + $0x2e0] sm:$0xff]
  %v3977 = vld [vmem:[%s3883 + $0x2e8] sm:$0xff]
  %v3978 = vld [vmem:[%s3883 + $0x2f0] sm:$0xff]
  %v3979 = vld [vmem:[%s3883 + $0x2f8] sm:$0xff]
  %s3980 = scalar_lea.vmem %s7, 42
  %v3981 = vld [vmem:[%s3980] sm:$0x3f]
  %v3983 = vlaneseq
  %v3984 = vshrl.u32 %v3983, 7
  %v3985 = vsub.s32 0, %v3984
  %v3986 = vrot.slane %v3981, %v3985
  %v3987 = vlaneseq
  %v3988 = vshrl.u32 %v3987, 7
  %v3989 = vsub.s32 1, %v3988
  %v3990 = vrot.slane %v3981, %v3989
  %v3991 = vlaneseq
  %v3992 = vshrl.u32 %v3991, 7
  %v3993 = vsub.s32 2, %v3992
  %v3994 = vrot.slane %v3981, %v3993
  %v3995 = vlaneseq
  %v3996 = vshrl.u32 %v3995, 7
  %v3997 = vsub.s32 3, %v3996
  %v3998 = vrot.slane %v3981, %v3997
  %v3999 = vlaneseq
  %v4000 = vshrl.u32 %v3999, 7
  %v4001 = vsub.s32 4, %v4000
  %v4002 = vrot.slane %v3981, %v4001
  %v4003 = vlaneseq
  %v4004 = vshrl.u32 %v4003, 7
  %v4005 = vsub.s32 5, %v4004
  %v4006 = vrot.slane %v3981, %v4005
  %v4013 = vrot.slane %v1218, 6
  %4015 = vmatprep.subr.mxu0 %v3975
  %4016 = vmatpush1.msra.mxu0 %v3974
  %4017 = vmatprep.subr.mxu0 %v3969
  %4018 = vmatpush1.msra.mxu0 %v3968
  %4019 = vmatprep.subr.mxu0 %v3963
  %4020 = vmatpush1.msra.mxu0 %v3962
  %4021 = vmatprep.subr.mxu0 %v3957
  %4022 = vmatpush1.msra.mxu0 %v3956
  %4023 = vmatprep.subr.mxu0 %v3951
  %4024 = vmatpush1.msra.mxu0 %v3950
  %4025 = vmatprep.subr.mxu0 %v3945
  %4026 = vmatpush1.msra.mxu0 %v3944
  %4027 = vmatprep.subr.mxu0 %v3939
  %4028 = vmatpush1.msra.mxu0 %v3938
  %4029 = vmatprep.subr.mxu0 %v3933
  %4030 = vmatpush1.msra.mxu0 %v3932
  %4031 = vmatprep.subr.mxu0 %v3927
  %4032 = vmatpush1.msra.mxu0 %v3926
  %4033 = vmatprep.subr.mxu0 %v3921
  %4034 = vmatpush1.msra.mxu0 %v3920
  %4035 = vmatprep.subr.mxu0 %v3915
  %4036 = vmatpush1.msra.mxu0 %v3914
  %4037 = vmatprep.subr.mxu0 %v3909
  %4038 = vmatpush1.msra.mxu0 %v3908
  %4039 = vmatprep.subr.mxu0 %v3903
  %4040 = vmatpush1.msra.mxu0 %v3902
  %4041 = vmatprep.subr.mxu0 %v3897
  %4042 = vmatpush1.msra.mxu0 %v3896
  %4043 = vmatprep.subr.mxu0 %v3891
  %4044 = vmatpush1.msra.mxu0 %v3890
  %4045 = vmatprep.subr.mxu0 %v3885
  %4046 = vmatpush1.msra.mxu0 %v3884
  %4047 = vmatprep.subr.mxu0 0.0
  %4048 = vmatpush2.msra.mxu0 0.0
  %4049 = vmatprep.subr.mxu0 0.0
  %4050 = vmatpush2.msra.mxu0 0.0
  %4051 = vmatprep.subr.mxu0 0.0
  %4052 = vmatpush2.msra.mxu0 0.0
  %4053 = vmatprep.subr.mxu0 0.0
  %4054 = vmatpush2.msra.mxu0 0.0
  %4055 = vmatprep.subr.mxu0 0.0
  %4056 = vmatpush2.msra.mxu0 0.0
  %4057 = vmatprep.subr.mxu0 0.0
  %4058 = vmatpush2.msra.mxu0 0.0
  %4059 = vmatprep.subr.mxu0 0.0
  %4060 = vmatpush2.msra.mxu0 0.0
  %4061 = vmatprep.subr.mxu0 0.0
  %4062 = vmatpush2.msra.mxu0 0.0
  %4063 = vmatprep.subr.mxu0 0.0
  %4064 = vmatpush2.msra.mxu0 0.0
  %4065 = vmatprep.subr.mxu0 0.0
  %4066 = vmatpush2.msra.mxu0 0.0
  %4067 = vmatprep.subr.mxu0 0.0
  %4068 = vmatpush2.msra.mxu0 0.0
  %4069 = vmatprep.subr.mxu0 0.0
  %4070 = vmatpush2.msra.mxu0 0.0
  %4071 = vmatprep.subr.mxu0 0.0
  %4072 = vmatpush2.msra.mxu0 0.0
  %4073 = vmatprep.subr.mxu0 0.0
  %4074 = vmatpush2.msra.mxu0 0.0
  %4075 = vmatprep.subr.mxu0 0.0
  %4076 = vmatpush2.msra.mxu0 0.0
  %4077 = vmatprep.subr.mxu0 0.0
  %4078 = vmatpush2.msra.mxu0 0.0
  %4079 = vmatprep.mubr.f32.mxu0 0.0
  %4080 = vmatmul.mubr.f32.gmra.mxu0 %v4013
  %v4081 = vpop.f32.mrf.mxu0
  %v4082 = vadd.f32 %v3986, %v4081
  %v4083 = vpop.f32.mrf.mxu0
  %v4084 = vadd.f32 %v3990, %v4083
  %4085 = vdwg.mxu0
  %4086 = vmatprep.subr.mxu0 %v3977
  %4087 = vmatpush1.msra.mxu0 %v3976
  %4088 = vmatprep.subr.mxu0 %v3971
  %4089 = vmatpush1.msra.mxu0 %v3970
  %4090 = vmatprep.subr.mxu0 %v3965
  %4091 = vmatpush1.msra.mxu0 %v3964
  %4092 = vmatprep.subr.mxu0 %v3959
  %4093 = vmatpush1.msra.mxu0 %v3958
  %4094 = vmatprep.subr.mxu0 %v3953
  %4095 = vmatpush1.msra.mxu0 %v3952
  %4096 = vmatprep.subr.mxu0 %v3947
  %4097 = vmatpush1.msra.mxu0 %v3946
  %4098 = vmatprep.subr.mxu0 %v3941
  %4099 = vmatpush1.msra.mxu0 %v3940
  %4100 = vmatprep.subr.mxu0 %v3935
  %4101 = vmatpush1.msra.mxu0 %v3934
  %4102 = vmatprep.subr.mxu0 %v3929
  %4103 = vmatpush1.msra.mxu0 %v3928
  %4104 = vmatprep.subr.mxu0 %v3923
  %4105 = vmatpush1.msra.mxu0 %v3922
  %4106 = vmatprep.subr.mxu0 %v3917
  %4107 = vmatpush1.msra.mxu0 %v3916
  %4108 = vmatprep.subr.mxu0 %v3911
  %4109 = vmatpush1.msra.mxu0 %v3910
  %4110 = vmatprep.subr.mxu0 %v3905
  %4111 = vmatpush1.msra.mxu0 %v3904
  %4112 = vmatprep.subr.mxu0 %v3899
  %4113 = vmatpush1.msra.mxu0 %v3898
  %4114 = vmatprep.subr.mxu0 %v3893
  %4115 = vmatpush1.msra.mxu0 %v3892
  %4116 = vmatprep.subr.mxu0 %v3887
  %4117 = vmatpush1.msra.mxu0 %v3886
  %4118 = vmatprep.subr.mxu0 0.0
  %4119 = vmatpush2.msra.mxu0 0.0
  %4120 = vmatprep.subr.mxu0 0.0
  %4121 = vmatpush2.msra.mxu0 0.0
  %4122 = vmatprep.subr.mxu0 0.0
  %4123 = vmatpush2.msra.mxu0 0.0
  %4124 = vmatprep.subr.mxu0 0.0
  %4125 = vmatpush2.msra.mxu0 0.0
  %4126 = vmatprep.subr.mxu0 0.0
  %4127 = vmatpush2.msra.mxu0 0.0
  %4128 = vmatprep.subr.mxu0 0.0
  %4129 = vmatpush2.msra.mxu0 0.0
  %4130 = vmatprep.subr.mxu0 0.0
  %4131 = vmatpush2.msra.mxu0 0.0
  %4132 = vmatprep.subr.mxu0 0.0
  %4133 = vmatpush2.msra.mxu0 0.0
  %4134 = vmatprep.subr.mxu0 0.0
  %4135 = vmatpush2.msra.mxu0 0.0
  %4136 = vmatprep.subr.mxu0 0.0
  %4137 = vmatpush2.msra.mxu0 0.0
  %4138 = vmatprep.subr.mxu0 0.0
  %4139 = vmatpush2.msra.mxu0 0.0
  %4140 = vmatprep.subr.mxu0 0.0
  %4141 = vmatpush2.msra.mxu0 0.0
  %4142 = vmatprep.subr.mxu0 0.0
  %4143 = vmatpush2.msra.mxu0 0.0
  %4144 = vmatprep.subr.mxu0 0.0
  %4145 = vmatpush2.msra.mxu0 0.0
  %4146 = vmatprep.subr.mxu0 0.0
  %4147 = vmatpush2.msra.mxu0 0.0
  %4148 = vmatprep.subr.mxu0 0.0
  %4149 = vmatpush2.msra.mxu0 0.0
  %4150 = vmatprep.mubr.f32.mxu0 0.0
  %4151 = vmatmul.mubr.f32.gmra.mxu0 %v4013
  %v4152 = vpop.f32.mrf.mxu0
  %v4153 = vadd.f32 %v3994, %v4152
  %v4154 = vpop.f32.mrf.mxu0
  %v4155 = vadd.f32 %v3998, %v4154
  %4156 = vdwg.mxu0
  %4157 = vmatprep.subr.mxu0 %v3979
  %4158 = vmatpush1.msra.mxu0 %v3978
  %4159 = vmatprep.subr.mxu0 %v3973
  %4160 = vmatpush1.msra.mxu0 %v3972
  %4161 = vmatprep.subr.mxu0 %v3967
  %4162 = vmatpush1.msra.mxu0 %v3966
  %4163 = vmatprep.subr.mxu0 %v3961
  %4164 = vmatpush1.msra.mxu0 %v3960
  %4165 = vmatprep.subr.mxu0 %v3955
  %4166 = vmatpush1.msra.mxu0 %v3954
  %4167 = vmatprep.subr.mxu0 %v3949
  %4168 = vmatpush1.msra.mxu0 %v3948
  %4169 = vmatprep.subr.mxu0 %v3943
  %4170 = vmatpush1.msra.mxu0 %v3942
  %4171 = vmatprep.subr.mxu0 %v3937
  %4172 = vmatpush1.msra.mxu0 %v3936
  %4173 = vmatprep.subr.mxu0 %v3931
  %4174 = vmatpush1.msra.mxu0 %v3930
  %4175 = vmatprep.subr.mxu0 %v3925
  %4176 = vmatpush1.msra.mxu0 %v3924
  %4177 = vmatprep.subr.mxu0 %v3919
  %4178 = vmatpush1.msra.mxu0 %v3918
  %4179 = vmatprep.subr.mxu0 %v3913
  %4180 = vmatpush1.msra.mxu0 %v3912
  %4181 = vmatprep.subr.mxu0 %v3907
  %4182 = vmatpush1.msra.mxu0 %v3906
  %4183 = vmatprep.subr.mxu0 %v3901
  %4184 = vmatpush1.msra.mxu0 %v3900
  %4185 = vmatprep.subr.mxu0 %v3895
  %4186 = vmatpush1.msra.mxu0 %v3894
  %4187 = vmatprep.subr.mxu0 %v3889
  %4188 = vmatpush1.msra.mxu0 %v3888
  %4189 = vmatprep.subr.mxu0 0.0
  %4190 = vmatpush2.msra.mxu0 0.0
  %4191 = vmatprep.subr.mxu0 0.0
  %4192 = vmatpush2.msra.mxu0 0.0
  %4193 = vmatprep.subr.mxu0 0.0
  %4194 = vmatpush2.msra.mxu0 0.0
  %4195 = vmatprep.subr.mxu0 0.0
  %4196 = vmatpush2.msra.mxu0 0.0
  %4197 = vmatprep.subr.mxu0 0.0
  %4198 = vmatpush2.msra.mxu0 0.0
  %4199 = vmatprep.subr.mxu0 0.0
  %4200 = vmatpush2.msra.mxu0 0.0
  %4201 = vmatprep.subr.mxu0 0.0
  %4202 = vmatpush2.msra.mxu0 0.0
  %4203 = vmatprep.subr.mxu0 0.0
  %4204 = vmatpush2.msra.mxu0 0.0
  %4205 = vmatprep.subr.mxu0 0.0
  %4206 = vmatpush2.msra.mxu0 0.0
  %4207 = vmatprep.subr.mxu0 0.0
  %4208 = vmatpush2.msra.mxu0 0.0
  %4209 = vmatprep.subr.mxu0 0.0
  %4210 = vmatpush2.msra.mxu0 0.0
  %4211 = vmatprep.subr.mxu0 0.0
  %4212 = vmatpush2.msra.mxu0 0.0
  %4213 = vmatprep.subr.mxu0 0.0
  %4214 = vmatpush2.msra.mxu0 0.0
  %4215 = vmatprep.subr.mxu0 0.0
  %4216 = vmatpush2.msra.mxu0 0.0
  %4217 = vmatprep.subr.mxu0 0.0
  %4218 = vmatpush2.msra.mxu0 0.0
  %4219 = vmatprep.subr.mxu0 0.0
  %4220 = vmatpush2.msra.mxu0 0.0
  %4221 = vmatprep.mubr.f32.mxu0 0.0
  %4222 = vmatmul.mubr.f32.gmra.mxu0 %v4013
  %v4223 = vpop.f32.mrf.mxu0
  %v4224 = vadd.f32 %v4002, %v4223
  %v4225 = vpop.f32.mrf.mxu0
  %v4226 = vadd.f32 %v4006, %v4225
  %4227 = vdwg.mxu0
  %v4234 = vcombine.low %v4082, %v4084
  %v4235 = vcombine.low %v4153, %v4155
  %v4237 = vunpack.c.l.s4 1983009808
  %v4238 = vunpack.c.0.s8 %v4237
  %v4239 = vlaneseq
  %v4240 = vshrl.u32 %v4239, 7
  %v4241 = vsub.s32 %v4238, %v4240
  %v4242 = vrot.slane %v4234, %v4241
  %v4244 = vunpack.c.l.s4 1983009808
  %v4245 = vunpack.c.0.s8 %v4244
  %v4246 = vlaneseq
  %v4247 = vshrl.u32 %v4246, 7
  %v4248 = vsub.s32 %v4245, %v4247
  %v4249 = vrot.slane %v4235, %v4248
  %v4250 = vcombine.low %v4242, %v4249
  %v4251 = vcombine.low %v4224, %v4226
  %v4253 = vunpack.c.l.s4 1983009808
  %v4254 = vunpack.c.0.s8 %v4253
  %v4255 = vlaneseq
  %v4256 = vshrl.u32 %v4255, 7
  %v4257 = vsub.s32 %v4254, %v4256
  %v4258 = vrot.slane %v4251, %v4257
  %s4261 = scalar_lea.vmem %s9, 84
  %4262 = vst [vmem:[%s4261] sm:$0xff] %v4250
  %4263 = vst [vmem:[%s4261 + $0x8] sm:$0xf] %v4258
  // Predicated region
  $region34: #{mgn_forward.11} parent=0 // pred_check
    _
  $region35: #{mgn_forward.11} parent=0 // pred_check_branch
    %4265 = sbr.rel (0) target = $region37
  $region36: #{mgn_forward.11} parent=0 // pred_region
    _
  $region37: #{mgn_forward.11} parent=0 // pred_fallthru
    _
  // Predicated region
  $region38: #{mgn_forward.11} parent=0 // pred_check
    _
  $region39: #{mgn_forward.11} parent=0 // pred_check_branch
    %4267 = sbr.rel (0) target = $region41
  $region40: #{mgn_forward.11} parent=0 // pred_region
    _
  $region41: #{mgn_forward.11} parent=0 // pred_fallthru
    _
  // Predicated region
  $region42: #{mgn_forward.11} parent=0 // pred_check
    _
  $region43: #{mgn_forward.11} parent=0 // pred_check_branch
    %4269 = sbr.rel (0) target = $region45
  $region44: #{mgn_forward.11} parent=0 // pred_region
    _
  $region45: #{mgn_forward.11} parent=0 // pred_fallthru
    _
  // Predicated region
  $region46: #{mgn_forward.11} parent=0 // pred_check
    _
  $region47: #{mgn_forward.11} parent=0 // pred_check_branch
    %4271 = sbr.rel (0) target = $region49
  $region48: #{mgn_forward.11} parent=0 // pred_region
    _
  $region49: #{mgn_forward.11} parent=0 // pred_fallthru
    _

</llo_original>
